<compile_context>
chip_gen: v7x
topology: tpu7x:2x2x1
jax: 0.10.0
libtpu: 0.0.40
codegen_flags: <defaults>
</compile_context>

<pallas_src>
import numpy as np
import jax
import jax.numpy as jnp
from jax.experimental import pallas as pl
from jax.experimental.pallas import tpu as pltpu

# ------------------------------- sizes --------------------------------------
_H, _W = 28, 28
_OH1, _OW1 = 24, 24            # conv1 valid output
_PH, _PW = 12, 12              # after 2x2/2 max-pool
_OH2, _OW2 = 10, 10            # conv2 valid output
_XPAD = 800                    # 784 input pixels padded so all tap slices fit
_C1WIDE = _OH1 * _W            # 672 : conv1 "wide" output (24 rows x 28 cols)
_POOLW = 160                   # 144 pooled pixels padded to 160
_C2WIDE = _OH2 * _PW           # 120 : conv2 "wide" output (10 rows x 12 cols)
_FC1_IN = 20 * _C2WIDE         # 2400 wide features (garbage cols -> 0 weights)
_FC1_OUT = 512                 # 500 padded to 512 lanes
_NCLS = 128                    # 10 classes padded to 128 lanes


# ------------------------------ Pallas kernel -------------------------------

def _digit_kernel(x_ref, w1_ref, b1_ref, s4_ref, w2_ref, b2_ref,
                  fc1w_ref, fc1b_ref, fc2w_ref, fc2b_ref, out_ref):
    f32 = jnp.float32
    x = x_ref[0]                                            # (1, 800)

    # ---- conv1 5x5 (Cin=1 -> Cout=10) + bias + ReLU (VPU tap FMAs) ---------
    # acc1[co, p], p = i*28 + j ; columns j in 24..27 are don't-care.
    acc1 = jnp.zeros((10, _C1WIDE), f32)
    for ki in range(5):
        for kj in range(5):
            t = ki * 5 + kj
            off = ki * _W + kj
            xs = x[:, off:off + _C1WIDE]                    # (1, 672)
            acc1 = acc1 + w1_ref[:, t:t + 1] * xs           # (10,1)*(1,672)
    y1 = jnp.maximum(acc1 + b1_ref[...], 0.0)               # (10, 672)

    # ---- maxpool 2x2/2 : 4 phase-selection matmuls (MXU) + max -------------
    pooled = jnp.dot(y1, s4_ref[0], preferred_element_type=f32)
    for k in range(1, 4):
        pooled = jnp.maximum(
            pooled, jnp.dot(y1, s4_ref[k], preferred_element_type=f32))
    # pooled: (10, 160); cols 0..143 hold the 12x12 map, 144.. are zero.

    # ---- conv2 3x3 (Cin=10 -> Cout=20) + bias + ReLU (9 tap matmuls) -------
    acc2 = jnp.zeros((20, _C2WIDE), f32)
    for ki in range(3):
        for kj in range(3):
            t = ki * 3 + kj
            w2t = w2_ref[:, t * 10:(t + 1) * 10]            # (20, 10)
            ps = pooled[:, ki * _PW + kj: ki * _PW + kj + _C2WIDE]  # (10, 120)
            acc2 = acc2 + jnp.dot(w2t, ps, preferred_element_type=f32)
    y2 = jnp.maximum(acc2 + b2_ref[...], 0.0)               # (20, 120)

    # ---- fc1 + ReLU : contraction over (channel, pixel) as 20 row-blocks ---
    h = fc1b_ref[...]                                       # (1, 512)
    for co in range(20):
        h = h + jnp.dot(y2[co:co + 1, :],
                        fc1w_ref[co * _C2WIDE:(co + 1) * _C2WIDE, :],
                        preferred_element_type=f32)
    h = jnp.maximum(h, 0.0)

    # ---- fc2 + log_softmax over 128 padded classes (pad bias = -1e30) ------
    z = jnp.dot(h, fc2w_ref[...], preferred_element_type=f32) + fc2b_ref[...]
    m = jnp.max(z, axis=-1, keepdims=True)
    lse = jnp.log(jnp.sum(jnp.exp(z - m), axis=-1, keepdims=True)) + m
    out_ref[0] = z - lse                                    # (1, 128)


# --------------------------- constants / weight prep ------------------------

def _pool_selectors():
    """4 x (672, 160) one-hot matrices: phase (di,dj) of the 2x2/2 max pool."""
    s = np.zeros((4, _C1WIDE, _POOLW), np.float32)
    for di in range(2):
        for dj in range(2):
            k = di * 2 + dj
            for a in range(_PH):
                for b in range(_PW):
                    p = (2 * a + di) * _W + (2 * b + dj)
                    s[k, p, a * _PW + b] = 1.0
    return jnp.asarray(s)


_S4 = _pool_selectors()


def prepare_params(params):
    """One-time layout transforms of the PyTorch-layout parameters."""
    f32 = jnp.float32
    w1 = params["conv1_w"].astype(f32).reshape(10, 25)            # (Cout, kh*kw)
    b1 = params["conv1_b"].astype(f32).reshape(10, 1)
    # conv2 weights -> (Cout, tap*Cin), tap = ki*3 + kj
    w2 = jnp.transpose(params["conv2_w"].astype(f32), (0, 2, 3, 1)).reshape(20, 90)
    b2 = params["conv2_b"].astype(f32).reshape(20, 1)
    # fc1 [2000, 500] (feature order C,H,W) -> wide/padded [2400, 512]
    fc1w = params["fc1_w"].astype(f32).reshape(20, _OH2, _OW2, 500)
    fc1w = jnp.pad(fc1w, ((0, 0), (0, 0), (0, _PW - _OW2), (0, 0)))
    fc1w = jnp.pad(fc1w.reshape(_FC1_IN, 500), ((0, 0), (0, _FC1_OUT - 500)))
    fc1b = jnp.pad(params["fc1_b"].astype(f32),
                   (0, _FC1_OUT - 500)).reshape(1, _FC1_OUT)
    # fc2 [500, 10] -> [512, 128]; padded class bias = -1e30 (exact log_softmax)
    fc2w = jnp.pad(params["fc2_w"].astype(f32),
                   ((0, _FC1_OUT - 500), (0, _NCLS - 10)))
    fc2b = jnp.concatenate(
        [params["fc2_b"].astype(f32),
         jnp.full((_NCLS - 10,), -1e30, f32)]).reshape(1, _NCLS)
    return dict(w1=w1, b1=b1, s4=_S4, w2=w2, b2=b2,
                fc1w=fc1w, fc1b=fc1b, fc2w=fc2w, fc2b=fc2b)


# ------------------------------- forward ------------------------------------

def _whole(*shape):
    rank = len(shape)
    return pl.BlockSpec(shape, lambda i, _r=rank: (0,) * _r)


@jax.jit
def digit_pallas_forward(x, params):
    """x: [N, 1, 28, 28] float32 -> log-probs [N, 10] (one fused Pallas call)."""
    assert x.shape[1:] == (1, _H, _W)
    p = prepare_params(params)
    n = x.shape[0]
    x2 = jnp.pad(x.astype(jnp.float32).reshape(n, 1, _H * _W),
                 ((0, 0), (0, 0), (0, _XPAD - _H * _W)))

    out = pl.pallas_call(
        _digit_kernel,
        out_shape=jax.ShapeDtypeStruct((n, 1, _NCLS), jnp.float32),
        grid=(n,),
        in_specs=[
            pl.BlockSpec((1, 1, _XPAD), lambda i: (i, 0, 0)),   # per-sample x
            _whole(10, 25), _whole(10, 1),                      # conv1 w, b
            _whole(4, _C1WIDE, _POOLW),                         # pool selectors
            _whole(20, 90), _whole(20, 1),                      # conv2 w, b
            _whole(_FC1_IN, _FC1_OUT), _whole(1, _FC1_OUT),     # fc1 w, b
            _whole(_FC1_OUT, _NCLS), _whole(1, _NCLS),          # fc2 w, b
        ],
        out_specs=pl.BlockSpec((1, 1, _NCLS), lambda i: (i, 0, 0)),
        compiler_params=pltpu.CompilerParams(
            dimension_semantics=("parallel",),
            vmem_limit_bytes=40 * 1024 * 1024),
    )(x2, p["w1"], p["b1"], p["s4"], p["w2"], p["b2"],
      p["fc1w"], p["fc1b"], p["fc2w"], p["fc2b"])
    return out.reshape(n, _NCLS)[:, :10]


# --------------------------- params & pure-JAX reference --------------------

def init_params(key):
    ks = jax.random.split(key, 8)

    def uni(k, shape, fan_in):
        bound = 1.0 / jnp.sqrt(jnp.float32(fan_in))
        return jax.random.uniform(k, shape, jnp.float32, -bound, bound)

    return dict(
        conv1_w=uni(ks[0], (10, 1, 5, 5), 1 * 5 * 5),
        conv1_b=uni(ks[1], (10,), 1 * 5 * 5),
        conv2_w=uni(ks[2], (20, 10, 3, 3), 10 * 3 * 3),
        conv2_b=uni(ks[3], (20,), 10 * 3 * 3),
        fc1_w=uni(ks[4], (20 * 10 * 10, 500), 20 * 10 * 10),   # stored [in, out]
        fc1_b=uni(ks[5], (500,), 20 * 10 * 10),
        fc2_w=uni(ks[6], (500, 10), 500),
        fc2_b=uni(ks[7], (10,), 500),
    )


def _im2col(x, kh, kw):
    """x: [N, C, H, W] -> patches [N*oh*ow, C*kh*kw], (C, kh, kw) order."""
    N, C, H, W = x.shape
    oh, ow = H - kh + 1, W - kw + 1
    cols = []
    for ci in range(C):
        for ki in range(kh):
            for kj in range(kw):
                cols.append(x[:, ci, ki:ki + oh, kj:kj + ow])
    patches = jnp.stack(cols, axis=-1)
    return patches.reshape(N * oh * ow, C * kh * kw), (N, oh, ow)


def ref_forward(x, params):
    hi = jax.lax.Precision.HIGHEST

    def conv_relu(x, w, b):
        Cout, Cin, kh, kw = w.shape
        patches, (N, oh, ow) = _im2col(x, kh, kw)
        y = jnp.dot(patches, w.reshape(Cout, -1).T, precision=hi) + b
        y = jnp.maximum(y, 0.0)
        return y.reshape(N, oh, ow, Cout).transpose(0, 3, 1, 2)

    x = conv_relu(x, params["conv1_w"], params["conv1_b"])
    N, C, H, W = x.shape
    x = x.reshape(N, C, H // 2, 2, W // 2, 2).max(axis=(3, 5))
    x = conv_relu(x, params["conv2_w"], params["conv2_b"])
    x = x.reshape(N, -1)
    x = jnp.maximum(jnp.dot(x, params["fc1_w"], precision=hi) + params["fc1_b"], 0.0)
    z = jnp.dot(x, params["fc2_w"], precision=hi) + params["fc2_b"]
    return z - jax.scipy.special.logsumexp(z, axis=1, keepdims=True)


# --------------------------------- main --------------------------------------

if __name__ == "__main__":
    key = jax.random.PRNGKey(0)
    k_x, k_p = jax.random.split(key)
    # fc1 expects 20*10*10 features -> input spatial must be 28x28 (MNIST-like)
    x = jax.random.normal(k_x, (2, 1, 28, 28), dtype=jnp.float32)
    params = init_params(k_p)

    out = jax.block_until_ready(digit_pallas_forward(x, params))
    assert out.shape == (2, 10) and out.dtype == jnp.float32

    ref = jax.block_until_ready(ref_forward(x, params))
    assert bool(jnp.all(jnp.isfinite(out)))
    assert bool(jnp.allclose(out, ref, rtol=5e-3, atol=5e-3))

    print("KERNEL_OK")
</pallas_src>

<mosaic_0001>
module attributes {stable_mosaic.version = 11 : i64} {
  func.func @_digit_kernel(%arg0: i32, %arg1: memref<1x1x800xf32, #tpu.memory_space<vmem>>, %arg2: memref<10x25xf32, #tpu.memory_space<vmem>>, %arg3: memref<10x1xf32, #tpu.memory_space<vmem>>, %arg4: memref<4x672x160xf32, #tpu.memory_space<vmem>>, %arg5: memref<20x90xf32, #tpu.memory_space<vmem>>, %arg6: memref<20x1xf32, #tpu.memory_space<vmem>>, %arg7: memref<2400x512xf32, #tpu.memory_space<vmem>>, %arg8: memref<1x512xf32, #tpu.memory_space<vmem>>, %arg9: memref<512x128xf32, #tpu.memory_space<vmem>>, %arg10: memref<1x128xf32, #tpu.memory_space<vmem>>, %arg11: memref<1x1x128xf32, #tpu.memory_space<vmem>>) attributes {dimension_semantics = [#tpu.dimension_semantics<parallel>], iteration_bounds = array<i64: 2>, scalar_prefetch = 0 : i64, scratch_operands = 0 : i64, tpu.core_type = #tpu.core_type<tc>, window_params = [{transform_indices = @transform_0, window_bounds = array<i64: 1, 1, 800>}, {pipeline_mode = #tpu.pipeline_mode<synchronous>, transform_indices = @transform_1, window_bounds = array<i64: 10, 25>}, {pipeline_mode = #tpu.pipeline_mode<synchronous>, transform_indices = @transform_2, window_bounds = array<i64: 10, 1>}, {pipeline_mode = #tpu.pipeline_mode<synchronous>, transform_indices = @transform_3, window_bounds = array<i64: 4, 672, 160>}, {pipeline_mode = #tpu.pipeline_mode<synchronous>, transform_indices = @transform_4, window_bounds = array<i64: 20, 90>}, {pipeline_mode = #tpu.pipeline_mode<synchronous>, transform_indices = @transform_5, window_bounds = array<i64: 20, 1>}, {pipeline_mode = #tpu.pipeline_mode<synchronous>, transform_indices = @transform_6, window_bounds = array<i64: 2400, 512>}, {pipeline_mode = #tpu.pipeline_mode<synchronous>, transform_indices = @transform_7, window_bounds = array<i64: 1, 512>}, {pipeline_mode = #tpu.pipeline_mode<synchronous>, transform_indices = @transform_8, window_bounds = array<i64: 512, 128>}, {pipeline_mode = #tpu.pipeline_mode<synchronous>, transform_indices = @transform_9, window_bounds = array<i64: 1, 128>}, {transform_indices = @transform_10, window_bounds = array<i64: 1, 1, 128>}]} {
    %c0 = arith.constant 0 : index
    %c0_0 = arith.constant 0 : index
    %c0_1 = arith.constant 0 : index
    %0 = vector.load %arg1[%c0, %c0_0, %c0_1] : memref<1x1x800xf32, #tpu.memory_space<vmem>>, vector<1x1x800xf32>
    %1 = vector.shape_cast %0 : vector<1x1x800xf32> to vector<1x800xf32>
    %cst = arith.constant 0.000000e+00 : f32
    %2 = vector.broadcast %cst : f32 to vector<10x672xf32>
    %3 = vector.extract_strided_slice %1 {offsets = [0, 0], sizes = [1, 672], strides = [1, 1]} : vector<1x800xf32> to vector<1x672xf32>
    %c0_2 = arith.constant 0 : index
    %c0_3 = arith.constant 0 : index
    %4 = vector.load %arg2[%c0_2, %c0_3] : memref<10x25xf32, #tpu.memory_space<vmem>>, vector<10x1xf32>
    %5 = vector.broadcast %4 : vector<10x1xf32> to vector<10x672xf32>
    %6 = vector.broadcast %3 : vector<1x672xf32> to vector<10x672xf32>
    %7 = arith.mulf %5, %6 : vector<10x672xf32>
    %8 = arith.addf %2, %7 : vector<10x672xf32>
    %9 = vector.extract_strided_slice %1 {offsets = [0, 1], sizes = [1, 672], strides = [1, 1]} : vector<1x800xf32> to vector<1x672xf32>
    %c0_4 = arith.constant 0 : index
    %c1 = arith.constant 1 : index
    %10 = vector.load %arg2[%c0_4, %c1] : memref<10x25xf32, #tpu.memory_space<vmem>>, vector<10x1xf32>
    %11 = vector.broadcast %10 : vector<10x1xf32> to vector<10x672xf32>
    %12 = vector.broadcast %9 : vector<1x672xf32> to vector<10x672xf32>
    %13 = arith.mulf %11, %12 : vector<10x672xf32>
    %14 = arith.addf %8, %13 : vector<10x672xf32>
    %15 = vector.extract_strided_slice %1 {offsets = [0, 2], sizes = [1, 672], strides = [1, 1]} : vector<1x800xf32> to vector<1x672xf32>
    %c0_5 = arith.constant 0 : index
    %c2 = arith.constant 2 : index
    %16 = vector.load %arg2[%c0_5, %c2] : memref<10x25xf32, #tpu.memory_space<vmem>>, vector<10x1xf32>
    %17 = vector.broadcast %16 : vector<10x1xf32> to vector<10x672xf32>
    %18 = vector.broadcast %15 : vector<1x672xf32> to vector<10x672xf32>
    %19 = arith.mulf %17, %18 : vector<10x672xf32>
    %20 = arith.addf %14, %19 : vector<10x672xf32>
    %21 = vector.extract_strided_slice %1 {offsets = [0, 3], sizes = [1, 672], strides = [1, 1]} : vector<1x800xf32> to vector<1x672xf32>
    %c0_6 = arith.constant 0 : index
    %c3 = arith.constant 3 : index
    %22 = vector.load %arg2[%c0_6, %c3] : memref<10x25xf32, #tpu.memory_space<vmem>>, vector<10x1xf32>
    %23 = vector.broadcast %22 : vector<10x1xf32> to vector<10x672xf32>
    %24 = vector.broadcast %21 : vector<1x672xf32> to vector<10x672xf32>
    %25 = arith.mulf %23, %24 : vector<10x672xf32>
    %26 = arith.addf %20, %25 : vector<10x672xf32>
    %27 = vector.extract_strided_slice %1 {offsets = [0, 4], sizes = [1, 672], strides = [1, 1]} : vector<1x800xf32> to vector<1x672xf32>
    %c0_7 = arith.constant 0 : index
    %c4 = arith.constant 4 : index
    %28 = vector.load %arg2[%c0_7, %c4] : memref<10x25xf32, #tpu.memory_space<vmem>>, vector<10x1xf32>
    %29 = vector.broadcast %28 : vector<10x1xf32> to vector<10x672xf32>
    %30 = vector.broadcast %27 : vector<1x672xf32> to vector<10x672xf32>
    %31 = arith.mulf %29, %30 : vector<10x672xf32>
    %32 = arith.addf %26, %31 : vector<10x672xf32>
    %33 = vector.extract_strided_slice %1 {offsets = [0, 28], sizes = [1, 672], strides = [1, 1]} : vector<1x800xf32> to vector<1x672xf32>
    %c0_8 = arith.constant 0 : index
    %c5 = arith.constant 5 : index
    %34 = vector.load %arg2[%c0_8, %c5] : memref<10x25xf32, #tpu.memory_space<vmem>>, vector<10x1xf32>
    %35 = vector.broadcast %34 : vector<10x1xf32> to vector<10x672xf32>
    %36 = vector.broadcast %33 : vector<1x672xf32> to vector<10x672xf32>
    %37 = arith.mulf %35, %36 : vector<10x672xf32>
    %38 = arith.addf %32, %37 : vector<10x672xf32>
    %39 = vector.extract_strided_slice %1 {offsets = [0, 29], sizes = [1, 672], strides = [1, 1]} : vector<1x800xf32> to vector<1x672xf32>
    %c0_9 = arith.constant 0 : index
    %c6 = arith.constant 6 : index
    %40 = vector.load %arg2[%c0_9, %c6] : memref<10x25xf32, #tpu.memory_space<vmem>>, vector<10x1xf32>
    %41 = vector.broadcast %40 : vector<10x1xf32> to vector<10x672xf32>
    %42 = vector.broadcast %39 : vector<1x672xf32> to vector<10x672xf32>
    %43 = arith.mulf %41, %42 : vector<10x672xf32>
    %44 = arith.addf %38, %43 : vector<10x672xf32>
    %45 = vector.extract_strided_slice %1 {offsets = [0, 30], sizes = [1, 672], strides = [1, 1]} : vector<1x800xf32> to vector<1x672xf32>
    %c0_10 = arith.constant 0 : index
    %c7 = arith.constant 7 : index
    %46 = vector.load %arg2[%c0_10, %c7] : memref<10x25xf32, #tpu.memory_space<vmem>>, vector<10x1xf32>
    %47 = vector.broadcast %46 : vector<10x1xf32> to vector<10x672xf32>
    %48 = vector.broadcast %45 : vector<1x672xf32> to vector<10x672xf32>
    %49 = arith.mulf %47, %48 : vector<10x672xf32>
    %50 = arith.addf %44, %49 : vector<10x672xf32>
    %51 = vector.extract_strided_slice %1 {offsets = [0, 31], sizes = [1, 672], strides = [1, 1]} : vector<1x800xf32> to vector<1x672xf32>
    %c0_11 = arith.constant 0 : index
    %c8 = arith.constant 8 : index
    %52 = vector.load %arg2[%c0_11, %c8] : memref<10x25xf32, #tpu.memory_space<vmem>>, vector<10x1xf32>
    %53 = vector.broadcast %52 : vector<10x1xf32> to vector<10x672xf32>
    %54 = vector.broadcast %51 : vector<1x672xf32> to vector<10x672xf32>
    %55 = arith.mulf %53, %54 : vector<10x672xf32>
    %56 = arith.addf %50, %55 : vector<10x672xf32>
    %57 = vector.extract_strided_slice %1 {offsets = [0, 32], sizes = [1, 672], strides = [1, 1]} : vector<1x800xf32> to vector<1x672xf32>
    %c0_12 = arith.constant 0 : index
    %c9 = arith.constant 9 : index
    %58 = vector.load %arg2[%c0_12, %c9] : memref<10x25xf32, #tpu.memory_space<vmem>>, vector<10x1xf32>
    %59 = vector.broadcast %58 : vector<10x1xf32> to vector<10x672xf32>
    %60 = vector.broadcast %57 : vector<1x672xf32> to vector<10x672xf32>
    %61 = arith.mulf %59, %60 : vector<10x672xf32>
    %62 = arith.addf %56, %61 : vector<10x672xf32>
    %63 = vector.extract_strided_slice %1 {offsets = [0, 56], sizes = [1, 672], strides = [1, 1]} : vector<1x800xf32> to vector<1x672xf32>
    %c0_13 = arith.constant 0 : index
    %c10 = arith.constant 10 : index
    %64 = vector.load %arg2[%c0_13, %c10] : memref<10x25xf32, #tpu.memory_space<vmem>>, vector<10x1xf32>
    %65 = vector.broadcast %64 : vector<10x1xf32> to vector<10x672xf32>
    %66 = vector.broadcast %63 : vector<1x672xf32> to vector<10x672xf32>
    %67 = arith.mulf %65, %66 : vector<10x672xf32>
    %68 = arith.addf %62, %67 : vector<10x672xf32>
    %69 = vector.extract_strided_slice %1 {offsets = [0, 57], sizes = [1, 672], strides = [1, 1]} : vector<1x800xf32> to vector<1x672xf32>
    %c0_14 = arith.constant 0 : index
    %c11 = arith.constant 11 : index
    %70 = vector.load %arg2[%c0_14, %c11] : memref<10x25xf32, #tpu.memory_space<vmem>>, vector<10x1xf32>
    %71 = vector.broadcast %70 : vector<10x1xf32> to vector<10x672xf32>
    %72 = vector.broadcast %69 : vector<1x672xf32> to vector<10x672xf32>
    %73 = arith.mulf %71, %72 : vector<10x672xf32>
    %74 = arith.addf %68, %73 : vector<10x672xf32>
    %75 = vector.extract_strided_slice %1 {offsets = [0, 58], sizes = [1, 672], strides = [1, 1]} : vector<1x800xf32> to vector<1x672xf32>
    %c0_15 = arith.constant 0 : index
    %c12 = arith.constant 12 : index
    %76 = vector.load %arg2[%c0_15, %c12] : memref<10x25xf32, #tpu.memory_space<vmem>>, vector<10x1xf32>
    %77 = vector.broadcast %76 : vector<10x1xf32> to vector<10x672xf32>
    %78 = vector.broadcast %75 : vector<1x672xf32> to vector<10x672xf32>
    %79 = arith.mulf %77, %78 : vector<10x672xf32>
    %80 = arith.addf %74, %79 : vector<10x672xf32>
    %81 = vector.extract_strided_slice %1 {offsets = [0, 59], sizes = [1, 672], strides = [1, 1]} : vector<1x800xf32> to vector<1x672xf32>
    %c0_16 = arith.constant 0 : index
    %c13 = arith.constant 13 : index
    %82 = vector.load %arg2[%c0_16, %c13] : memref<10x25xf32, #tpu.memory_space<vmem>>, vector<10x1xf32>
    %83 = vector.broadcast %82 : vector<10x1xf32> to vector<10x672xf32>
    %84 = vector.broadcast %81 : vector<1x672xf32> to vector<10x672xf32>
    %85 = arith.mulf %83, %84 : vector<10x672xf32>
    %86 = arith.addf %80, %85 : vector<10x672xf32>
    %87 = vector.extract_strided_slice %1 {offsets = [0, 60], sizes = [1, 672], strides = [1, 1]} : vector<1x800xf32> to vector<1x672xf32>
    %c0_17 = arith.constant 0 : index
    %c14 = arith.constant 14 : index
    %88 = vector.load %arg2[%c0_17, %c14] : memref<10x25xf32, #tpu.memory_space<vmem>>, vector<10x1xf32>
    %89 = vector.broadcast %88 : vector<10x1xf32> to vector<10x672xf32>
    %90 = vector.broadcast %87 : vector<1x672xf32> to vector<10x672xf32>
    %91 = arith.mulf %89, %90 : vector<10x672xf32>
    %92 = arith.addf %86, %91 : vector<10x672xf32>
    %93 = vector.extract_strided_slice %1 {offsets = [0, 84], sizes = [1, 672], strides = [1, 1]} : vector<1x800xf32> to vector<1x672xf32>
    %c0_18 = arith.constant 0 : index
    %c15 = arith.constant 15 : index
    %94 = vector.load %arg2[%c0_18, %c15] : memref<10x25xf32, #tpu.memory_space<vmem>>, vector<10x1xf32>
    %95 = vector.broadcast %94 : vector<10x1xf32> to vector<10x672xf32>
    %96 = vector.broadcast %93 : vector<1x672xf32> to vector<10x672xf32>
    %97 = arith.mulf %95, %96 : vector<10x672xf32>
    %98 = arith.addf %92, %97 : vector<10x672xf32>
    %99 = vector.extract_strided_slice %1 {offsets = [0, 85], sizes = [1, 672], strides = [1, 1]} : vector<1x800xf32> to vector<1x672xf32>
    %c0_19 = arith.constant 0 : index
    %c16 = arith.constant 16 : index
    %100 = vector.load %arg2[%c0_19, %c16] : memref<10x25xf32, #tpu.memory_space<vmem>>, vector<10x1xf32>
    %101 = vector.broadcast %100 : vector<10x1xf32> to vector<10x672xf32>
    %102 = vector.broadcast %99 : vector<1x672xf32> to vector<10x672xf32>
    %103 = arith.mulf %101, %102 : vector<10x672xf32>
    %104 = arith.addf %98, %103 : vector<10x672xf32>
    %105 = vector.extract_strided_slice %1 {offsets = [0, 86], sizes = [1, 672], strides = [1, 1]} : vector<1x800xf32> to vector<1x672xf32>
    %c0_20 = arith.constant 0 : index
    %c17 = arith.constant 17 : index
    %106 = vector.load %arg2[%c0_20, %c17] : memref<10x25xf32, #tpu.memory_space<vmem>>, vector<10x1xf32>
    %107 = vector.broadcast %106 : vector<10x1xf32> to vector<10x672xf32>
    %108 = vector.broadcast %105 : vector<1x672xf32> to vector<10x672xf32>
    %109 = arith.mulf %107, %108 : vector<10x672xf32>
    %110 = arith.addf %104, %109 : vector<10x672xf32>
    %111 = vector.extract_strided_slice %1 {offsets = [0, 87], sizes = [1, 672], strides = [1, 1]} : vector<1x800xf32> to vector<1x672xf32>
    %c0_21 = arith.constant 0 : index
    %c18 = arith.constant 18 : index
    %112 = vector.load %arg2[%c0_21, %c18] : memref<10x25xf32, #tpu.memory_space<vmem>>, vector<10x1xf32>
    %113 = vector.broadcast %112 : vector<10x1xf32> to vector<10x672xf32>
    %114 = vector.broadcast %111 : vector<1x672xf32> to vector<10x672xf32>
    %115 = arith.mulf %113, %114 : vector<10x672xf32>
    %116 = arith.addf %110, %115 : vector<10x672xf32>
    %117 = vector.extract_strided_slice %1 {offsets = [0, 88], sizes = [1, 672], strides = [1, 1]} : vector<1x800xf32> to vector<1x672xf32>
    %c0_22 = arith.constant 0 : index
    %c19 = arith.constant 19 : index
    %118 = vector.load %arg2[%c0_22, %c19] : memref<10x25xf32, #tpu.memory_space<vmem>>, vector<10x1xf32>
    %119 = vector.broadcast %118 : vector<10x1xf32> to vector<10x672xf32>
    %120 = vector.broadcast %117 : vector<1x672xf32> to vector<10x672xf32>
    %121 = arith.mulf %119, %120 : vector<10x672xf32>
    %122 = arith.addf %116, %121 : vector<10x672xf32>
    %123 = vector.extract_strided_slice %1 {offsets = [0, 112], sizes = [1, 672], strides = [1, 1]} : vector<1x800xf32> to vector<1x672xf32>
    %c0_23 = arith.constant 0 : index
    %c20 = arith.constant 20 : index
    %124 = vector.load %arg2[%c0_23, %c20] : memref<10x25xf32, #tpu.memory_space<vmem>>, vector<10x1xf32>
    %125 = vector.broadcast %124 : vector<10x1xf32> to vector<10x672xf32>
    %126 = vector.broadcast %123 : vector<1x672xf32> to vector<10x672xf32>
    %127 = arith.mulf %125, %126 : vector<10x672xf32>
    %128 = arith.addf %122, %127 : vector<10x672xf32>
    %129 = vector.extract_strided_slice %1 {offsets = [0, 113], sizes = [1, 672], strides = [1, 1]} : vector<1x800xf32> to vector<1x672xf32>
    %c0_24 = arith.constant 0 : index
    %c21 = arith.constant 21 : index
    %130 = vector.load %arg2[%c0_24, %c21] : memref<10x25xf32, #tpu.memory_space<vmem>>, vector<10x1xf32>
    %131 = vector.broadcast %130 : vector<10x1xf32> to vector<10x672xf32>
    %132 = vector.broadcast %129 : vector<1x672xf32> to vector<10x672xf32>
    %133 = arith.mulf %131, %132 : vector<10x672xf32>
    %134 = arith.addf %128, %133 : vector<10x672xf32>
    %135 = vector.extract_strided_slice %1 {offsets = [0, 114], sizes = [1, 672], strides = [1, 1]} : vector<1x800xf32> to vector<1x672xf32>
    %c0_25 = arith.constant 0 : index
    %c22 = arith.constant 22 : index
    %136 = vector.load %arg2[%c0_25, %c22] : memref<10x25xf32, #tpu.memory_space<vmem>>, vector<10x1xf32>
    %137 = vector.broadcast %136 : vector<10x1xf32> to vector<10x672xf32>
    %138 = vector.broadcast %135 : vector<1x672xf32> to vector<10x672xf32>
    %139 = arith.mulf %137, %138 : vector<10x672xf32>
    %140 = arith.addf %134, %139 : vector<10x672xf32>
    %141 = vector.extract_strided_slice %1 {offsets = [0, 115], sizes = [1, 672], strides = [1, 1]} : vector<1x800xf32> to vector<1x672xf32>
    %c0_26 = arith.constant 0 : index
    %c23 = arith.constant 23 : index
    %142 = vector.load %arg2[%c0_26, %c23] : memref<10x25xf32, #tpu.memory_space<vmem>>, vector<10x1xf32>
    %143 = vector.broadcast %142 : vector<10x1xf32> to vector<10x672xf32>
    %144 = vector.broadcast %141 : vector<1x672xf32> to vector<10x672xf32>
    %145 = arith.mulf %143, %144 : vector<10x672xf32>
    %146 = arith.addf %140, %145 : vector<10x672xf32>
    %147 = vector.extract_strided_slice %1 {offsets = [0, 116], sizes = [1, 672], strides = [1, 1]} : vector<1x800xf32> to vector<1x672xf32>
    %c0_27 = arith.constant 0 : index
    %c24 = arith.constant 24 : index
    %148 = vector.load %arg2[%c0_27, %c24] : memref<10x25xf32, #tpu.memory_space<vmem>>, vector<10x1xf32>
    %149 = vector.broadcast %148 : vector<10x1xf32> to vector<10x672xf32>
    %150 = vector.broadcast %147 : vector<1x672xf32> to vector<10x672xf32>
    %151 = arith.mulf %149, %150 : vector<10x672xf32>
    %152 = arith.addf %146, %151 : vector<10x672xf32>
    %c0_28 = arith.constant 0 : index
    %c0_29 = arith.constant 0 : index
    %153 = vector.load %arg3[%c0_28, %c0_29] : memref<10x1xf32, #tpu.memory_space<vmem>>, vector<10x1xf32>
    %154 = vector.broadcast %153 : vector<10x1xf32> to vector<10x672xf32>
    %155 = arith.addf %152, %154 : vector<10x672xf32>
    %cst_30 = arith.constant 0.000000e+00 : f32
    %156 = vector.broadcast %cst_30 : f32 to vector<10x672xf32>
    %157 = arith.maximumf %155, %156 : vector<10x672xf32>
    %c0_31 = arith.constant 0 : index
    %c0_32 = arith.constant 0 : index
    %c0_33 = arith.constant 0 : index
    %158 = vector.load %arg4[%c0_31, %c0_32, %c0_33] : memref<4x672x160xf32, #tpu.memory_space<vmem>>, vector<1x672x160xf32>
    %159 = vector.shape_cast %158 : vector<1x672x160xf32> to vector<672x160xf32>
    %cst_34 = arith.constant dense<0.000000e+00> : vector<10x160xf32>
    %160 = tpu.matmul %157, %159, %cst_34 {dimension_numbers = #tpu.dot_dimension_numbers<[1], [0], [0], [1], [0, 0, 1, 1], [], []>} : vector<10x672xf32>, vector<672x160xf32>, vector<10x160xf32> -> vector<10x160xf32>
    %c1_35 = arith.constant 1 : index
    %c0_36 = arith.constant 0 : index
    %c0_37 = arith.constant 0 : index
    %161 = vector.load %arg4[%c1_35, %c0_36, %c0_37] : memref<4x672x160xf32, #tpu.memory_space<vmem>>, vector<1x672x160xf32>
    %162 = vector.shape_cast %161 : vector<1x672x160xf32> to vector<672x160xf32>
    %cst_38 = arith.constant dense<0.000000e+00> : vector<10x160xf32>
    %163 = tpu.matmul %157, %162, %cst_38 {dimension_numbers = #tpu.dot_dimension_numbers<[1], [0], [0], [1], [0, 0, 1, 1], [], []>} : vector<10x672xf32>, vector<672x160xf32>, vector<10x160xf32> -> vector<10x160xf32>
    %164 = arith.maximumf %160, %163 : vector<10x160xf32>
    %c2_39 = arith.constant 2 : index
    %c0_40 = arith.constant 0 : index
    %c0_41 = arith.constant 0 : index
    %165 = vector.load %arg4[%c2_39, %c0_40, %c0_41] : memref<4x672x160xf32, #tpu.memory_space<vmem>>, vector<1x672x160xf32>
    %166 = vector.shape_cast %165 : vector<1x672x160xf32> to vector<672x160xf32>
    %cst_42 = arith.constant dense<0.000000e+00> : vector<10x160xf32>
    %167 = tpu.matmul %157, %166, %cst_42 {dimension_numbers = #tpu.dot_dimension_numbers<[1], [0], [0], [1], [0, 0, 1, 1], [], []>} : vector<10x672xf32>, vector<672x160xf32>, vector<10x160xf32> -> vector<10x160xf32>
    %168 = arith.maximumf %164, %167 : vector<10x160xf32>
    %c3_43 = arith.constant 3 : index
    %c0_44 = arith.constant 0 : index
    %c0_45 = arith.constant 0 : index
    %169 = vector.load %arg4[%c3_43, %c0_44, %c0_45] : memref<4x672x160xf32, #tpu.memory_space<vmem>>, vector<1x672x160xf32>
    %170 = vector.shape_cast %169 : vector<1x672x160xf32> to vector<672x160xf32>
    %cst_46 = arith.constant dense<0.000000e+00> : vector<10x160xf32>
    %171 = tpu.matmul %157, %170, %cst_46 {dimension_numbers = #tpu.dot_dimension_numbers<[1], [0], [0], [1], [0, 0, 1, 1], [], []>} : vector<10x672xf32>, vector<672x160xf32>, vector<10x160xf32> -> vector<10x160xf32>
    %172 = arith.maximumf %168, %171 : vector<10x160xf32>
    %cst_47 = arith.constant 0.000000e+00 : f32
    %173 = vector.broadcast %cst_47 : f32 to vector<20x120xf32>
    %c0_48 = arith.constant 0 : index
    %c0_49 = arith.constant 0 : index
    %174 = vector.load %arg5[%c0_48, %c0_49] : memref<20x90xf32, #tpu.memory_space<vmem>>, vector<20x10xf32>
    %175 = vector.extract_strided_slice %172 {offsets = [0, 0], sizes = [10, 120], strides = [1, 1]} : vector<10x160xf32> to vector<10x120xf32>
    %cst_50 = arith.constant dense<0.000000e+00> : vector<20x120xf32>
    %176 = tpu.matmul %174, %175, %cst_50 {dimension_numbers = #tpu.dot_dimension_numbers<[1], [0], [0], [1], [0, 0, 1, 1], [], []>} : vector<20x10xf32>, vector<10x120xf32>, vector<20x120xf32> -> vector<20x120xf32>
    %177 = arith.addf %173, %176 : vector<20x120xf32>
    %c0_51 = arith.constant 0 : index
    %c10_52 = arith.constant 10 : index
    %178 = vector.load %arg5[%c0_51, %c10_52] : memref<20x90xf32, #tpu.memory_space<vmem>>, vector<20x10xf32>
    %179 = vector.extract_strided_slice %172 {offsets = [0, 1], sizes = [10, 120], strides = [1, 1]} : vector<10x160xf32> to vector<10x120xf32>
    %cst_53 = arith.constant dense<0.000000e+00> : vector<20x120xf32>
    %180 = tpu.matmul %178, %179, %cst_53 {dimension_numbers = #tpu.dot_dimension_numbers<[1], [0], [0], [1], [0, 0, 1, 1], [], []>} : vector<20x10xf32>, vector<10x120xf32>, vector<20x120xf32> -> vector<20x120xf32>
    %181 = arith.addf %177, %180 : vector<20x120xf32>
    %c0_54 = arith.constant 0 : index
    %c20_55 = arith.constant 20 : index
    %182 = vector.load %arg5[%c0_54, %c20_55] : memref<20x90xf32, #tpu.memory_space<vmem>>, vector<20x10xf32>
    %183 = vector.extract_strided_slice %172 {offsets = [0, 2], sizes = [10, 120], strides = [1, 1]} : vector<10x160xf32> to vector<10x120xf32>
    %cst_56 = arith.constant dense<0.000000e+00> : vector<20x120xf32>
    %184 = tpu.matmul %182, %183, %cst_56 {dimension_numbers = #tpu.dot_dimension_numbers<[1], [0], [0], [1], [0, 0, 1, 1], [], []>} : vector<20x10xf32>, vector<10x120xf32>, vector<20x120xf32> -> vector<20x120xf32>
    %185 = arith.addf %181, %184 : vector<20x120xf32>
    %c0_57 = arith.constant 0 : index
    %c30 = arith.constant 30 : index
    %186 = vector.load %arg5[%c0_57, %c30] : memref<20x90xf32, #tpu.memory_space<vmem>>, vector<20x10xf32>
    %187 = vector.extract_strided_slice %172 {offsets = [0, 12], sizes = [10, 120], strides = [1, 1]} : vector<10x160xf32> to vector<10x120xf32>
    %cst_58 = arith.constant dense<0.000000e+00> : vector<20x120xf32>
    %188 = tpu.matmul %186, %187, %cst_58 {dimension_numbers = #tpu.dot_dimension_numbers<[1], [0], [0], [1], [0, 0, 1, 1], [], []>} : vector<20x10xf32>, vector<10x120xf32>, vector<20x120xf32> -> vector<20x120xf32>
    %189 = arith.addf %185, %188 : vector<20x120xf32>
    %c0_59 = arith.constant 0 : index
    %c40 = arith.constant 40 : index
    %190 = vector.load %arg5[%c0_59, %c40] : memref<20x90xf32, #tpu.memory_space<vmem>>, vector<20x10xf32>
    %191 = vector.extract_strided_slice %172 {offsets = [0, 13], sizes = [10, 120], strides = [1, 1]} : vector<10x160xf32> to vector<10x120xf32>
    %cst_60 = arith.constant dense<0.000000e+00> : vector<20x120xf32>
    %192 = tpu.matmul %190, %191, %cst_60 {dimension_numbers = #tpu.dot_dimension_numbers<[1], [0], [0], [1], [0, 0, 1, 1], [], []>} : vector<20x10xf32>, vector<10x120xf32>, vector<20x120xf32> -> vector<20x120xf32>
    %193 = arith.addf %189, %192 : vector<20x120xf32>
    %c0_61 = arith.constant 0 : index
    %c50 = arith.constant 50 : index
    %194 = vector.load %arg5[%c0_61, %c50] : memref<20x90xf32, #tpu.memory_space<vmem>>, vector<20x10xf32>
    %195 = vector.extract_strided_slice %172 {offsets = [0, 14], sizes = [10, 120], strides = [1, 1]} : vector<10x160xf32> to vector<10x120xf32>
    %cst_62 = arith.constant dense<0.000000e+00> : vector<20x120xf32>
    %196 = tpu.matmul %194, %195, %cst_62 {dimension_numbers = #tpu.dot_dimension_numbers<[1], [0], [0], [1], [0, 0, 1, 1], [], []>} : vector<20x10xf32>, vector<10x120xf32>, vector<20x120xf32> -> vector<20x120xf32>
    %197 = arith.addf %193, %196 : vector<20x120xf32>
    %c0_63 = arith.constant 0 : index
    %c60 = arith.constant 60 : index
    %198 = vector.load %arg5[%c0_63, %c60] : memref<20x90xf32, #tpu.memory_space<vmem>>, vector<20x10xf32>
    %199 = vector.extract_strided_slice %172 {offsets = [0, 24], sizes = [10, 120], strides = [1, 1]} : vector<10x160xf32> to vector<10x120xf32>
    %cst_64 = arith.constant dense<0.000000e+00> : vector<20x120xf32>
    %200 = tpu.matmul %198, %199, %cst_64 {dimension_numbers = #tpu.dot_dimension_numbers<[1], [0], [0], [1], [0, 0, 1, 1], [], []>} : vector<20x10xf32>, vector<10x120xf32>, vector<20x120xf32> -> vector<20x120xf32>
    %201 = arith.addf %197, %200 : vector<20x120xf32>
    %c0_65 = arith.constant 0 : index
    %c70 = arith.constant 70 : index
    %202 = vector.load %arg5[%c0_65, %c70] : memref<20x90xf32, #tpu.memory_space<vmem>>, vector<20x10xf32>
    %203 = vector.extract_strided_slice %172 {offsets = [0, 25], sizes = [10, 120], strides = [1, 1]} : vector<10x160xf32> to vector<10x120xf32>
    %cst_66 = arith.constant dense<0.000000e+00> : vector<20x120xf32>
    %204 = tpu.matmul %202, %203, %cst_66 {dimension_numbers = #tpu.dot_dimension_numbers<[1], [0], [0], [1], [0, 0, 1, 1], [], []>} : vector<20x10xf32>, vector<10x120xf32>, vector<20x120xf32> -> vector<20x120xf32>
    %205 = arith.addf %201, %204 : vector<20x120xf32>
    %c0_67 = arith.constant 0 : index
    %c80 = arith.constant 80 : index
    %206 = vector.load %arg5[%c0_67, %c80] : memref<20x90xf32, #tpu.memory_space<vmem>>, vector<20x10xf32>
    %207 = vector.extract_strided_slice %172 {offsets = [0, 26], sizes = [10, 120], strides = [1, 1]} : vector<10x160xf32> to vector<10x120xf32>
    %cst_68 = arith.constant dense<0.000000e+00> : vector<20x120xf32>
    %208 = tpu.matmul %206, %207, %cst_68 {dimension_numbers = #tpu.dot_dimension_numbers<[1], [0], [0], [1], [0, 0, 1, 1], [], []>} : vector<20x10xf32>, vector<10x120xf32>, vector<20x120xf32> -> vector<20x120xf32>
    %209 = arith.addf %205, %208 : vector<20x120xf32>
    %c0_69 = arith.constant 0 : index
    %c0_70 = arith.constant 0 : index
    %210 = vector.load %arg6[%c0_69, %c0_70] : memref<20x1xf32, #tpu.memory_space<vmem>>, vector<20x1xf32>
    %211 = vector.broadcast %210 : vector<20x1xf32> to vector<20x120xf32>
    %212 = arith.addf %209, %211 : vector<20x120xf32>
    %cst_71 = arith.constant 0.000000e+00 : f32
    %213 = vector.broadcast %cst_71 : f32 to vector<20x120xf32>
    %214 = arith.maximumf %212, %213 : vector<20x120xf32>
    %c0_72 = arith.constant 0 : index
    %c0_73 = arith.constant 0 : index
    %215 = vector.load %arg8[%c0_72, %c0_73] : memref<1x512xf32, #tpu.memory_space<vmem>>, vector<1x512xf32>
    %216 = vector.extract_strided_slice %214 {offsets = [0, 0], sizes = [1, 120], strides = [1, 1]} : vector<20x120xf32> to vector<1x120xf32>
    %c0_74 = arith.constant 0 : index
    %c0_75 = arith.constant 0 : index
    %217 = vector.load %arg7[%c0_74, %c0_75] : memref<2400x512xf32, #tpu.memory_space<vmem>>, vector<120x512xf32>
    %cst_76 = arith.constant dense<0.000000e+00> : vector<1x512xf32>
    %218 = tpu.matmul %216, %217, %cst_76 {dimension_numbers = #tpu.dot_dimension_numbers<[1], [0], [0], [1], [0, 0, 1, 1], [], []>} : vector<1x120xf32>, vector<120x512xf32>, vector<1x512xf32> -> vector<1x512xf32>
    %219 = arith.addf %215, %218 : vector<1x512xf32>
    %220 = vector.extract_strided_slice %214 {offsets = [1, 0], sizes = [1, 120], strides = [1, 1]} : vector<20x120xf32> to vector<1x120xf32>
    %c120 = arith.constant 120 : index
    %c0_77 = arith.constant 0 : index
    %221 = vector.load %arg7[%c120, %c0_77] : memref<2400x512xf32, #tpu.memory_space<vmem>>, vector<120x512xf32>
    %cst_78 = arith.constant dense<0.000000e+00> : vector<1x512xf32>
    %222 = tpu.matmul %220, %221, %cst_78 {dimension_numbers = #tpu.dot_dimension_numbers<[1], [0], [0], [1], [0, 0, 1, 1], [], []>} : vector<1x120xf32>, vector<120x512xf32>, vector<1x512xf32> -> vector<1x512xf32>
    %223 = arith.addf %219, %222 : vector<1x512xf32>
    %224 = vector.extract_strided_slice %214 {offsets = [2, 0], sizes = [1, 120], strides = [1, 1]} : vector<20x120xf32> to vector<1x120xf32>
    %c240 = arith.constant 240 : index
    %c0_79 = arith.constant 0 : index
    %225 = vector.load %arg7[%c240, %c0_79] : memref<2400x512xf32, #tpu.memory_space<vmem>>, vector<120x512xf32>
    %cst_80 = arith.constant dense<0.000000e+00> : vector<1x512xf32>
    %226 = tpu.matmul %224, %225, %cst_80 {dimension_numbers = #tpu.dot_dimension_numbers<[1], [0], [0], [1], [0, 0, 1, 1], [], []>} : vector<1x120xf32>, vector<120x512xf32>, vector<1x512xf32> -> vector<1x512xf32>
    %227 = arith.addf %223, %226 : vector<1x512xf32>
    %228 = vector.extract_strided_slice %214 {offsets = [3, 0], sizes = [1, 120], strides = [1, 1]} : vector<20x120xf32> to vector<1x120xf32>
    %c360 = arith.constant 360 : index
    %c0_81 = arith.constant 0 : index
    %229 = vector.load %arg7[%c360, %c0_81] : memref<2400x512xf32, #tpu.memory_space<vmem>>, vector<120x512xf32>
    %cst_82 = arith.constant dense<0.000000e+00> : vector<1x512xf32>
    %230 = tpu.matmul %228, %229, %cst_82 {dimension_numbers = #tpu.dot_dimension_numbers<[1], [0], [0], [1], [0, 0, 1, 1], [], []>} : vector<1x120xf32>, vector<120x512xf32>, vector<1x512xf32> -> vector<1x512xf32>
    %231 = arith.addf %227, %230 : vector<1x512xf32>
    %232 = vector.extract_strided_slice %214 {offsets = [4, 0], sizes = [1, 120], strides = [1, 1]} : vector<20x120xf32> to vector<1x120xf32>
    %c480 = arith.constant 480 : index
    %c0_83 = arith.constant 0 : index
    %233 = vector.load %arg7[%c480, %c0_83] : memref<2400x512xf32, #tpu.memory_space<vmem>>, vector<120x512xf32>
    %cst_84 = arith.constant dense<0.000000e+00> : vector<1x512xf32>
    %234 = tpu.matmul %232, %233, %cst_84 {dimension_numbers = #tpu.dot_dimension_numbers<[1], [0], [0], [1], [0, 0, 1, 1], [], []>} : vector<1x120xf32>, vector<120x512xf32>, vector<1x512xf32> -> vector<1x512xf32>
    %235 = arith.addf %231, %234 : vector<1x512xf32>
    %236 = vector.extract_strided_slice %214 {offsets = [5, 0], sizes = [1, 120], strides = [1, 1]} : vector<20x120xf32> to vector<1x120xf32>
    %c600 = arith.constant 600 : index
    %c0_85 = arith.constant 0 : index
    %237 = vector.load %arg7[%c600, %c0_85] : memref<2400x512xf32, #tpu.memory_space<vmem>>, vector<120x512xf32>
    %cst_86 = arith.constant dense<0.000000e+00> : vector<1x512xf32>
    %238 = tpu.matmul %236, %237, %cst_86 {dimension_numbers = #tpu.dot_dimension_numbers<[1], [0], [0], [1], [0, 0, 1, 1], [], []>} : vector<1x120xf32>, vector<120x512xf32>, vector<1x512xf32> -> vector<1x512xf32>
    %239 = arith.addf %235, %238 : vector<1x512xf32>
    %240 = vector.extract_strided_slice %214 {offsets = [6, 0], sizes = [1, 120], strides = [1, 1]} : vector<20x120xf32> to vector<1x120xf32>
    %c720 = arith.constant 720 : index
    %c0_87 = arith.constant 0 : index
    %241 = vector.load %arg7[%c720, %c0_87] : memref<2400x512xf32, #tpu.memory_space<vmem>>, vector<120x512xf32>
    %cst_88 = arith.constant dense<0.000000e+00> : vector<1x512xf32>
    %242 = tpu.matmul %240, %241, %cst_88 {dimension_numbers = #tpu.dot_dimension_numbers<[1], [0], [0], [1], [0, 0, 1, 1], [], []>} : vector<1x120xf32>, vector<120x512xf32>, vector<1x512xf32> -> vector<1x512xf32>
    %243 = arith.addf %239, %242 : vector<1x512xf32>
    %244 = vector.extract_strided_slice %214 {offsets = [7, 0], sizes = [1, 120], strides = [1, 1]} : vector<20x120xf32> to vector<1x120xf32>
    %c840 = arith.constant 840 : index
    %c0_89 = arith.constant 0 : index
    %245 = vector.load %arg7[%c840, %c0_89] : memref<2400x512xf32, #tpu.memory_space<vmem>>, vector<120x512xf32>
    %cst_90 = arith.constant dense<0.000000e+00> : vector<1x512xf32>
    %246 = tpu.matmul %244, %245, %cst_90 {dimension_numbers = #tpu.dot_dimension_numbers<[1], [0], [0], [1], [0, 0, 1, 1], [], []>} : vector<1x120xf32>, vector<120x512xf32>, vector<1x512xf32> -> vector<1x512xf32>
    %247 = arith.addf %243, %246 : vector<1x512xf32>
    %248 = vector.extract_strided_slice %214 {offsets = [8, 0], sizes = [1, 120], strides = [1, 1]} : vector<20x120xf32> to vector<1x120xf32>
    %c960 = arith.constant 960 : index
    %c0_91 = arith.constant 0 : index
    %249 = vector.load %arg7[%c960, %c0_91] : memref<2400x512xf32, #tpu.memory_space<vmem>>, vector<120x512xf32>
    %cst_92 = arith.constant dense<0.000000e+00> : vector<1x512xf32>
    %250 = tpu.matmul %248, %249, %cst_92 {dimension_numbers = #tpu.dot_dimension_numbers<[1], [0], [0], [1], [0, 0, 1, 1], [], []>} : vector<1x120xf32>, vector<120x512xf32>, vector<1x512xf32> -> vector<1x512xf32>
    %251 = arith.addf %247, %250 : vector<1x512xf32>
    %252 = vector.extract_strided_slice %214 {offsets = [9, 0], sizes = [1, 120], strides = [1, 1]} : vector<20x120xf32> to vector<1x120xf32>
    %c1080 = arith.constant 1080 : index
    %c0_93 = arith.constant 0 : index
    %253 = vector.load %arg7[%c1080, %c0_93] : memref<2400x512xf32, #tpu.memory_space<vmem>>, vector<120x512xf32>
    %cst_94 = arith.constant dense<0.000000e+00> : vector<1x512xf32>
    %254 = tpu.matmul %252, %253, %cst_94 {dimension_numbers = #tpu.dot_dimension_numbers<[1], [0], [0], [1], [0, 0, 1, 1], [], []>} : vector<1x120xf32>, vector<120x512xf32>, vector<1x512xf32> -> vector<1x512xf32>
    %255 = arith.addf %251, %254 : vector<1x512xf32>
    %256 = vector.extract_strided_slice %214 {offsets = [10, 0], sizes = [1, 120], strides = [1, 1]} : vector<20x120xf32> to vector<1x120xf32>
    %c1200 = arith.constant 1200 : index
    %c0_95 = arith.constant 0 : index
    %257 = vector.load %arg7[%c1200, %c0_95] : memref<2400x512xf32, #tpu.memory_space<vmem>>, vector<120x512xf32>
    %cst_96 = arith.constant dense<0.000000e+00> : vector<1x512xf32>
    %258 = tpu.matmul %256, %257, %cst_96 {dimension_numbers = #tpu.dot_dimension_numbers<[1], [0], [0], [1], [0, 0, 1, 1], [], []>} : vector<1x120xf32>, vector<120x512xf32>, vector<1x512xf32> -> vector<1x512xf32>
    %259 = arith.addf %255, %258 : vector<1x512xf32>
    %260 = vector.extract_strided_slice %214 {offsets = [11, 0], sizes = [1, 120], strides = [1, 1]} : vector<20x120xf32> to vector<1x120xf32>
    %c1320 = arith.constant 1320 : index
    %c0_97 = arith.constant 0 : index
    %261 = vector.load %arg7[%c1320, %c0_97] : memref<2400x512xf32, #tpu.memory_space<vmem>>, vector<120x512xf32>
    %cst_98 = arith.constant dense<0.000000e+00> : vector<1x512xf32>
    %262 = tpu.matmul %260, %261, %cst_98 {dimension_numbers = #tpu.dot_dimension_numbers<[1], [0], [0], [1], [0, 0, 1, 1], [], []>} : vector<1x120xf32>, vector<120x512xf32>, vector<1x512xf32> -> vector<1x512xf32>
    %263 = arith.addf %259, %262 : vector<1x512xf32>
    %264 = vector.extract_strided_slice %214 {offsets = [12, 0], sizes = [1, 120], strides = [1, 1]} : vector<20x120xf32> to vector<1x120xf32>
    %c1440 = arith.constant 1440 : index
    %c0_99 = arith.constant 0 : index
    %265 = vector.load %arg7[%c1440, %c0_99] : memref<2400x512xf32, #tpu.memory_space<vmem>>, vector<120x512xf32>
    %cst_100 = arith.constant dense<0.000000e+00> : vector<1x512xf32>
    %266 = tpu.matmul %264, %265, %cst_100 {dimension_numbers = #tpu.dot_dimension_numbers<[1], [0], [0], [1], [0, 0, 1, 1], [], []>} : vector<1x120xf32>, vector<120x512xf32>, vector<1x512xf32> -> vector<1x512xf32>
    %267 = arith.addf %263, %266 : vector<1x512xf32>
    %268 = vector.extract_strided_slice %214 {offsets = [13, 0], sizes = [1, 120], strides = [1, 1]} : vector<20x120xf32> to vector<1x120xf32>
    %c1560 = arith.constant 1560 : index
    %c0_101 = arith.constant 0 : index
    %269 = vector.load %arg7[%c1560, %c0_101] : memref<2400x512xf32, #tpu.memory_space<vmem>>, vector<120x512xf32>
    %cst_102 = arith.constant dense<0.000000e+00> : vector<1x512xf32>
    %270 = tpu.matmul %268, %269, %cst_102 {dimension_numbers = #tpu.dot_dimension_numbers<[1], [0], [0], [1], [0, 0, 1, 1], [], []>} : vector<1x120xf32>, vector<120x512xf32>, vector<1x512xf32> -> vector<1x512xf32>
    %271 = arith.addf %267, %270 : vector<1x512xf32>
    %272 = vector.extract_strided_slice %214 {offsets = [14, 0], sizes = [1, 120], strides = [1, 1]} : vector<20x120xf32> to vector<1x120xf32>
    %c1680 = arith.constant 1680 : index
    %c0_103 = arith.constant 0 : index
    %273 = vector.load %arg7[%c1680, %c0_103] : memref<2400x512xf32, #tpu.memory_space<vmem>>, vector<120x512xf32>
    %cst_104 = arith.constant dense<0.000000e+00> : vector<1x512xf32>
    %274 = tpu.matmul %272, %273, %cst_104 {dimension_numbers = #tpu.dot_dimension_numbers<[1], [0], [0], [1], [0, 0, 1, 1], [], []>} : vector<1x120xf32>, vector<120x512xf32>, vector<1x512xf32> -> vector<1x512xf32>
    %275 = arith.addf %271, %274 : vector<1x512xf32>
    %276 = vector.extract_strided_slice %214 {offsets = [15, 0], sizes = [1, 120], strides = [1, 1]} : vector<20x120xf32> to vector<1x120xf32>
    %c1800 = arith.constant 1800 : index
    %c0_105 = arith.constant 0 : index
    %277 = vector.load %arg7[%c1800, %c0_105] : memref<2400x512xf32, #tpu.memory_space<vmem>>, vector<120x512xf32>
    %cst_106 = arith.constant dense<0.000000e+00> : vector<1x512xf32>
    %278 = tpu.matmul %276, %277, %cst_106 {dimension_numbers = #tpu.dot_dimension_numbers<[1], [0], [0], [1], [0, 0, 1, 1], [], []>} : vector<1x120xf32>, vector<120x512xf32>, vector<1x512xf32> -> vector<1x512xf32>
    %279 = arith.addf %275, %278 : vector<1x512xf32>
    %280 = vector.extract_strided_slice %214 {offsets = [16, 0], sizes = [1, 120], strides = [1, 1]} : vector<20x120xf32> to vector<1x120xf32>
    %c1920 = arith.constant 1920 : index
    %c0_107 = arith.constant 0 : index
    %281 = vector.load %arg7[%c1920, %c0_107] : memref<2400x512xf32, #tpu.memory_space<vmem>>, vector<120x512xf32>
    %cst_108 = arith.constant dense<0.000000e+00> : vector<1x512xf32>
    %282 = tpu.matmul %280, %281, %cst_108 {dimension_numbers = #tpu.dot_dimension_numbers<[1], [0], [0], [1], [0, 0, 1, 1], [], []>} : vector<1x120xf32>, vector<120x512xf32>, vector<1x512xf32> -> vector<1x512xf32>
    %283 = arith.addf %279, %282 : vector<1x512xf32>
    %284 = vector.extract_strided_slice %214 {offsets = [17, 0], sizes = [1, 120], strides = [1, 1]} : vector<20x120xf32> to vector<1x120xf32>
    %c2040 = arith.constant 2040 : index
    %c0_109 = arith.constant 0 : index
    %285 = vector.load %arg7[%c2040, %c0_109] : memref<2400x512xf32, #tpu.memory_space<vmem>>, vector<120x512xf32>
    %cst_110 = arith.constant dense<0.000000e+00> : vector<1x512xf32>
    %286 = tpu.matmul %284, %285, %cst_110 {dimension_numbers = #tpu.dot_dimension_numbers<[1], [0], [0], [1], [0, 0, 1, 1], [], []>} : vector<1x120xf32>, vector<120x512xf32>, vector<1x512xf32> -> vector<1x512xf32>
    %287 = arith.addf %283, %286 : vector<1x512xf32>
    %288 = vector.extract_strided_slice %214 {offsets = [18, 0], sizes = [1, 120], strides = [1, 1]} : vector<20x120xf32> to vector<1x120xf32>
    %c2160 = arith.constant 2160 : index
    %c0_111 = arith.constant 0 : index
    %289 = vector.load %arg7[%c2160, %c0_111] : memref<2400x512xf32, #tpu.memory_space<vmem>>, vector<120x512xf32>
    %cst_112 = arith.constant dense<0.000000e+00> : vector<1x512xf32>
    %290 = tpu.matmul %288, %289, %cst_112 {dimension_numbers = #tpu.dot_dimension_numbers<[1], [0], [0], [1], [0, 0, 1, 1], [], []>} : vector<1x120xf32>, vector<120x512xf32>, vector<1x512xf32> -> vector<1x512xf32>
    %291 = arith.addf %287, %290 : vector<1x512xf32>
    %292 = vector.extract_strided_slice %214 {offsets = [19, 0], sizes = [1, 120], strides = [1, 1]} : vector<20x120xf32> to vector<1x120xf32>
    %c2280 = arith.constant 2280 : index
    %c0_113 = arith.constant 0 : index
    %293 = vector.load %arg7[%c2280, %c0_113] : memref<2400x512xf32, #tpu.memory_space<vmem>>, vector<120x512xf32>
    %cst_114 = arith.constant dense<0.000000e+00> : vector<1x512xf32>
    %294 = tpu.matmul %292, %293, %cst_114 {dimension_numbers = #tpu.dot_dimension_numbers<[1], [0], [0], [1], [0, 0, 1, 1], [], []>} : vector<1x120xf32>, vector<120x512xf32>, vector<1x512xf32> -> vector<1x512xf32>
    %295 = arith.addf %291, %294 : vector<1x512xf32>
    %cst_115 = arith.constant 0.000000e+00 : f32
    %296 = vector.broadcast %cst_115 : f32 to vector<1x512xf32>
    %297 = arith.maximumf %295, %296 : vector<1x512xf32>
    %c0_116 = arith.constant 0 : index
    %c0_117 = arith.constant 0 : index
    %298 = vector.load %arg9[%c0_116, %c0_117] : memref<512x128xf32, #tpu.memory_space<vmem>>, vector<512x128xf32>
    %cst_118 = arith.constant dense<0.000000e+00> : vector<1x128xf32>
    %299 = tpu.matmul %297, %298, %cst_118 {dimension_numbers = #tpu.dot_dimension_numbers<[1], [0], [0], [1], [0, 0, 1, 1], [], []>} : vector<1x512xf32>, vector<512x128xf32>, vector<1x128xf32> -> vector<1x128xf32>
    %c0_119 = arith.constant 0 : index
    %c0_120 = arith.constant 0 : index
    %300 = vector.load %arg10[%c0_119, %c0_120] : memref<1x128xf32, #tpu.memory_space<vmem>>, vector<1x128xf32>
    %301 = arith.addf %299, %300 : vector<1x128xf32>
    %cst_121 = arith.constant dense<0xFF800000> : vector<1xf32>
    %302 = vector.multi_reduction <maximumf>, %301, %cst_121 [1] : vector<1x128xf32> to vector<1xf32>
    %303 = vector.shape_cast %302 : vector<1xf32> to vector<1x1xf32>
    %304 = vector.broadcast %303 : vector<1x1xf32> to vector<1x128xf32>
    %305 = arith.subf %301, %304 : vector<1x128xf32>
    %306 = math.exp %305 : vector<1x128xf32>
    %cst_122 = arith.constant dense<0.000000e+00> : vector<1xf32>
    %307 = vector.multi_reduction <add>, %306, %cst_122 [1] : vector<1x128xf32> to vector<1xf32>
    %308 = vector.shape_cast %307 : vector<1xf32> to vector<1x1xf32>
    %309 = math.log %308 : vector<1x1xf32>
    %310 = arith.addf %309, %303 : vector<1x1xf32>
    %311 = vector.broadcast %310 : vector<1x1xf32> to vector<1x128xf32>
    %312 = arith.subf %301, %311 : vector<1x128xf32>
    %c0_123 = arith.constant 0 : index
    %c0_124 = arith.constant 0 : index
    %c0_125 = arith.constant 0 : index
    %313 = vector.load %arg11[%c0_123, %c0_124, %c0_125] : memref<1x1x128xf32, #tpu.memory_space<vmem>>, vector<1x1x128xf32>
    %314 = vector.shape_cast %313 : vector<1x1x128xf32> to vector<1x128xf32>
    %315 = vector.shape_cast %312 : vector<1x128xf32> to vector<1x1x128xf32>
    tpu.vector_store %arg11[%c0_123, %c0_124, %c0_125], %315 {strides = array<i32>} : memref<1x1x128xf32, #tpu.memory_space<vmem>>, vector<1x1x128xf32>,
    return
  }
  func.func @transform_0(%arg0: i32) -> (i32, i32, i32) {
    %c0_i32 = arith.constant 0 : i32
    %c0_i32_0 = arith.constant 0 : i32
    %c0_i32_1 = arith.constant 0 : i32
    return %arg0, %c0_i32, %c0_i32_0 : i32, i32, i32
  }
  func.func @transform_1(%arg0: i32) -> (i32, i32) {
    %c0_i32 = arith.constant 0 : i32
    %c0_i32_0 = arith.constant 0 : i32
    %c0_i32_1 = arith.constant 0 : i32
    return %c0_i32, %c0_i32_0 : i32, i32
  }
  func.func @transform_2(%arg0: i32) -> (i32, i32) {
    %c0_i32 = arith.constant 0 : i32
    %c0_i32_0 = arith.constant 0 : i32
    %c0_i32_1 = arith.constant 0 : i32
    return %c0_i32, %c0_i32_0 : i32, i32
  }
  func.func @transform_3(%arg0: i32) -> (i32, i32, i32) {
    %c0_i32 = arith.constant 0 : i32
    %c0_i32_0 = arith.constant 0 : i32
    %c0_i32_1 = arith.constant 0 : i32
    %c0_i32_2 = arith.constant 0 : i32
    return %c0_i32, %c0_i32_0, %c0_i32_1 : i32, i32, i32
  }
  func.func @transform_4(%arg0: i32) -> (i32, i32) {
    %c0_i32 = arith.constant 0 : i32
    %c0_i32_0 = arith.constant 0 : i32
    %c0_i32_1 = arith.constant 0 : i32
    return %c0_i32, %c0_i32_0 : i32, i32
  }
  func.func @transform_5(%arg0: i32) -> (i32, i32) {
    %c0_i32 = arith.constant 0 : i32
    %c0_i32_0 = arith.constant 0 : i32
    %c0_i32_1 = arith.constant 0 : i32
    return %c0_i32, %c0_i32_0 : i32, i32
  }
  func.func @transform_6(%arg0: i32) -> (i32, i32) {
    %c0_i32 = arith.constant 0 : i32
    %c0_i32_0 = arith.constant 0 : i32
    %c0_i32_1 = arith.constant 0 : i32
    return %c0_i32, %c0_i32_0 : i32, i32
  }
  func.func @transform_7(%arg0: i32) -> (i32, i32) {
    %c0_i32 = arith.constant 0 : i32
    %c0_i32_0 = arith.constant 0 : i32
    %c0_i32_1 = arith.constant 0 : i32
    return %c0_i32, %c0_i32_0 : i32, i32
  }
  func.func @transform_8(%arg0: i32) -> (i32, i32) {
    %c0_i32 = arith.constant 0 : i32
    %c0_i32_0 = arith.constant 0 : i32
    %c0_i32_1 = arith.constant 0 : i32
    return %c0_i32, %c0_i32_0 : i32, i32
  }
  func.func @transform_9(%arg0: i32) -> (i32, i32) {
    %c0_i32 = arith.constant 0 : i32
    %c0_i32_0 = arith.constant 0 : i32
    %c0_i32_1 = arith.constant 0 : i32
    return %c0_i32, %c0_i32_0 : i32, i32
  }
  func.func @transform_10(%arg0: i32) -> (i32, i32, i32) {
    %c0_i32 = arith.constant 0 : i32
    %c0_i32_0 = arith.constant 0 : i32
    %c0_i32_1 = arith.constant 0 : i32
    return %arg0, %c0_i32, %c0_i32_0 : i32, i32, i32
  }
}

</mosaic_0001>

<llo_original>
// kernel: digit_pallas_forward.1
$region0: #{digit_pallas_forward.1}
  #allocation0 [shape = 'u32[]', space=smem, size = 0x4, offset = 0x4, fixed_abs, tag = 'smem constant byte address 0x4 - core index']
  #allocation1 [shape = 'u32[144,128]{1,0:T(1,128)}', space=vmem, size = 0x12000, scoped, tag = 'internal scratch']
  %s0 = inlined_call_operand.vmem [shape: f32[2,1,800], index: 0, kind: input, shape index: {}]
  %s1 = inlined_call_operand.vmem [shape: f32[10,25], index: 1, kind: input, shape index: {}]
  %s2 = inlined_call_operand.vmem [shape: f32[10,1], index: 2, kind: input, shape index: {}]
  %s3 = inlined_call_operand.vmem [shape: f32[4,672,160], index: 3, kind: input, shape index: {}]
  %s4 = inlined_call_operand.vmem [shape: f32[20,90], index: 4, kind: input, shape index: {}]
  %s5 = inlined_call_operand.vmem [shape: f32[20,1], index: 5, kind: input, shape index: {}]
  %s6 = inlined_call_operand.vmem [shape: f32[2400,512], index: 6, kind: input, shape index: {}]
  %s7 = inlined_call_operand.vmem [shape: f32[1,512], index: 7, kind: input, shape index: {}]
  %s8 = inlined_call_operand.vmem [shape: f32[512,128], index: 8, kind: input, shape index: {}]
  %s9 = inlined_call_operand.vmem [shape: f32[1,128], index: 9, kind: input, shape index: {}]
  %s10 = inlined_call_operand.hbm [shape: f32[2,1,128], index: 10, kind: output, shape index: {}]
  %s11 = sld [smem:[#allocation0]]
  $region73: #{digit_pallas_forward.1} parent=0
    _
  %s13 = ssub.s32 1, %s11
  %s14 = scalar_select 0, %s13, %s11
  $region1: #{digit_pallas_forward.1} parent=0
    #allocation2 [shape = 'u8[1024]{0}', space=vmem, size = 0x400, scoped, tag = 'output window, operand 0']
    #allocation3 [shape = 's32[2]{0}', space=sflag, size = 0x8, scoped, tag = 'scoped memory for digit_pallas_forward.1']
    %15 = vsyncpa [#allocation3], 0
    %s16 = scalar_lea.sflag [#allocation3], 1
    %17 = vsyncpa %s16, 0
    loop: start=0, step=1, limit=4
    $region2: #{digit_pallas_forward.1} parent=1 // loop_pre_header
      _
    $region3: #{digit_pallas_forward.1} parent=1 // loop_header
      %s19 = sphi 0, %s23
      %p20 = scmp.ge.s32.totalorder %s19, 4
      %s29 = sphi 0, %s31
      %s32 = sphi 0, %s29
      %s33 = sphi 0, %s32
      %s49 = sphi 0, %s33
      %s53 = sphi 0, %s53
      %s55 = sphi 0, %s53
      %s56 = sphi 0, %s55
      %s70 = sphi 0, %s56
      %s74 = sphi 0, %s74
      %s76 = sphi 0, %s74
      %s77 = sphi 0, %s76
      %s91 = sphi 0, %s77
      %s95 = sphi 0, %s95
      %s97 = sphi 0, %s95
      %s98 = sphi 0, %s97
      %s112 = sphi 0, %s98
      %s116 = sphi 0, %s116
      %s118 = sphi 0, %s116
      %s119 = sphi 0, %s118
      %s133 = sphi 0, %s119
      %s137 = sphi 0, %s137
      %s139 = sphi 0, %s137
      %s140 = sphi 0, %s139
      %s154 = sphi 0, %s140
      %s158 = sphi 0, %s158
      %s160 = sphi 0, %s158
      %s161 = sphi 0, %s160
      %s175 = sphi 0, %s161
      %s179 = sphi 0, %s179
      %s181 = sphi 0, %s179
      %s182 = sphi 0, %s181
      %s196 = sphi 0, %s182
      %s200 = sphi 0, %s200
      %s202 = sphi 0, %s200
      %s203 = sphi 0, %s202
      %s217 = sphi 0, %s203
      %s221 = sphi 0, %s221
      %s223 = sphi 0, %s221
      %s224 = sphi 0, %s223
      %s238 = sphi 0, %s224
      %s244 = sphi 0, %s246
      %s247 = sphi 0, %s244
      %s248 = sphi 0, %s247
      %s264 = sphi 0, %s248
    $region4: #{digit_pallas_forward.1} parent=1 // loop_header_branch
      %22 = sbr.rel (%p20) target = $region8
    $region5: #{digit_pallas_forward.1} parent=1 // loop_body
      %s24 = ssub.s32 %s19, 1
      %s25 = ssub.s32 %s19, 2
      %s26 = sadd.s32 %s19, 1
      %s27 = ssub.s32 %s19, %s26
      %p28 = scmp.eq.s32.totalorder %s27, 0
      %s30 = sadd.s32 %s29, 1
      %s31 = scalar_select %p28, %s29, %s30
      %p34 = pneg %p28
      %p35 = scmp.eq.s32.totalorder %s19, 1
      %p36 = por %p34, %p35
      %p37 = scmp.ne.s32.totalorder %s29, %s32
      %p38 = scmp.eq.s32.totalorder %s19, 0
      %p39 = por %p37, %p38
      %p40 = scmp.ne.s32.totalorder %s29, %s32
      %p41 = scmp.eq.s32.totalorder %s24, 1
      %p42 = por %p40, %p41
      %p43 = scmp.ne.s32.totalorder %s32, %s33
      %p44 = scmp.eq.s32.totalorder %s24, 0
      %p45 = por %p43, %p44
      %p46 = scmp.ne.s32.totalorder %s32, %s33
      %p47 = scmp.eq.s32.totalorder %s25, 1
      %p48 = por %p46, %p47
      %p50 = scmp.ne.s32.totalorder %s33, %s49
      %p51 = scmp.eq.s32.totalorder %s25, 0
      %p52 = por %p50, %p51
      %s54 = sadd.s32 %s53, 1
      %p57 = scmp.eq.s32.totalorder %s19, 1
      %p58 = scmp.ne.s32.totalorder %s53, %s55
      %p59 = scmp.eq.s32.totalorder %s19, 0
      %p60 = por %p58, %p59
      %p61 = scmp.ne.s32.totalorder %s53, %s55
      %p62 = scmp.eq.s32.totalorder %s24, 1
      %p63 = por %p61, %p62
      %p64 = scmp.ne.s32.totalorder %s55, %s56
      %p65 = scmp.eq.s32.totalorder %s24, 0
      %p66 = por %p64, %p65
      %p67 = scmp.ne.s32.totalorder %s55, %s56
      %p68 = scmp.eq.s32.totalorder %s25, 1
      %p69 = por %p67, %p68
      %p71 = scmp.ne.s32.totalorder %s56, %s70
      %p72 = scmp.eq.s32.totalorder %s25, 0
      %p73 = por %p71, %p72
      %s75 = sadd.s32 %s74, 1
      %p78 = scmp.eq.s32.totalorder %s19, 1
      %p79 = scmp.ne.s32.totalorder %s74, %s76
      %p80 = scmp.eq.s32.totalorder %s19, 0
      %p81 = por %p79, %p80
      %p82 = scmp.ne.s32.totalorder %s74, %s76
      %p83 = scmp.eq.s32.totalorder %s24, 1
      %p84 = por %p82, %p83
      %p85 = scmp.ne.s32.totalorder %s76, %s77
      %p86 = scmp.eq.s32.totalorder %s24, 0
      %p87 = por %p85, %p86
      %p88 = scmp.ne.s32.totalorder %s76, %s77
      %p89 = scmp.eq.s32.totalorder %s25, 1
      %p90 = por %p88, %p89
      %p92 = scmp.ne.s32.totalorder %s77, %s91
      %p93 = scmp.eq.s32.totalorder %s25, 0
      %p94 = por %p92, %p93
      %s96 = sadd.s32 %s95, 1
      %p99 = scmp.eq.s32.totalorder %s19, 1
      %p100 = scmp.ne.s32.totalorder %s95, %s97
      %p101 = scmp.eq.s32.totalorder %s19, 0
      %p102 = por %p100, %p101
      %p103 = scmp.ne.s32.totalorder %s95, %s97
      %p104 = scmp.eq.s32.totalorder %s24, 1
      %p105 = por %p103, %p104
      %p106 = scmp.ne.s32.totalorder %s97, %s98
      %p107 = scmp.eq.s32.totalorder %s24, 0
      %p108 = por %p106, %p107
      %p109 = scmp.ne.s32.totalorder %s97, %s98
      %p110 = scmp.eq.s32.totalorder %s25, 1
      %p111 = por %p109, %p110
      %p113 = scmp.ne.s32.totalorder %s98, %s112
      %p114 = scmp.eq.s32.totalorder %s25, 0
      %p115 = por %p113, %p114
      %s117 = sadd.s32 %s116, 1
      %p120 = scmp.eq.s32.totalorder %s19, 1
      %p121 = scmp.ne.s32.totalorder %s116, %s118
      %p122 = scmp.eq.s32.totalorder %s19, 0
      %p123 = por %p121, %p122
      %p124 = scmp.ne.s32.totalorder %s116, %s118
      %p125 = scmp.eq.s32.totalorder %s24, 1
      %p126 = por %p124, %p125
      %p127 = scmp.ne.s32.totalorder %s118, %s119
      %p128 = scmp.eq.s32.totalorder %s24, 0
      %p129 = por %p127, %p128
      %p130 = scmp.ne.s32.totalorder %s118, %s119
      %p131 = scmp.eq.s32.totalorder %s25, 1
      %p132 = por %p130, %p131
      %p134 = scmp.ne.s32.totalorder %s119, %s133
      %p135 = scmp.eq.s32.totalorder %s25, 0
      %p136 = por %p134, %p135
      %s138 = sadd.s32 %s137, 1
      %p141 = scmp.eq.s32.totalorder %s19, 1
      %p142 = scmp.ne.s32.totalorder %s137, %s139
      %p143 = scmp.eq.s32.totalorder %s19, 0
      %p144 = por %p142, %p143
      %p145 = scmp.ne.s32.totalorder %s137, %s139
      %p146 = scmp.eq.s32.totalorder %s24, 1
      %p147 = por %p145, %p146
      %p148 = scmp.ne.s32.totalorder %s139, %s140
      %p149 = scmp.eq.s32.totalorder %s24, 0
      %p150 = por %p148, %p149
      %p151 = scmp.ne.s32.totalorder %s139, %s140
      %p152 = scmp.eq.s32.totalorder %s25, 1
      %p153 = por %p151, %p152
      %p155 = scmp.ne.s32.totalorder %s140, %s154
      %p156 = scmp.eq.s32.totalorder %s25, 0
      %p157 = por %p155, %p156
      %s159 = sadd.s32 %s158, 1
      %p162 = scmp.eq.s32.totalorder %s19, 1
      %p163 = scmp.ne.s32.totalorder %s158, %s160
      %p164 = scmp.eq.s32.totalorder %s19, 0
      %p165 = por %p163, %p164
      %p166 = scmp.ne.s32.totalorder %s158, %s160
      %p167 = scmp.eq.s32.totalorder %s24, 1
      %p168 = por %p166, %p167
      %p169 = scmp.ne.s32.totalorder %s160, %s161
      %p170 = scmp.eq.s32.totalorder %s24, 0
      %p171 = por %p169, %p170
      %p172 = scmp.ne.s32.totalorder %s160, %s161
      %p173 = scmp.eq.s32.totalorder %s25, 1
      %p174 = por %p172, %p173
      %p176 = scmp.ne.s32.totalorder %s161, %s175
      %p177 = scmp.eq.s32.totalorder %s25, 0
      %p178 = por %p176, %p177
      %s180 = sadd.s32 %s179, 1
      %p183 = scmp.eq.s32.totalorder %s19, 1
      %p184 = scmp.ne.s32.totalorder %s179, %s181
      %p185 = scmp.eq.s32.totalorder %s19, 0
      %p186 = por %p184, %p185
      %p187 = scmp.ne.s32.totalorder %s179, %s181
      %p188 = scmp.eq.s32.totalorder %s24, 1
      %p189 = por %p187, %p188
      %p190 = scmp.ne.s32.totalorder %s181, %s182
      %p191 = scmp.eq.s32.totalorder %s24, 0
      %p192 = por %p190, %p191
      %p193 = scmp.ne.s32.totalorder %s181, %s182
      %p194 = scmp.eq.s32.totalorder %s25, 1
      %p195 = por %p193, %p194
      %p197 = scmp.ne.s32.totalorder %s182, %s196
      %p198 = scmp.eq.s32.totalorder %s25, 0
      %p199 = por %p197, %p198
      %s201 = sadd.s32 %s200, 1
      %p204 = scmp.eq.s32.totalorder %s19, 1
      %p205 = scmp.ne.s32.totalorder %s200, %s202
      %p206 = scmp.eq.s32.totalorder %s19, 0
      %p207 = por %p205, %p206
      %p208 = scmp.ne.s32.totalorder %s200, %s202
      %p209 = scmp.eq.s32.totalorder %s24, 1
      %p210 = por %p208, %p209
      %p211 = scmp.ne.s32.totalorder %s202, %s203
      %p212 = scmp.eq.s32.totalorder %s24, 0
      %p213 = por %p211, %p212
      %p214 = scmp.ne.s32.totalorder %s202, %s203
      %p215 = scmp.eq.s32.totalorder %s25, 1
      %p216 = por %p214, %p215
      %p218 = scmp.ne.s32.totalorder %s203, %s217
      %p219 = scmp.eq.s32.totalorder %s25, 0
      %p220 = por %p218, %p219
      %s222 = sadd.s32 %s221, 1
      %p225 = scmp.eq.s32.totalorder %s19, 1
      %p226 = scmp.ne.s32.totalorder %s221, %s223
      %p227 = scmp.eq.s32.totalorder %s19, 0
      %p228 = por %p226, %p227
      %p229 = scmp.ne.s32.totalorder %s221, %s223
      %p230 = scmp.eq.s32.totalorder %s24, 1
      %p231 = por %p229, %p230
      %p232 = scmp.ne.s32.totalorder %s223, %s224
      %p233 = scmp.eq.s32.totalorder %s24, 0
      %p234 = por %p232, %p233
      %p235 = scmp.ne.s32.totalorder %s223, %s224
      %p236 = scmp.eq.s32.totalorder %s25, 1
      %p237 = por %p235, %p236
      %p239 = scmp.ne.s32.totalorder %s224, %s238
      %p240 = scmp.eq.s32.totalorder %s25, 0
      %p241 = por %p239, %p240
      %s242 = ssub.s32 %s19, %s26
      %p243 = scmp.eq.s32.totalorder %s242, 0
      %s245 = sadd.s32 %s244, 1
      %s246 = scalar_select %p243, %s244, %s245
      %p249 = pneg %p243
      %p250 = scmp.eq.s32.totalorder %s19, 1
      %p251 = por %p249, %p250
      %p252 = scmp.ne.s32.totalorder %s244, %s247
      %p253 = scmp.eq.s32.totalorder %s19, 0
      %p254 = por %p252, %p253
      %p255 = scmp.ne.s32.totalorder %s244, %s247
      %p256 = scmp.eq.s32.totalorder %s24, 1
      %p257 = por %p255, %p256
      %p258 = scmp.ne.s32.totalorder %s247, %s248
      %p259 = scmp.eq.s32.totalorder %s24, 0
      %p260 = por %p258, %p259
      %p261 = scmp.ne.s32.totalorder %s247, %s248
      %p262 = scmp.eq.s32.totalorder %s25, 1
      %p263 = por %p261, %p262
      %p265 = scmp.ne.s32.totalorder %s248, %s264
      %p266 = scmp.eq.s32.totalorder %s25, 0
      %p267 = por %p265, %p266
      %p268 = scmp.le.s32.totalorder 1, %s19
      %p269 = scmp.lt.s32.totalorder %s19, 3
      %p270 = pnand %p268, %p269
      %p271 = pneg %p270
      // Predicated region
      $region9: #{digit_pallas_forward.1} parent=5 // pred_check
        _
      $region10: #{digit_pallas_forward.1} parent=5 // pred_check_branch
        %273 = sbr.rel (%p270) target = $region12
      $region11: #{digit_pallas_forward.1} parent=5 // pred_region
        %s274 = ssub.s32 %s19, 1
        // Predicated region
        $region13: #{digit_pallas_forward.1} parent=11 // pred_check
          %p275 = pneg %p66
        $region14: #{digit_pallas_forward.1} parent=11 // pred_check_branch
          %277 = sbr.rel (%p275) target = $region16
        $region15: #{digit_pallas_forward.1} parent=11 // pred_region
          _
        $region16: #{digit_pallas_forward.1} parent=11 // pred_fallthru
          _
        // Predicated region
        $region17: #{digit_pallas_forward.1} parent=11 // pred_check
          %p278 = pneg %p87
        $region18: #{digit_pallas_forward.1} parent=11 // pred_check_branch
          %280 = sbr.rel (%p278) target = $region20
        $region19: #{digit_pallas_forward.1} parent=11 // pred_region
          _
        $region20: #{digit_pallas_forward.1} parent=11 // pred_fallthru
          _
        // Predicated region
        $region21: #{digit_pallas_forward.1} parent=11 // pred_check
          %p281 = pneg %p108
        $region22: #{digit_pallas_forward.1} parent=11 // pred_check_branch
          %283 = sbr.rel (%p281) target = $region24
        $region23: #{digit_pallas_forward.1} parent=11 // pred_region
          _
        $region24: #{digit_pallas_forward.1} parent=11 // pred_fallthru
          _
        // Predicated region
        $region25: #{digit_pallas_forward.1} parent=11 // pred_check
          %p284 = pneg %p129
        $region26: #{digit_pallas_forward.1} parent=11 // pred_check_branch
          %286 = sbr.rel (%p284) target = $region28
        $region27: #{digit_pallas_forward.1} parent=11 // pred_region
          _
        $region28: #{digit_pallas_forward.1} parent=11 // pred_fallthru
          _
        // Predicated region
        $region29: #{digit_pallas_forward.1} parent=11 // pred_check
          %p287 = pneg %p150
        $region30: #{digit_pallas_forward.1} parent=11 // pred_check_branch
          %289 = sbr.rel (%p287) target = $region32
        $region31: #{digit_pallas_forward.1} parent=11 // pred_region
          _
        $region32: #{digit_pallas_forward.1} parent=11 // pred_fallthru
          _
        // Predicated region
        $region33: #{digit_pallas_forward.1} parent=11 // pred_check
          %p290 = pneg %p171
        $region34: #{digit_pallas_forward.1} parent=11 // pred_check_branch
          %292 = sbr.rel (%p290) target = $region36
        $region35: #{digit_pallas_forward.1} parent=11 // pred_region
          _
        $region36: #{digit_pallas_forward.1} parent=11 // pred_fallthru
          _
        // Predicated region
        $region37: #{digit_pallas_forward.1} parent=11 // pred_check
          %p293 = pneg %p192
        $region38: #{digit_pallas_forward.1} parent=11 // pred_check_branch
          %295 = sbr.rel (%p293) target = $region40
        $region39: #{digit_pallas_forward.1} parent=11 // pred_region
          _
        $region40: #{digit_pallas_forward.1} parent=11 // pred_fallthru
          _
        // Predicated region
        $region41: #{digit_pallas_forward.1} parent=11 // pred_check
          %p296 = pneg %p213
        $region42: #{digit_pallas_forward.1} parent=11 // pred_check_branch
          %298 = sbr.rel (%p296) target = $region44
        $region43: #{digit_pallas_forward.1} parent=11 // pred_region
          _
        $region44: #{digit_pallas_forward.1} parent=11 // pred_fallthru
          _
        // Predicated region
        $region45: #{digit_pallas_forward.1} parent=11 // pred_check
          %p299 = pneg %p234
        $region46: #{digit_pallas_forward.1} parent=11 // pred_check_branch
          %301 = sbr.rel (%p299) target = $region48
        $region47: #{digit_pallas_forward.1} parent=11 // pred_region
          _
        $region48: #{digit_pallas_forward.1} parent=11 // pred_fallthru
          _
      $region12: #{digit_pallas_forward.1} parent=5 // pred_fallthru
        _
      %p302 = scmp.lt.s32.totalorder %s19, 2
      // Predicated region
      $region49: #{digit_pallas_forward.1} parent=5 // pred_check
        %p303 = pneg %p302
      $region50: #{digit_pallas_forward.1} parent=5 // pred_check_branch
        %305 = sbr.rel (%p303) target = $region52
      $region51: #{digit_pallas_forward.1} parent=5 // pred_region
        // Predicated region
        $region53: #{digit_pallas_forward.1} parent=51 // pred_check
          %p306 = pneg %p39
        $region54: #{digit_pallas_forward.1} parent=51 // pred_check_branch
          %308 = sbr.rel (%p306) target = $region56
        $region55: #{digit_pallas_forward.1} parent=51 // pred_region
          %p309 = scmp.lt.s32.totalorder %s19, 1
          %s310 = scalar_select %p309, %s19, 1
          %s311 = smul.addr %s310, 7
          %s312 = scalar_lea.vmem %s0, %s311
        $region56: #{digit_pallas_forward.1} parent=51 // pred_fallthru
          _
      $region52: #{digit_pallas_forward.1} parent=5 // pred_fallthru
        _
      %p313 = scmp.le.s32.totalorder 1, %s19
      %p314 = scmp.lt.s32.totalorder %s19, 3
      %p315 = pnand %p313, %p314
      %p316 = pneg %p315
      // Predicated region
      $region57: #{digit_pallas_forward.1} parent=5 // pred_check
        _
      $region58: #{digit_pallas_forward.1} parent=5 // pred_check_branch
        %318 = sbr.rel (%p315) target = $region60
      $region59: #{digit_pallas_forward.1} parent=5 // pred_region
        %s319 = ssub.s32 %s19, 1
        %p320 = scmp.lt.s32.totalorder %s24, 1
        %s321 = scalar_select %p320, %s24, 1
        %s322 = smul.addr %s321, 7
        %s323 = scalar_lea.vmem %s0, %s322
        %p324 = pneg %p45
        %p325 = pneg %p42
        %p326 = pneg %p66
        %p327 = pneg %p63
        %p328 = pneg %p87
        %p329 = pneg %p84
        %p330 = pneg %p108
        %p331 = pneg %p105
        %p332 = pneg %p129
        %p333 = pneg %p126
        %p334 = pneg %p150
        %p335 = pneg %p147
        %p336 = pneg %p171
        %p337 = pneg %p168
        %p338 = pneg %p192
        %p339 = pneg %p189
        %p340 = pneg %p213
        %p341 = pneg %p210
        %p342 = pneg %p234
        %p343 = pneg %p231
        %p344 = pneg %p260
        %p345 = pneg %p257
        %s346 = sand.u32 %s247, 1
        %s347 = scalar_lea.sflag [#allocation3], %s346
        %s348 = sand.u32 %s247, 1
        %s349 = scalar_lea.vmem [#allocation2], %s348
        %p350 = scmp.lt.s32.totalorder %s24, 1
        %s351 = scalar_select %p350, %s24, 1
        %s352 = smul.addr %s351, 7
        %s353 = scalar_lea.vmem %s0, %s352
        %v354 = vld [vmem:[%s353] sm:$0x7f]
        %v355 = vld [vmem:[%s1] sm:$0xff]
        %v356 = vld [vmem:[%s1 + $0x8] sm:$0x3]
        %358 = vset.pattern.permute.xlu0 0
        %359 = vperm.xlu0 %358, %v355
        %v360 = vpop.permute.xlu0 %359
        %363 = vset.pattern.permute.xlu0 0
        %364 = vperm.xlu0 %363, %v356
        %v365 = vpop.permute.xlu0 %364
        %v368 = vlaneseq
        %v369 = vshrl.u32 %v368, 7
        %v370 = vsub.s32 0, %v369
        %v371 = vrot.slane %v354, %v370
        %v372 = vlaneseq
        %v373 = vshrl.u32 %v372, 7
        %v374 = vsub.s32 1, %v373
        %v375 = vrot.slane %v354, %v374
        %v376 = vlaneseq
        %v377 = vshrl.u32 %v376, 7
        %v378 = vsub.s32 2, %v377
        %v379 = vrot.slane %v354, %v378
        %v380 = vlaneseq
        %v381 = vshrl.u32 %v380, 7
        %v382 = vsub.s32 3, %v381
        %v383 = vrot.slane %v354, %v382
        %v384 = vlaneseq
        %v385 = vshrl.u32 %v384, 7
        %v386 = vsub.s32 4, %v385
        %v387 = vrot.slane %v354, %v386
        %v388 = vlaneseq
        %v389 = vshrl.u32 %v388, 7
        %v390 = vsub.s32 5, %v389
        %v391 = vrot.slane %v354, %v390
        %v398 = vmul.f32 %v360, %v371
        %v399 = vmul.f32 %v360, %v375
        %v400 = vmul.f32 %v360, %v379
        %v401 = vmul.f32 %v360, %v383
        %v402 = vmul.f32 %v360, %v387
        %v403 = vmul.f32 %v360, %v391
        %v404 = vmul.f32 %v365, %v371
        %v405 = vmul.f32 %v365, %v375
        %v406 = vmul.f32 %v365, %v379
        %v407 = vmul.f32 %v365, %v383
        %v408 = vmul.f32 %v365, %v387
        %v409 = vmul.f32 %v365, %v391
        %v410 = vadd.f32 %v398, 0.0
        %v411 = vadd.f32 %v399, 0.0
        %v412 = vadd.f32 %v400, 0.0
        %v413 = vadd.f32 %v401, 0.0
        %v414 = vadd.f32 %v402, 0.0
        %v415 = vadd.f32 %v403, 0.0
        %v416 = vadd.f32 %v404, 0.0
        %v417 = vadd.f32 %v405, 0.0
        %v418 = vadd.f32 %v406, 0.0
        %v419 = vadd.f32 %v407, 0.0
        %v420 = vadd.f32 %v408, 0.0
        %v421 = vadd.f32 %v409, 0.0
        %422 = vset.pattern.permute.xlu0 1
        %423 = vperm.xlu0 %422, %v355
        %v424 = vpop.permute.xlu0 %423
        %426 = vset.pattern.permute.xlu0 1
        %427 = vperm.xlu0 %426, %v356
        %v428 = vpop.permute.xlu0 %427
        %v430 = vmul.f32 %v424, %v371
        %v431 = vmul.f32 %v424, %v375
        %v432 = vmul.f32 %v424, %v379
        %v433 = vmul.f32 %v424, %v383
        %v434 = vmul.f32 %v424, %v387
        %v435 = vmul.f32 %v424, %v391
        %v436 = vmul.f32 %v428, %v371
        %v437 = vmul.f32 %v428, %v375
        %v438 = vmul.f32 %v428, %v379
        %v439 = vmul.f32 %v428, %v383
        %v440 = vmul.f32 %v428, %v387
        %v441 = vmul.f32 %v428, %v391
        %454 = vrot.lane.b32.xlu0 %v430, 127
        %v455 = vpop.permute.xlu0 %454
        %456 = vrot.lane.b32.xlu0 %v431, 127
        %v457 = vpop.permute.xlu0 %456
        %458 = vrot.lane.b32.xlu0 %v432, 127
        %v459 = vpop.permute.xlu0 %458
        %460 = vrot.lane.b32.xlu0 %v433, 127
        %v461 = vpop.permute.xlu0 %460
        %462 = vrot.lane.b32.xlu0 %v434, 127
        %v463 = vpop.permute.xlu0 %462
        %464 = vrot.lane.b32.xlu0 %v435, 127
        %v465 = vpop.permute.xlu0 %464
        %466 = vrot.lane.b32.xlu0 %v436, 127
        %v467 = vpop.permute.xlu0 %466
        %468 = vrot.lane.b32.xlu0 %v437, 127
        %v469 = vpop.permute.xlu0 %468
        %470 = vrot.lane.b32.xlu0 %v438, 127
        %v471 = vpop.permute.xlu0 %470
        %472 = vrot.lane.b32.xlu0 %v439, 127
        %v473 = vpop.permute.xlu0 %472
        %474 = vrot.lane.b32.xlu0 %v440, 127
        %v475 = vpop.permute.xlu0 %474
        %476 = vrot.lane.b32.xlu0 %v441, 127
        %v477 = vpop.permute.xlu0 %476
        %vm478 = vcmask 1039360
        %v479 = vsel %vm478, %v455, %v457
        %v480 = vsel %vm478, %v457, %v459
        %v481 = vsel %vm478, %v459, %v461
        %v482 = vsel %vm478, %v461, %v463
        %v483 = vsel %vm478, %v463, %v465
        %v484 = vsel %vm478, %v467, %v469
        %v485 = vsel %vm478, %v469, %v471
        %v486 = vsel %vm478, %v471, %v473
        %v487 = vsel %vm478, %v473, %v475
        %v488 = vsel %vm478, %v475, %v477
        %v501 = vadd.f32 %v410, %v479
        %v502 = vadd.f32 %v411, %v480
        %v503 = vadd.f32 %v412, %v481
        %v504 = vadd.f32 %v413, %v482
        %v505 = vadd.f32 %v414, %v483
        %v506 = vadd.f32 %v415, %v465
        %v507 = vadd.f32 %v416, %v484
        %v508 = vadd.f32 %v417, %v485
        %v509 = vadd.f32 %v418, %v486
        %v510 = vadd.f32 %v419, %v487
        %v511 = vadd.f32 %v420, %v488
        %v512 = vadd.f32 %v421, %v477
        %513 = vset.pattern.permute.xlu0 2
        %514 = vperm.xlu0 %513, %v355
        %v515 = vpop.permute.xlu0 %514
        %517 = vset.pattern.permute.xlu0 2
        %518 = vperm.xlu0 %517, %v356
        %v519 = vpop.permute.xlu0 %518
        %v521 = vmul.f32 %v515, %v371
        %v522 = vmul.f32 %v515, %v375
        %v523 = vmul.f32 %v515, %v379
        %v524 = vmul.f32 %v515, %v383
        %v525 = vmul.f32 %v515, %v387
        %v526 = vmul.f32 %v515, %v391
        %v527 = vmul.f32 %v519, %v371
        %v528 = vmul.f32 %v519, %v375
        %v529 = vmul.f32 %v519, %v379
        %v530 = vmul.f32 %v519, %v383
        %v531 = vmul.f32 %v519, %v387
        %v532 = vmul.f32 %v519, %v391
        %545 = vrot.lane.b32.xlu0 %v521, 126
        %v546 = vpop.permute.xlu0 %545
        %547 = vrot.lane.b32.xlu0 %v522, 126
        %v548 = vpop.permute.xlu0 %547
        %549 = vrot.lane.b32.xlu0 %v523, 126
        %v550 = vpop.permute.xlu0 %549
        %551 = vrot.lane.b32.xlu0 %v524, 126
        %v552 = vpop.permute.xlu0 %551
        %553 = vrot.lane.b32.xlu0 %v525, 126
        %v554 = vpop.permute.xlu0 %553
        %555 = vrot.lane.b32.xlu0 %v526, 126
        %v556 = vpop.permute.xlu0 %555
        %557 = vrot.lane.b32.xlu0 %v527, 126
        %v558 = vpop.permute.xlu0 %557
        %559 = vrot.lane.b32.xlu0 %v528, 126
        %v560 = vpop.permute.xlu0 %559
        %561 = vrot.lane.b32.xlu0 %v529, 126
        %v562 = vpop.permute.xlu0 %561
        %563 = vrot.lane.b32.xlu0 %v530, 126
        %v564 = vpop.permute.xlu0 %563
        %565 = vrot.lane.b32.xlu0 %v531, 126
        %v566 = vpop.permute.xlu0 %565
        %567 = vrot.lane.b32.xlu0 %v532, 126
        %v568 = vpop.permute.xlu0 %567
        %vm569 = vcmask 1031168
        %v570 = vsel %vm569, %v546, %v548
        %v571 = vsel %vm569, %v548, %v550
        %v572 = vsel %vm569, %v550, %v552
        %v573 = vsel %vm569, %v552, %v554
        %v574 = vsel %vm569, %v554, %v556
        %v575 = vsel %vm569, %v558, %v560
        %v576 = vsel %vm569, %v560, %v562
        %v577 = vsel %vm569, %v562, %v564
        %v578 = vsel %vm569, %v564, %v566
        %v579 = vsel %vm569, %v566, %v568
        %v592 = vadd.f32 %v501, %v570
        %v593 = vadd.f32 %v502, %v571
        %v594 = vadd.f32 %v503, %v572
        %v595 = vadd.f32 %v504, %v573
        %v596 = vadd.f32 %v505, %v574
        %v597 = vadd.f32 %v506, %v556
        %v598 = vadd.f32 %v507, %v575
        %v599 = vadd.f32 %v508, %v576
        %v600 = vadd.f32 %v509, %v577
        %v601 = vadd.f32 %v510, %v578
        %v602 = vadd.f32 %v511, %v579
        %v603 = vadd.f32 %v512, %v568
        %604 = vset.pattern.permute.xlu0 3
        %605 = vperm.xlu0 %604, %v355
        %v606 = vpop.permute.xlu0 %605
        %608 = vset.pattern.permute.xlu0 3
        %609 = vperm.xlu0 %608, %v356
        %v610 = vpop.permute.xlu0 %609
        %v612 = vmul.f32 %v606, %v371
        %v613 = vmul.f32 %v606, %v375
        %v614 = vmul.f32 %v606, %v379
        %v615 = vmul.f32 %v606, %v383
        %v616 = vmul.f32 %v606, %v387
        %v617 = vmul.f32 %v606, %v391
        %v618 = vmul.f32 %v610, %v371
        %v619 = vmul.f32 %v610, %v375
        %v620 = vmul.f32 %v610, %v379
        %v621 = vmul.f32 %v610, %v383
        %v622 = vmul.f32 %v610, %v387
        %v623 = vmul.f32 %v610, %v391
        %636 = vrot.lane.b32.xlu0 %v612, 125
        %v637 = vpop.permute.xlu0 %636
        %638 = vrot.lane.b32.xlu0 %v613, 125
        %v639 = vpop.permute.xlu0 %638
        %640 = vrot.lane.b32.xlu0 %v614, 125
        %v641 = vpop.permute.xlu0 %640
        %642 = vrot.lane.b32.xlu0 %v615, 125
        %v643 = vpop.permute.xlu0 %642
        %644 = vrot.lane.b32.xlu0 %v616, 125
        %v645 = vpop.permute.xlu0 %644
        %646 = vrot.lane.b32.xlu0 %v617, 125
        %v647 = vpop.permute.xlu0 %646
        %648 = vrot.lane.b32.xlu0 %v618, 125
        %v649 = vpop.permute.xlu0 %648
        %650 = vrot.lane.b32.xlu0 %v619, 125
        %v651 = vpop.permute.xlu0 %650
        %652 = vrot.lane.b32.xlu0 %v620, 125
        %v653 = vpop.permute.xlu0 %652
        %654 = vrot.lane.b32.xlu0 %v621, 125
        %v655 = vpop.permute.xlu0 %654
        %656 = vrot.lane.b32.xlu0 %v622, 125
        %v657 = vpop.permute.xlu0 %656
        %658 = vrot.lane.b32.xlu0 %v623, 125
        %v659 = vpop.permute.xlu0 %658
        %vm660 = vcmask 1022976
        %v661 = vsel %vm660, %v637, %v639
        %v662 = vsel %vm660, %v639, %v641
        %v663 = vsel %vm660, %v641, %v643
        %v664 = vsel %vm660, %v643, %v645
        %v665 = vsel %vm660, %v645, %v647
        %v666 = vsel %vm660, %v649, %v651
        %v667 = vsel %vm660, %v651, %v653
        %v668 = vsel %vm660, %v653, %v655
        %v669 = vsel %vm660, %v655, %v657
        %v670 = vsel %vm660, %v657, %v659
        %v683 = vadd.f32 %v592, %v661
        %v684 = vadd.f32 %v593, %v662
        %v685 = vadd.f32 %v594, %v663
        %v686 = vadd.f32 %v595, %v664
        %v687 = vadd.f32 %v596, %v665
        %v688 = vadd.f32 %v597, %v647
        %v689 = vadd.f32 %v598, %v666
        %v690 = vadd.f32 %v599, %v667
        %v691 = vadd.f32 %v600, %v668
        %v692 = vadd.f32 %v601, %v669
        %v693 = vadd.f32 %v602, %v670
        %v694 = vadd.f32 %v603, %v659
        %695 = vset.pattern.permute.xlu0 4
        %696 = vperm.xlu0 %695, %v355
        %v697 = vpop.permute.xlu0 %696
        %699 = vset.pattern.permute.xlu0 4
        %700 = vperm.xlu0 %699, %v356
        %v701 = vpop.permute.xlu0 %700
        %v703 = vmul.f32 %v697, %v371
        %v704 = vmul.f32 %v697, %v375
        %v705 = vmul.f32 %v697, %v379
        %v706 = vmul.f32 %v697, %v383
        %v707 = vmul.f32 %v697, %v387
        %v708 = vmul.f32 %v697, %v391
        %v709 = vmul.f32 %v701, %v371
        %v710 = vmul.f32 %v701, %v375
        %v711 = vmul.f32 %v701, %v379
        %v712 = vmul.f32 %v701, %v383
        %v713 = vmul.f32 %v701, %v387
        %v714 = vmul.f32 %v701, %v391
        %727 = vrot.lane.b32.xlu0 %v703, 124
        %v728 = vpop.permute.xlu0 %727
        %729 = vrot.lane.b32.xlu0 %v704, 124
        %v730 = vpop.permute.xlu0 %729
        %731 = vrot.lane.b32.xlu0 %v705, 124
        %v732 = vpop.permute.xlu0 %731
        %733 = vrot.lane.b32.xlu0 %v706, 124
        %v734 = vpop.permute.xlu0 %733
        %735 = vrot.lane.b32.xlu0 %v707, 124
        %v736 = vpop.permute.xlu0 %735
        %737 = vrot.lane.b32.xlu0 %v708, 124
        %v738 = vpop.permute.xlu0 %737
        %739 = vrot.lane.b32.xlu0 %v709, 124
        %v740 = vpop.permute.xlu0 %739
        %741 = vrot.lane.b32.xlu0 %v710, 124
        %v742 = vpop.permute.xlu0 %741
        %743 = vrot.lane.b32.xlu0 %v711, 124
        %v744 = vpop.permute.xlu0 %743
        %745 = vrot.lane.b32.xlu0 %v712, 124
        %v746 = vpop.permute.xlu0 %745
        %747 = vrot.lane.b32.xlu0 %v713, 124
        %v748 = vpop.permute.xlu0 %747
        %749 = vrot.lane.b32.xlu0 %v714, 124
        %v750 = vpop.permute.xlu0 %749
        %vm751 = vcmask 1014784
        %v752 = vsel %vm751, %v728, %v730
        %v753 = vsel %vm751, %v730, %v732
        %v754 = vsel %vm751, %v732, %v734
        %v755 = vsel %vm751, %v734, %v736
        %v756 = vsel %vm751, %v736, %v738
        %v757 = vsel %vm751, %v740, %v742
        %v758 = vsel %vm751, %v742, %v744
        %v759 = vsel %vm751, %v744, %v746
        %v760 = vsel %vm751, %v746, %v748
        %v761 = vsel %vm751, %v748, %v750
        %v774 = vadd.f32 %v683, %v752
        %v775 = vadd.f32 %v684, %v753
        %v776 = vadd.f32 %v685, %v754
        %v777 = vadd.f32 %v686, %v755
        %v778 = vadd.f32 %v687, %v756
        %v779 = vadd.f32 %v688, %v738
        %v780 = vadd.f32 %v689, %v757
        %v781 = vadd.f32 %v690, %v758
        %v782 = vadd.f32 %v691, %v759
        %v783 = vadd.f32 %v692, %v760
        %v784 = vadd.f32 %v693, %v761
        %v785 = vadd.f32 %v694, %v750
        %786 = vset.pattern.permute.xlu0 5
        %787 = vperm.xlu0 %786, %v355
        %v788 = vpop.permute.xlu0 %787
        %790 = vset.pattern.permute.xlu0 5
        %791 = vperm.xlu0 %790, %v356
        %v792 = vpop.permute.xlu0 %791
        %v794 = vmul.f32 %v788, %v371
        %v795 = vmul.f32 %v788, %v375
        %v796 = vmul.f32 %v788, %v379
        %v797 = vmul.f32 %v788, %v383
        %v798 = vmul.f32 %v788, %v387
        %v799 = vmul.f32 %v788, %v391
        %v800 = vmul.f32 %v792, %v371
        %v801 = vmul.f32 %v792, %v375
        %v802 = vmul.f32 %v792, %v379
        %v803 = vmul.f32 %v792, %v383
        %v804 = vmul.f32 %v792, %v387
        %v805 = vmul.f32 %v792, %v391
        %818 = vrot.lane.b32.xlu0 %v794, 100
        %v819 = vpop.permute.xlu0 %818
        %820 = vrot.lane.b32.xlu0 %v795, 100
        %v821 = vpop.permute.xlu0 %820
        %822 = vrot.lane.b32.xlu0 %v796, 100
        %v823 = vpop.permute.xlu0 %822
        %824 = vrot.lane.b32.xlu0 %v797, 100
        %v825 = vpop.permute.xlu0 %824
        %826 = vrot.lane.b32.xlu0 %v798, 100
        %v827 = vpop.permute.xlu0 %826
        %828 = vrot.lane.b32.xlu0 %v799, 100
        %v829 = vpop.permute.xlu0 %828
        %830 = vrot.lane.b32.xlu0 %v800, 100
        %v831 = vpop.permute.xlu0 %830
        %832 = vrot.lane.b32.xlu0 %v801, 100
        %v833 = vpop.permute.xlu0 %832
        %834 = vrot.lane.b32.xlu0 %v802, 100
        %v835 = vpop.permute.xlu0 %834
        %836 = vrot.lane.b32.xlu0 %v803, 100
        %v837 = vpop.permute.xlu0 %836
        %838 = vrot.lane.b32.xlu0 %v804, 100
        %v839 = vpop.permute.xlu0 %838
        %840 = vrot.lane.b32.xlu0 %v805, 100
        %v841 = vpop.permute.xlu0 %840
        %vm842 = vcmask 818176
        %v843 = vsel %vm842, %v819, %v821
        %v844 = vsel %vm842, %v821, %v823
        %v845 = vsel %vm842, %v823, %v825
        %v846 = vsel %vm842, %v825, %v827
        %v847 = vsel %vm842, %v827, %v829
        %v848 = vsel %vm842, %v831, %v833
        %v849 = vsel %vm842, %v833, %v835
        %v850 = vsel %vm842, %v835, %v837
        %v851 = vsel %vm842, %v837, %v839
        %v852 = vsel %vm842, %v839, %v841
        %v865 = vadd.f32 %v774, %v843
        %v866 = vadd.f32 %v775, %v844
        %v867 = vadd.f32 %v776, %v845
        %v868 = vadd.f32 %v777, %v846
        %v869 = vadd.f32 %v778, %v847
        %v870 = vadd.f32 %v779, %v829
        %v871 = vadd.f32 %v780, %v848
        %v872 = vadd.f32 %v781, %v849
        %v873 = vadd.f32 %v782, %v850
        %v874 = vadd.f32 %v783, %v851
        %v875 = vadd.f32 %v784, %v852
        %v876 = vadd.f32 %v785, %v841
        %877 = vset.pattern.permute.xlu0 6
        %878 = vperm.xlu0 %877, %v355
        %v879 = vpop.permute.xlu0 %878
        %881 = vset.pattern.permute.xlu0 6
        %882 = vperm.xlu0 %881, %v356
        %v883 = vpop.permute.xlu0 %882
        %v885 = vmul.f32 %v879, %v371
        %v886 = vmul.f32 %v879, %v375
        %v887 = vmul.f32 %v879, %v379
        %v888 = vmul.f32 %v879, %v383
        %v889 = vmul.f32 %v879, %v387
        %v890 = vmul.f32 %v879, %v391
        %v891 = vmul.f32 %v883, %v371
        %v892 = vmul.f32 %v883, %v375
        %v893 = vmul.f32 %v883, %v379
        %v894 = vmul.f32 %v883, %v383
        %v895 = vmul.f32 %v883, %v387
        %v896 = vmul.f32 %v883, %v391
        %909 = vrot.lane.b32.xlu0 %v885, 99
        %v910 = vpop.permute.xlu0 %909
        %911 = vrot.lane.b32.xlu0 %v886, 99
        %v912 = vpop.permute.xlu0 %911
        %913 = vrot.lane.b32.xlu0 %v887, 99
        %v914 = vpop.permute.xlu0 %913
        %915 = vrot.lane.b32.xlu0 %v888, 99
        %v916 = vpop.permute.xlu0 %915
        %917 = vrot.lane.b32.xlu0 %v889, 99
        %v918 = vpop.permute.xlu0 %917
        %919 = vrot.lane.b32.xlu0 %v890, 99
        %v920 = vpop.permute.xlu0 %919
        %921 = vrot.lane.b32.xlu0 %v891, 99
        %v922 = vpop.permute.xlu0 %921
        %923 = vrot.lane.b32.xlu0 %v892, 99
        %v924 = vpop.permute.xlu0 %923
        %925 = vrot.lane.b32.xlu0 %v893, 99
        %v926 = vpop.permute.xlu0 %925
        %927 = vrot.lane.b32.xlu0 %v894, 99
        %v928 = vpop.permute.xlu0 %927
        %929 = vrot.lane.b32.xlu0 %v895, 99
        %v930 = vpop.permute.xlu0 %929
        %931 = vrot.lane.b32.xlu0 %v896, 99
        %v932 = vpop.permute.xlu0 %931
        %vm933 = vcmask 809984
        %v934 = vsel %vm933, %v910, %v912
        %v935 = vsel %vm933, %v912, %v914
        %v936 = vsel %vm933, %v914, %v916
        %v937 = vsel %vm933, %v916, %v918
        %v938 = vsel %vm933, %v918, %v920
        %v939 = vsel %vm933, %v922, %v924
        %v940 = vsel %vm933, %v924, %v926
        %v941 = vsel %vm933, %v926, %v928
        %v942 = vsel %vm933, %v928, %v930
        %v943 = vsel %vm933, %v930, %v932
        %v956 = vadd.f32 %v865, %v934
        %v957 = vadd.f32 %v866, %v935
        %v958 = vadd.f32 %v867, %v936
        %v959 = vadd.f32 %v868, %v937
        %v960 = vadd.f32 %v869, %v938
        %v961 = vadd.f32 %v870, %v920
        %v962 = vadd.f32 %v871, %v939
        %v963 = vadd.f32 %v872, %v940
        %v964 = vadd.f32 %v873, %v941
        %v965 = vadd.f32 %v874, %v942
        %v966 = vadd.f32 %v875, %v943
        %v967 = vadd.f32 %v876, %v932
        %968 = vset.pattern.permute.xlu0 7
        %969 = vperm.xlu0 %968, %v355
        %v970 = vpop.permute.xlu0 %969
        %972 = vset.pattern.permute.xlu0 7
        %973 = vperm.xlu0 %972, %v356
        %v974 = vpop.permute.xlu0 %973
        %v976 = vmul.f32 %v970, %v371
        %v977 = vmul.f32 %v970, %v375
        %v978 = vmul.f32 %v970, %v379
        %v979 = vmul.f32 %v970, %v383
        %v980 = vmul.f32 %v970, %v387
        %v981 = vmul.f32 %v970, %v391
        %v982 = vmul.f32 %v974, %v371
        %v983 = vmul.f32 %v974, %v375
        %v984 = vmul.f32 %v974, %v379
        %v985 = vmul.f32 %v974, %v383
        %v986 = vmul.f32 %v974, %v387
        %v987 = vmul.f32 %v974, %v391
        %1000 = vrot.lane.b32.xlu0 %v976, 98
        %v1001 = vpop.permute.xlu0 %1000
        %1002 = vrot.lane.b32.xlu0 %v977, 98
        %v1003 = vpop.permute.xlu0 %1002
        %1004 = vrot.lane.b32.xlu0 %v978, 98
        %v1005 = vpop.permute.xlu0 %1004
        %1006 = vrot.lane.b32.xlu0 %v979, 98
        %v1007 = vpop.permute.xlu0 %1006
        %1008 = vrot.lane.b32.xlu0 %v980, 98
        %v1009 = vpop.permute.xlu0 %1008
        %1010 = vrot.lane.b32.xlu0 %v981, 98
        %v1011 = vpop.permute.xlu0 %1010
        %1012 = vrot.lane.b32.xlu0 %v982, 98
        %v1013 = vpop.permute.xlu0 %1012
        %1014 = vrot.lane.b32.xlu0 %v983, 98
        %v1015 = vpop.permute.xlu0 %1014
        %1016 = vrot.lane.b32.xlu0 %v984, 98
        %v1017 = vpop.permute.xlu0 %1016
        %1018 = vrot.lane.b32.xlu0 %v985, 98
        %v1019 = vpop.permute.xlu0 %1018
        %1020 = vrot.lane.b32.xlu0 %v986, 98
        %v1021 = vpop.permute.xlu0 %1020
        %1022 = vrot.lane.b32.xlu0 %v987, 98
        %v1023 = vpop.permute.xlu0 %1022
        %vm1024 = vcmask 801792
        %v1025 = vsel %vm1024, %v1001, %v1003
        %v1026 = vsel %vm1024, %v1003, %v1005
        %v1027 = vsel %vm1024, %v1005, %v1007
        %v1028 = vsel %vm1024, %v1007, %v1009
        %v1029 = vsel %vm1024, %v1009, %v1011
        %v1030 = vsel %vm1024, %v1013, %v1015
        %v1031 = vsel %vm1024, %v1015, %v1017
        %v1032 = vsel %vm1024, %v1017, %v1019
        %v1033 = vsel %vm1024, %v1019, %v1021
        %v1034 = vsel %vm1024, %v1021, %v1023
        %v1047 = vadd.f32 %v956, %v1025
        %v1048 = vadd.f32 %v957, %v1026
        %v1049 = vadd.f32 %v958, %v1027
        %v1050 = vadd.f32 %v959, %v1028
        %v1051 = vadd.f32 %v960, %v1029
        %v1052 = vadd.f32 %v961, %v1011
        %v1053 = vadd.f32 %v962, %v1030
        %v1054 = vadd.f32 %v963, %v1031
        %v1055 = vadd.f32 %v964, %v1032
        %v1056 = vadd.f32 %v965, %v1033
        %v1057 = vadd.f32 %v966, %v1034
        %v1058 = vadd.f32 %v967, %v1023
        %1059 = vset.pattern.permute.xlu0 8
        %1060 = vperm.xlu0 %1059, %v355
        %v1061 = vpop.permute.xlu0 %1060
        %1063 = vset.pattern.permute.xlu0 8
        %1064 = vperm.xlu0 %1063, %v356
        %v1065 = vpop.permute.xlu0 %1064
        %v1067 = vmul.f32 %v1061, %v371
        %v1068 = vmul.f32 %v1061, %v375
        %v1069 = vmul.f32 %v1061, %v379
        %v1070 = vmul.f32 %v1061, %v383
        %v1071 = vmul.f32 %v1061, %v387
        %v1072 = vmul.f32 %v1061, %v391
        %v1073 = vmul.f32 %v1065, %v371
        %v1074 = vmul.f32 %v1065, %v375
        %v1075 = vmul.f32 %v1065, %v379
        %v1076 = vmul.f32 %v1065, %v383
        %v1077 = vmul.f32 %v1065, %v387
        %v1078 = vmul.f32 %v1065, %v391
        %1091 = vrot.lane.b32.xlu0 %v1067, 97
        %v1092 = vpop.permute.xlu0 %1091
        %1093 = vrot.lane.b32.xlu0 %v1068, 97
        %v1094 = vpop.permute.xlu0 %1093
        %1095 = vrot.lane.b32.xlu0 %v1069, 97
        %v1096 = vpop.permute.xlu0 %1095
        %1097 = vrot.lane.b32.xlu0 %v1070, 97
        %v1098 = vpop.permute.xlu0 %1097
        %1099 = vrot.lane.b32.xlu0 %v1071, 97
        %v1100 = vpop.permute.xlu0 %1099
        %1101 = vrot.lane.b32.xlu0 %v1072, 97
        %v1102 = vpop.permute.xlu0 %1101
        %1103 = vrot.lane.b32.xlu0 %v1073, 97
        %v1104 = vpop.permute.xlu0 %1103
        %1105 = vrot.lane.b32.xlu0 %v1074, 97
        %v1106 = vpop.permute.xlu0 %1105
        %1107 = vrot.lane.b32.xlu0 %v1075, 97
        %v1108 = vpop.permute.xlu0 %1107
        %1109 = vrot.lane.b32.xlu0 %v1076, 97
        %v1110 = vpop.permute.xlu0 %1109
        %1111 = vrot.lane.b32.xlu0 %v1077, 97
        %v1112 = vpop.permute.xlu0 %1111
        %1113 = vrot.lane.b32.xlu0 %v1078, 97
        %v1114 = vpop.permute.xlu0 %1113
        %vm1115 = vcmask 793600
        %v1116 = vsel %vm1115, %v1092, %v1094
        %v1117 = vsel %vm1115, %v1094, %v1096
        %v1118 = vsel %vm1115, %v1096, %v1098
        %v1119 = vsel %vm1115, %v1098, %v1100
        %v1120 = vsel %vm1115, %v1100, %v1102
        %v1121 = vsel %vm1115, %v1104, %v1106
        %v1122 = vsel %vm1115, %v1106, %v1108
        %v1123 = vsel %vm1115, %v1108, %v1110
        %v1124 = vsel %vm1115, %v1110, %v1112
        %v1125 = vsel %vm1115, %v1112, %v1114
        %v1138 = vadd.f32 %v1047, %v1116
        %v1139 = vadd.f32 %v1048, %v1117
        %v1140 = vadd.f32 %v1049, %v1118
        %v1141 = vadd.f32 %v1050, %v1119
        %v1142 = vadd.f32 %v1051, %v1120
        %v1143 = vadd.f32 %v1052, %v1102
        %v1144 = vadd.f32 %v1053, %v1121
        %v1145 = vadd.f32 %v1054, %v1122
        %v1146 = vadd.f32 %v1055, %v1123
        %v1147 = vadd.f32 %v1056, %v1124
        %v1148 = vadd.f32 %v1057, %v1125
        %v1149 = vadd.f32 %v1058, %v1114
        %1150 = vset.pattern.permute.xlu0 9
        %1151 = vperm.xlu0 %1150, %v355
        %v1152 = vpop.permute.xlu0 %1151
        %1154 = vset.pattern.permute.xlu0 9
        %1155 = vperm.xlu0 %1154, %v356
        %v1156 = vpop.permute.xlu0 %1155
        %v1158 = vmul.f32 %v1152, %v371
        %v1159 = vmul.f32 %v1152, %v375
        %v1160 = vmul.f32 %v1152, %v379
        %v1161 = vmul.f32 %v1152, %v383
        %v1162 = vmul.f32 %v1152, %v387
        %v1163 = vmul.f32 %v1152, %v391
        %v1164 = vmul.f32 %v1156, %v371
        %v1165 = vmul.f32 %v1156, %v375
        %v1166 = vmul.f32 %v1156, %v379
        %v1167 = vmul.f32 %v1156, %v383
        %v1168 = vmul.f32 %v1156, %v387
        %v1169 = vmul.f32 %v1156, %v391
        %1182 = vrot.lane.b32.xlu0 %v1158, 96
        %v1183 = vpop.permute.xlu0 %1182
        %1184 = vrot.lane.b32.xlu0 %v1159, 96
        %v1185 = vpop.permute.xlu0 %1184
        %1186 = vrot.lane.b32.xlu0 %v1160, 96
        %v1187 = vpop.permute.xlu0 %1186
        %1188 = vrot.lane.b32.xlu0 %v1161, 96
        %v1189 = vpop.permute.xlu0 %1188
        %1190 = vrot.lane.b32.xlu0 %v1162, 96
        %v1191 = vpop.permute.xlu0 %1190
        %1192 = vrot.lane.b32.xlu0 %v1163, 96
        %v1193 = vpop.permute.xlu0 %1192
        %1194 = vrot.lane.b32.xlu0 %v1164, 96
        %v1195 = vpop.permute.xlu0 %1194
        %1196 = vrot.lane.b32.xlu0 %v1165, 96
        %v1197 = vpop.permute.xlu0 %1196
        %1198 = vrot.lane.b32.xlu0 %v1166, 96
        %v1199 = vpop.permute.xlu0 %1198
        %1200 = vrot.lane.b32.xlu0 %v1167, 96
        %v1201 = vpop.permute.xlu0 %1200
        %1202 = vrot.lane.b32.xlu0 %v1168, 96
        %v1203 = vpop.permute.xlu0 %1202
        %1204 = vrot.lane.b32.xlu0 %v1169, 96
        %v1205 = vpop.permute.xlu0 %1204
        %vm1206 = vcmask 785408
        %v1207 = vsel %vm1206, %v1183, %v1185
        %v1208 = vsel %vm1206, %v1185, %v1187
        %v1209 = vsel %vm1206, %v1187, %v1189
        %v1210 = vsel %vm1206, %v1189, %v1191
        %v1211 = vsel %vm1206, %v1191, %v1193
        %v1212 = vsel %vm1206, %v1195, %v1197
        %v1213 = vsel %vm1206, %v1197, %v1199
        %v1214 = vsel %vm1206, %v1199, %v1201
        %v1215 = vsel %vm1206, %v1201, %v1203
        %v1216 = vsel %vm1206, %v1203, %v1205
        %v1229 = vadd.f32 %v1138, %v1207
        %v1230 = vadd.f32 %v1139, %v1208
        %v1231 = vadd.f32 %v1140, %v1209
        %v1232 = vadd.f32 %v1141, %v1210
        %v1233 = vadd.f32 %v1142, %v1211
        %v1234 = vadd.f32 %v1143, %v1193
        %v1235 = vadd.f32 %v1144, %v1212
        %v1236 = vadd.f32 %v1145, %v1213
        %v1237 = vadd.f32 %v1146, %v1214
        %v1238 = vadd.f32 %v1147, %v1215
        %v1239 = vadd.f32 %v1148, %v1216
        %v1240 = vadd.f32 %v1149, %v1205
        %1241 = vset.pattern.permute.xlu0 10
        %1242 = vperm.xlu0 %1241, %v355
        %v1243 = vpop.permute.xlu0 %1242
        %1245 = vset.pattern.permute.xlu0 10
        %1246 = vperm.xlu0 %1245, %v356
        %v1247 = vpop.permute.xlu0 %1246
        %v1249 = vmul.f32 %v1243, %v371
        %v1250 = vmul.f32 %v1243, %v375
        %v1251 = vmul.f32 %v1243, %v379
        %v1252 = vmul.f32 %v1243, %v383
        %v1253 = vmul.f32 %v1243, %v387
        %v1254 = vmul.f32 %v1243, %v391
        %v1255 = vmul.f32 %v1247, %v371
        %v1256 = vmul.f32 %v1247, %v375
        %v1257 = vmul.f32 %v1247, %v379
        %v1258 = vmul.f32 %v1247, %v383
        %v1259 = vmul.f32 %v1247, %v387
        %v1260 = vmul.f32 %v1247, %v391
        %1273 = vrot.lane.b32.xlu0 %v1249, 72
        %v1274 = vpop.permute.xlu0 %1273
        %1275 = vrot.lane.b32.xlu0 %v1250, 72
        %v1276 = vpop.permute.xlu0 %1275
        %1277 = vrot.lane.b32.xlu0 %v1251, 72
        %v1278 = vpop.permute.xlu0 %1277
        %1279 = vrot.lane.b32.xlu0 %v1252, 72
        %v1280 = vpop.permute.xlu0 %1279
        %1281 = vrot.lane.b32.xlu0 %v1253, 72
        %v1282 = vpop.permute.xlu0 %1281
        %1283 = vrot.lane.b32.xlu0 %v1254, 72
        %v1284 = vpop.permute.xlu0 %1283
        %1285 = vrot.lane.b32.xlu0 %v1255, 72
        %v1286 = vpop.permute.xlu0 %1285
        %1287 = vrot.lane.b32.xlu0 %v1256, 72
        %v1288 = vpop.permute.xlu0 %1287
        %1289 = vrot.lane.b32.xlu0 %v1257, 72
        %v1290 = vpop.permute.xlu0 %1289
        %1291 = vrot.lane.b32.xlu0 %v1258, 72
        %v1292 = vpop.permute.xlu0 %1291
        %1293 = vrot.lane.b32.xlu0 %v1259, 72
        %v1294 = vpop.permute.xlu0 %1293
        %1295 = vrot.lane.b32.xlu0 %v1260, 72
        %v1296 = vpop.permute.xlu0 %1295
        %vm1297 = vcmask 588800
        %v1298 = vsel %vm1297, %v1274, %v1276
        %v1299 = vsel %vm1297, %v1276, %v1278
        %v1300 = vsel %vm1297, %v1278, %v1280
        %v1301 = vsel %vm1297, %v1280, %v1282
        %v1302 = vsel %vm1297, %v1282, %v1284
        %v1303 = vsel %vm1297, %v1286, %v1288
        %v1304 = vsel %vm1297, %v1288, %v1290
        %v1305 = vsel %vm1297, %v1290, %v1292
        %v1306 = vsel %vm1297, %v1292, %v1294
        %v1307 = vsel %vm1297, %v1294, %v1296
        %v1320 = vadd.f32 %v1229, %v1298
        %v1321 = vadd.f32 %v1230, %v1299
        %v1322 = vadd.f32 %v1231, %v1300
        %v1323 = vadd.f32 %v1232, %v1301
        %v1324 = vadd.f32 %v1233, %v1302
        %v1325 = vadd.f32 %v1234, %v1284
        %v1326 = vadd.f32 %v1235, %v1303
        %v1327 = vadd.f32 %v1236, %v1304
        %v1328 = vadd.f32 %v1237, %v1305
        %v1329 = vadd.f32 %v1238, %v1306
        %v1330 = vadd.f32 %v1239, %v1307
        %v1331 = vadd.f32 %v1240, %v1296
        %1332 = vset.pattern.permute.xlu0 11
        %1333 = vperm.xlu0 %1332, %v355
        %v1334 = vpop.permute.xlu0 %1333
        %1336 = vset.pattern.permute.xlu0 11
        %1337 = vperm.xlu0 %1336, %v356
        %v1338 = vpop.permute.xlu0 %1337
        %v1340 = vmul.f32 %v1334, %v371
        %v1341 = vmul.f32 %v1334, %v375
        %v1342 = vmul.f32 %v1334, %v379
        %v1343 = vmul.f32 %v1334, %v383
        %v1344 = vmul.f32 %v1334, %v387
        %v1345 = vmul.f32 %v1334, %v391
        %v1346 = vmul.f32 %v1338, %v371
        %v1347 = vmul.f32 %v1338, %v375
        %v1348 = vmul.f32 %v1338, %v379
        %v1349 = vmul.f32 %v1338, %v383
        %v1350 = vmul.f32 %v1338, %v387
        %v1351 = vmul.f32 %v1338, %v391
        %1364 = vrot.lane.b32.xlu0 %v1340, 71
        %v1365 = vpop.permute.xlu0 %1364
        %1366 = vrot.lane.b32.xlu0 %v1341, 71
        %v1367 = vpop.permute.xlu0 %1366
        %1368 = vrot.lane.b32.xlu0 %v1342, 71
        %v1369 = vpop.permute.xlu0 %1368
        %1370 = vrot.lane.b32.xlu0 %v1343, 71
        %v1371 = vpop.permute.xlu0 %1370
        %1372 = vrot.lane.b32.xlu0 %v1344, 71
        %v1373 = vpop.permute.xlu0 %1372
        %1374 = vrot.lane.b32.xlu0 %v1345, 71
        %v1375 = vpop.permute.xlu0 %1374
        %1376 = vrot.lane.b32.xlu0 %v1346, 71
        %v1377 = vpop.permute.xlu0 %1376
        %1378 = vrot.lane.b32.xlu0 %v1347, 71
        %v1379 = vpop.permute.xlu0 %1378
        %1380 = vrot.lane.b32.xlu0 %v1348, 71
        %v1381 = vpop.permute.xlu0 %1380
        %1382 = vrot.lane.b32.xlu0 %v1349, 71
        %v1383 = vpop.permute.xlu0 %1382
        %1384 = vrot.lane.b32.xlu0 %v1350, 71
        %v1385 = vpop.permute.xlu0 %1384
        %1386 = vrot.lane.b32.xlu0 %v1351, 71
        %v1387 = vpop.permute.xlu0 %1386
        %vm1388 = vcmask 580608
        %v1389 = vsel %vm1388, %v1365, %v1367
        %v1390 = vsel %vm1388, %v1367, %v1369
        %v1391 = vsel %vm1388, %v1369, %v1371
        %v1392 = vsel %vm1388, %v1371, %v1373
        %v1393 = vsel %vm1388, %v1373, %v1375
        %v1394 = vsel %vm1388, %v1377, %v1379
        %v1395 = vsel %vm1388, %v1379, %v1381
        %v1396 = vsel %vm1388, %v1381, %v1383
        %v1397 = vsel %vm1388, %v1383, %v1385
        %v1398 = vsel %vm1388, %v1385, %v1387
        %v1411 = vadd.f32 %v1320, %v1389
        %v1412 = vadd.f32 %v1321, %v1390
        %v1413 = vadd.f32 %v1322, %v1391
        %v1414 = vadd.f32 %v1323, %v1392
        %v1415 = vadd.f32 %v1324, %v1393
        %v1416 = vadd.f32 %v1325, %v1375
        %v1417 = vadd.f32 %v1326, %v1394
        %v1418 = vadd.f32 %v1327, %v1395
        %v1419 = vadd.f32 %v1328, %v1396
        %v1420 = vadd.f32 %v1329, %v1397
        %v1421 = vadd.f32 %v1330, %v1398
        %v1422 = vadd.f32 %v1331, %v1387
        %1423 = vset.pattern.permute.xlu0 12
        %1424 = vperm.xlu0 %1423, %v355
        %v1425 = vpop.permute.xlu0 %1424
        %1427 = vset.pattern.permute.xlu0 12
        %1428 = vperm.xlu0 %1427, %v356
        %v1429 = vpop.permute.xlu0 %1428
        %v1431 = vmul.f32 %v1425, %v371
        %v1432 = vmul.f32 %v1425, %v375
        %v1433 = vmul.f32 %v1425, %v379
        %v1434 = vmul.f32 %v1425, %v383
        %v1435 = vmul.f32 %v1425, %v387
        %v1436 = vmul.f32 %v1425, %v391
        %v1437 = vmul.f32 %v1429, %v371
        %v1438 = vmul.f32 %v1429, %v375
        %v1439 = vmul.f32 %v1429, %v379
        %v1440 = vmul.f32 %v1429, %v383
        %v1441 = vmul.f32 %v1429, %v387
        %v1442 = vmul.f32 %v1429, %v391
        %1455 = vrot.lane.b32.xlu0 %v1431, 70
        %v1456 = vpop.permute.xlu0 %1455
        %1457 = vrot.lane.b32.xlu0 %v1432, 70
        %v1458 = vpop.permute.xlu0 %1457
        %1459 = vrot.lane.b32.xlu0 %v1433, 70
        %v1460 = vpop.permute.xlu0 %1459
        %1461 = vrot.lane.b32.xlu0 %v1434, 70
        %v1462 = vpop.permute.xlu0 %1461
        %1463 = vrot.lane.b32.xlu0 %v1435, 70
        %v1464 = vpop.permute.xlu0 %1463
        %1465 = vrot.lane.b32.xlu0 %v1436, 70
        %v1466 = vpop.permute.xlu0 %1465
        %1467 = vrot.lane.b32.xlu0 %v1437, 70
        %v1468 = vpop.permute.xlu0 %1467
        %1469 = vrot.lane.b32.xlu0 %v1438, 70
        %v1470 = vpop.permute.xlu0 %1469
        %1471 = vrot.lane.b32.xlu0 %v1439, 70
        %v1472 = vpop.permute.xlu0 %1471
        %1473 = vrot.lane.b32.xlu0 %v1440, 70
        %v1474 = vpop.permute.xlu0 %1473
        %1475 = vrot.lane.b32.xlu0 %v1441, 70
        %v1476 = vpop.permute.xlu0 %1475
        %1477 = vrot.lane.b32.xlu0 %v1442, 70
        %v1478 = vpop.permute.xlu0 %1477
        %vm1479 = vcmask 572416
        %v1480 = vsel %vm1479, %v1456, %v1458
        %v1481 = vsel %vm1479, %v1458, %v1460
        %v1482 = vsel %vm1479, %v1460, %v1462
        %v1483 = vsel %vm1479, %v1462, %v1464
        %v1484 = vsel %vm1479, %v1464, %v1466
        %v1485 = vsel %vm1479, %v1468, %v1470
        %v1486 = vsel %vm1479, %v1470, %v1472
        %v1487 = vsel %vm1479, %v1472, %v1474
        %v1488 = vsel %vm1479, %v1474, %v1476
        %v1489 = vsel %vm1479, %v1476, %v1478
        %v1502 = vadd.f32 %v1411, %v1480
        %v1503 = vadd.f32 %v1412, %v1481
        %v1504 = vadd.f32 %v1413, %v1482
        %v1505 = vadd.f32 %v1414, %v1483
        %v1506 = vadd.f32 %v1415, %v1484
        %v1507 = vadd.f32 %v1416, %v1466
        %v1508 = vadd.f32 %v1417, %v1485
        %v1509 = vadd.f32 %v1418, %v1486
        %v1510 = vadd.f32 %v1419, %v1487
        %v1511 = vadd.f32 %v1420, %v1488
        %v1512 = vadd.f32 %v1421, %v1489
        %v1513 = vadd.f32 %v1422, %v1478
        %1514 = vset.pattern.permute.xlu0 13
        %1515 = vperm.xlu0 %1514, %v355
        %v1516 = vpop.permute.xlu0 %1515
        %1518 = vset.pattern.permute.xlu0 13
        %1519 = vperm.xlu0 %1518, %v356
        %v1520 = vpop.permute.xlu0 %1519
        %v1522 = vmul.f32 %v1516, %v371
        %v1523 = vmul.f32 %v1516, %v375
        %v1524 = vmul.f32 %v1516, %v379
        %v1525 = vmul.f32 %v1516, %v383
        %v1526 = vmul.f32 %v1516, %v387
        %v1527 = vmul.f32 %v1516, %v391
        %v1528 = vmul.f32 %v1520, %v371
        %v1529 = vmul.f32 %v1520, %v375
        %v1530 = vmul.f32 %v1520, %v379
        %v1531 = vmul.f32 %v1520, %v383
        %v1532 = vmul.f32 %v1520, %v387
        %v1533 = vmul.f32 %v1520, %v391
        %1546 = vrot.lane.b32.xlu0 %v1522, 69
        %v1547 = vpop.permute.xlu0 %1546
        %1548 = vrot.lane.b32.xlu0 %v1523, 69
        %v1549 = vpop.permute.xlu0 %1548
        %1550 = vrot.lane.b32.xlu0 %v1524, 69
        %v1551 = vpop.permute.xlu0 %1550
        %1552 = vrot.lane.b32.xlu0 %v1525, 69
        %v1553 = vpop.permute.xlu0 %1552
        %1554 = vrot.lane.b32.xlu0 %v1526, 69
        %v1555 = vpop.permute.xlu0 %1554
        %1556 = vrot.lane.b32.xlu0 %v1527, 69
        %v1557 = vpop.permute.xlu0 %1556
        %1558 = vrot.lane.b32.xlu0 %v1528, 69
        %v1559 = vpop.permute.xlu0 %1558
        %1560 = vrot.lane.b32.xlu0 %v1529, 69
        %v1561 = vpop.permute.xlu0 %1560
        %1562 = vrot.lane.b32.xlu0 %v1530, 69
        %v1563 = vpop.permute.xlu0 %1562
        %1564 = vrot.lane.b32.xlu0 %v1531, 69
        %v1565 = vpop.permute.xlu0 %1564
        %1566 = vrot.lane.b32.xlu0 %v1532, 69
        %v1567 = vpop.permute.xlu0 %1566
        %1568 = vrot.lane.b32.xlu0 %v1533, 69
        %v1569 = vpop.permute.xlu0 %1568
        %vm1570 = vcmask 564224
        %v1571 = vsel %vm1570, %v1547, %v1549
        %v1572 = vsel %vm1570, %v1549, %v1551
        %v1573 = vsel %vm1570, %v1551, %v1553
        %v1574 = vsel %vm1570, %v1553, %v1555
        %v1575 = vsel %vm1570, %v1555, %v1557
        %v1576 = vsel %vm1570, %v1559, %v1561
        %v1577 = vsel %vm1570, %v1561, %v1563
        %v1578 = vsel %vm1570, %v1563, %v1565
        %v1579 = vsel %vm1570, %v1565, %v1567
        %v1580 = vsel %vm1570, %v1567, %v1569
        %v1593 = vadd.f32 %v1502, %v1571
        %v1594 = vadd.f32 %v1503, %v1572
        %v1595 = vadd.f32 %v1504, %v1573
        %v1596 = vadd.f32 %v1505, %v1574
        %v1597 = vadd.f32 %v1506, %v1575
        %v1598 = vadd.f32 %v1507, %v1557
        %v1599 = vadd.f32 %v1508, %v1576
        %v1600 = vadd.f32 %v1509, %v1577
        %v1601 = vadd.f32 %v1510, %v1578
        %v1602 = vadd.f32 %v1511, %v1579
        %v1603 = vadd.f32 %v1512, %v1580
        %v1604 = vadd.f32 %v1513, %v1569
        %1605 = vset.pattern.permute.xlu0 14
        %1606 = vperm.xlu0 %1605, %v355
        %v1607 = vpop.permute.xlu0 %1606
        %1609 = vset.pattern.permute.xlu0 14
        %1610 = vperm.xlu0 %1609, %v356
        %v1611 = vpop.permute.xlu0 %1610
        %v1613 = vmul.f32 %v1607, %v371
        %v1614 = vmul.f32 %v1607, %v375
        %v1615 = vmul.f32 %v1607, %v379
        %v1616 = vmul.f32 %v1607, %v383
        %v1617 = vmul.f32 %v1607, %v387
        %v1618 = vmul.f32 %v1607, %v391
        %v1619 = vmul.f32 %v1611, %v371
        %v1620 = vmul.f32 %v1611, %v375
        %v1621 = vmul.f32 %v1611, %v379
        %v1622 = vmul.f32 %v1611, %v383
        %v1623 = vmul.f32 %v1611, %v387
        %v1624 = vmul.f32 %v1611, %v391
        %1637 = vrot.lane.b32.xlu0 %v1613, 68
        %v1638 = vpop.permute.xlu0 %1637
        %1639 = vrot.lane.b32.xlu0 %v1614, 68
        %v1640 = vpop.permute.xlu0 %1639
        %1641 = vrot.lane.b32.xlu0 %v1615, 68
        %v1642 = vpop.permute.xlu0 %1641
        %1643 = vrot.lane.b32.xlu0 %v1616, 68
        %v1644 = vpop.permute.xlu0 %1643
        %1645 = vrot.lane.b32.xlu0 %v1617, 68
        %v1646 = vpop.permute.xlu0 %1645
        %1647 = vrot.lane.b32.xlu0 %v1618, 68
        %v1648 = vpop.permute.xlu0 %1647
        %1649 = vrot.lane.b32.xlu0 %v1619, 68
        %v1650 = vpop.permute.xlu0 %1649
        %1651 = vrot.lane.b32.xlu0 %v1620, 68
        %v1652 = vpop.permute.xlu0 %1651
        %1653 = vrot.lane.b32.xlu0 %v1621, 68
        %v1654 = vpop.permute.xlu0 %1653
        %1655 = vrot.lane.b32.xlu0 %v1622, 68
        %v1656 = vpop.permute.xlu0 %1655
        %1657 = vrot.lane.b32.xlu0 %v1623, 68
        %v1658 = vpop.permute.xlu0 %1657
        %1659 = vrot.lane.b32.xlu0 %v1624, 68
        %v1660 = vpop.permute.xlu0 %1659
        %vm1661 = vcmask 556032
        %v1662 = vsel %vm1661, %v1638, %v1640
        %v1663 = vsel %vm1661, %v1640, %v1642
        %v1664 = vsel %vm1661, %v1642, %v1644
        %v1665 = vsel %vm1661, %v1644, %v1646
        %v1666 = vsel %vm1661, %v1646, %v1648
        %v1667 = vsel %vm1661, %v1650, %v1652
        %v1668 = vsel %vm1661, %v1652, %v1654
        %v1669 = vsel %vm1661, %v1654, %v1656
        %v1670 = vsel %vm1661, %v1656, %v1658
        %v1671 = vsel %vm1661, %v1658, %v1660
        %v1684 = vadd.f32 %v1593, %v1662
        %v1685 = vadd.f32 %v1594, %v1663
        %v1686 = vadd.f32 %v1595, %v1664
        %v1687 = vadd.f32 %v1596, %v1665
        %v1688 = vadd.f32 %v1597, %v1666
        %v1689 = vadd.f32 %v1598, %v1648
        %v1690 = vadd.f32 %v1599, %v1667
        %v1691 = vadd.f32 %v1600, %v1668
        %v1692 = vadd.f32 %v1601, %v1669
        %v1693 = vadd.f32 %v1602, %v1670
        %v1694 = vadd.f32 %v1603, %v1671
        %v1695 = vadd.f32 %v1604, %v1660
        %1696 = vset.pattern.permute.xlu0 15
        %1697 = vperm.xlu0 %1696, %v355
        %v1698 = vpop.permute.xlu0 %1697
        %1700 = vset.pattern.permute.xlu0 15
        %1701 = vperm.xlu0 %1700, %v356
        %v1702 = vpop.permute.xlu0 %1701
        %v1704 = vmul.f32 %v1698, %v371
        %v1705 = vmul.f32 %v1698, %v375
        %v1706 = vmul.f32 %v1698, %v379
        %v1707 = vmul.f32 %v1698, %v383
        %v1708 = vmul.f32 %v1698, %v387
        %v1709 = vmul.f32 %v1698, %v391
        %v1710 = vmul.f32 %v1702, %v371
        %v1711 = vmul.f32 %v1702, %v375
        %v1712 = vmul.f32 %v1702, %v379
        %v1713 = vmul.f32 %v1702, %v383
        %v1714 = vmul.f32 %v1702, %v387
        %v1715 = vmul.f32 %v1702, %v391
        %1728 = vrot.lane.b32.xlu0 %v1704, 44
        %v1729 = vpop.permute.xlu0 %1728
        %1730 = vrot.lane.b32.xlu0 %v1705, 44
        %v1731 = vpop.permute.xlu0 %1730
        %1732 = vrot.lane.b32.xlu0 %v1706, 44
        %v1733 = vpop.permute.xlu0 %1732
        %1734 = vrot.lane.b32.xlu0 %v1707, 44
        %v1735 = vpop.permute.xlu0 %1734
        %1736 = vrot.lane.b32.xlu0 %v1708, 44
        %v1737 = vpop.permute.xlu0 %1736
        %1738 = vrot.lane.b32.xlu0 %v1709, 44
        %v1739 = vpop.permute.xlu0 %1738
        %1740 = vrot.lane.b32.xlu0 %v1710, 44
        %v1741 = vpop.permute.xlu0 %1740
        %1742 = vrot.lane.b32.xlu0 %v1711, 44
        %v1743 = vpop.permute.xlu0 %1742
        %1744 = vrot.lane.b32.xlu0 %v1712, 44
        %v1745 = vpop.permute.xlu0 %1744
        %1746 = vrot.lane.b32.xlu0 %v1713, 44
        %v1747 = vpop.permute.xlu0 %1746
        %1748 = vrot.lane.b32.xlu0 %v1714, 44
        %v1749 = vpop.permute.xlu0 %1748
        %1750 = vrot.lane.b32.xlu0 %v1715, 44
        %v1751 = vpop.permute.xlu0 %1750
        %vm1752 = vcmask 359424
        %v1753 = vsel %vm1752, %v1729, %v1731
        %v1754 = vsel %vm1752, %v1731, %v1733
        %v1755 = vsel %vm1752, %v1733, %v1735
        %v1756 = vsel %vm1752, %v1735, %v1737
        %v1757 = vsel %vm1752, %v1737, %v1739
        %v1758 = vsel %vm1752, %v1741, %v1743
        %v1759 = vsel %vm1752, %v1743, %v1745
        %v1760 = vsel %vm1752, %v1745, %v1747
        %v1761 = vsel %vm1752, %v1747, %v1749
        %v1762 = vsel %vm1752, %v1749, %v1751
        %v1775 = vadd.f32 %v1684, %v1753
        %v1776 = vadd.f32 %v1685, %v1754
        %v1777 = vadd.f32 %v1686, %v1755
        %v1778 = vadd.f32 %v1687, %v1756
        %v1779 = vadd.f32 %v1688, %v1757
        %v1780 = vadd.f32 %v1689, %v1739
        %v1781 = vadd.f32 %v1690, %v1758
        %v1782 = vadd.f32 %v1691, %v1759
        %v1783 = vadd.f32 %v1692, %v1760
        %v1784 = vadd.f32 %v1693, %v1761
        %v1785 = vadd.f32 %v1694, %v1762
        %v1786 = vadd.f32 %v1695, %v1751
        %1787 = vset.pattern.permute.xlu0 16
        %1788 = vperm.xlu0 %1787, %v355
        %v1789 = vpop.permute.xlu0 %1788
        %1791 = vset.pattern.permute.xlu0 16
        %1792 = vperm.xlu0 %1791, %v356
        %v1793 = vpop.permute.xlu0 %1792
        %v1795 = vmul.f32 %v1789, %v371
        %v1796 = vmul.f32 %v1789, %v375
        %v1797 = vmul.f32 %v1789, %v379
        %v1798 = vmul.f32 %v1789, %v383
        %v1799 = vmul.f32 %v1789, %v387
        %v1800 = vmul.f32 %v1789, %v391
        %v1801 = vmul.f32 %v1793, %v371
        %v1802 = vmul.f32 %v1793, %v375
        %v1803 = vmul.f32 %v1793, %v379
        %v1804 = vmul.f32 %v1793, %v383
        %v1805 = vmul.f32 %v1793, %v387
        %v1806 = vmul.f32 %v1793, %v391
        %1819 = vrot.lane.b32.xlu0 %v1795, 43
        %v1820 = vpop.permute.xlu0 %1819
        %1821 = vrot.lane.b32.xlu0 %v1796, 43
        %v1822 = vpop.permute.xlu0 %1821
        %1823 = vrot.lane.b32.xlu0 %v1797, 43
        %v1824 = vpop.permute.xlu0 %1823
        %1825 = vrot.lane.b32.xlu0 %v1798, 43
        %v1826 = vpop.permute.xlu0 %1825
        %1827 = vrot.lane.b32.xlu0 %v1799, 43
        %v1828 = vpop.permute.xlu0 %1827
        %1829 = vrot.lane.b32.xlu0 %v1800, 43
        %v1830 = vpop.permute.xlu0 %1829
        %1831 = vrot.lane.b32.xlu0 %v1801, 43
        %v1832 = vpop.permute.xlu0 %1831
        %1833 = vrot.lane.b32.xlu0 %v1802, 43
        %v1834 = vpop.permute.xlu0 %1833
        %1835 = vrot.lane.b32.xlu0 %v1803, 43
        %v1836 = vpop.permute.xlu0 %1835
        %1837 = vrot.lane.b32.xlu0 %v1804, 43
        %v1838 = vpop.permute.xlu0 %1837
        %1839 = vrot.lane.b32.xlu0 %v1805, 43
        %v1840 = vpop.permute.xlu0 %1839
        %1841 = vrot.lane.b32.xlu0 %v1806, 43
        %v1842 = vpop.permute.xlu0 %1841
        %vm1843 = vcmask 351232
        %v1844 = vsel %vm1843, %v1820, %v1822
        %v1845 = vsel %vm1843, %v1822, %v1824
        %v1846 = vsel %vm1843, %v1824, %v1826
        %v1847 = vsel %vm1843, %v1826, %v1828
        %v1848 = vsel %vm1843, %v1828, %v1830
        %v1849 = vsel %vm1843, %v1832, %v1834
        %v1850 = vsel %vm1843, %v1834, %v1836
        %v1851 = vsel %vm1843, %v1836, %v1838
        %v1852 = vsel %vm1843, %v1838, %v1840
        %v1853 = vsel %vm1843, %v1840, %v1842
        %v1866 = vadd.f32 %v1775, %v1844
        %v1867 = vadd.f32 %v1776, %v1845
        %v1868 = vadd.f32 %v1777, %v1846
        %v1869 = vadd.f32 %v1778, %v1847
        %v1870 = vadd.f32 %v1779, %v1848
        %v1871 = vadd.f32 %v1780, %v1830
        %v1872 = vadd.f32 %v1781, %v1849
        %v1873 = vadd.f32 %v1782, %v1850
        %v1874 = vadd.f32 %v1783, %v1851
        %v1875 = vadd.f32 %v1784, %v1852
        %v1876 = vadd.f32 %v1785, %v1853
        %v1877 = vadd.f32 %v1786, %v1842
        %1878 = vset.pattern.permute.xlu0 17
        %1879 = vperm.xlu0 %1878, %v355
        %v1880 = vpop.permute.xlu0 %1879
        %1882 = vset.pattern.permute.xlu0 17
        %1883 = vperm.xlu0 %1882, %v356
        %v1884 = vpop.permute.xlu0 %1883
        %v1886 = vmul.f32 %v1880, %v371
        %v1887 = vmul.f32 %v1880, %v375
        %v1888 = vmul.f32 %v1880, %v379
        %v1889 = vmul.f32 %v1880, %v383
        %v1890 = vmul.f32 %v1880, %v387
        %v1891 = vmul.f32 %v1880, %v391
        %v1892 = vmul.f32 %v1884, %v371
        %v1893 = vmul.f32 %v1884, %v375
        %v1894 = vmul.f32 %v1884, %v379
        %v1895 = vmul.f32 %v1884, %v383
        %v1896 = vmul.f32 %v1884, %v387
        %v1897 = vmul.f32 %v1884, %v391
        %1910 = vrot.lane.b32.xlu0 %v1886, 42
        %v1911 = vpop.permute.xlu0 %1910
        %1912 = vrot.lane.b32.xlu0 %v1887, 42
        %v1913 = vpop.permute.xlu0 %1912
        %1914 = vrot.lane.b32.xlu0 %v1888, 42
        %v1915 = vpop.permute.xlu0 %1914
        %1916 = vrot.lane.b32.xlu0 %v1889, 42
        %v1917 = vpop.permute.xlu0 %1916
        %1918 = vrot.lane.b32.xlu0 %v1890, 42
        %v1919 = vpop.permute.xlu0 %1918
        %1920 = vrot.lane.b32.xlu0 %v1891, 42
        %v1921 = vpop.permute.xlu0 %1920
        %1922 = vrot.lane.b32.xlu0 %v1892, 42
        %v1923 = vpop.permute.xlu0 %1922
        %1924 = vrot.lane.b32.xlu0 %v1893, 42
        %v1925 = vpop.permute.xlu0 %1924
        %1926 = vrot.lane.b32.xlu0 %v1894, 42
        %v1927 = vpop.permute.xlu0 %1926
        %1928 = vrot.lane.b32.xlu0 %v1895, 42
        %v1929 = vpop.permute.xlu0 %1928
        %1930 = vrot.lane.b32.xlu0 %v1896, 42
        %v1931 = vpop.permute.xlu0 %1930
        %1932 = vrot.lane.b32.xlu0 %v1897, 42
        %v1933 = vpop.permute.xlu0 %1932
        %vm1934 = vcmask 343040
        %v1935 = vsel %vm1934, %v1911, %v1913
        %v1936 = vsel %vm1934, %v1913, %v1915
        %v1937 = vsel %vm1934, %v1915, %v1917
        %v1938 = vsel %vm1934, %v1917, %v1919
        %v1939 = vsel %vm1934, %v1919, %v1921
        %v1940 = vsel %vm1934, %v1923, %v1925
        %v1941 = vsel %vm1934, %v1925, %v1927
        %v1942 = vsel %vm1934, %v1927, %v1929
        %v1943 = vsel %vm1934, %v1929, %v1931
        %v1944 = vsel %vm1934, %v1931, %v1933
        %v1957 = vadd.f32 %v1866, %v1935
        %v1958 = vadd.f32 %v1867, %v1936
        %v1959 = vadd.f32 %v1868, %v1937
        %v1960 = vadd.f32 %v1869, %v1938
        %v1961 = vadd.f32 %v1870, %v1939
        %v1962 = vadd.f32 %v1871, %v1921
        %v1963 = vadd.f32 %v1872, %v1940
        %v1964 = vadd.f32 %v1873, %v1941
        %v1965 = vadd.f32 %v1874, %v1942
        %v1966 = vadd.f32 %v1875, %v1943
        %v1967 = vadd.f32 %v1876, %v1944
        %v1968 = vadd.f32 %v1877, %v1933
        %1969 = vset.pattern.permute.xlu0 18
        %1970 = vperm.xlu0 %1969, %v355
        %v1971 = vpop.permute.xlu0 %1970
        %1973 = vset.pattern.permute.xlu0 18
        %1974 = vperm.xlu0 %1973, %v356
        %v1975 = vpop.permute.xlu0 %1974
        %v1977 = vmul.f32 %v1971, %v371
        %v1978 = vmul.f32 %v1971, %v375
        %v1979 = vmul.f32 %v1971, %v379
        %v1980 = vmul.f32 %v1971, %v383
        %v1981 = vmul.f32 %v1971, %v387
        %v1982 = vmul.f32 %v1971, %v391
        %v1983 = vmul.f32 %v1975, %v371
        %v1984 = vmul.f32 %v1975, %v375
        %v1985 = vmul.f32 %v1975, %v379
        %v1986 = vmul.f32 %v1975, %v383
        %v1987 = vmul.f32 %v1975, %v387
        %v1988 = vmul.f32 %v1975, %v391
        %2001 = vrot.lane.b32.xlu0 %v1977, 41
        %v2002 = vpop.permute.xlu0 %2001
        %2003 = vrot.lane.b32.xlu0 %v1978, 41
        %v2004 = vpop.permute.xlu0 %2003
        %2005 = vrot.lane.b32.xlu0 %v1979, 41
        %v2006 = vpop.permute.xlu0 %2005
        %2007 = vrot.lane.b32.xlu0 %v1980, 41
        %v2008 = vpop.permute.xlu0 %2007
        %2009 = vrot.lane.b32.xlu0 %v1981, 41
        %v2010 = vpop.permute.xlu0 %2009
        %2011 = vrot.lane.b32.xlu0 %v1982, 41
        %v2012 = vpop.permute.xlu0 %2011
        %2013 = vrot.lane.b32.xlu0 %v1983, 41
        %v2014 = vpop.permute.xlu0 %2013
        %2015 = vrot.lane.b32.xlu0 %v1984, 41
        %v2016 = vpop.permute.xlu0 %2015
        %2017 = vrot.lane.b32.xlu0 %v1985, 41
        %v2018 = vpop.permute.xlu0 %2017
        %2019 = vrot.lane.b32.xlu0 %v1986, 41
        %v2020 = vpop.permute.xlu0 %2019
        %2021 = vrot.lane.b32.xlu0 %v1987, 41
        %v2022 = vpop.permute.xlu0 %2021
        %2023 = vrot.lane.b32.xlu0 %v1988, 41
        %v2024 = vpop.permute.xlu0 %2023
        %vm2025 = vcmask 334848
        %v2026 = vsel %vm2025, %v2002, %v2004
        %v2027 = vsel %vm2025, %v2004, %v2006
        %v2028 = vsel %vm2025, %v2006, %v2008
        %v2029 = vsel %vm2025, %v2008, %v2010
        %v2030 = vsel %vm2025, %v2010, %v2012
        %v2031 = vsel %vm2025, %v2014, %v2016
        %v2032 = vsel %vm2025, %v2016, %v2018
        %v2033 = vsel %vm2025, %v2018, %v2020
        %v2034 = vsel %vm2025, %v2020, %v2022
        %v2035 = vsel %vm2025, %v2022, %v2024
        %v2048 = vadd.f32 %v1957, %v2026
        %v2049 = vadd.f32 %v1958, %v2027
        %v2050 = vadd.f32 %v1959, %v2028
        %v2051 = vadd.f32 %v1960, %v2029
        %v2052 = vadd.f32 %v1961, %v2030
        %v2053 = vadd.f32 %v1962, %v2012
        %v2054 = vadd.f32 %v1963, %v2031
        %v2055 = vadd.f32 %v1964, %v2032
        %v2056 = vadd.f32 %v1965, %v2033
        %v2057 = vadd.f32 %v1966, %v2034
        %v2058 = vadd.f32 %v1967, %v2035
        %v2059 = vadd.f32 %v1968, %v2024
        %2060 = vset.pattern.permute.xlu0 19
        %2061 = vperm.xlu0 %2060, %v355
        %v2062 = vpop.permute.xlu0 %2061
        %2064 = vset.pattern.permute.xlu0 19
        %2065 = vperm.xlu0 %2064, %v356
        %v2066 = vpop.permute.xlu0 %2065
        %v2068 = vmul.f32 %v2062, %v371
        %v2069 = vmul.f32 %v2062, %v375
        %v2070 = vmul.f32 %v2062, %v379
        %v2071 = vmul.f32 %v2062, %v383
        %v2072 = vmul.f32 %v2062, %v387
        %v2073 = vmul.f32 %v2062, %v391
        %v2074 = vmul.f32 %v2066, %v371
        %v2075 = vmul.f32 %v2066, %v375
        %v2076 = vmul.f32 %v2066, %v379
        %v2077 = vmul.f32 %v2066, %v383
        %v2078 = vmul.f32 %v2066, %v387
        %v2079 = vmul.f32 %v2066, %v391
        %2092 = vrot.lane.b32.xlu0 %v2068, 40
        %v2093 = vpop.permute.xlu0 %2092
        %2094 = vrot.lane.b32.xlu0 %v2069, 40
        %v2095 = vpop.permute.xlu0 %2094
        %2096 = vrot.lane.b32.xlu0 %v2070, 40
        %v2097 = vpop.permute.xlu0 %2096
        %2098 = vrot.lane.b32.xlu0 %v2071, 40
        %v2099 = vpop.permute.xlu0 %2098
        %2100 = vrot.lane.b32.xlu0 %v2072, 40
        %v2101 = vpop.permute.xlu0 %2100
        %2102 = vrot.lane.b32.xlu0 %v2073, 40
        %v2103 = vpop.permute.xlu0 %2102
        %2104 = vrot.lane.b32.xlu0 %v2074, 40
        %v2105 = vpop.permute.xlu0 %2104
        %2106 = vrot.lane.b32.xlu0 %v2075, 40
        %v2107 = vpop.permute.xlu0 %2106
        %2108 = vrot.lane.b32.xlu0 %v2076, 40
        %v2109 = vpop.permute.xlu0 %2108
        %2110 = vrot.lane.b32.xlu0 %v2077, 40
        %v2111 = vpop.permute.xlu0 %2110
        %2112 = vrot.lane.b32.xlu0 %v2078, 40
        %v2113 = vpop.permute.xlu0 %2112
        %2114 = vrot.lane.b32.xlu0 %v2079, 40
        %v2115 = vpop.permute.xlu0 %2114
        %vm2116 = vcmask 326656
        %v2117 = vsel %vm2116, %v2093, %v2095
        %v2118 = vsel %vm2116, %v2095, %v2097
        %v2119 = vsel %vm2116, %v2097, %v2099
        %v2120 = vsel %vm2116, %v2099, %v2101
        %v2121 = vsel %vm2116, %v2101, %v2103
        %v2122 = vsel %vm2116, %v2105, %v2107
        %v2123 = vsel %vm2116, %v2107, %v2109
        %v2124 = vsel %vm2116, %v2109, %v2111
        %v2125 = vsel %vm2116, %v2111, %v2113
        %v2126 = vsel %vm2116, %v2113, %v2115
        %v2139 = vadd.f32 %v2048, %v2117
        %v2140 = vadd.f32 %v2049, %v2118
        %v2141 = vadd.f32 %v2050, %v2119
        %v2142 = vadd.f32 %v2051, %v2120
        %v2143 = vadd.f32 %v2052, %v2121
        %v2144 = vadd.f32 %v2053, %v2103
        %v2145 = vadd.f32 %v2054, %v2122
        %v2146 = vadd.f32 %v2055, %v2123
        %v2147 = vadd.f32 %v2056, %v2124
        %v2148 = vadd.f32 %v2057, %v2125
        %v2149 = vadd.f32 %v2058, %v2126
        %v2150 = vadd.f32 %v2059, %v2115
        %2151 = vset.pattern.permute.xlu0 20
        %2152 = vperm.xlu0 %2151, %v355
        %v2153 = vpop.permute.xlu0 %2152
        %2155 = vset.pattern.permute.xlu0 20
        %2156 = vperm.xlu0 %2155, %v356
        %v2157 = vpop.permute.xlu0 %2156
        %v2159 = vlaneseq
        %v2160 = vshrl.u32 %v2159, 7
        %v2161 = vsub.s32 6, %v2160
        %v2162 = vrot.slane %v354, %v2161
        %v2164 = vmul.f32 %v2153, %v371
        %v2165 = vmul.f32 %v2153, %v375
        %v2166 = vmul.f32 %v2153, %v379
        %v2167 = vmul.f32 %v2153, %v383
        %v2168 = vmul.f32 %v2153, %v387
        %v2169 = vmul.f32 %v2153, %v391
        %v2170 = vmul.f32 %v2153, %v2162
        %v2171 = vmul.f32 %v2157, %v371
        %v2172 = vmul.f32 %v2157, %v375
        %v2173 = vmul.f32 %v2157, %v379
        %v2174 = vmul.f32 %v2157, %v383
        %v2175 = vmul.f32 %v2157, %v387
        %v2176 = vmul.f32 %v2157, %v391
        %v2177 = vmul.f32 %v2157, %v2162
        %2192 = vrot.lane.b32.xlu0 %v2164, 16
        %v2193 = vpop.permute.xlu0 %2192
        %2194 = vrot.lane.b32.xlu0 %v2165, 16
        %v2195 = vpop.permute.xlu0 %2194
        %2196 = vrot.lane.b32.xlu0 %v2166, 16
        %v2197 = vpop.permute.xlu0 %2196
        %2198 = vrot.lane.b32.xlu0 %v2167, 16
        %v2199 = vpop.permute.xlu0 %2198
        %2200 = vrot.lane.b32.xlu0 %v2168, 16
        %v2201 = vpop.permute.xlu0 %2200
        %2202 = vrot.lane.b32.xlu0 %v2169, 16
        %v2203 = vpop.permute.xlu0 %2202
        %2204 = vrot.lane.b32.xlu0 %v2170, 16
        %v2205 = vpop.permute.xlu0 %2204
        %2206 = vrot.lane.b32.xlu0 %v2171, 16
        %v2207 = vpop.permute.xlu0 %2206
        %2208 = vrot.lane.b32.xlu0 %v2172, 16
        %v2209 = vpop.permute.xlu0 %2208
        %2210 = vrot.lane.b32.xlu0 %v2173, 16
        %v2211 = vpop.permute.xlu0 %2210
        %2212 = vrot.lane.b32.xlu0 %v2174, 16
        %v2213 = vpop.permute.xlu0 %2212
        %2214 = vrot.lane.b32.xlu0 %v2175, 16
        %v2215 = vpop.permute.xlu0 %2214
        %2216 = vrot.lane.b32.xlu0 %v2176, 16
        %v2217 = vpop.permute.xlu0 %2216
        %2218 = vrot.lane.b32.xlu0 %v2177, 16
        %v2219 = vpop.permute.xlu0 %2218
        %vm2220 = vcmask 130048
        %v2221 = vsel %vm2220, %v2193, %v2195
        %v2222 = vsel %vm2220, %v2195, %v2197
        %v2223 = vsel %vm2220, %v2197, %v2199
        %v2224 = vsel %vm2220, %v2199, %v2201
        %v2225 = vsel %vm2220, %v2201, %v2203
        %v2226 = vsel %vm2220, %v2203, %v2205
        %v2227 = vsel %vm2220, %v2207, %v2209
        %v2228 = vsel %vm2220, %v2209, %v2211
        %v2229 = vsel %vm2220, %v2211, %v2213
        %v2230 = vsel %vm2220, %v2213, %v2215
        %v2231 = vsel %vm2220, %v2215, %v2217
        %v2232 = vsel %vm2220, %v2217, %v2219
        %v2245 = vadd.f32 %v2139, %v2221
        %v2246 = vadd.f32 %v2140, %v2222
        %v2247 = vadd.f32 %v2141, %v2223
        %v2248 = vadd.f32 %v2142, %v2224
        %v2249 = vadd.f32 %v2143, %v2225
        %v2250 = vadd.f32 %v2144, %v2226
        %v2251 = vadd.f32 %v2145, %v2227
        %v2252 = vadd.f32 %v2146, %v2228
        %v2253 = vadd.f32 %v2147, %v2229
        %v2254 = vadd.f32 %v2148, %v2230
        %v2255 = vadd.f32 %v2149, %v2231
        %v2256 = vadd.f32 %v2150, %v2232
        %2257 = vset.pattern.permute.xlu0 21
        %2258 = vperm.xlu0 %2257, %v355
        %v2259 = vpop.permute.xlu0 %2258
        %2261 = vset.pattern.permute.xlu0 21
        %2262 = vperm.xlu0 %2261, %v356
        %v2263 = vpop.permute.xlu0 %2262
        %v2265 = vmul.f32 %v2259, %v371
        %v2266 = vmul.f32 %v2259, %v375
        %v2267 = vmul.f32 %v2259, %v379
        %v2268 = vmul.f32 %v2259, %v383
        %v2269 = vmul.f32 %v2259, %v387
        %v2270 = vmul.f32 %v2259, %v391
        %v2271 = vmul.f32 %v2259, %v2162
        %v2272 = vmul.f32 %v2263, %v371
        %v2273 = vmul.f32 %v2263, %v375
        %v2274 = vmul.f32 %v2263, %v379
        %v2275 = vmul.f32 %v2263, %v383
        %v2276 = vmul.f32 %v2263, %v387
        %v2277 = vmul.f32 %v2263, %v391
        %v2278 = vmul.f32 %v2263, %v2162
        %2293 = vrot.lane.b32.xlu0 %v2265, 15
        %v2294 = vpop.permute.xlu0 %2293
        %2295 = vrot.lane.b32.xlu0 %v2266, 15
        %v2296 = vpop.permute.xlu0 %2295
        %2297 = vrot.lane.b32.xlu0 %v2267, 15
        %v2298 = vpop.permute.xlu0 %2297
        %2299 = vrot.lane.b32.xlu0 %v2268, 15
        %v2300 = vpop.permute.xlu0 %2299
        %2301 = vrot.lane.b32.xlu0 %v2269, 15
        %v2302 = vpop.permute.xlu0 %2301
        %2303 = vrot.lane.b32.xlu0 %v2270, 15
        %v2304 = vpop.permute.xlu0 %2303
        %2305 = vrot.lane.b32.xlu0 %v2271, 15
        %v2306 = vpop.permute.xlu0 %2305
        %2307 = vrot.lane.b32.xlu0 %v2272, 15
        %v2308 = vpop.permute.xlu0 %2307
        %2309 = vrot.lane.b32.xlu0 %v2273, 15
        %v2310 = vpop.permute.xlu0 %2309
        %2311 = vrot.lane.b32.xlu0 %v2274, 15
        %v2312 = vpop.permute.xlu0 %2311
        %2313 = vrot.lane.b32.xlu0 %v2275, 15
        %v2314 = vpop.permute.xlu0 %2313
        %2315 = vrot.lane.b32.xlu0 %v2276, 15
        %v2316 = vpop.permute.xlu0 %2315
        %2317 = vrot.lane.b32.xlu0 %v2277, 15
        %v2318 = vpop.permute.xlu0 %2317
        %2319 = vrot.lane.b32.xlu0 %v2278, 15
        %v2320 = vpop.permute.xlu0 %2319
        %vm2321 = vcmask 121856
        %v2322 = vsel %vm2321, %v2294, %v2296
        %v2323 = vsel %vm2321, %v2296, %v2298
        %v2324 = vsel %vm2321, %v2298, %v2300
        %v2325 = vsel %vm2321, %v2300, %v2302
        %v2326 = vsel %vm2321, %v2302, %v2304
        %v2327 = vsel %vm2321, %v2304, %v2306
        %v2328 = vsel %vm2321, %v2308, %v2310
        %v2329 = vsel %vm2321, %v2310, %v2312
        %v2330 = vsel %vm2321, %v2312, %v2314
        %v2331 = vsel %vm2321, %v2314, %v2316
        %v2332 = vsel %vm2321, %v2316, %v2318
        %v2333 = vsel %vm2321, %v2318, %v2320
        %v2346 = vadd.f32 %v2245, %v2322
        %v2347 = vadd.f32 %v2246, %v2323
        %v2348 = vadd.f32 %v2247, %v2324
        %v2349 = vadd.f32 %v2248, %v2325
        %v2350 = vadd.f32 %v2249, %v2326
        %v2351 = vadd.f32 %v2250, %v2327
        %v2352 = vadd.f32 %v2251, %v2328
        %v2353 = vadd.f32 %v2252, %v2329
        %v2354 = vadd.f32 %v2253, %v2330
        %v2355 = vadd.f32 %v2254, %v2331
        %v2356 = vadd.f32 %v2255, %v2332
        %v2357 = vadd.f32 %v2256, %v2333
        %2358 = vset.pattern.permute.xlu0 22
        %2359 = vperm.xlu0 %2358, %v355
        %v2360 = vpop.permute.xlu0 %2359
        %2362 = vset.pattern.permute.xlu0 22
        %2363 = vperm.xlu0 %2362, %v356
        %v2364 = vpop.permute.xlu0 %2363
        %v2366 = vmul.f32 %v2360, %v371
        %v2367 = vmul.f32 %v2360, %v375
        %v2368 = vmul.f32 %v2360, %v379
        %v2369 = vmul.f32 %v2360, %v383
        %v2370 = vmul.f32 %v2360, %v387
        %v2371 = vmul.f32 %v2360, %v391
        %v2372 = vmul.f32 %v2360, %v2162
        %v2373 = vmul.f32 %v2364, %v371
        %v2374 = vmul.f32 %v2364, %v375
        %v2375 = vmul.f32 %v2364, %v379
        %v2376 = vmul.f32 %v2364, %v383
        %v2377 = vmul.f32 %v2364, %v387
        %v2378 = vmul.f32 %v2364, %v391
        %v2379 = vmul.f32 %v2364, %v2162
        %2394 = vrot.lane.b32.xlu0 %v2366, 14
        %v2395 = vpop.permute.xlu0 %2394
        %2396 = vrot.lane.b32.xlu0 %v2367, 14
        %v2397 = vpop.permute.xlu0 %2396
        %2398 = vrot.lane.b32.xlu0 %v2368, 14
        %v2399 = vpop.permute.xlu0 %2398
        %2400 = vrot.lane.b32.xlu0 %v2369, 14
        %v2401 = vpop.permute.xlu0 %2400
        %2402 = vrot.lane.b32.xlu0 %v2370, 14
        %v2403 = vpop.permute.xlu0 %2402
        %2404 = vrot.lane.b32.xlu0 %v2371, 14
        %v2405 = vpop.permute.xlu0 %2404
        %2406 = vrot.lane.b32.xlu0 %v2372, 14
        %v2407 = vpop.permute.xlu0 %2406
        %2408 = vrot.lane.b32.xlu0 %v2373, 14
        %v2409 = vpop.permute.xlu0 %2408
        %2410 = vrot.lane.b32.xlu0 %v2374, 14
        %v2411 = vpop.permute.xlu0 %2410
        %2412 = vrot.lane.b32.xlu0 %v2375, 14
        %v2413 = vpop.permute.xlu0 %2412
        %2414 = vrot.lane.b32.xlu0 %v2376, 14
        %v2415 = vpop.permute.xlu0 %2414
        %2416 = vrot.lane.b32.xlu0 %v2377, 14
        %v2417 = vpop.permute.xlu0 %2416
        %2418 = vrot.lane.b32.xlu0 %v2378, 14
        %v2419 = vpop.permute.xlu0 %2418
        %2420 = vrot.lane.b32.xlu0 %v2379, 14
        %v2421 = vpop.permute.xlu0 %2420
        %vm2422 = vcmask 113664
        %v2423 = vsel %vm2422, %v2395, %v2397
        %v2424 = vsel %vm2422, %v2397, %v2399
        %v2425 = vsel %vm2422, %v2399, %v2401
        %v2426 = vsel %vm2422, %v2401, %v2403
        %v2427 = vsel %vm2422, %v2403, %v2405
        %v2428 = vsel %vm2422, %v2405, %v2407
        %v2429 = vsel %vm2422, %v2409, %v2411
        %v2430 = vsel %vm2422, %v2411, %v2413
        %v2431 = vsel %vm2422, %v2413, %v2415
        %v2432 = vsel %vm2422, %v2415, %v2417
        %v2433 = vsel %vm2422, %v2417, %v2419
        %v2434 = vsel %vm2422, %v2419, %v2421
        %v2447 = vadd.f32 %v2346, %v2423
        %v2448 = vadd.f32 %v2347, %v2424
        %v2449 = vadd.f32 %v2348, %v2425
        %v2450 = vadd.f32 %v2349, %v2426
        %v2451 = vadd.f32 %v2350, %v2427
        %v2452 = vadd.f32 %v2351, %v2428
        %v2453 = vadd.f32 %v2352, %v2429
        %v2454 = vadd.f32 %v2353, %v2430
        %v2455 = vadd.f32 %v2354, %v2431
        %v2456 = vadd.f32 %v2355, %v2432
        %v2457 = vadd.f32 %v2356, %v2433
        %v2458 = vadd.f32 %v2357, %v2434
        %2459 = vset.pattern.permute.xlu0 23
        %2460 = vperm.xlu0 %2459, %v355
        %v2461 = vpop.permute.xlu0 %2460
        %2463 = vset.pattern.permute.xlu0 23
        %2464 = vperm.xlu0 %2463, %v356
        %v2465 = vpop.permute.xlu0 %2464
        %v2467 = vmul.f32 %v2461, %v371
        %v2468 = vmul.f32 %v2461, %v375
        %v2469 = vmul.f32 %v2461, %v379
        %v2470 = vmul.f32 %v2461, %v383
        %v2471 = vmul.f32 %v2461, %v387
        %v2472 = vmul.f32 %v2461, %v391
        %v2473 = vmul.f32 %v2461, %v2162
        %v2474 = vmul.f32 %v2465, %v371
        %v2475 = vmul.f32 %v2465, %v375
        %v2476 = vmul.f32 %v2465, %v379
        %v2477 = vmul.f32 %v2465, %v383
        %v2478 = vmul.f32 %v2465, %v387
        %v2479 = vmul.f32 %v2465, %v391
        %v2480 = vmul.f32 %v2465, %v2162
        %2495 = vrot.lane.b32.xlu0 %v2467, 13
        %v2496 = vpop.permute.xlu0 %2495
        %2497 = vrot.lane.b32.xlu0 %v2468, 13
        %v2498 = vpop.permute.xlu0 %2497
        %2499 = vrot.lane.b32.xlu0 %v2469, 13
        %v2500 = vpop.permute.xlu0 %2499
        %2501 = vrot.lane.b32.xlu0 %v2470, 13
        %v2502 = vpop.permute.xlu0 %2501
        %2503 = vrot.lane.b32.xlu0 %v2471, 13
        %v2504 = vpop.permute.xlu0 %2503
        %2505 = vrot.lane.b32.xlu0 %v2472, 13
        %v2506 = vpop.permute.xlu0 %2505
        %2507 = vrot.lane.b32.xlu0 %v2473, 13
        %v2508 = vpop.permute.xlu0 %2507
        %2509 = vrot.lane.b32.xlu0 %v2474, 13
        %v2510 = vpop.permute.xlu0 %2509
        %2511 = vrot.lane.b32.xlu0 %v2475, 13
        %v2512 = vpop.permute.xlu0 %2511
        %2513 = vrot.lane.b32.xlu0 %v2476, 13
        %v2514 = vpop.permute.xlu0 %2513
        %2515 = vrot.lane.b32.xlu0 %v2477, 13
        %v2516 = vpop.permute.xlu0 %2515
        %2517 = vrot.lane.b32.xlu0 %v2478, 13
        %v2518 = vpop.permute.xlu0 %2517
        %2519 = vrot.lane.b32.xlu0 %v2479, 13
        %v2520 = vpop.permute.xlu0 %2519
        %2521 = vrot.lane.b32.xlu0 %v2480, 13
        %v2522 = vpop.permute.xlu0 %2521
        %vm2523 = vcmask 105472
        %v2524 = vsel %vm2523, %v2496, %v2498
        %v2525 = vsel %vm2523, %v2498, %v2500
        %v2526 = vsel %vm2523, %v2500, %v2502
        %v2527 = vsel %vm2523, %v2502, %v2504
        %v2528 = vsel %vm2523, %v2504, %v2506
        %v2529 = vsel %vm2523, %v2506, %v2508
        %v2530 = vsel %vm2523, %v2510, %v2512
        %v2531 = vsel %vm2523, %v2512, %v2514
        %v2532 = vsel %vm2523, %v2514, %v2516
        %v2533 = vsel %vm2523, %v2516, %v2518
        %v2534 = vsel %vm2523, %v2518, %v2520
        %v2535 = vsel %vm2523, %v2520, %v2522
        %v2548 = vadd.f32 %v2447, %v2524
        %v2549 = vadd.f32 %v2448, %v2525
        %v2550 = vadd.f32 %v2449, %v2526
        %v2551 = vadd.f32 %v2450, %v2527
        %v2552 = vadd.f32 %v2451, %v2528
        %v2553 = vadd.f32 %v2452, %v2529
        %v2554 = vadd.f32 %v2453, %v2530
        %v2555 = vadd.f32 %v2454, %v2531
        %v2556 = vadd.f32 %v2455, %v2532
        %v2557 = vadd.f32 %v2456, %v2533
        %v2558 = vadd.f32 %v2457, %v2534
        %v2559 = vadd.f32 %v2458, %v2535
        %2560 = vset.pattern.permute.xlu0 24
        %2561 = vperm.xlu0 %2560, %v355
        %v2562 = vpop.permute.xlu0 %2561
        %2564 = vset.pattern.permute.xlu0 24
        %2565 = vperm.xlu0 %2564, %v356
        %v2566 = vpop.permute.xlu0 %2565
        %v2568 = vmul.f32 %v2562, %v371
        %v2569 = vmul.f32 %v2562, %v375
        %v2570 = vmul.f32 %v2562, %v379
        %v2571 = vmul.f32 %v2562, %v383
        %v2572 = vmul.f32 %v2562, %v387
        %v2573 = vmul.f32 %v2562, %v391
        %v2574 = vmul.f32 %v2562, %v2162
        %v2575 = vmul.f32 %v2566, %v371
        %v2576 = vmul.f32 %v2566, %v375
        %v2577 = vmul.f32 %v2566, %v379
        %v2578 = vmul.f32 %v2566, %v383
        %v2579 = vmul.f32 %v2566, %v387
        %v2580 = vmul.f32 %v2566, %v391
        %v2581 = vmul.f32 %v2566, %v2162
        %2596 = vrot.lane.b32.xlu0 %v2568, 12
        %v2597 = vpop.permute.xlu0 %2596
        %2598 = vrot.lane.b32.xlu0 %v2569, 12
        %v2599 = vpop.permute.xlu0 %2598
        %2600 = vrot.lane.b32.xlu0 %v2570, 12
        %v2601 = vpop.permute.xlu0 %2600
        %2602 = vrot.lane.b32.xlu0 %v2571, 12
        %v2603 = vpop.permute.xlu0 %2602
        %2604 = vrot.lane.b32.xlu0 %v2572, 12
        %v2605 = vpop.permute.xlu0 %2604
        %2606 = vrot.lane.b32.xlu0 %v2573, 12
        %v2607 = vpop.permute.xlu0 %2606
        %2608 = vrot.lane.b32.xlu0 %v2574, 12
        %v2609 = vpop.permute.xlu0 %2608
        %2610 = vrot.lane.b32.xlu0 %v2575, 12
        %v2611 = vpop.permute.xlu0 %2610
        %2612 = vrot.lane.b32.xlu0 %v2576, 12
        %v2613 = vpop.permute.xlu0 %2612
        %2614 = vrot.lane.b32.xlu0 %v2577, 12
        %v2615 = vpop.permute.xlu0 %2614
        %2616 = vrot.lane.b32.xlu0 %v2578, 12
        %v2617 = vpop.permute.xlu0 %2616
        %2618 = vrot.lane.b32.xlu0 %v2579, 12
        %v2619 = vpop.permute.xlu0 %2618
        %2620 = vrot.lane.b32.xlu0 %v2580, 12
        %v2621 = vpop.permute.xlu0 %2620
        %2622 = vrot.lane.b32.xlu0 %v2581, 12
        %v2623 = vpop.permute.xlu0 %2622
        %vm2624 = vcmask 97280
        %v2625 = vsel %vm2624, %v2597, %v2599
        %v2626 = vsel %vm2624, %v2599, %v2601
        %v2627 = vsel %vm2624, %v2601, %v2603
        %v2628 = vsel %vm2624, %v2603, %v2605
        %v2629 = vsel %vm2624, %v2605, %v2607
        %v2630 = vsel %vm2624, %v2607, %v2609
        %v2631 = vsel %vm2624, %v2611, %v2613
        %v2632 = vsel %vm2624, %v2613, %v2615
        %v2633 = vsel %vm2624, %v2615, %v2617
        %v2634 = vsel %vm2624, %v2617, %v2619
        %v2635 = vsel %vm2624, %v2619, %v2621
        %v2636 = vsel %vm2624, %v2621, %v2623
        %v2649 = vadd.f32 %v2548, %v2625
        %v2650 = vadd.f32 %v2549, %v2626
        %v2651 = vadd.f32 %v2550, %v2627
        %v2652 = vadd.f32 %v2551, %v2628
        %v2653 = vadd.f32 %v2552, %v2629
        %v2654 = vadd.f32 %v2553, %v2630
        %v2655 = vadd.f32 %v2554, %v2631
        %v2656 = vadd.f32 %v2555, %v2632
        %v2657 = vadd.f32 %v2556, %v2633
        %v2658 = vadd.f32 %v2557, %v2634
        %v2659 = vadd.f32 %v2558, %v2635
        %v2660 = vadd.f32 %v2559, %v2636
        %v2661 = vld [vmem:[%s2] sm:$0xff]
        %v2662 = vld [vmem:[%s2 + $0x8] sm:$0x3]
        %2664 = vset.pattern.permute.xlu0 0
        %2665 = vperm.xlu0 %2664, %v2661
        %v2666 = vpop.permute.xlu0 %2665
        %2669 = vset.pattern.permute.xlu0 0
        %2670 = vperm.xlu0 %2669, %v2662
        %v2671 = vpop.permute.xlu0 %2670
        %v2673 = vadd.f32 %v2649, %v2666
        %v2674 = vadd.f32 %v2650, %v2666
        %v2675 = vadd.f32 %v2651, %v2666
        %v2676 = vadd.f32 %v2652, %v2666
        %v2677 = vadd.f32 %v2653, %v2666
        %v2678 = vadd.f32 %v2654, %v2666
        %v2679 = vadd.f32 %v2655, %v2671
        %v2680 = vadd.f32 %v2656, %v2671
        %v2681 = vadd.f32 %v2657, %v2671
        %v2682 = vadd.f32 %v2658, %v2671
        %v2683 = vadd.f32 %v2659, %v2671
        %v2684 = vadd.f32 %v2660, %v2671
        %v2685 = vmax.f32 %v2673, 0.0
        %v2686 = vmax.f32 %v2674, 0.0
        %v2687 = vmax.f32 %v2675, 0.0
        %v2688 = vmax.f32 %v2676, 0.0
        %v2689 = vmax.f32 %v2677, 0.0
        %v2690 = vmax.f32 %v2678, 0.0
        %v2691 = vmax.f32 %v2679, 0.0
        %v2692 = vmax.f32 %v2680, 0.0
        %v2693 = vmax.f32 %v2681, 0.0
        %v2694 = vmax.f32 %v2682, 0.0
        %v2695 = vmax.f32 %v2683, 0.0
        %v2696 = vmax.f32 %v2684, 0.0
        %v2697 = vld [vmem:[%s3] sm:$0xff]
        %v2698 = vld [vmem:[%s3 + $0x8] sm:$0xff]
        %v2699 = vld [vmem:[%s3 + $0x10] sm:$0xff]
        %v2700 = vld [vmem:[%s3 + $0x18] sm:$0xff]
        %v2701 = vld [vmem:[%s3 + $0x20] sm:$0xff]
        %v2702 = vld [vmem:[%s3 + $0x28] sm:$0xff]
        %v2703 = vld [vmem:[%s3 + $0x30] sm:$0xff]
        %v2704 = vld [vmem:[%s3 + $0x38] sm:$0xff]
        %v2705 = vld [vmem:[%s3 + $0x40] sm:$0xff]
        %v2706 = vld [vmem:[%s3 + $0x48] sm:$0xff]
        %v2707 = vld [vmem:[%s3 + $0x50] sm:$0xff]
        %v2708 = vld [vmem:[%s3 + $0x58] sm:$0xff]
        %v2709 = vld [vmem:[%s3 + $0x60] sm:$0xff]
        %v2710 = vld [vmem:[%s3 + $0x68] sm:$0xff]
        %v2711 = vld [vmem:[%s3 + $0x70] sm:$0xff]
        %v2712 = vld [vmem:[%s3 + $0x78] sm:$0xff]
        %v2713 = vld [vmem:[%s3 + $0x80] sm:$0xff]
        %v2714 = vld [vmem:[%s3 + $0x88] sm:$0xff]
        %v2715 = vld [vmem:[%s3 + $0x90] sm:$0xff]
        %v2716 = vld [vmem:[%s3 + $0x98] sm:$0xff]
        %v2717 = vld [vmem:[%s3 + $0xa0] sm:$0xff]
        %v2718 = vld [vmem:[%s3 + $0xa8] sm:$0xff]
        %v2719 = vld [vmem:[%s3 + $0xb0] sm:$0xff]
        %v2720 = vld [vmem:[%s3 + $0xb8] sm:$0xff]
        %v2721 = vld [vmem:[%s3 + $0xc0] sm:$0xff]
        %v2722 = vld [vmem:[%s3 + $0xc8] sm:$0xff]
        %v2723 = vld [vmem:[%s3 + $0xd0] sm:$0xff]
        %v2724 = vld [vmem:[%s3 + $0xd8] sm:$0xff]
        %v2725 = vld [vmem:[%s3 + $0xe0] sm:$0xff]
        %v2726 = vld [vmem:[%s3 + $0xe8] sm:$0xff]
        %v2727 = vld [vmem:[%s3 + $0xf0] sm:$0xff]
        %v2728 = vld [vmem:[%s3 + $0xf8] sm:$0xff]
        %v2729 = vld [vmem:[%s3 + $0x100] sm:$0xff]
        %v2730 = vld [vmem:[%s3 + $0x108] sm:$0xff]
        %v2731 = vld [vmem:[%s3 + $0x110] sm:$0xff]
        %v2732 = vld [vmem:[%s3 + $0x118] sm:$0xff]
        %v2733 = vld [vmem:[%s3 + $0x120] sm:$0xff]
        %v2734 = vld [vmem:[%s3 + $0x128] sm:$0xff]
        %v2735 = vld [vmem:[%s3 + $0x130] sm:$0xff]
        %v2736 = vld [vmem:[%s3 + $0x138] sm:$0xff]
        %v2737 = vld [vmem:[%s3 + $0x140] sm:$0xff]
        %v2738 = vld [vmem:[%s3 + $0x148] sm:$0xff]
        %v2739 = vld [vmem:[%s3 + $0x150] sm:$0xff]
        %v2740 = vld [vmem:[%s3 + $0x158] sm:$0xff]
        %v2741 = vld [vmem:[%s3 + $0x160] sm:$0xff]
        %v2742 = vld [vmem:[%s3 + $0x168] sm:$0xff]
        %v2743 = vld [vmem:[%s3 + $0x170] sm:$0xff]
        %v2744 = vld [vmem:[%s3 + $0x178] sm:$0xff]
        %v2745 = vld [vmem:[%s3 + $0x180] sm:$0xff]
        %v2746 = vld [vmem:[%s3 + $0x188] sm:$0xff]
        %v2747 = vld [vmem:[%s3 + $0x190] sm:$0xff]
        %v2748 = vld [vmem:[%s3 + $0x198] sm:$0xff]
        %v2749 = vld [vmem:[%s3 + $0x1a0] sm:$0xff]
        %v2750 = vld [vmem:[%s3 + $0x1a8] sm:$0xff]
        %v2751 = vld [vmem:[%s3 + $0x1b0] sm:$0xff]
        %v2752 = vld [vmem:[%s3 + $0x1b8] sm:$0xff]
        %v2753 = vld [vmem:[%s3 + $0x1c0] sm:$0xff]
        %v2754 = vld [vmem:[%s3 + $0x1c8] sm:$0xff]
        %v2755 = vld [vmem:[%s3 + $0x1d0] sm:$0xff]
        %v2756 = vld [vmem:[%s3 + $0x1d8] sm:$0xff]
        %v2757 = vld [vmem:[%s3 + $0x1e0] sm:$0xff]
        %v2758 = vld [vmem:[%s3 + $0x1e8] sm:$0xff]
        %v2759 = vld [vmem:[%s3 + $0x1f0] sm:$0xff]
        %v2760 = vld [vmem:[%s3 + $0x1f8] sm:$0xff]
        %v2761 = vld [vmem:[%s3 + $0x200] sm:$0xff]
        %v2762 = vld [vmem:[%s3 + $0x208] sm:$0xff]
        %v2763 = vld [vmem:[%s3 + $0x210] sm:$0xff]
        %v2764 = vld [vmem:[%s3 + $0x218] sm:$0xff]
        %v2765 = vld [vmem:[%s3 + $0x220] sm:$0xff]
        %v2766 = vld [vmem:[%s3 + $0x228] sm:$0xff]
        %v2767 = vld [vmem:[%s3 + $0x230] sm:$0xff]
        %v2768 = vld [vmem:[%s3 + $0x238] sm:$0xff]
        %v2769 = vld [vmem:[%s3 + $0x240] sm:$0xff]
        %v2770 = vld [vmem:[%s3 + $0x248] sm:$0xff]
        %v2771 = vld [vmem:[%s3 + $0x250] sm:$0xff]
        %v2772 = vld [vmem:[%s3 + $0x258] sm:$0xff]
        %v2773 = vld [vmem:[%s3 + $0x260] sm:$0xff]
        %v2774 = vld [vmem:[%s3 + $0x268] sm:$0xff]
        %v2775 = vld [vmem:[%s3 + $0x270] sm:$0xff]
        %v2776 = vld [vmem:[%s3 + $0x278] sm:$0xff]
        %v2777 = vld [vmem:[%s3 + $0x280] sm:$0xff]
        %v2778 = vld [vmem:[%s3 + $0x288] sm:$0xff]
        %v2779 = vld [vmem:[%s3 + $0x290] sm:$0xff]
        %v2780 = vld [vmem:[%s3 + $0x298] sm:$0xff]
        %v2781 = vld [vmem:[%s3 + $0x2a0] sm:$0xff]
        %v2782 = vld [vmem:[%s3 + $0x2a8] sm:$0xff]
        %v2783 = vld [vmem:[%s3 + $0x2b0] sm:$0xff]
        %v2784 = vld [vmem:[%s3 + $0x2b8] sm:$0xff]
        %v2785 = vld [vmem:[%s3 + $0x2c0] sm:$0xff]
        %v2786 = vld [vmem:[%s3 + $0x2c8] sm:$0xff]
        %v2787 = vld [vmem:[%s3 + $0x2d0] sm:$0xff]
        %v2788 = vld [vmem:[%s3 + $0x2d8] sm:$0xff]
        %v2789 = vld [vmem:[%s3 + $0x2e0] sm:$0xff]
        %v2790 = vld [vmem:[%s3 + $0x2e8] sm:$0xff]
        %v2791 = vld [vmem:[%s3 + $0x2f0] sm:$0xff]
        %v2792 = vld [vmem:[%s3 + $0x2f8] sm:$0xff]
        %v2793 = vld [vmem:[%s3 + $0x300] sm:$0xff]
        %v2794 = vld [vmem:[%s3 + $0x308] sm:$0xff]
        %v2795 = vld [vmem:[%s3 + $0x310] sm:$0xff]
        %v2796 = vld [vmem:[%s3 + $0x318] sm:$0xff]
        %v2797 = vld [vmem:[%s3 + $0x320] sm:$0xff]
        %v2798 = vld [vmem:[%s3 + $0x328] sm:$0xff]
        %v2799 = vld [vmem:[%s3 + $0x330] sm:$0xff]
        %v2800 = vld [vmem:[%s3 + $0x338] sm:$0xff]
        %v2801 = vld [vmem:[%s3 + $0x340] sm:$0xff]
        %v2802 = vld [vmem:[%s3 + $0x348] sm:$0xff]
        %v2803 = vld [vmem:[%s3 + $0x350] sm:$0xff]
        %v2804 = vld [vmem:[%s3 + $0x358] sm:$0xff]
        %v2805 = vld [vmem:[%s3 + $0x360] sm:$0xff]
        %v2806 = vld [vmem:[%s3 + $0x368] sm:$0xff]
        %v2807 = vld [vmem:[%s3 + $0x370] sm:$0xff]
        %v2808 = vld [vmem:[%s3 + $0x378] sm:$0xff]
        %v2809 = vld [vmem:[%s3 + $0x380] sm:$0xff]
        %v2810 = vld [vmem:[%s3 + $0x388] sm:$0xff]
        %v2811 = vld [vmem:[%s3 + $0x390] sm:$0xff]
        %v2812 = vld [vmem:[%s3 + $0x398] sm:$0xff]
        %v2813 = vld [vmem:[%s3 + $0x3a0] sm:$0xff]
        %v2814 = vld [vmem:[%s3 + $0x3a8] sm:$0xff]
        %v2815 = vld [vmem:[%s3 + $0x3b0] sm:$0xff]
        %v2816 = vld [vmem:[%s3 + $0x3b8] sm:$0xff]
        %v2817 = vld [vmem:[%s3 + $0x3c0] sm:$0xff]
        %v2818 = vld [vmem:[%s3 + $0x3c8] sm:$0xff]
        %v2819 = vld [vmem:[%s3 + $0x3d0] sm:$0xff]
        %v2820 = vld [vmem:[%s3 + $0x3d8] sm:$0xff]
        %v2821 = vld [vmem:[%s3 + $0x3e0] sm:$0xff]
        %v2822 = vld [vmem:[%s3 + $0x3e8] sm:$0xff]
        %v2823 = vld [vmem:[%s3 + $0x3f0] sm:$0xff]
        %v2824 = vld [vmem:[%s3 + $0x3f8] sm:$0xff]
        %v2825 = vld [vmem:[%s3 + $0x400] sm:$0xff]
        %v2826 = vld [vmem:[%s3 + $0x408] sm:$0xff]
        %v2827 = vld [vmem:[%s3 + $0x410] sm:$0xff]
        %v2828 = vld [vmem:[%s3 + $0x418] sm:$0xff]
        %v2829 = vld [vmem:[%s3 + $0x420] sm:$0xff]
        %v2830 = vld [vmem:[%s3 + $0x428] sm:$0xff]
        %v2831 = vld [vmem:[%s3 + $0x430] sm:$0xff]
        %v2832 = vld [vmem:[%s3 + $0x438] sm:$0xff]
        %v2833 = vld [vmem:[%s3 + $0x440] sm:$0xff]
        %v2834 = vld [vmem:[%s3 + $0x448] sm:$0xff]
        %v2835 = vld [vmem:[%s3 + $0x450] sm:$0xff]
        %v2836 = vld [vmem:[%s3 + $0x458] sm:$0xff]
        %v2837 = vld [vmem:[%s3 + $0x460] sm:$0xff]
        %v2838 = vld [vmem:[%s3 + $0x468] sm:$0xff]
        %v2839 = vld [vmem:[%s3 + $0x470] sm:$0xff]
        %v2840 = vld [vmem:[%s3 + $0x478] sm:$0xff]
        %v2841 = vld [vmem:[%s3 + $0x480] sm:$0xff]
        %v2842 = vld [vmem:[%s3 + $0x488] sm:$0xff]
        %v2843 = vld [vmem:[%s3 + $0x490] sm:$0xff]
        %v2844 = vld [vmem:[%s3 + $0x498] sm:$0xff]
        %v2845 = vld [vmem:[%s3 + $0x4a0] sm:$0xff]
        %v2846 = vld [vmem:[%s3 + $0x4a8] sm:$0xff]
        %v2847 = vld [vmem:[%s3 + $0x4b0] sm:$0xff]
        %v2848 = vld [vmem:[%s3 + $0x4b8] sm:$0xff]
        %v2849 = vld [vmem:[%s3 + $0x4c0] sm:$0xff]
        %v2850 = vld [vmem:[%s3 + $0x4c8] sm:$0xff]
        %v2851 = vld [vmem:[%s3 + $0x4d0] sm:$0xff]
        %v2852 = vld [vmem:[%s3 + $0x4d8] sm:$0xff]
        %v2853 = vld [vmem:[%s3 + $0x4e0] sm:$0xff]
        %v2854 = vld [vmem:[%s3 + $0x4e8] sm:$0xff]
        %v2855 = vld [vmem:[%s3 + $0x4f0] sm:$0xff]
        %v2856 = vld [vmem:[%s3 + $0x4f8] sm:$0xff]
        %v2857 = vld [vmem:[%s3 + $0x500] sm:$0xff]
        %v2858 = vld [vmem:[%s3 + $0x508] sm:$0xff]
        %v2859 = vld [vmem:[%s3 + $0x510] sm:$0xff]
        %v2860 = vld [vmem:[%s3 + $0x518] sm:$0xff]
        %v2861 = vld [vmem:[%s3 + $0x520] sm:$0xff]
        %v2862 = vld [vmem:[%s3 + $0x528] sm:$0xff]
        %v2863 = vld [vmem:[%s3 + $0x530] sm:$0xff]
        %v2864 = vld [vmem:[%s3 + $0x538] sm:$0xff]
        %vm2865 = vcmask 261120
        %v2867 = vsel %vm2865, %v2690, 0
        %v2870 = vsel %vm2865, %v2696, 0
        %2872 = vmatprep.subr.mxu0 %v2698
        %2873 = vmatpush1.msra.mxu0 %v2697
        %2874 = vmatprep.subr.mxu0 %v2700
        %2875 = vmatpush1.msra.mxu0 %v2699
        %2876 = vmatprep.subr.mxu0 %v2702
        %2877 = vmatpush1.msra.mxu0 %v2701
        %2878 = vmatprep.subr.mxu0 %v2704
        %2879 = vmatpush1.msra.mxu0 %v2703
        %2880 = vmatprep.subr.mxu0 %v2706
        %2881 = vmatpush1.msra.mxu0 %v2705
        %2882 = vmatprep.subr.mxu0 %v2708
        %2883 = vmatpush1.msra.mxu0 %v2707
        %2884 = vmatprep.subr.mxu0 %v2710
        %2885 = vmatpush1.msra.mxu0 %v2709
        %2886 = vmatprep.subr.mxu0 %v2712
        %2887 = vmatpush1.msra.mxu0 %v2711
        %2888 = vmatprep.subr.mxu0 %v2714
        %2889 = vmatpush1.msra.mxu0 %v2713
        %2890 = vmatprep.subr.mxu0 %v2716
        %2891 = vmatpush1.msra.mxu0 %v2715
        %2892 = vmatprep.subr.mxu0 %v2718
        %2893 = vmatpush1.msra.mxu0 %v2717
        %2894 = vmatprep.subr.mxu0 %v2720
        %2895 = vmatpush1.msra.mxu0 %v2719
        %2896 = vmatprep.subr.mxu0 %v2722
        %2897 = vmatpush1.msra.mxu0 %v2721
        %2898 = vmatprep.subr.mxu0 %v2724
        %2899 = vmatpush1.msra.mxu0 %v2723
        %2900 = vmatprep.subr.mxu0 %v2726
        %2901 = vmatpush1.msra.mxu0 %v2725
        %2902 = vmatprep.subr.mxu0 %v2728
        %2903 = vmatpush1.msra.mxu0 %v2727
        %2904 = vmatprep.subr.mxu0 %v2730
        %2905 = vmatpush1.msra.mxu0 %v2729
        %2906 = vmatprep.subr.mxu0 %v2732
        %2907 = vmatpush1.msra.mxu0 %v2731
        %2908 = vmatprep.subr.mxu0 %v2734
        %2909 = vmatpush1.msra.mxu0 %v2733
        %2910 = vmatprep.subr.mxu0 %v2736
        %2911 = vmatpush1.msra.mxu0 %v2735
        %2912 = vmatprep.subr.mxu0 %v2738
        %2913 = vmatpush1.msra.mxu0 %v2737
        %2914 = vmatprep.subr.mxu0 %v2740
        %2915 = vmatpush1.msra.mxu0 %v2739
        %2916 = vmatprep.subr.mxu0 %v2742
        %2917 = vmatpush1.msra.mxu0 %v2741
        %2918 = vmatprep.subr.mxu0 %v2744
        %2919 = vmatpush1.msra.mxu0 %v2743
        %2920 = vmatprep.subr.mxu0 %v2746
        %2921 = vmatpush1.msra.mxu0 %v2745
        %2922 = vmatprep.subr.mxu0 %v2748
        %2923 = vmatpush1.msra.mxu0 %v2747
        %2924 = vmatprep.subr.mxu0 %v2750
        %2925 = vmatpush1.msra.mxu0 %v2749
        %2926 = vmatprep.subr.mxu0 %v2752
        %2927 = vmatpush1.msra.mxu0 %v2751
        %2928 = vmatprep.subr.mxu0 %v2754
        %2929 = vmatpush1.msra.mxu0 %v2753
        %2930 = vmatprep.subr.mxu0 %v2756
        %2931 = vmatpush1.msra.mxu0 %v2755
        %2932 = vmatprep.subr.mxu0 %v2758
        %2933 = vmatpush1.msra.mxu0 %v2757
        %2934 = vmatprep.subr.mxu0 %v2760
        %2935 = vmatpush1.msra.mxu0 %v2759
        %2936 = vmatprep.mubr.f32.mxu0 %v2686
        %2937 = vmatmul.mubr.f32.gmra.mrb[0].mxu0 %v2685
        %v2938 = vpop.f32.mrb[0].mxu0
        %v2939 = vadd.f32 0.0, %v2938
        %v2940 = vpop.f32.mrb[0].mxu0
        %v2941 = vadd.f32 0.0, %v2940
        %2942 = vmatprep.mubr.f32.mxu0 %v2692
        %2943 = vmatmul.mubr.f32.gmra.mrb[0].mxu0 %v2691
        %v2944 = vpop.f32.mrb[0].mxu0
        %v2945 = vadd.f32 0.0, %v2944
        %v2946 = vpop.f32.mrb[0].mxu0
        %v2947 = vadd.f32 0.0, %v2946
        %2948 = vdwg.mxu0
        %2949 = vmatprep.subr.mxu0 %v2762
        %2950 = vmatpush1.msra.mxu0 %v2761
        %2951 = vmatprep.subr.mxu0 %v2764
        %2952 = vmatpush1.msra.mxu0 %v2763
        %2953 = vmatprep.subr.mxu0 %v2766
        %2954 = vmatpush1.msra.mxu0 %v2765
        %2955 = vmatprep.subr.mxu0 %v2768
        %2956 = vmatpush1.msra.mxu0 %v2767
        %2957 = vmatprep.subr.mxu0 %v2770
        %2958 = vmatpush1.msra.mxu0 %v2769
        %2959 = vmatprep.subr.mxu0 %v2772
        %2960 = vmatpush1.msra.mxu0 %v2771
        %2961 = vmatprep.subr.mxu0 %v2774
        %2962 = vmatpush1.msra.mxu0 %v2773
        %2963 = vmatprep.subr.mxu0 %v2776
        %2964 = vmatpush1.msra.mxu0 %v2775
        %2965 = vmatprep.subr.mxu0 %v2778
        %2966 = vmatpush1.msra.mxu0 %v2777
        %2967 = vmatprep.subr.mxu0 %v2780
        %2968 = vmatpush1.msra.mxu0 %v2779
        %2969 = vmatprep.subr.mxu0 %v2782
        %2970 = vmatpush1.msra.mxu0 %v2781
        %2971 = vmatprep.subr.mxu0 %v2784
        %2972 = vmatpush1.msra.mxu0 %v2783
        %2973 = vmatprep.subr.mxu0 %v2786
        %2974 = vmatpush1.msra.mxu0 %v2785
        %2975 = vmatprep.subr.mxu0 %v2788
        %2976 = vmatpush1.msra.mxu0 %v2787
        %2977 = vmatprep.subr.mxu0 %v2790
        %2978 = vmatpush1.msra.mxu0 %v2789
        %2979 = vmatprep.subr.mxu0 %v2792
        %2980 = vmatpush1.msra.mxu0 %v2791
        %2981 = vmatprep.subr.mxu0 %v2794
        %2982 = vmatpush1.msra.mxu0 %v2793
        %2983 = vmatprep.subr.mxu0 %v2796
        %2984 = vmatpush1.msra.mxu0 %v2795
        %2985 = vmatprep.subr.mxu0 %v2798
        %2986 = vmatpush1.msra.mxu0 %v2797
        %2987 = vmatprep.subr.mxu0 %v2800
        %2988 = vmatpush1.msra.mxu0 %v2799
        %2989 = vmatprep.subr.mxu0 %v2802
        %2990 = vmatpush1.msra.mxu0 %v2801
        %2991 = vmatprep.subr.mxu0 %v2804
        %2992 = vmatpush1.msra.mxu0 %v2803
        %2993 = vmatprep.subr.mxu0 %v2806
        %2994 = vmatpush1.msra.mxu0 %v2805
        %2995 = vmatprep.subr.mxu0 %v2808
        %2996 = vmatpush1.msra.mxu0 %v2807
        %2997 = vmatprep.subr.mxu0 %v2810
        %2998 = vmatpush1.msra.mxu0 %v2809
        %2999 = vmatprep.subr.mxu0 %v2812
        %3000 = vmatpush1.msra.mxu0 %v2811
        %3001 = vmatprep.subr.mxu0 %v2814
        %3002 = vmatpush1.msra.mxu0 %v2813
        %3003 = vmatprep.subr.mxu0 %v2816
        %3004 = vmatpush1.msra.mxu0 %v2815
        %3005 = vmatprep.subr.mxu0 %v2818
        %3006 = vmatpush1.msra.mxu0 %v2817
        %3007 = vmatprep.subr.mxu0 %v2820
        %3008 = vmatpush1.msra.mxu0 %v2819
        %3009 = vmatprep.subr.mxu0 %v2822
        %3010 = vmatpush1.msra.mxu0 %v2821
        %3011 = vmatprep.subr.mxu0 %v2824
        %3012 = vmatpush1.msra.mxu0 %v2823
        %3013 = vmatprep.mubr.f32.mxu0 %v2688
        %3014 = vmatmul.mubr.f32.gmra.mrb[0].mxu0 %v2687
        %v3015 = vpop.f32.mrb[0].mxu0
        %v3016 = vadd.f32 %v2939, %v3015
        %v3017 = vpop.f32.mrb[0].mxu0
        %v3018 = vadd.f32 %v2941, %v3017
        %3019 = vmatprep.mubr.f32.mxu0 %v2694
        %3020 = vmatmul.mubr.f32.gmra.mrb[0].mxu0 %v2693
        %v3021 = vpop.f32.mrb[0].mxu0
        %v3022 = vadd.f32 %v2945, %v3021
        %v3023 = vpop.f32.mrb[0].mxu0
        %v3024 = vadd.f32 %v2947, %v3023
        %3025 = vdwg.mxu0
        %3026 = vmatprep.subr.mxu0 %v2826
        %3027 = vmatpush1.msra.mxu0 %v2825
        %3028 = vmatprep.subr.mxu0 %v2828
        %3029 = vmatpush1.msra.mxu0 %v2827
        %3030 = vmatprep.subr.mxu0 %v2830
        %3031 = vmatpush1.msra.mxu0 %v2829
        %3032 = vmatprep.subr.mxu0 %v2832
        %3033 = vmatpush1.msra.mxu0 %v2831
        %3034 = vmatprep.subr.mxu0 %v2834
        %3035 = vmatpush1.msra.mxu0 %v2833
        %3036 = vmatprep.subr.mxu0 %v2836
        %3037 = vmatpush1.msra.mxu0 %v2835
        %3038 = vmatprep.subr.mxu0 %v2838
        %3039 = vmatpush1.msra.mxu0 %v2837
        %3040 = vmatprep.subr.mxu0 %v2840
        %3041 = vmatpush1.msra.mxu0 %v2839
        %3042 = vmatprep.subr.mxu0 %v2842
        %3043 = vmatpush1.msra.mxu0 %v2841
        %3044 = vmatprep.subr.mxu0 %v2844
        %3045 = vmatpush1.msra.mxu0 %v2843
        %3046 = vmatprep.subr.mxu0 %v2846
        %3047 = vmatpush1.msra.mxu0 %v2845
        %3048 = vmatprep.subr.mxu0 %v2848
        %3049 = vmatpush1.msra.mxu0 %v2847
        %3050 = vmatprep.subr.mxu0 %v2850
        %3051 = vmatpush1.msra.mxu0 %v2849
        %3052 = vmatprep.subr.mxu0 %v2852
        %3053 = vmatpush1.msra.mxu0 %v2851
        %3054 = vmatprep.subr.mxu0 %v2854
        %3055 = vmatpush1.msra.mxu0 %v2853
        %3056 = vmatprep.subr.mxu0 %v2856
        %3057 = vmatpush1.msra.mxu0 %v2855
        %3058 = vmatprep.subr.mxu0 %v2858
        %3059 = vmatpush1.msra.mxu0 %v2857
        %3060 = vmatprep.subr.mxu0 %v2860
        %3061 = vmatpush1.msra.mxu0 %v2859
        %3062 = vmatprep.subr.mxu0 %v2862
        %3063 = vmatpush1.msra.mxu0 %v2861
        %3064 = vmatprep.subr.mxu0 %v2864
        %3065 = vmatpush1.msra.mxu0 %v2863
        %3066 = vmatprep.subr.mxu0 0.0
        %3067 = vmatpush1.msra.mxu0 0.0
        %3068 = vmatprep.subr.mxu0 0.0
        %3069 = vmatpush1.msra.mxu0 0.0
        %3070 = vmatprep.subr.mxu0 0.0
        %3071 = vmatpush1.msra.mxu0 0.0
        %3072 = vmatprep.subr.mxu0 0.0
        %3073 = vmatpush1.msra.mxu0 0.0
        %3074 = vmatprep.subr.mxu0 0.0
        %3075 = vmatpush1.msra.mxu0 0.0
        %3076 = vmatprep.subr.mxu0 0.0
        %3077 = vmatpush1.msra.mxu0 0.0
        %3078 = vmatprep.subr.mxu0 0.0
        %3079 = vmatpush1.msra.mxu0 0.0
        %3080 = vmatprep.subr.mxu0 0.0
        %3081 = vmatpush1.msra.mxu0 0.0
        %3082 = vmatprep.subr.mxu0 0.0
        %3083 = vmatpush1.msra.mxu0 0.0
        %3084 = vmatprep.subr.mxu0 0.0
        %3085 = vmatpush1.msra.mxu0 0.0
        %3086 = vmatprep.subr.mxu0 0.0
        %3087 = vmatpush1.msra.mxu0 0.0
        %3088 = vmatprep.subr.mxu0 0.0
        %3089 = vmatpush1.msra.mxu0 0.0
        %3090 = vmatprep.mubr.f32.mxu0 %v2867
        %3091 = vmatmul.mubr.f32.gmra.mrb[0].mxu0 %v2689
        %v3092 = vpop.f32.mrb[0].mxu0
        %v3093 = vadd.f32 %v3016, %v3092
        %v3094 = vpop.f32.mrb[0].mxu0
        %v3095 = vadd.f32 %v3018, %v3094
        %3096 = vmatprep.mubr.f32.mxu0 %v2870
        %3097 = vmatmul.mubr.f32.gmra.mrb[0].mxu0 %v2695
        %v3098 = vpop.f32.mrb[0].mxu0
        %v3099 = vadd.f32 %v3022, %v3098
        %v3100 = vpop.f32.mrb[0].mxu0
        %v3101 = vadd.f32 %v3024, %v3100
        %3102 = vdwg.mxu0
        %s3103 = scalar_lea.vmem %s3, 1344
        %v3104 = vld [vmem:[%s3103] sm:$0xff]
        %v3105 = vld [vmem:[%s3103 + $0x8] sm:$0xff]
        %v3106 = vld [vmem:[%s3103 + $0x10] sm:$0xff]
        %v3107 = vld [vmem:[%s3103 + $0x18] sm:$0xff]
        %v3108 = vld [vmem:[%s3103 + $0x20] sm:$0xff]
        %v3109 = vld [vmem:[%s3103 + $0x28] sm:$0xff]
        %v3110 = vld [vmem:[%s3103 + $0x30] sm:$0xff]
        %v3111 = vld [vmem:[%s3103 + $0x38] sm:$0xff]
        %v3112 = vld [vmem:[%s3103 + $0x40] sm:$0xff]
        %v3113 = vld [vmem:[%s3103 + $0x48] sm:$0xff]
        %v3114 = vld [vmem:[%s3103 + $0x50] sm:$0xff]
        %v3115 = vld [vmem:[%s3103 + $0x58] sm:$0xff]
        %v3116 = vld [vmem:[%s3103 + $0x60] sm:$0xff]
        %v3117 = vld [vmem:[%s3103 + $0x68] sm:$0xff]
        %v3118 = vld [vmem:[%s3103 + $0x70] sm:$0xff]
        %v3119 = vld [vmem:[%s3103 + $0x78] sm:$0xff]
        %v3120 = vld [vmem:[%s3103 + $0x80] sm:$0xff]
        %v3121 = vld [vmem:[%s3103 + $0x88] sm:$0xff]
        %v3122 = vld [vmem:[%s3103 + $0x90] sm:$0xff]
        %v3123 = vld [vmem:[%s3103 + $0x98] sm:$0xff]
        %v3124 = vld [vmem:[%s3103 + $0xa0] sm:$0xff]
        %v3125 = vld [vmem:[%s3103 + $0xa8] sm:$0xff]
        %v3126 = vld [vmem:[%s3103 + $0xb0] sm:$0xff]
        %v3127 = vld [vmem:[%s3103 + $0xb8] sm:$0xff]
        %v3128 = vld [vmem:[%s3103 + $0xc0] sm:$0xff]
        %v3129 = vld [vmem:[%s3103 + $0xc8] sm:$0xff]
        %v3130 = vld [vmem:[%s3103 + $0xd0] sm:$0xff]
        %v3131 = vld [vmem:[%s3103 + $0xd8] sm:$0xff]
        %v3132 = vld [vmem:[%s3103 + $0xe0] sm:$0xff]
        %v3133 = vld [vmem:[%s3103 + $0xe8] sm:$0xff]
        %v3134 = vld [vmem:[%s3103 + $0xf0] sm:$0xff]
        %v3135 = vld [vmem:[%s3103 + $0xf8] sm:$0xff]
        %v3136 = vld [vmem:[%s3103 + $0x100] sm:$0xff]
        %v3137 = vld [vmem:[%s3103 + $0x108] sm:$0xff]
        %v3138 = vld [vmem:[%s3103 + $0x110] sm:$0xff]
        %v3139 = vld [vmem:[%s3103 + $0x118] sm:$0xff]
        %v3140 = vld [vmem:[%s3103 + $0x120] sm:$0xff]
        %v3141 = vld [vmem:[%s3103 + $0x128] sm:$0xff]
        %v3142 = vld [vmem:[%s3103 + $0x130] sm:$0xff]
        %v3143 = vld [vmem:[%s3103 + $0x138] sm:$0xff]
        %v3144 = vld [vmem:[%s3103 + $0x140] sm:$0xff]
        %v3145 = vld [vmem:[%s3103 + $0x148] sm:$0xff]
        %v3146 = vld [vmem:[%s3103 + $0x150] sm:$0xff]
        %v3147 = vld [vmem:[%s3103 + $0x158] sm:$0xff]
        %v3148 = vld [vmem:[%s3103 + $0x160] sm:$0xff]
        %v3149 = vld [vmem:[%s3103 + $0x168] sm:$0xff]
        %v3150 = vld [vmem:[%s3103 + $0x170] sm:$0xff]
        %v3151 = vld [vmem:[%s3103 + $0x178] sm:$0xff]
        %v3152 = vld [vmem:[%s3103 + $0x180] sm:$0xff]
        %v3153 = vld [vmem:[%s3103 + $0x188] sm:$0xff]
        %v3154 = vld [vmem:[%s3103 + $0x190] sm:$0xff]
        %v3155 = vld [vmem:[%s3103 + $0x198] sm:$0xff]
        %v3156 = vld [vmem:[%s3103 + $0x1a0] sm:$0xff]
        %v3157 = vld [vmem:[%s3103 + $0x1a8] sm:$0xff]
        %v3158 = vld [vmem:[%s3103 + $0x1b0] sm:$0xff]
        %v3159 = vld [vmem:[%s3103 + $0x1b8] sm:$0xff]
        %v3160 = vld [vmem:[%s3103 + $0x1c0] sm:$0xff]
        %v3161 = vld [vmem:[%s3103 + $0x1c8] sm:$0xff]
        %v3162 = vld [vmem:[%s3103 + $0x1d0] sm:$0xff]
        %v3163 = vld [vmem:[%s3103 + $0x1d8] sm:$0xff]
        %v3164 = vld [vmem:[%s3103 + $0x1e0] sm:$0xff]
        %v3165 = vld [vmem:[%s3103 + $0x1e8] sm:$0xff]
        %v3166 = vld [vmem:[%s3103 + $0x1f0] sm:$0xff]
        %v3167 = vld [vmem:[%s3103 + $0x1f8] sm:$0xff]
        %v3168 = vld [vmem:[%s3103 + $0x200] sm:$0xff]
        %v3169 = vld [vmem:[%s3103 + $0x208] sm:$0xff]
        %v3170 = vld [vmem:[%s3103 + $0x210] sm:$0xff]
        %v3171 = vld [vmem:[%s3103 + $0x218] sm:$0xff]
        %v3172 = vld [vmem:[%s3103 + $0x220] sm:$0xff]
        %v3173 = vld [vmem:[%s3103 + $0x228] sm:$0xff]
        %v3174 = vld [vmem:[%s3103 + $0x230] sm:$0xff]
        %v3175 = vld [vmem:[%s3103 + $0x238] sm:$0xff]
        %v3176 = vld [vmem:[%s3103 + $0x240] sm:$0xff]
        %v3177 = vld [vmem:[%s3103 + $0x248] sm:$0xff]
        %v3178 = vld [vmem:[%s3103 + $0x250] sm:$0xff]
        %v3179 = vld [vmem:[%s3103 + $0x258] sm:$0xff]
        %v3180 = vld [vmem:[%s3103 + $0x260] sm:$0xff]
        %v3181 = vld [vmem:[%s3103 + $0x268] sm:$0xff]
        %v3182 = vld [vmem:[%s3103 + $0x270] sm:$0xff]
        %v3183 = vld [vmem:[%s3103 + $0x278] sm:$0xff]
        %v3184 = vld [vmem:[%s3103 + $0x280] sm:$0xff]
        %v3185 = vld [vmem:[%s3103 + $0x288] sm:$0xff]
        %v3186 = vld [vmem:[%s3103 + $0x290] sm:$0xff]
        %v3187 = vld [vmem:[%s3103 + $0x298] sm:$0xff]
        %v3188 = vld [vmem:[%s3103 + $0x2a0] sm:$0xff]
        %v3189 = vld [vmem:[%s3103 + $0x2a8] sm:$0xff]
        %v3190 = vld [vmem:[%s3103 + $0x2b0] sm:$0xff]
        %v3191 = vld [vmem:[%s3103 + $0x2b8] sm:$0xff]
        %v3192 = vld [vmem:[%s3103 + $0x2c0] sm:$0xff]
        %v3193 = vld [vmem:[%s3103 + $0x2c8] sm:$0xff]
        %v3194 = vld [vmem:[%s3103 + $0x2d0] sm:$0xff]
        %v3195 = vld [vmem:[%s3103 + $0x2d8] sm:$0xff]
        %v3196 = vld [vmem:[%s3103 + $0x2e0] sm:$0xff]
        %v3197 = vld [vmem:[%s3103 + $0x2e8] sm:$0xff]
        %v3198 = vld [vmem:[%s3103 + $0x2f0] sm:$0xff]
        %v3199 = vld [vmem:[%s3103 + $0x2f8] sm:$0xff]
        %v3200 = vld [vmem:[%s3103 + $0x300] sm:$0xff]
        %v3201 = vld [vmem:[%s3103 + $0x308] sm:$0xff]
        %v3202 = vld [vmem:[%s3103 + $0x310] sm:$0xff]
        %v3203 = vld [vmem:[%s3103 + $0x318] sm:$0xff]
        %v3204 = vld [vmem:[%s3103 + $0x320] sm:$0xff]
        %v3205 = vld [vmem:[%s3103 + $0x328] sm:$0xff]
        %v3206 = vld [vmem:[%s3103 + $0x330] sm:$0xff]
        %v3207 = vld [vmem:[%s3103 + $0x338] sm:$0xff]
        %v3208 = vld [vmem:[%s3103 + $0x340] sm:$0xff]
        %v3209 = vld [vmem:[%s3103 + $0x348] sm:$0xff]
        %v3210 = vld [vmem:[%s3103 + $0x350] sm:$0xff]
        %v3211 = vld [vmem:[%s3103 + $0x358] sm:$0xff]
        %v3212 = vld [vmem:[%s3103 + $0x360] sm:$0xff]
        %v3213 = vld [vmem:[%s3103 + $0x368] sm:$0xff]
        %v3214 = vld [vmem:[%s3103 + $0x370] sm:$0xff]
        %v3215 = vld [vmem:[%s3103 + $0x378] sm:$0xff]
        %v3216 = vld [vmem:[%s3103 + $0x380] sm:$0xff]
        %v3217 = vld [vmem:[%s3103 + $0x388] sm:$0xff]
        %v3218 = vld [vmem:[%s3103 + $0x390] sm:$0xff]
        %v3219 = vld [vmem:[%s3103 + $0x398] sm:$0xff]
        %v3220 = vld [vmem:[%s3103 + $0x3a0] sm:$0xff]
        %v3221 = vld [vmem:[%s3103 + $0x3a8] sm:$0xff]
        %v3222 = vld [vmem:[%s3103 + $0x3b0] sm:$0xff]
        %v3223 = vld [vmem:[%s3103 + $0x3b8] sm:$0xff]
        %v3224 = vld [vmem:[%s3103 + $0x3c0] sm:$0xff]
        %v3225 = vld [vmem:[%s3103 + $0x3c8] sm:$0xff]
        %v3226 = vld [vmem:[%s3103 + $0x3d0] sm:$0xff]
        %v3227 = vld [vmem:[%s3103 + $0x3d8] sm:$0xff]
        %v3228 = vld [vmem:[%s3103 + $0x3e0] sm:$0xff]
        %v3229 = vld [vmem:[%s3103 + $0x3e8] sm:$0xff]
        %v3230 = vld [vmem:[%s3103 + $0x3f0] sm:$0xff]
        %v3231 = vld [vmem:[%s3103 + $0x3f8] sm:$0xff]
        %v3232 = vld [vmem:[%s3103 + $0x400] sm:$0xff]
        %v3233 = vld [vmem:[%s3103 + $0x408] sm:$0xff]
        %v3234 = vld [vmem:[%s3103 + $0x410] sm:$0xff]
        %v3235 = vld [vmem:[%s3103 + $0x418] sm:$0xff]
        %v3236 = vld [vmem:[%s3103 + $0x420] sm:$0xff]
        %v3237 = vld [vmem:[%s3103 + $0x428] sm:$0xff]
        %v3238 = vld [vmem:[%s3103 + $0x430] sm:$0xff]
        %v3239 = vld [vmem:[%s3103 + $0x438] sm:$0xff]
        %v3240 = vld [vmem:[%s3103 + $0x440] sm:$0xff]
        %v3241 = vld [vmem:[%s3103 + $0x448] sm:$0xff]
        %v3242 = vld [vmem:[%s3103 + $0x450] sm:$0xff]
        %v3243 = vld [vmem:[%s3103 + $0x458] sm:$0xff]
        %v3244 = vld [vmem:[%s3103 + $0x460] sm:$0xff]
        %v3245 = vld [vmem:[%s3103 + $0x468] sm:$0xff]
        %v3246 = vld [vmem:[%s3103 + $0x470] sm:$0xff]
        %v3247 = vld [vmem:[%s3103 + $0x478] sm:$0xff]
        %v3248 = vld [vmem:[%s3103 + $0x480] sm:$0xff]
        %v3249 = vld [vmem:[%s3103 + $0x488] sm:$0xff]
        %v3250 = vld [vmem:[%s3103 + $0x490] sm:$0xff]
        %v3251 = vld [vmem:[%s3103 + $0x498] sm:$0xff]
        %v3252 = vld [vmem:[%s3103 + $0x4a0] sm:$0xff]
        %v3253 = vld [vmem:[%s3103 + $0x4a8] sm:$0xff]
        %v3254 = vld [vmem:[%s3103 + $0x4b0] sm:$0xff]
        %v3255 = vld [vmem:[%s3103 + $0x4b8] sm:$0xff]
        %v3256 = vld [vmem:[%s3103 + $0x4c0] sm:$0xff]
        %v3257 = vld [vmem:[%s3103 + $0x4c8] sm:$0xff]
        %v3258 = vld [vmem:[%s3103 + $0x4d0] sm:$0xff]
        %v3259 = vld [vmem:[%s3103 + $0x4d8] sm:$0xff]
        %v3260 = vld [vmem:[%s3103 + $0x4e0] sm:$0xff]
        %v3261 = vld [vmem:[%s3103 + $0x4e8] sm:$0xff]
        %v3262 = vld [vmem:[%s3103 + $0x4f0] sm:$0xff]
        %v3263 = vld [vmem:[%s3103 + $0x4f8] sm:$0xff]
        %v3264 = vld [vmem:[%s3103 + $0x500] sm:$0xff]
        %v3265 = vld [vmem:[%s3103 + $0x508] sm:$0xff]
        %v3266 = vld [vmem:[%s3103 + $0x510] sm:$0xff]
        %v3267 = vld [vmem:[%s3103 + $0x518] sm:$0xff]
        %v3268 = vld [vmem:[%s3103 + $0x520] sm:$0xff]
        %v3269 = vld [vmem:[%s3103 + $0x528] sm:$0xff]
        %v3270 = vld [vmem:[%s3103 + $0x530] sm:$0xff]
        %v3271 = vld [vmem:[%s3103 + $0x538] sm:$0xff]
        %3272 = vmatprep.subr.mxu0 %v3105
        %3273 = vmatpush1.msra.mxu0 %v3104
        %3274 = vmatprep.subr.mxu0 %v3107
        %3275 = vmatpush1.msra.mxu0 %v3106
        %3276 = vmatprep.subr.mxu0 %v3109
        %3277 = vmatpush1.msra.mxu0 %v3108
        %3278 = vmatprep.subr.mxu0 %v3111
        %3279 = vmatpush1.msra.mxu0 %v3110
        %3280 = vmatprep.subr.mxu0 %v3113
        %3281 = vmatpush1.msra.mxu0 %v3112
        %3282 = vmatprep.subr.mxu0 %v3115
        %3283 = vmatpush1.msra.mxu0 %v3114
        %3284 = vmatprep.subr.mxu0 %v3117
        %3285 = vmatpush1.msra.mxu0 %v3116
        %3286 = vmatprep.subr.mxu0 %v3119
        %3287 = vmatpush1.msra.mxu0 %v3118
        %3288 = vmatprep.subr.mxu0 %v3121
        %3289 = vmatpush1.msra.mxu0 %v3120
        %3290 = vmatprep.subr.mxu0 %v3123
        %3291 = vmatpush1.msra.mxu0 %v3122
        %3292 = vmatprep.subr.mxu0 %v3125
        %3293 = vmatpush1.msra.mxu0 %v3124
        %3294 = vmatprep.subr.mxu0 %v3127
        %3295 = vmatpush1.msra.mxu0 %v3126
        %3296 = vmatprep.subr.mxu0 %v3129
        %3297 = vmatpush1.msra.mxu0 %v3128
        %3298 = vmatprep.subr.mxu0 %v3131
        %3299 = vmatpush1.msra.mxu0 %v3130
        %3300 = vmatprep.subr.mxu0 %v3133
        %3301 = vmatpush1.msra.mxu0 %v3132
        %3302 = vmatprep.subr.mxu0 %v3135
        %3303 = vmatpush1.msra.mxu0 %v3134
        %3304 = vmatprep.subr.mxu0 %v3137
        %3305 = vmatpush1.msra.mxu0 %v3136
        %3306 = vmatprep.subr.mxu0 %v3139
        %3307 = vmatpush1.msra.mxu0 %v3138
        %3308 = vmatprep.subr.mxu0 %v3141
        %3309 = vmatpush1.msra.mxu0 %v3140
        %3310 = vmatprep.subr.mxu0 %v3143
        %3311 = vmatpush1.msra.mxu0 %v3142
        %3312 = vmatprep.subr.mxu0 %v3145
        %3313 = vmatpush1.msra.mxu0 %v3144
        %3314 = vmatprep.subr.mxu0 %v3147
        %3315 = vmatpush1.msra.mxu0 %v3146
        %3316 = vmatprep.subr.mxu0 %v3149
        %3317 = vmatpush1.msra.mxu0 %v3148
        %3318 = vmatprep.subr.mxu0 %v3151
        %3319 = vmatpush1.msra.mxu0 %v3150
        %3320 = vmatprep.subr.mxu0 %v3153
        %3321 = vmatpush1.msra.mxu0 %v3152
        %3322 = vmatprep.subr.mxu0 %v3155
        %3323 = vmatpush1.msra.mxu0 %v3154
        %3324 = vmatprep.subr.mxu0 %v3157
        %3325 = vmatpush1.msra.mxu0 %v3156
        %3326 = vmatprep.subr.mxu0 %v3159
        %3327 = vmatpush1.msra.mxu0 %v3158
        %3328 = vmatprep.subr.mxu0 %v3161
        %3329 = vmatpush1.msra.mxu0 %v3160
        %3330 = vmatprep.subr.mxu0 %v3163
        %3331 = vmatpush1.msra.mxu0 %v3162
        %3332 = vmatprep.subr.mxu0 %v3165
        %3333 = vmatpush1.msra.mxu0 %v3164
        %3334 = vmatprep.subr.mxu0 %v3167
        %3335 = vmatpush1.msra.mxu0 %v3166
        %3336 = vmatprep.mubr.f32.mxu0 %v2686
        %3337 = vmatmul.mubr.f32.gmra.mrb[0].mxu0 %v2685
        %v3338 = vpop.f32.mrb[0].mxu0
        %v3339 = vadd.f32 0.0, %v3338
        %v3340 = vpop.f32.mrb[0].mxu0
        %v3341 = vadd.f32 0.0, %v3340
        %3342 = vmatprep.mubr.f32.mxu0 %v2692
        %3343 = vmatmul.mubr.f32.gmra.mrb[0].mxu0 %v2691
        %v3344 = vpop.f32.mrb[0].mxu0
        %v3345 = vadd.f32 0.0, %v3344
        %v3346 = vpop.f32.mrb[0].mxu0
        %v3347 = vadd.f32 0.0, %v3346
        %3348 = vdwg.mxu0
        %3349 = vmatprep.subr.mxu0 %v3169
        %3350 = vmatpush1.msra.mxu0 %v3168
        %3351 = vmatprep.subr.mxu0 %v3171
        %3352 = vmatpush1.msra.mxu0 %v3170
        %3353 = vmatprep.subr.mxu0 %v3173
        %3354 = vmatpush1.msra.mxu0 %v3172
        %3355 = vmatprep.subr.mxu0 %v3175
        %3356 = vmatpush1.msra.mxu0 %v3174
        %3357 = vmatprep.subr.mxu0 %v3177
        %3358 = vmatpush1.msra.mxu0 %v3176
        %3359 = vmatprep.subr.mxu0 %v3179
        %3360 = vmatpush1.msra.mxu0 %v3178
        %3361 = vmatprep.subr.mxu0 %v3181
        %3362 = vmatpush1.msra.mxu0 %v3180
        %3363 = vmatprep.subr.mxu0 %v3183
        %3364 = vmatpush1.msra.mxu0 %v3182
        %3365 = vmatprep.subr.mxu0 %v3185
        %3366 = vmatpush1.msra.mxu0 %v3184
        %3367 = vmatprep.subr.mxu0 %v3187
        %3368 = vmatpush1.msra.mxu0 %v3186
        %3369 = vmatprep.subr.mxu0 %v3189
        %3370 = vmatpush1.msra.mxu0 %v3188
        %3371 = vmatprep.subr.mxu0 %v3191
        %3372 = vmatpush1.msra.mxu0 %v3190
        %3373 = vmatprep.subr.mxu0 %v3193
        %3374 = vmatpush1.msra.mxu0 %v3192
        %3375 = vmatprep.subr.mxu0 %v3195
        %3376 = vmatpush1.msra.mxu0 %v3194
        %3377 = vmatprep.subr.mxu0 %v3197
        %3378 = vmatpush1.msra.mxu0 %v3196
        %3379 = vmatprep.subr.mxu0 %v3199
        %3380 = vmatpush1.msra.mxu0 %v3198
        %3381 = vmatprep.subr.mxu0 %v3201
        %3382 = vmatpush1.msra.mxu0 %v3200
        %3383 = vmatprep.subr.mxu0 %v3203
        %3384 = vmatpush1.msra.mxu0 %v3202
        %3385 = vmatprep.subr.mxu0 %v3205
        %3386 = vmatpush1.msra.mxu0 %v3204
        %3387 = vmatprep.subr.mxu0 %v3207
        %3388 = vmatpush1.msra.mxu0 %v3206
        %3389 = vmatprep.subr.mxu0 %v3209
        %3390 = vmatpush1.msra.mxu0 %v3208
        %3391 = vmatprep.subr.mxu0 %v3211
        %3392 = vmatpush1.msra.mxu0 %v3210
        %3393 = vmatprep.subr.mxu0 %v3213
        %3394 = vmatpush1.msra.mxu0 %v3212
        %3395 = vmatprep.subr.mxu0 %v3215
        %3396 = vmatpush1.msra.mxu0 %v3214
        %3397 = vmatprep.subr.mxu0 %v3217
        %3398 = vmatpush1.msra.mxu0 %v3216
        %3399 = vmatprep.subr.mxu0 %v3219
        %3400 = vmatpush1.msra.mxu0 %v3218
        %3401 = vmatprep.subr.mxu0 %v3221
        %3402 = vmatpush1.msra.mxu0 %v3220
        %3403 = vmatprep.subr.mxu0 %v3223
        %3404 = vmatpush1.msra.mxu0 %v3222
        %3405 = vmatprep.subr.mxu0 %v3225
        %3406 = vmatpush1.msra.mxu0 %v3224
        %3407 = vmatprep.subr.mxu0 %v3227
        %3408 = vmatpush1.msra.mxu0 %v3226
        %3409 = vmatprep.subr.mxu0 %v3229
        %3410 = vmatpush1.msra.mxu0 %v3228
        %3411 = vmatprep.subr.mxu0 %v3231
        %3412 = vmatpush1.msra.mxu0 %v3230
        %3413 = vmatprep.mubr.f32.mxu0 %v2688
        %3414 = vmatmul.mubr.f32.gmra.mrb[0].mxu0 %v2687
        %v3415 = vpop.f32.mrb[0].mxu0
        %v3416 = vadd.f32 %v3339, %v3415
        %v3417 = vpop.f32.mrb[0].mxu0
        %v3418 = vadd.f32 %v3341, %v3417
        %3419 = vmatprep.mubr.f32.mxu0 %v2694
        %3420 = vmatmul.mubr.f32.gmra.mrb[0].mxu0 %v2693
        %v3421 = vpop.f32.mrb[0].mxu0
        %v3422 = vadd.f32 %v3345, %v3421
        %v3423 = vpop.f32.mrb[0].mxu0
        %v3424 = vadd.f32 %v3347, %v3423
        %3425 = vdwg.mxu0
        %3426 = vmatprep.subr.mxu0 %v3233
        %3427 = vmatpush1.msra.mxu0 %v3232
        %3428 = vmatprep.subr.mxu0 %v3235
        %3429 = vmatpush1.msra.mxu0 %v3234
        %3430 = vmatprep.subr.mxu0 %v3237
        %3431 = vmatpush1.msra.mxu0 %v3236
        %3432 = vmatprep.subr.mxu0 %v3239
        %3433 = vmatpush1.msra.mxu0 %v3238
        %3434 = vmatprep.subr.mxu0 %v3241
        %3435 = vmatpush1.msra.mxu0 %v3240
        %3436 = vmatprep.subr.mxu0 %v3243
        %3437 = vmatpush1.msra.mxu0 %v3242
        %3438 = vmatprep.subr.mxu0 %v3245
        %3439 = vmatpush1.msra.mxu0 %v3244
        %3440 = vmatprep.subr.mxu0 %v3247
        %3441 = vmatpush1.msra.mxu0 %v3246
        %3442 = vmatprep.subr.mxu0 %v3249
        %3443 = vmatpush1.msra.mxu0 %v3248
        %3444 = vmatprep.subr.mxu0 %v3251
        %3445 = vmatpush1.msra.mxu0 %v3250
        %3446 = vmatprep.subr.mxu0 %v3253
        %3447 = vmatpush1.msra.mxu0 %v3252
        %3448 = vmatprep.subr.mxu0 %v3255
        %3449 = vmatpush1.msra.mxu0 %v3254
        %3450 = vmatprep.subr.mxu0 %v3257
        %3451 = vmatpush1.msra.mxu0 %v3256
        %3452 = vmatprep.subr.mxu0 %v3259
        %3453 = vmatpush1.msra.mxu0 %v3258
        %3454 = vmatprep.subr.mxu0 %v3261
        %3455 = vmatpush1.msra.mxu0 %v3260
        %3456 = vmatprep.subr.mxu0 %v3263
        %3457 = vmatpush1.msra.mxu0 %v3262
        %3458 = vmatprep.subr.mxu0 %v3265
        %3459 = vmatpush1.msra.mxu0 %v3264
        %3460 = vmatprep.subr.mxu0 %v3267
        %3461 = vmatpush1.msra.mxu0 %v3266
        %3462 = vmatprep.subr.mxu0 %v3269
        %3463 = vmatpush1.msra.mxu0 %v3268
        %3464 = vmatprep.subr.mxu0 %v3271
        %3465 = vmatpush1.msra.mxu0 %v3270
        %3466 = vmatprep.subr.mxu0 0.0
        %3467 = vmatpush1.msra.mxu0 0.0
        %3468 = vmatprep.subr.mxu0 0.0
        %3469 = vmatpush1.msra.mxu0 0.0
        %3470 = vmatprep.subr.mxu0 0.0
        %3471 = vmatpush1.msra.mxu0 0.0
        %3472 = vmatprep.subr.mxu0 0.0
        %3473 = vmatpush1.msra.mxu0 0.0
        %3474 = vmatprep.subr.mxu0 0.0
        %3475 = vmatpush1.msra.mxu0 0.0
        %3476 = vmatprep.subr.mxu0 0.0
        %3477 = vmatpush1.msra.mxu0 0.0
        %3478 = vmatprep.subr.mxu0 0.0
        %3479 = vmatpush1.msra.mxu0 0.0
        %3480 = vmatprep.subr.mxu0 0.0
        %3481 = vmatpush1.msra.mxu0 0.0
        %3482 = vmatprep.subr.mxu0 0.0
        %3483 = vmatpush1.msra.mxu0 0.0
        %3484 = vmatprep.subr.mxu0 0.0
        %3485 = vmatpush1.msra.mxu0 0.0
        %3486 = vmatprep.subr.mxu0 0.0
        %3487 = vmatpush1.msra.mxu0 0.0
        %3488 = vmatprep.subr.mxu0 0.0
        %3489 = vmatpush1.msra.mxu0 0.0
        %3490 = vmatprep.mubr.f32.mxu0 %v2867
        %3491 = vmatmul.mubr.f32.gmra.mrb[0].mxu0 %v2689
        %v3492 = vpop.f32.mrb[0].mxu0
        %v3493 = vadd.f32 %v3416, %v3492
        %v3494 = vpop.f32.mrb[0].mxu0
        %v3495 = vadd.f32 %v3418, %v3494
        %3496 = vmatprep.mubr.f32.mxu0 %v2870
        %3497 = vmatmul.mubr.f32.gmra.mrb[0].mxu0 %v2695
        %v3498 = vpop.f32.mrb[0].mxu0
        %v3499 = vadd.f32 %v3422, %v3498
        %v3500 = vpop.f32.mrb[0].mxu0
        %v3501 = vadd.f32 %v3424, %v3500
        %3502 = vdwg.mxu0
        %v3503 = vmax.f32 %v3093, %v3493
        %v3504 = vmax.f32 %v3095, %v3495
        %v3505 = vmax.f32 %v3099, %v3499
        %v3506 = vmax.f32 %v3101, %v3501
        %s3507 = scalar_lea.vmem %s3, 2688
        %v3508 = vld [vmem:[%s3507] sm:$0xff]
        %v3509 = vld [vmem:[%s3507 + $0x8] sm:$0xff]
        %v3510 = vld [vmem:[%s3507 + $0x10] sm:$0xff]
        %v3511 = vld [vmem:[%s3507 + $0x18] sm:$0xff]
        %v3512 = vld [vmem:[%s3507 + $0x20] sm:$0xff]
        %v3513 = vld [vmem:[%s3507 + $0x28] sm:$0xff]
        %v3514 = vld [vmem:[%s3507 + $0x30] sm:$0xff]
        %v3515 = vld [vmem:[%s3507 + $0x38] sm:$0xff]
        %v3516 = vld [vmem:[%s3507 + $0x40] sm:$0xff]
        %v3517 = vld [vmem:[%s3507 + $0x48] sm:$0xff]
        %v3518 = vld [vmem:[%s3507 + $0x50] sm:$0xff]
        %v3519 = vld [vmem:[%s3507 + $0x58] sm:$0xff]
        %v3520 = vld [vmem:[%s3507 + $0x60] sm:$0xff]
        %v3521 = vld [vmem:[%s3507 + $0x68] sm:$0xff]
        %v3522 = vld [vmem:[%s3507 + $0x70] sm:$0xff]
        %v3523 = vld [vmem:[%s3507 + $0x78] sm:$0xff]
        %v3524 = vld [vmem:[%s3507 + $0x80] sm:$0xff]
        %v3525 = vld [vmem:[%s3507 + $0x88] sm:$0xff]
        %v3526 = vld [vmem:[%s3507 + $0x90] sm:$0xff]
        %v3527 = vld [vmem:[%s3507 + $0x98] sm:$0xff]
        %v3528 = vld [vmem:[%s3507 + $0xa0] sm:$0xff]
        %v3529 = vld [vmem:[%s3507 + $0xa8] sm:$0xff]
        %v3530 = vld [vmem:[%s3507 + $0xb0] sm:$0xff]
        %v3531 = vld [vmem:[%s3507 + $0xb8] sm:$0xff]
        %v3532 = vld [vmem:[%s3507 + $0xc0] sm:$0xff]
        %v3533 = vld [vmem:[%s3507 + $0xc8] sm:$0xff]
        %v3534 = vld [vmem:[%s3507 + $0xd0] sm:$0xff]
        %v3535 = vld [vmem:[%s3507 + $0xd8] sm:$0xff]
        %v3536 = vld [vmem:[%s3507 + $0xe0] sm:$0xff]
        %v3537 = vld [vmem:[%s3507 + $0xe8] sm:$0xff]
        %v3538 = vld [vmem:[%s3507 + $0xf0] sm:$0xff]
        %v3539 = vld [vmem:[%s3507 + $0xf8] sm:$0xff]
        %v3540 = vld [vmem:[%s3507 + $0x100] sm:$0xff]
        %v3541 = vld [vmem:[%s3507 + $0x108] sm:$0xff]
        %v3542 = vld [vmem:[%s3507 + $0x110] sm:$0xff]
        %v3543 = vld [vmem:[%s3507 + $0x118] sm:$0xff]
        %v3544 = vld [vmem:[%s3507 + $0x120] sm:$0xff]
        %v3545 = vld [vmem:[%s3507 + $0x128] sm:$0xff]
        %v3546 = vld [vmem:[%s3507 + $0x130] sm:$0xff]
        %v3547 = vld [vmem:[%s3507 + $0x138] sm:$0xff]
        %v3548 = vld [vmem:[%s3507 + $0x140] sm:$0xff]
        %v3549 = vld [vmem:[%s3507 + $0x148] sm:$0xff]
        %v3550 = vld [vmem:[%s3507 + $0x150] sm:$0xff]
        %v3551 = vld [vmem:[%s3507 + $0x158] sm:$0xff]
        %v3552 = vld [vmem:[%s3507 + $0x160] sm:$0xff]
        %v3553 = vld [vmem:[%s3507 + $0x168] sm:$0xff]
        %v3554 = vld [vmem:[%s3507 + $0x170] sm:$0xff]
        %v3555 = vld [vmem:[%s3507 + $0x178] sm:$0xff]
        %v3556 = vld [vmem:[%s3507 + $0x180] sm:$0xff]
        %v3557 = vld [vmem:[%s3507 + $0x188] sm:$0xff]
        %v3558 = vld [vmem:[%s3507 + $0x190] sm:$0xff]
        %v3559 = vld [vmem:[%s3507 + $0x198] sm:$0xff]
        %v3560 = vld [vmem:[%s3507 + $0x1a0] sm:$0xff]
        %v3561 = vld [vmem:[%s3507 + $0x1a8] sm:$0xff]
        %v3562 = vld [vmem:[%s3507 + $0x1b0] sm:$0xff]
        %v3563 = vld [vmem:[%s3507 + $0x1b8] sm:$0xff]
        %v3564 = vld [vmem:[%s3507 + $0x1c0] sm:$0xff]
        %v3565 = vld [vmem:[%s3507 + $0x1c8] sm:$0xff]
        %v3566 = vld [vmem:[%s3507 + $0x1d0] sm:$0xff]
        %v3567 = vld [vmem:[%s3507 + $0x1d8] sm:$0xff]
        %v3568 = vld [vmem:[%s3507 + $0x1e0] sm:$0xff]
        %v3569 = vld [vmem:[%s3507 + $0x1e8] sm:$0xff]
        %v3570 = vld [vmem:[%s3507 + $0x1f0] sm:$0xff]
        %v3571 = vld [vmem:[%s3507 + $0x1f8] sm:$0xff]
        %v3572 = vld [vmem:[%s3507 + $0x200] sm:$0xff]
        %v3573 = vld [vmem:[%s3507 + $0x208] sm:$0xff]
        %v3574 = vld [vmem:[%s3507 + $0x210] sm:$0xff]
        %v3575 = vld [vmem:[%s3507 + $0x218] sm:$0xff]
        %v3576 = vld [vmem:[%s3507 + $0x220] sm:$0xff]
        %v3577 = vld [vmem:[%s3507 + $0x228] sm:$0xff]
        %v3578 = vld [vmem:[%s3507 + $0x230] sm:$0xff]
        %v3579 = vld [vmem:[%s3507 + $0x238] sm:$0xff]
        %v3580 = vld [vmem:[%s3507 + $0x240] sm:$0xff]
        %v3581 = vld [vmem:[%s3507 + $0x248] sm:$0xff]
        %v3582 = vld [vmem:[%s3507 + $0x250] sm:$0xff]
        %v3583 = vld [vmem:[%s3507 + $0x258] sm:$0xff]
        %v3584 = vld [vmem:[%s3507 + $0x260] sm:$0xff]
        %v3585 = vld [vmem:[%s3507 + $0x268] sm:$0xff]
        %v3586 = vld [vmem:[%s3507 + $0x270] sm:$0xff]
        %v3587 = vld [vmem:[%s3507 + $0x278] sm:$0xff]
        %v3588 = vld [vmem:[%s3507 + $0x280] sm:$0xff]
        %v3589 = vld [vmem:[%s3507 + $0x288] sm:$0xff]
        %v3590 = vld [vmem:[%s3507 + $0x290] sm:$0xff]
        %v3591 = vld [vmem:[%s3507 + $0x298] sm:$0xff]
        %v3592 = vld [vmem:[%s3507 + $0x2a0] sm:$0xff]
        %v3593 = vld [vmem:[%s3507 + $0x2a8] sm:$0xff]
        %v3594 = vld [vmem:[%s3507 + $0x2b0] sm:$0xff]
        %v3595 = vld [vmem:[%s3507 + $0x2b8] sm:$0xff]
        %v3596 = vld [vmem:[%s3507 + $0x2c0] sm:$0xff]
        %v3597 = vld [vmem:[%s3507 + $0x2c8] sm:$0xff]
        %v3598 = vld [vmem:[%s3507 + $0x2d0] sm:$0xff]
        %v3599 = vld [vmem:[%s3507 + $0x2d8] sm:$0xff]
        %v3600 = vld [vmem:[%s3507 + $0x2e0] sm:$0xff]
        %v3601 = vld [vmem:[%s3507 + $0x2e8] sm:$0xff]
        %v3602 = vld [vmem:[%s3507 + $0x2f0] sm:$0xff]
        %v3603 = vld [vmem:[%s3507 + $0x2f8] sm:$0xff]
        %v3604 = vld [vmem:[%s3507 + $0x300] sm:$0xff]
        %v3605 = vld [vmem:[%s3507 + $0x308] sm:$0xff]
        %v3606 = vld [vmem:[%s3507 + $0x310] sm:$0xff]
        %v3607 = vld [vmem:[%s3507 + $0x318] sm:$0xff]
        %v3608 = vld [vmem:[%s3507 + $0x320] sm:$0xff]
        %v3609 = vld [vmem:[%s3507 + $0x328] sm:$0xff]
        %v3610 = vld [vmem:[%s3507 + $0x330] sm:$0xff]
        %v3611 = vld [vmem:[%s3507 + $0x338] sm:$0xff]
        %v3612 = vld [vmem:[%s3507 + $0x340] sm:$0xff]
        %v3613 = vld [vmem:[%s3507 + $0x348] sm:$0xff]
        %v3614 = vld [vmem:[%s3507 + $0x350] sm:$0xff]
        %v3615 = vld [vmem:[%s3507 + $0x358] sm:$0xff]
        %v3616 = vld [vmem:[%s3507 + $0x360] sm:$0xff]
        %v3617 = vld [vmem:[%s3507 + $0x368] sm:$0xff]
        %v3618 = vld [vmem:[%s3507 + $0x370] sm:$0xff]
        %v3619 = vld [vmem:[%s3507 + $0x378] sm:$0xff]
        %v3620 = vld [vmem:[%s3507 + $0x380] sm:$0xff]
        %v3621 = vld [vmem:[%s3507 + $0x388] sm:$0xff]
        %v3622 = vld [vmem:[%s3507 + $0x390] sm:$0xff]
        %v3623 = vld [vmem:[%s3507 + $0x398] sm:$0xff]
        %v3624 = vld [vmem:[%s3507 + $0x3a0] sm:$0xff]
        %v3625 = vld [vmem:[%s3507 + $0x3a8] sm:$0xff]
        %v3626 = vld [vmem:[%s3507 + $0x3b0] sm:$0xff]
        %v3627 = vld [vmem:[%s3507 + $0x3b8] sm:$0xff]
        %v3628 = vld [vmem:[%s3507 + $0x3c0] sm:$0xff]
        %v3629 = vld [vmem:[%s3507 + $0x3c8] sm:$0xff]
        %v3630 = vld [vmem:[%s3507 + $0x3d0] sm:$0xff]
        %v3631 = vld [vmem:[%s3507 + $0x3d8] sm:$0xff]
        %v3632 = vld [vmem:[%s3507 + $0x3e0] sm:$0xff]
        %v3633 = vld [vmem:[%s3507 + $0x3e8] sm:$0xff]
        %v3634 = vld [vmem:[%s3507 + $0x3f0] sm:$0xff]
        %v3635 = vld [vmem:[%s3507 + $0x3f8] sm:$0xff]
        %v3636 = vld [vmem:[%s3507 + $0x400] sm:$0xff]
        %v3637 = vld [vmem:[%s3507 + $0x408] sm:$0xff]
        %v3638 = vld [vmem:[%s3507 + $0x410] sm:$0xff]
        %v3639 = vld [vmem:[%s3507 + $0x418] sm:$0xff]
        %v3640 = vld [vmem:[%s3507 + $0x420] sm:$0xff]
        %v3641 = vld [vmem:[%s3507 + $0x428] sm:$0xff]
        %v3642 = vld [vmem:[%s3507 + $0x430] sm:$0xff]
        %v3643 = vld [vmem:[%s3507 + $0x438] sm:$0xff]
        %v3644 = vld [vmem:[%s3507 + $0x440] sm:$0xff]
        %v3645 = vld [vmem:[%s3507 + $0x448] sm:$0xff]
        %v3646 = vld [vmem:[%s3507 + $0x450] sm:$0xff]
        %v3647 = vld [vmem:[%s3507 + $0x458] sm:$0xff]
        %v3648 = vld [vmem:[%s3507 + $0x460] sm:$0xff]
        %v3649 = vld [vmem:[%s3507 + $0x468] sm:$0xff]
        %v3650 = vld [vmem:[%s3507 + $0x470] sm:$0xff]
        %v3651 = vld [vmem:[%s3507 + $0x478] sm:$0xff]
        %v3652 = vld [vmem:[%s3507 + $0x480] sm:$0xff]
        %v3653 = vld [vmem:[%s3507 + $0x488] sm:$0xff]
        %v3654 = vld [vmem:[%s3507 + $0x490] sm:$0xff]
        %v3655 = vld [vmem:[%s3507 + $0x498] sm:$0xff]
        %v3656 = vld [vmem:[%s3507 + $0x4a0] sm:$0xff]
        %v3657 = vld [vmem:[%s3507 + $0x4a8] sm:$0xff]
        %v3658 = vld [vmem:[%s3507 + $0x4b0] sm:$0xff]
        %v3659 = vld [vmem:[%s3507 + $0x4b8] sm:$0xff]
        %v3660 = vld [vmem:[%s3507 + $0x4c0] sm:$0xff]
        %v3661 = vld [vmem:[%s3507 + $0x4c8] sm:$0xff]
        %v3662 = vld [vmem:[%s3507 + $0x4d0] sm:$0xff]
        %v3663 = vld [vmem:[%s3507 + $0x4d8] sm:$0xff]
        %v3664 = vld [vmem:[%s3507 + $0x4e0] sm:$0xff]
        %v3665 = vld [vmem:[%s3507 + $0x4e8] sm:$0xff]
        %v3666 = vld [vmem:[%s3507 + $0x4f0] sm:$0xff]
        %v3667 = vld [vmem:[%s3507 + $0x4f8] sm:$0xff]
        %v3668 = vld [vmem:[%s3507 + $0x500] sm:$0xff]
        %v3669 = vld [vmem:[%s3507 + $0x508] sm:$0xff]
        %v3670 = vld [vmem:[%s3507 + $0x510] sm:$0xff]
        %v3671 = vld [vmem:[%s3507 + $0x518] sm:$0xff]
        %v3672 = vld [vmem:[%s3507 + $0x520] sm:$0xff]
        %v3673 = vld [vmem:[%s3507 + $0x528] sm:$0xff]
        %v3674 = vld [vmem:[%s3507 + $0x530] sm:$0xff]
        %v3675 = vld [vmem:[%s3507 + $0x538] sm:$0xff]
        %3676 = vmatprep.subr.mxu0 %v3509
        %3677 = vmatpush1.msra.mxu0 %v3508
        %3678 = vmatprep.subr.mxu0 %v3511
        %3679 = vmatpush1.msra.mxu0 %v3510
        %3680 = vmatprep.subr.mxu0 %v3513
        %3681 = vmatpush1.msra.mxu0 %v3512
        %3682 = vmatprep.subr.mxu0 %v3515
        %3683 = vmatpush1.msra.mxu0 %v3514
        %3684 = vmatprep.subr.mxu0 %v3517
        %3685 = vmatpush1.msra.mxu0 %v3516
        %3686 = vmatprep.subr.mxu0 %v3519
        %3687 = vmatpush1.msra.mxu0 %v3518
        %3688 = vmatprep.subr.mxu0 %v3521
        %3689 = vmatpush1.msra.mxu0 %v3520
        %3690 = vmatprep.subr.mxu0 %v3523
        %3691 = vmatpush1.msra.mxu0 %v3522
        %3692 = vmatprep.subr.mxu0 %v3525
        %3693 = vmatpush1.msra.mxu0 %v3524
        %3694 = vmatprep.subr.mxu0 %v3527
        %3695 = vmatpush1.msra.mxu0 %v3526
        %3696 = vmatprep.subr.mxu0 %v3529
        %3697 = vmatpush1.msra.mxu0 %v3528
        %3698 = vmatprep.subr.mxu0 %v3531
        %3699 = vmatpush1.msra.mxu0 %v3530
        %3700 = vmatprep.subr.mxu0 %v3533
        %3701 = vmatpush1.msra.mxu0 %v3532
        %3702 = vmatprep.subr.mxu0 %v3535
        %3703 = vmatpush1.msra.mxu0 %v3534
        %3704 = vmatprep.subr.mxu0 %v3537
        %3705 = vmatpush1.msra.mxu0 %v3536
        %3706 = vmatprep.subr.mxu0 %v3539
        %3707 = vmatpush1.msra.mxu0 %v3538
        %3708 = vmatprep.subr.mxu0 %v3541
        %3709 = vmatpush1.msra.mxu0 %v3540
        %3710 = vmatprep.subr.mxu0 %v3543
        %3711 = vmatpush1.msra.mxu0 %v3542
        %3712 = vmatprep.subr.mxu0 %v3545
        %3713 = vmatpush1.msra.mxu0 %v3544
        %3714 = vmatprep.subr.mxu0 %v3547
        %3715 = vmatpush1.msra.mxu0 %v3546
        %3716 = vmatprep.subr.mxu0 %v3549
        %3717 = vmatpush1.msra.mxu0 %v3548
        %3718 = vmatprep.subr.mxu0 %v3551
        %3719 = vmatpush1.msra.mxu0 %v3550
        %3720 = vmatprep.subr.mxu0 %v3553
        %3721 = vmatpush1.msra.mxu0 %v3552
        %3722 = vmatprep.subr.mxu0 %v3555
        %3723 = vmatpush1.msra.mxu0 %v3554
        %3724 = vmatprep.subr.mxu0 %v3557
        %3725 = vmatpush1.msra.mxu0 %v3556
        %3726 = vmatprep.subr.mxu0 %v3559
        %3727 = vmatpush1.msra.mxu0 %v3558
        %3728 = vmatprep.subr.mxu0 %v3561
        %3729 = vmatpush1.msra.mxu0 %v3560
        %3730 = vmatprep.subr.mxu0 %v3563
        %3731 = vmatpush1.msra.mxu0 %v3562
        %3732 = vmatprep.subr.mxu0 %v3565
        %3733 = vmatpush1.msra.mxu0 %v3564
        %3734 = vmatprep.subr.mxu0 %v3567
        %3735 = vmatpush1.msra.mxu0 %v3566
        %3736 = vmatprep.subr.mxu0 %v3569
        %3737 = vmatpush1.msra.mxu0 %v3568
        %3738 = vmatprep.subr.mxu0 %v3571
        %3739 = vmatpush1.msra.mxu0 %v3570
        %3740 = vmatprep.mubr.f32.mxu0 %v2686
        %3741 = vmatmul.mubr.f32.gmra.mrb[0].mxu0 %v2685
        %v3742 = vpop.f32.mrb[0].mxu0
        %v3743 = vadd.f32 0.0, %v3742
        %v3744 = vpop.f32.mrb[0].mxu0
        %v3745 = vadd.f32 0.0, %v3744
        %3746 = vmatprep.mubr.f32.mxu0 %v2692
        %3747 = vmatmul.mubr.f32.gmra.mrb[0].mxu0 %v2691
        %v3748 = vpop.f32.mrb[0].mxu0
        %v3749 = vadd.f32 0.0, %v3748
        %v3750 = vpop.f32.mrb[0].mxu0
        %v3751 = vadd.f32 0.0, %v3750
        %3752 = vdwg.mxu0
        %3753 = vmatprep.subr.mxu0 %v3573
        %3754 = vmatpush1.msra.mxu0 %v3572
        %3755 = vmatprep.subr.mxu0 %v3575
        %3756 = vmatpush1.msra.mxu0 %v3574
        %3757 = vmatprep.subr.mxu0 %v3577
        %3758 = vmatpush1.msra.mxu0 %v3576
        %3759 = vmatprep.subr.mxu0 %v3579
        %3760 = vmatpush1.msra.mxu0 %v3578
        %3761 = vmatprep.subr.mxu0 %v3581
        %3762 = vmatpush1.msra.mxu0 %v3580
        %3763 = vmatprep.subr.mxu0 %v3583
        %3764 = vmatpush1.msra.mxu0 %v3582
        %3765 = vmatprep.subr.mxu0 %v3585
        %3766 = vmatpush1.msra.mxu0 %v3584
        %3767 = vmatprep.subr.mxu0 %v3587
        %3768 = vmatpush1.msra.mxu0 %v3586
        %3769 = vmatprep.subr.mxu0 %v3589
        %3770 = vmatpush1.msra.mxu0 %v3588
        %3771 = vmatprep.subr.mxu0 %v3591
        %3772 = vmatpush1.msra.mxu0 %v3590
        %3773 = vmatprep.subr.mxu0 %v3593
        %3774 = vmatpush1.msra.mxu0 %v3592
        %3775 = vmatprep.subr.mxu0 %v3595
        %3776 = vmatpush1.msra.mxu0 %v3594
        %3777 = vmatprep.subr.mxu0 %v3597
        %3778 = vmatpush1.msra.mxu0 %v3596
        %3779 = vmatprep.subr.mxu0 %v3599
        %3780 = vmatpush1.msra.mxu0 %v3598
        %3781 = vmatprep.subr.mxu0 %v3601
        %3782 = vmatpush1.msra.mxu0 %v3600
        %3783 = vmatprep.subr.mxu0 %v3603
        %3784 = vmatpush1.msra.mxu0 %v3602
        %3785 = vmatprep.subr.mxu0 %v3605
        %3786 = vmatpush1.msra.mxu0 %v3604
        %3787 = vmatprep.subr.mxu0 %v3607
        %3788 = vmatpush1.msra.mxu0 %v3606
        %3789 = vmatprep.subr.mxu0 %v3609
        %3790 = vmatpush1.msra.mxu0 %v3608
        %3791 = vmatprep.subr.mxu0 %v3611
        %3792 = vmatpush1.msra.mxu0 %v3610
        %3793 = vmatprep.subr.mxu0 %v3613
        %3794 = vmatpush1.msra.mxu0 %v3612
        %3795 = vmatprep.subr.mxu0 %v3615
        %3796 = vmatpush1.msra.mxu0 %v3614
        %3797 = vmatprep.subr.mxu0 %v3617
        %3798 = vmatpush1.msra.mxu0 %v3616
        %3799 = vmatprep.subr.mxu0 %v3619
        %3800 = vmatpush1.msra.mxu0 %v3618
        %3801 = vmatprep.subr.mxu0 %v3621
        %3802 = vmatpush1.msra.mxu0 %v3620
        %3803 = vmatprep.subr.mxu0 %v3623
        %3804 = vmatpush1.msra.mxu0 %v3622
        %3805 = vmatprep.subr.mxu0 %v3625
        %3806 = vmatpush1.msra.mxu0 %v3624
        %3807 = vmatprep.subr.mxu0 %v3627
        %3808 = vmatpush1.msra.mxu0 %v3626
        %3809 = vmatprep.subr.mxu0 %v3629
        %3810 = vmatpush1.msra.mxu0 %v3628
        %3811 = vmatprep.subr.mxu0 %v3631
        %3812 = vmatpush1.msra.mxu0 %v3630
        %3813 = vmatprep.subr.mxu0 %v3633
        %3814 = vmatpush1.msra.mxu0 %v3632
        %3815 = vmatprep.subr.mxu0 %v3635
        %3816 = vmatpush1.msra.mxu0 %v3634
        %3817 = vmatprep.mubr.f32.mxu0 %v2688
        %3818 = vmatmul.mubr.f32.gmra.mrb[0].mxu0 %v2687
        %v3819 = vpop.f32.mrb[0].mxu0
        %v3820 = vadd.f32 %v3743, %v3819
        %v3821 = vpop.f32.mrb[0].mxu0
        %v3822 = vadd.f32 %v3745, %v3821
        %3823 = vmatprep.mubr.f32.mxu0 %v2694
        %3824 = vmatmul.mubr.f32.gmra.mrb[0].mxu0 %v2693
        %v3825 = vpop.f32.mrb[0].mxu0
        %v3826 = vadd.f32 %v3749, %v3825
        %v3827 = vpop.f32.mrb[0].mxu0
        %v3828 = vadd.f32 %v3751, %v3827
        %3829 = vdwg.mxu0
        %3830 = vmatprep.subr.mxu0 %v3637
        %3831 = vmatpush1.msra.mxu0 %v3636
        %3832 = vmatprep.subr.mxu0 %v3639
        %3833 = vmatpush1.msra.mxu0 %v3638
        %3834 = vmatprep.subr.mxu0 %v3641
        %3835 = vmatpush1.msra.mxu0 %v3640
        %3836 = vmatprep.subr.mxu0 %v3643
        %3837 = vmatpush1.msra.mxu0 %v3642
        %3838 = vmatprep.subr.mxu0 %v3645
        %3839 = vmatpush1.msra.mxu0 %v3644
        %3840 = vmatprep.subr.mxu0 %v3647
        %3841 = vmatpush1.msra.mxu0 %v3646
        %3842 = vmatprep.subr.mxu0 %v3649
        %3843 = vmatpush1.msra.mxu0 %v3648
        %3844 = vmatprep.subr.mxu0 %v3651
        %3845 = vmatpush1.msra.mxu0 %v3650
        %3846 = vmatprep.subr.mxu0 %v3653
        %3847 = vmatpush1.msra.mxu0 %v3652
        %3848 = vmatprep.subr.mxu0 %v3655
        %3849 = vmatpush1.msra.mxu0 %v3654
        %3850 = vmatprep.subr.mxu0 %v3657
        %3851 = vmatpush1.msra.mxu0 %v3656
        %3852 = vmatprep.subr.mxu0 %v3659
        %3853 = vmatpush1.msra.mxu0 %v3658
        %3854 = vmatprep.subr.mxu0 %v3661
        %3855 = vmatpush1.msra.mxu0 %v3660
        %3856 = vmatprep.subr.mxu0 %v3663
        %3857 = vmatpush1.msra.mxu0 %v3662
        %3858 = vmatprep.subr.mxu0 %v3665
        %3859 = vmatpush1.msra.mxu0 %v3664
        %3860 = vmatprep.subr.mxu0 %v3667
        %3861 = vmatpush1.msra.mxu0 %v3666
        %3862 = vmatprep.subr.mxu0 %v3669
        %3863 = vmatpush1.msra.mxu0 %v3668
        %3864 = vmatprep.subr.mxu0 %v3671
        %3865 = vmatpush1.msra.mxu0 %v3670
        %3866 = vmatprep.subr.mxu0 %v3673
        %3867 = vmatpush1.msra.mxu0 %v3672
        %3868 = vmatprep.subr.mxu0 %v3675
        %3869 = vmatpush1.msra.mxu0 %v3674
        %3870 = vmatprep.subr.mxu0 0.0
        %3871 = vmatpush1.msra.mxu0 0.0
        %3872 = vmatprep.subr.mxu0 0.0
        %3873 = vmatpush1.msra.mxu0 0.0
        %3874 = vmatprep.subr.mxu0 0.0
        %3875 = vmatpush1.msra.mxu0 0.0
        %3876 = vmatprep.subr.mxu0 0.0
        %3877 = vmatpush1.msra.mxu0 0.0
        %3878 = vmatprep.subr.mxu0 0.0
        %3879 = vmatpush1.msra.mxu0 0.0
        %3880 = vmatprep.subr.mxu0 0.0
        %3881 = vmatpush1.msra.mxu0 0.0
        %3882 = vmatprep.subr.mxu0 0.0
        %3883 = vmatpush1.msra.mxu0 0.0
        %3884 = vmatprep.subr.mxu0 0.0
        %3885 = vmatpush1.msra.mxu0 0.0
        %3886 = vmatprep.subr.mxu0 0.0
        %3887 = vmatpush1.msra.mxu0 0.0
        %3888 = vmatprep.subr.mxu0 0.0
        %3889 = vmatpush1.msra.mxu0 0.0
        %3890 = vmatprep.subr.mxu0 0.0
        %3891 = vmatpush1.msra.mxu0 0.0
        %3892 = vmatprep.subr.mxu0 0.0
        %3893 = vmatpush1.msra.mxu0 0.0
        %3894 = vmatprep.mubr.f32.mxu0 %v2867
        %3895 = vmatmul.mubr.f32.gmra.mrb[0].mxu0 %v2689
        %v3896 = vpop.f32.mrb[0].mxu0
        %v3897 = vadd.f32 %v3820, %v3896
        %v3898 = vpop.f32.mrb[0].mxu0
        %v3899 = vadd.f32 %v3822, %v3898
        %3900 = vmatprep.mubr.f32.mxu0 %v2870
        %3901 = vmatmul.mubr.f32.gmra.mrb[0].mxu0 %v2695
        %v3902 = vpop.f32.mrb[0].mxu0
        %v3903 = vadd.f32 %v3826, %v3902
        %v3904 = vpop.f32.mrb[0].mxu0
        %v3905 = vadd.f32 %v3828, %v3904
        %3906 = vdwg.mxu0
        %v3907 = vmax.f32 %v3503, %v3897
        %v3908 = vmax.f32 %v3504, %v3899
        %v3909 = vmax.f32 %v3505, %v3903
        %v3910 = vmax.f32 %v3506, %v3905
        %s3911 = scalar_lea.vmem %s3, 4032
        %v3912 = vld [vmem:[%s3911] sm:$0xff]
        %v3913 = vld [vmem:[%s3911 + $0x8] sm:$0xff]
        %v3914 = vld [vmem:[%s3911 + $0x10] sm:$0xff]
        %v3915 = vld [vmem:[%s3911 + $0x18] sm:$0xff]
        %v3916 = vld [vmem:[%s3911 + $0x20] sm:$0xff]
        %v3917 = vld [vmem:[%s3911 + $0x28] sm:$0xff]
        %v3918 = vld [vmem:[%s3911 + $0x30] sm:$0xff]
        %v3919 = vld [vmem:[%s3911 + $0x38] sm:$0xff]
        %v3920 = vld [vmem:[%s3911 + $0x40] sm:$0xff]
        %v3921 = vld [vmem:[%s3911 + $0x48] sm:$0xff]
        %v3922 = vld [vmem:[%s3911 + $0x50] sm:$0xff]
        %v3923 = vld [vmem:[%s3911 + $0x58] sm:$0xff]
        %v3924 = vld [vmem:[%s3911 + $0x60] sm:$0xff]
        %v3925 = vld [vmem:[%s3911 + $0x68] sm:$0xff]
        %v3926 = vld [vmem:[%s3911 + $0x70] sm:$0xff]
        %v3927 = vld [vmem:[%s3911 + $0x78] sm:$0xff]
        %v3928 = vld [vmem:[%s3911 + $0x80] sm:$0xff]
        %v3929 = vld [vmem:[%s3911 + $0x88] sm:$0xff]
        %v3930 = vld [vmem:[%s3911 + $0x90] sm:$0xff]
        %v3931 = vld [vmem:[%s3911 + $0x98] sm:$0xff]
        %v3932 = vld [vmem:[%s3911 + $0xa0] sm:$0xff]
        %v3933 = vld [vmem:[%s3911 + $0xa8] sm:$0xff]
        %v3934 = vld [vmem:[%s3911 + $0xb0] sm:$0xff]
        %v3935 = vld [vmem:[%s3911 + $0xb8] sm:$0xff]
        %v3936 = vld [vmem:[%s3911 + $0xc0] sm:$0xff]
        %v3937 = vld [vmem:[%s3911 + $0xc8] sm:$0xff]
        %v3938 = vld [vmem:[%s3911 + $0xd0] sm:$0xff]
        %v3939 = vld [vmem:[%s3911 + $0xd8] sm:$0xff]
        %v3940 = vld [vmem:[%s3911 + $0xe0] sm:$0xff]
        %v3941 = vld [vmem:[%s3911 + $0xe8] sm:$0xff]
        %v3942 = vld [vmem:[%s3911 + $0xf0] sm:$0xff]
        %v3943 = vld [vmem:[%s3911 + $0xf8] sm:$0xff]
        %v3944 = vld [vmem:[%s3911 + $0x100] sm:$0xff]
        %v3945 = vld [vmem:[%s3911 + $0x108] sm:$0xff]
        %v3946 = vld [vmem:[%s3911 + $0x110] sm:$0xff]
        %v3947 = vld [vmem:[%s3911 + $0x118] sm:$0xff]
        %v3948 = vld [vmem:[%s3911 + $0x120] sm:$0xff]
        %v3949 = vld [vmem:[%s3911 + $0x128] sm:$0xff]
        %v3950 = vld [vmem:[%s3911 + $0x130] sm:$0xff]
        %v3951 = vld [vmem:[%s3911 + $0x138] sm:$0xff]
        %v3952 = vld [vmem:[%s3911 + $0x140] sm:$0xff]
        %v3953 = vld [vmem:[%s3911 + $0x148] sm:$0xff]
        %v3954 = vld [vmem:[%s3911 + $0x150] sm:$0xff]
        %v3955 = vld [vmem:[%s3911 + $0x158] sm:$0xff]
        %v3956 = vld [vmem:[%s3911 + $0x160] sm:$0xff]
        %v3957 = vld [vmem:[%s3911 + $0x168] sm:$0xff]
        %v3958 = vld [vmem:[%s3911 + $0x170] sm:$0xff]
        %v3959 = vld [vmem:[%s3911 + $0x178] sm:$0xff]
        %v3960 = vld [vmem:[%s3911 + $0x180] sm:$0xff]
        %v3961 = vld [vmem:[%s3911 + $0x188] sm:$0xff]
        %v3962 = vld [vmem:[%s3911 + $0x190] sm:$0xff]
        %v3963 = vld [vmem:[%s3911 + $0x198] sm:$0xff]
        %v3964 = vld [vmem:[%s3911 + $0x1a0] sm:$0xff]
        %v3965 = vld [vmem:[%s3911 + $0x1a8] sm:$0xff]
        %v3966 = vld [vmem:[%s3911 + $0x1b0] sm:$0xff]
        %v3967 = vld [vmem:[%s3911 + $0x1b8] sm:$0xff]
        %v3968 = vld [vmem:[%s3911 + $0x1c0] sm:$0xff]
        %v3969 = vld [vmem:[%s3911 + $0x1c8] sm:$0xff]
        %v3970 = vld [vmem:[%s3911 + $0x1d0] sm:$0xff]
        %v3971 = vld [vmem:[%s3911 + $0x1d8] sm:$0xff]
        %v3972 = vld [vmem:[%s3911 + $0x1e0] sm:$0xff]
        %v3973 = vld [vmem:[%s3911 + $0x1e8] sm:$0xff]
        %v3974 = vld [vmem:[%s3911 + $0x1f0] sm:$0xff]
        %v3975 = vld [vmem:[%s3911 + $0x1f8] sm:$0xff]
        %v3976 = vld [vmem:[%s3911 + $0x200] sm:$0xff]
        %v3977 = vld [vmem:[%s3911 + $0x208] sm:$0xff]
        %v3978 = vld [vmem:[%s3911 + $0x210] sm:$0xff]
        %v3979 = vld [vmem:[%s3911 + $0x218] sm:$0xff]
        %v3980 = vld [vmem:[%s3911 + $0x220] sm:$0xff]
        %v3981 = vld [vmem:[%s3911 + $0x228] sm:$0xff]
        %v3982 = vld [vmem:[%s3911 + $0x230] sm:$0xff]
        %v3983 = vld [vmem:[%s3911 + $0x238] sm:$0xff]
        %v3984 = vld [vmem:[%s3911 + $0x240] sm:$0xff]
        %v3985 = vld [vmem:[%s3911 + $0x248] sm:$0xff]
        %v3986 = vld [vmem:[%s3911 + $0x250] sm:$0xff]
        %v3987 = vld [vmem:[%s3911 + $0x258] sm:$0xff]
        %v3988 = vld [vmem:[%s3911 + $0x260] sm:$0xff]
        %v3989 = vld [vmem:[%s3911 + $0x268] sm:$0xff]
        %v3990 = vld [vmem:[%s3911 + $0x270] sm:$0xff]
        %v3991 = vld [vmem:[%s3911 + $0x278] sm:$0xff]
        %v3992 = vld [vmem:[%s3911 + $0x280] sm:$0xff]
        %v3993 = vld [vmem:[%s3911 + $0x288] sm:$0xff]
        %v3994 = vld [vmem:[%s3911 + $0x290] sm:$0xff]
        %v3995 = vld [vmem:[%s3911 + $0x298] sm:$0xff]
        %v3996 = vld [vmem:[%s3911 + $0x2a0] sm:$0xff]
        %v3997 = vld [vmem:[%s3911 + $0x2a8] sm:$0xff]
        %v3998 = vld [vmem:[%s3911 + $0x2b0] sm:$0xff]
        %v3999 = vld [vmem:[%s3911 + $0x2b8] sm:$0xff]
        %v4000 = vld [vmem:[%s3911 + $0x2c0] sm:$0xff]
        %v4001 = vld [vmem:[%s3911 + $0x2c8] sm:$0xff]
        %v4002 = vld [vmem:[%s3911 + $0x2d0] sm:$0xff]
        %v4003 = vld [vmem:[%s3911 + $0x2d8] sm:$0xff]
        %v4004 = vld [vmem:[%s3911 + $0x2e0] sm:$0xff]
        %v4005 = vld [vmem:[%s3911 + $0x2e8] sm:$0xff]
        %v4006 = vld [vmem:[%s3911 + $0x2f0] sm:$0xff]
        %v4007 = vld [vmem:[%s3911 + $0x2f8] sm:$0xff]
        %v4008 = vld [vmem:[%s3911 + $0x300] sm:$0xff]
        %v4009 = vld [vmem:[%s3911 + $0x308] sm:$0xff]
        %v4010 = vld [vmem:[%s3911 + $0x310] sm:$0xff]
        %v4011 = vld [vmem:[%s3911 + $0x318] sm:$0xff]
        %v4012 = vld [vmem:[%s3911 + $0x320] sm:$0xff]
        %v4013 = vld [vmem:[%s3911 + $0x328] sm:$0xff]
        %v4014 = vld [vmem:[%s3911 + $0x330] sm:$0xff]
        %v4015 = vld [vmem:[%s3911 + $0x338] sm:$0xff]
        %v4016 = vld [vmem:[%s3911 + $0x340] sm:$0xff]
        %v4017 = vld [vmem:[%s3911 + $0x348] sm:$0xff]
        %v4018 = vld [vmem:[%s3911 + $0x350] sm:$0xff]
        %v4019 = vld [vmem:[%s3911 + $0x358] sm:$0xff]
        %v4020 = vld [vmem:[%s3911 + $0x360] sm:$0xff]
        %v4021 = vld [vmem:[%s3911 + $0x368] sm:$0xff]
        %v4022 = vld [vmem:[%s3911 + $0x370] sm:$0xff]
        %v4023 = vld [vmem:[%s3911 + $0x378] sm:$0xff]
        %v4024 = vld [vmem:[%s3911 + $0x380] sm:$0xff]
        %v4025 = vld [vmem:[%s3911 + $0x388] sm:$0xff]
        %v4026 = vld [vmem:[%s3911 + $0x390] sm:$0xff]
        %v4027 = vld [vmem:[%s3911 + $0x398] sm:$0xff]
        %v4028 = vld [vmem:[%s3911 + $0x3a0] sm:$0xff]
        %v4029 = vld [vmem:[%s3911 + $0x3a8] sm:$0xff]
        %v4030 = vld [vmem:[%s3911 + $0x3b0] sm:$0xff]
        %v4031 = vld [vmem:[%s3911 + $0x3b8] sm:$0xff]
        %v4032 = vld [vmem:[%s3911 + $0x3c0] sm:$0xff]
        %v4033 = vld [vmem:[%s3911 + $0x3c8] sm:$0xff]
        %v4034 = vld [vmem:[%s3911 + $0x3d0] sm:$0xff]
        %v4035 = vld [vmem:[%s3911 + $0x3d8] sm:$0xff]
        %v4036 = vld [vmem:[%s3911 + $0x3e0] sm:$0xff]
        %v4037 = vld [vmem:[%s3911 + $0x3e8] sm:$0xff]
        %v4038 = vld [vmem:[%s3911 + $0x3f0] sm:$0xff]
        %v4039 = vld [vmem:[%s3911 + $0x3f8] sm:$0xff]
        %v4040 = vld [vmem:[%s3911 + $0x400] sm:$0xff]
        %v4041 = vld [vmem:[%s3911 + $0x408] sm:$0xff]
        %v4042 = vld [vmem:[%s3911 + $0x410] sm:$0xff]
        %v4043 = vld [vmem:[%s3911 + $0x418] sm:$0xff]
        %v4044 = vld [vmem:[%s3911 + $0x420] sm:$0xff]
        %v4045 = vld [vmem:[%s3911 + $0x428] sm:$0xff]
        %v4046 = vld [vmem:[%s3911 + $0x430] sm:$0xff]
        %v4047 = vld [vmem:[%s3911 + $0x438] sm:$0xff]
        %v4048 = vld [vmem:[%s3911 + $0x440] sm:$0xff]
        %v4049 = vld [vmem:[%s3911 + $0x448] sm:$0xff]
        %v4050 = vld [vmem:[%s3911 + $0x450] sm:$0xff]
        %v4051 = vld [vmem:[%s3911 + $0x458] sm:$0xff]
        %v4052 = vld [vmem:[%s3911 + $0x460] sm:$0xff]
        %v4053 = vld [vmem:[%s3911 + $0x468] sm:$0xff]
        %v4054 = vld [vmem:[%s3911 + $0x470] sm:$0xff]
        %v4055 = vld [vmem:[%s3911 + $0x478] sm:$0xff]
        %v4056 = vld [vmem:[%s3911 + $0x480] sm:$0xff]
        %v4057 = vld [vmem:[%s3911 + $0x488] sm:$0xff]
        %v4058 = vld [vmem:[%s3911 + $0x490] sm:$0xff]
        %v4059 = vld [vmem:[%s3911 + $0x498] sm:$0xff]
        %v4060 = vld [vmem:[%s3911 + $0x4a0] sm:$0xff]
        %v4061 = vld [vmem:[%s3911 + $0x4a8] sm:$0xff]
        %v4062 = vld [vmem:[%s3911 + $0x4b0] sm:$0xff]
        %v4063 = vld [vmem:[%s3911 + $0x4b8] sm:$0xff]
        %v4064 = vld [vmem:[%s3911 + $0x4c0] sm:$0xff]
        %v4065 = vld [vmem:[%s3911 + $0x4c8] sm:$0xff]
        %v4066 = vld [vmem:[%s3911 + $0x4d0] sm:$0xff]
        %v4067 = vld [vmem:[%s3911 + $0x4d8] sm:$0xff]
        %v4068 = vld [vmem:[%s3911 + $0x4e0] sm:$0xff]
        %v4069 = vld [vmem:[%s3911 + $0x4e8] sm:$0xff]
        %v4070 = vld [vmem:[%s3911 + $0x4f0] sm:$0xff]
        %v4071 = vld [vmem:[%s3911 + $0x4f8] sm:$0xff]
        %v4072 = vld [vmem:[%s3911 + $0x500] sm:$0xff]
        %v4073 = vld [vmem:[%s3911 + $0x508] sm:$0xff]
        %v4074 = vld [vmem:[%s3911 + $0x510] sm:$0xff]
        %v4075 = vld [vmem:[%s3911 + $0x518] sm:$0xff]
        %v4076 = vld [vmem:[%s3911 + $0x520] sm:$0xff]
        %v4077 = vld [vmem:[%s3911 + $0x528] sm:$0xff]
        %v4078 = vld [vmem:[%s3911 + $0x530] sm:$0xff]
        %v4079 = vld [vmem:[%s3911 + $0x538] sm:$0xff]
        %4080 = vmatprep.subr.mxu0 %v3913
        %4081 = vmatpush1.msra.mxu0 %v3912
        %4082 = vmatprep.subr.mxu0 %v3915
        %4083 = vmatpush1.msra.mxu0 %v3914
        %4084 = vmatprep.subr.mxu0 %v3917
        %4085 = vmatpush1.msra.mxu0 %v3916
        %4086 = vmatprep.subr.mxu0 %v3919
        %4087 = vmatpush1.msra.mxu0 %v3918
        %4088 = vmatprep.subr.mxu0 %v3921
        %4089 = vmatpush1.msra.mxu0 %v3920
        %4090 = vmatprep.subr.mxu0 %v3923
        %4091 = vmatpush1.msra.mxu0 %v3922
        %4092 = vmatprep.subr.mxu0 %v3925
        %4093 = vmatpush1.msra.mxu0 %v3924
        %4094 = vmatprep.subr.mxu0 %v3927
        %4095 = vmatpush1.msra.mxu0 %v3926
        %4096 = vmatprep.subr.mxu0 %v3929
        %4097 = vmatpush1.msra.mxu0 %v3928
        %4098 = vmatprep.subr.mxu0 %v3931
        %4099 = vmatpush1.msra.mxu0 %v3930
        %4100 = vmatprep.subr.mxu0 %v3933
        %4101 = vmatpush1.msra.mxu0 %v3932
        %4102 = vmatprep.subr.mxu0 %v3935
        %4103 = vmatpush1.msra.mxu0 %v3934
        %4104 = vmatprep.subr.mxu0 %v3937
        %4105 = vmatpush1.msra.mxu0 %v3936
        %4106 = vmatprep.subr.mxu0 %v3939
        %4107 = vmatpush1.msra.mxu0 %v3938
        %4108 = vmatprep.subr.mxu0 %v3941
        %4109 = vmatpush1.msra.mxu0 %v3940
        %4110 = vmatprep.subr.mxu0 %v3943
        %4111 = vmatpush1.msra.mxu0 %v3942
        %4112 = vmatprep.subr.mxu0 %v3945
        %4113 = vmatpush1.msra.mxu0 %v3944
        %4114 = vmatprep.subr.mxu0 %v3947
        %4115 = vmatpush1.msra.mxu0 %v3946
        %4116 = vmatprep.subr.mxu0 %v3949
        %4117 = vmatpush1.msra.mxu0 %v3948
        %4118 = vmatprep.subr.mxu0 %v3951
        %4119 = vmatpush1.msra.mxu0 %v3950
        %4120 = vmatprep.subr.mxu0 %v3953
        %4121 = vmatpush1.msra.mxu0 %v3952
        %4122 = vmatprep.subr.mxu0 %v3955
        %4123 = vmatpush1.msra.mxu0 %v3954
        %4124 = vmatprep.subr.mxu0 %v3957
        %4125 = vmatpush1.msra.mxu0 %v3956
        %4126 = vmatprep.subr.mxu0 %v3959
        %4127 = vmatpush1.msra.mxu0 %v3958
        %4128 = vmatprep.subr.mxu0 %v3961
        %4129 = vmatpush1.msra.mxu0 %v3960
        %4130 = vmatprep.subr.mxu0 %v3963
        %4131 = vmatpush1.msra.mxu0 %v3962
        %4132 = vmatprep.subr.mxu0 %v3965
        %4133 = vmatpush1.msra.mxu0 %v3964
        %4134 = vmatprep.subr.mxu0 %v3967
        %4135 = vmatpush1.msra.mxu0 %v3966
        %4136 = vmatprep.subr.mxu0 %v3969
        %4137 = vmatpush1.msra.mxu0 %v3968
        %4138 = vmatprep.subr.mxu0 %v3971
        %4139 = vmatpush1.msra.mxu0 %v3970
        %4140 = vmatprep.subr.mxu0 %v3973
        %4141 = vmatpush1.msra.mxu0 %v3972
        %4142 = vmatprep.subr.mxu0 %v3975
        %4143 = vmatpush1.msra.mxu0 %v3974
        %4144 = vmatprep.mubr.f32.mxu0 %v2686
        %4145 = vmatmul.mubr.f32.gmra.mrb[0].mxu0 %v2685
        %v4146 = vpop.f32.mrb[0].mxu0
        %v4147 = vadd.f32 0.0, %v4146
        %v4148 = vpop.f32.mrb[0].mxu0
        %v4149 = vadd.f32 0.0, %v4148
        %4150 = vmatprep.mubr.f32.mxu0 %v2692
        %4151 = vmatmul.mubr.f32.gmra.mrb[0].mxu0 %v2691
        %v4152 = vpop.f32.mrb[0].mxu0
        %v4153 = vadd.f32 0.0, %v4152
        %v4154 = vpop.f32.mrb[0].mxu0
        %v4155 = vadd.f32 0.0, %v4154
        %4156 = vdwg.mxu0
        %4157 = vmatprep.subr.mxu0 %v3977
        %4158 = vmatpush1.msra.mxu0 %v3976
        %4159 = vmatprep.subr.mxu0 %v3979
        %4160 = vmatpush1.msra.mxu0 %v3978
        %4161 = vmatprep.subr.mxu0 %v3981
        %4162 = vmatpush1.msra.mxu0 %v3980
        %4163 = vmatprep.subr.mxu0 %v3983
        %4164 = vmatpush1.msra.mxu0 %v3982
        %4165 = vmatprep.subr.mxu0 %v3985
        %4166 = vmatpush1.msra.mxu0 %v3984
        %4167 = vmatprep.subr.mxu0 %v3987
        %4168 = vmatpush1.msra.mxu0 %v3986
        %4169 = vmatprep.subr.mxu0 %v3989
        %4170 = vmatpush1.msra.mxu0 %v3988
        %4171 = vmatprep.subr.mxu0 %v3991
        %4172 = vmatpush1.msra.mxu0 %v3990
        %4173 = vmatprep.subr.mxu0 %v3993
        %4174 = vmatpush1.msra.mxu0 %v3992
        %4175 = vmatprep.subr.mxu0 %v3995
        %4176 = vmatpush1.msra.mxu0 %v3994
        %4177 = vmatprep.subr.mxu0 %v3997
        %4178 = vmatpush1.msra.mxu0 %v3996
        %4179 = vmatprep.subr.mxu0 %v3999
        %4180 = vmatpush1.msra.mxu0 %v3998
        %4181 = vmatprep.subr.mxu0 %v4001
        %4182 = vmatpush1.msra.mxu0 %v4000
        %4183 = vmatprep.subr.mxu0 %v4003
        %4184 = vmatpush1.msra.mxu0 %v4002
        %4185 = vmatprep.subr.mxu0 %v4005
        %4186 = vmatpush1.msra.mxu0 %v4004
        %4187 = vmatprep.subr.mxu0 %v4007
        %4188 = vmatpush1.msra.mxu0 %v4006
        %4189 = vmatprep.subr.mxu0 %v4009
        %4190 = vmatpush1.msra.mxu0 %v4008
        %4191 = vmatprep.subr.mxu0 %v4011
        %4192 = vmatpush1.msra.mxu0 %v4010
        %4193 = vmatprep.subr.mxu0 %v4013
        %4194 = vmatpush1.msra.mxu0 %v4012
        %4195 = vmatprep.subr.mxu0 %v4015
        %4196 = vmatpush1.msra.mxu0 %v4014
        %4197 = vmatprep.subr.mxu0 %v4017
        %4198 = vmatpush1.msra.mxu0 %v4016
        %4199 = vmatprep.subr.mxu0 %v4019
        %4200 = vmatpush1.msra.mxu0 %v4018
        %4201 = vmatprep.subr.mxu0 %v4021
        %4202 = vmatpush1.msra.mxu0 %v4020
        %4203 = vmatprep.subr.mxu0 %v4023
        %4204 = vmatpush1.msra.mxu0 %v4022
        %4205 = vmatprep.subr.mxu0 %v4025
        %4206 = vmatpush1.msra.mxu0 %v4024
        %4207 = vmatprep.subr.mxu0 %v4027
        %4208 = vmatpush1.msra.mxu0 %v4026
        %4209 = vmatprep.subr.mxu0 %v4029
        %4210 = vmatpush1.msra.mxu0 %v4028
        %4211 = vmatprep.subr.mxu0 %v4031
        %4212 = vmatpush1.msra.mxu0 %v4030
        %4213 = vmatprep.subr.mxu0 %v4033
        %4214 = vmatpush1.msra.mxu0 %v4032
        %4215 = vmatprep.subr.mxu0 %v4035
        %4216 = vmatpush1.msra.mxu0 %v4034
        %4217 = vmatprep.subr.mxu0 %v4037
        %4218 = vmatpush1.msra.mxu0 %v4036
        %4219 = vmatprep.subr.mxu0 %v4039
        %4220 = vmatpush1.msra.mxu0 %v4038
        %4221 = vmatprep.mubr.f32.mxu0 %v2688
        %4222 = vmatmul.mubr.f32.gmra.mrb[0].mxu0 %v2687
        %v4223 = vpop.f32.mrb[0].mxu0
        %v4224 = vadd.f32 %v4147, %v4223
        %v4225 = vpop.f32.mrb[0].mxu0
        %v4226 = vadd.f32 %v4149, %v4225
        %4227 = vmatprep.mubr.f32.mxu0 %v2694
        %4228 = vmatmul.mubr.f32.gmra.mrb[0].mxu0 %v2693
        %v4229 = vpop.f32.mrb[0].mxu0
        %v4230 = vadd.f32 %v4153, %v4229
        %v4231 = vpop.f32.mrb[0].mxu0
        %v4232 = vadd.f32 %v4155, %v4231
        %4233 = vdwg.mxu0
        %4234 = vmatprep.subr.mxu0 %v4041
        %4235 = vmatpush1.msra.mxu0 %v4040
        %4236 = vmatprep.subr.mxu0 %v4043
        %4237 = vmatpush1.msra.mxu0 %v4042
        %4238 = vmatprep.subr.mxu0 %v4045
        %4239 = vmatpush1.msra.mxu0 %v4044
        %4240 = vmatprep.subr.mxu0 %v4047
        %4241 = vmatpush1.msra.mxu0 %v4046
        %4242 = vmatprep.subr.mxu0 %v4049
        %4243 = vmatpush1.msra.mxu0 %v4048
        %4244 = vmatprep.subr.mxu0 %v4051
        %4245 = vmatpush1.msra.mxu0 %v4050
        %4246 = vmatprep.subr.mxu0 %v4053
        %4247 = vmatpush1.msra.mxu0 %v4052
        %4248 = vmatprep.subr.mxu0 %v4055
        %4249 = vmatpush1.msra.mxu0 %v4054
        %4250 = vmatprep.subr.mxu0 %v4057
        %4251 = vmatpush1.msra.mxu0 %v4056
        %4252 = vmatprep.subr.mxu0 %v4059
        %4253 = vmatpush1.msra.mxu0 %v4058
        %4254 = vmatprep.subr.mxu0 %v4061
        %4255 = vmatpush1.msra.mxu0 %v4060
        %4256 = vmatprep.subr.mxu0 %v4063
        %4257 = vmatpush1.msra.mxu0 %v4062
        %4258 = vmatprep.subr.mxu0 %v4065
        %4259 = vmatpush1.msra.mxu0 %v4064
        %4260 = vmatprep.subr.mxu0 %v4067
        %4261 = vmatpush1.msra.mxu0 %v4066
        %4262 = vmatprep.subr.mxu0 %v4069
        %4263 = vmatpush1.msra.mxu0 %v4068
        %4264 = vmatprep.subr.mxu0 %v4071
        %4265 = vmatpush1.msra.mxu0 %v4070
        %4266 = vmatprep.subr.mxu0 %v4073
        %4267 = vmatpush1.msra.mxu0 %v4072
        %4268 = vmatprep.subr.mxu0 %v4075
        %4269 = vmatpush1.msra.mxu0 %v4074
        %4270 = vmatprep.subr.mxu0 %v4077
        %4271 = vmatpush1.msra.mxu0 %v4076
        %4272 = vmatprep.subr.mxu0 %v4079
        %4273 = vmatpush1.msra.mxu0 %v4078
        %4274 = vmatprep.subr.mxu0 0.0
        %4275 = vmatpush1.msra.mxu0 0.0
        %4276 = vmatprep.subr.mxu0 0.0
        %4277 = vmatpush1.msra.mxu0 0.0
        %4278 = vmatprep.subr.mxu0 0.0
        %4279 = vmatpush1.msra.mxu0 0.0
        %4280 = vmatprep.subr.mxu0 0.0
        %4281 = vmatpush1.msra.mxu0 0.0
        %4282 = vmatprep.subr.mxu0 0.0
        %4283 = vmatpush1.msra.mxu0 0.0
        %4284 = vmatprep.subr.mxu0 0.0
        %4285 = vmatpush1.msra.mxu0 0.0
        %4286 = vmatprep.subr.mxu0 0.0
        %4287 = vmatpush1.msra.mxu0 0.0
        %4288 = vmatprep.subr.mxu0 0.0
        %4289 = vmatpush1.msra.mxu0 0.0
        %4290 = vmatprep.subr.mxu0 0.0
        %4291 = vmatpush1.msra.mxu0 0.0
        %4292 = vmatprep.subr.mxu0 0.0
        %4293 = vmatpush1.msra.mxu0 0.0
        %4294 = vmatprep.subr.mxu0 0.0
        %4295 = vmatpush1.msra.mxu0 0.0
        %4296 = vmatprep.subr.mxu0 0.0
        %4297 = vmatpush1.msra.mxu0 0.0
        %4298 = vmatprep.mubr.f32.mxu0 %v2867
        %4299 = vmatmul.mubr.f32.gmra.mrb[0].mxu0 %v2689
        %v4300 = vpop.f32.mrb[0].mxu0
        %v4301 = vadd.f32 %v4224, %v4300
        %v4302 = vpop.f32.mrb[0].mxu0
        %v4303 = vadd.f32 %v4226, %v4302
        %4304 = vmatprep.mubr.f32.mxu0 %v2870
        %4305 = vmatmul.mubr.f32.gmra.mrb[0].mxu0 %v2695
        %v4306 = vpop.f32.mrb[0].mxu0
        %v4307 = vadd.f32 %v4230, %v4306
        %v4308 = vpop.f32.mrb[0].mxu0
        %v4309 = vadd.f32 %v4232, %v4308
        %4310 = vdwg.mxu0
        %v4311 = vmax.f32 %v3907, %v4301
        %v4312 = vmax.f32 %v3908, %v4303
        %v4313 = vmax.f32 %v3909, %v4307
        %v4314 = vmax.f32 %v3910, %v4309
        %v4315 = vld [vmem:[%s4] sm:$0xff]
        %v4316 = vld [vmem:[%s4 + $0x8] sm:$0xff]
        %v4317 = vld [vmem:[%s4 + $0x10] sm:$0xf]
        %4321 = vrot.lane.b32.xlu0 %v4315, 118
        %v4322 = vpop.permute.xlu0 %4321
        %4323 = vrot.lane.b32.xlu0 %v4316, 118
        %v4324 = vpop.permute.xlu0 %4323
        %4325 = vrot.lane.b32.xlu0 %v4317, 118
        %v4326 = vpop.permute.xlu0 %4325
        %4329 = vrot.lane.b32.xlu0 %v4311, 127
        %v4330 = vpop.permute.xlu0 %4329
        %4331 = vrot.lane.b32.xlu0 %v4313, 127
        %v4332 = vpop.permute.xlu0 %4331
        %vm4334 = vcmask 80896
        %v4335 = vsel %vm4334, %v4322, 0
        %v4337 = vsel %vm4334, %v4324, 0
        %v4339 = vsel %vm4334, %v4326, 0
        %vm4341 = vcmask 1041408
        %v4342 = vsel %vm4341, %v4332, 0
        %4344 = vmatprep.subr.mxu0 0.0
        %4345 = vmatpush1.msra.mxu0 %v4330
        %4346 = vmatprep.subr.mxu0 0.0
        %4347 = vmatpush1.msra.mxu0 %v4342
        %4348 = vmatprep.subr.mxu0 0.0
        %4349 = vmatpush1.msra.mxu0 0.0
        %4350 = vmatprep.subr.mxu0 0.0
        %4351 = vmatpush1.msra.mxu0 0.0
        %4352 = vmatprep.subr.mxu0 0.0
        %4353 = vmatpush1.msra.mxu0 0.0
        %4354 = vmatprep.subr.mxu0 0.0
        %4355 = vmatpush1.msra.mxu0 0.0
        %4356 = vmatprep.subr.mxu0 0.0
        %4357 = vmatpush1.msra.mxu0 0.0
        %4358 = vmatprep.subr.mxu0 0.0
        %4359 = vmatpush1.msra.mxu0 0.0
        %4360 = vmatprep.subr.mxu0 0.0
        %4361 = vmatpush1.msra.mxu0 0.0
        %4362 = vmatprep.subr.mxu0 0.0
        %4363 = vmatpush1.msra.mxu0 0.0
        %4364 = vmatprep.subr.mxu0 0.0
        %4365 = vmatpush1.msra.mxu0 0.0
        %4366 = vmatprep.subr.mxu0 0.0
        %4367 = vmatpush1.msra.mxu0 0.0
        %4368 = vmatprep.subr.mxu0 0.0
        %4369 = vmatpush1.msra.mxu0 0.0
        %4370 = vmatprep.subr.mxu0 0.0
        %4371 = vmatpush1.msra.mxu0 0.0
        %4372 = vmatprep.subr.mxu0 0.0
        %4373 = vmatpush1.msra.mxu0 0.0
        %4374 = vmatprep.subr.mxu0 0.0
        %4375 = vmatpush1.msra.mxu0 0.0
        %4376 = vmatprep.subr.mxu0 0.0
        %4377 = vmatpush1.msra.mxu0 0.0
        %4378 = vmatprep.subr.mxu0 0.0
        %4379 = vmatpush1.msra.mxu0 0.0
        %4380 = vmatprep.subr.mxu0 0.0
        %4381 = vmatpush1.msra.mxu0 0.0
        %4382 = vmatprep.subr.mxu0 0.0
        %4383 = vmatpush1.msra.mxu0 0.0
        %4384 = vmatprep.subr.mxu0 0.0
        %4385 = vmatpush1.msra.mxu0 0.0
        %4386 = vmatprep.subr.mxu0 0.0
        %4387 = vmatpush1.msra.mxu0 0.0
        %4388 = vmatprep.subr.mxu0 0.0
        %4389 = vmatpush1.msra.mxu0 0.0
        %4390 = vmatprep.subr.mxu0 0.0
        %4391 = vmatpush1.msra.mxu0 0.0
        %4392 = vmatprep.subr.mxu0 0.0
        %4393 = vmatpush1.msra.mxu0 0.0
        %4394 = vmatprep.subr.mxu0 0.0
        %4395 = vmatpush1.msra.mxu0 0.0
        %4396 = vmatprep.subr.mxu0 0.0
        %4397 = vmatpush1.msra.mxu0 0.0
        %4398 = vmatprep.subr.mxu0 0.0
        %4399 = vmatpush1.msra.mxu0 0.0
        %4400 = vmatprep.subr.mxu0 0.0
        %4401 = vmatpush1.msra.mxu0 0.0
        %4402 = vmatprep.subr.mxu0 0.0
        %4403 = vmatpush1.msra.mxu0 0.0
        %4404 = vmatprep.subr.mxu0 0.0
        %4405 = vmatpush1.msra.mxu0 0.0
        %4406 = vmatprep.subr.mxu0 0.0
        %4407 = vmatpush1.msra.mxu0 0.0
        %4408 = vmatprep.mubr.f32.mxu0 0.0
        %4409 = vmatmul.mubr.f32.gmra.mrb[0].mxu0 %v4335
        %v4410 = vpop.f32.mrb[0].mxu0
        %v4411 = vadd.f32 0.0, %v4410
        %v4412 = vpop.f32.mrb[0].mxu0
        %4413 = vmatprep.mubr.f32.mxu0 0.0
        %4414 = vmatmul.mubr.f32.gmra.mrb[0].mxu0 %v4337
        %v4415 = vpop.f32.mrb[0].mxu0
        %v4416 = vadd.f32 0.0, %v4415
        %v4417 = vpop.f32.mrb[0].mxu0
        %4418 = vmatprep.mubr.f32.mxu0 0.0
        %4419 = vmatmul.mubr.f32.gmra.mrb[0].mxu0 %v4339
        %v4420 = vpop.f32.mrb[0].mxu0
        %v4421 = vadd.f32 0.0, %v4420
        %v4422 = vpop.f32.mrb[0].mxu0
        %4423 = vdwg.mxu0
        %v4424 = vsel %vm4334, %v4315, 0
        %v4426 = vsel %vm4334, %v4316, 0
        %v4428 = vsel %vm4334, %v4317, 0
        %v4430 = vsel %vm4341, %v4313, 0
        %4432 = vmatprep.subr.mxu0 0.0
        %4433 = vmatpush1.msra.mxu0 %v4311
        %4434 = vmatprep.subr.mxu0 0.0
        %4435 = vmatpush1.msra.mxu0 %v4430
        %4436 = vmatprep.subr.mxu0 0.0
        %4437 = vmatpush1.msra.mxu0 0.0
        %4438 = vmatprep.subr.mxu0 0.0
        %4439 = vmatpush1.msra.mxu0 0.0
        %4440 = vmatprep.subr.mxu0 0.0
        %4441 = vmatpush1.msra.mxu0 0.0
        %4442 = vmatprep.subr.mxu0 0.0
        %4443 = vmatpush1.msra.mxu0 0.0
        %4444 = vmatprep.subr.mxu0 0.0
        %4445 = vmatpush1.msra.mxu0 0.0
        %4446 = vmatprep.subr.mxu0 0.0
        %4447 = vmatpush1.msra.mxu0 0.0
        %4448 = vmatprep.subr.mxu0 0.0
        %4449 = vmatpush1.msra.mxu0 0.0
        %4450 = vmatprep.subr.mxu0 0.0
        %4451 = vmatpush1.msra.mxu0 0.0
        %4452 = vmatprep.subr.mxu0 0.0
        %4453 = vmatpush1.msra.mxu0 0.0
        %4454 = vmatprep.subr.mxu0 0.0
        %4455 = vmatpush1.msra.mxu0 0.0
        %4456 = vmatprep.subr.mxu0 0.0
        %4457 = vmatpush1.msra.mxu0 0.0
        %4458 = vmatprep.subr.mxu0 0.0
        %4459 = vmatpush1.msra.mxu0 0.0
        %4460 = vmatprep.subr.mxu0 0.0
        %4461 = vmatpush1.msra.mxu0 0.0
        %4462 = vmatprep.subr.mxu0 0.0
        %4463 = vmatpush1.msra.mxu0 0.0
        %4464 = vmatprep.subr.mxu0 0.0
        %4465 = vmatpush1.msra.mxu0 0.0
        %4466 = vmatprep.subr.mxu0 0.0
        %4467 = vmatpush1.msra.mxu0 0.0
        %4468 = vmatprep.subr.mxu0 0.0
        %4469 = vmatpush1.msra.mxu0 0.0
        %4470 = vmatprep.subr.mxu0 0.0
        %4471 = vmatpush1.msra.mxu0 0.0
        %4472 = vmatprep.subr.mxu0 0.0
        %4473 = vmatpush1.msra.mxu0 0.0
        %4474 = vmatprep.subr.mxu0 0.0
        %4475 = vmatpush1.msra.mxu0 0.0
        %4476 = vmatprep.subr.mxu0 0.0
        %4477 = vmatpush1.msra.mxu0 0.0
        %4478 = vmatprep.subr.mxu0 0.0
        %4479 = vmatpush1.msra.mxu0 0.0
        %4480 = vmatprep.subr.mxu0 0.0
        %4481 = vmatpush1.msra.mxu0 0.0
        %4482 = vmatprep.subr.mxu0 0.0
        %4483 = vmatpush1.msra.mxu0 0.0
        %4484 = vmatprep.subr.mxu0 0.0
        %4485 = vmatpush1.msra.mxu0 0.0
        %4486 = vmatprep.subr.mxu0 0.0
        %4487 = vmatpush1.msra.mxu0 0.0
        %4488 = vmatprep.subr.mxu0 0.0
        %4489 = vmatpush1.msra.mxu0 0.0
        %4490 = vmatprep.subr.mxu0 0.0
        %4491 = vmatpush1.msra.mxu0 0.0
        %4492 = vmatprep.subr.mxu0 0.0
        %4493 = vmatpush1.msra.mxu0 0.0
        %4494 = vmatprep.subr.mxu0 0.0
        %4495 = vmatpush1.msra.mxu0 0.0
        %4496 = vmatprep.mubr.f32.mxu0 0.0
        %4497 = vmatmul.mubr.f32.gmra.mrb[0].mxu0 %v4424
        %v4498 = vpop.f32.mrb[0].mxu0
        %v4499 = vadd.f32 %v4411, %v4498
        %v4500 = vpop.f32.mrb[0].mxu0
        %4501 = vmatprep.mubr.f32.mxu0 0.0
        %4502 = vmatmul.mubr.f32.gmra.mrb[0].mxu0 %v4426
        %v4503 = vpop.f32.mrb[0].mxu0
        %v4504 = vadd.f32 %v4416, %v4503
        %v4505 = vpop.f32.mrb[0].mxu0
        %4506 = vmatprep.mubr.f32.mxu0 0.0
        %4507 = vmatmul.mubr.f32.gmra.mrb[0].mxu0 %v4428
        %v4508 = vpop.f32.mrb[0].mxu0
        %v4509 = vadd.f32 %v4421, %v4508
        %v4510 = vpop.f32.mrb[0].mxu0
        %4511 = vdwg.mxu0
        %4512 = vrot.lane.b32.xlu0 %v4315, 108
        %v4513 = vpop.permute.xlu0 %4512
        %4514 = vrot.lane.b32.xlu0 %v4316, 108
        %v4515 = vpop.permute.xlu0 %4514
        %4516 = vrot.lane.b32.xlu0 %v4317, 108
        %v4517 = vpop.permute.xlu0 %4516
        %4518 = vrot.lane.b32.xlu0 %v4311, 126
        %v4519 = vpop.permute.xlu0 %4518
        %4520 = vrot.lane.b32.xlu0 %v4313, 126
        %v4521 = vpop.permute.xlu0 %4520
        %v4523 = vsel %vm4334, %v4513, 0
        %v4525 = vsel %vm4334, %v4515, 0
        %v4527 = vsel %vm4334, %v4517, 0
        %v4529 = vsel %vm4341, %v4521, 0
        %4531 = vmatprep.subr.mxu0 0.0
        %4532 = vmatpush1.msra.mxu0 %v4519
        %4533 = vmatprep.subr.mxu0 0.0
        %4534 = vmatpush1.msra.mxu0 %v4529
        %4535 = vmatprep.subr.mxu0 0.0
        %4536 = vmatpush1.msra.mxu0 0.0
        %4537 = vmatprep.subr.mxu0 0.0
        %4538 = vmatpush1.msra.mxu0 0.0
        %4539 = vmatprep.subr.mxu0 0.0
        %4540 = vmatpush1.msra.mxu0 0.0
        %4541 = vmatprep.subr.mxu0 0.0
        %4542 = vmatpush1.msra.mxu0 0.0
        %4543 = vmatprep.subr.mxu0 0.0
        %4544 = vmatpush1.msra.mxu0 0.0
        %4545 = vmatprep.subr.mxu0 0.0
        %4546 = vmatpush1.msra.mxu0 0.0
        %4547 = vmatprep.subr.mxu0 0.0
        %4548 = vmatpush1.msra.mxu0 0.0
        %4549 = vmatprep.subr.mxu0 0.0
        %4550 = vmatpush1.msra.mxu0 0.0
        %4551 = vmatprep.subr.mxu0 0.0
        %4552 = vmatpush1.msra.mxu0 0.0
        %4553 = vmatprep.subr.mxu0 0.0
        %4554 = vmatpush1.msra.mxu0 0.0
        %4555 = vmatprep.subr.mxu0 0.0
        %4556 = vmatpush1.msra.mxu0 0.0
        %4557 = vmatprep.subr.mxu0 0.0
        %4558 = vmatpush1.msra.mxu0 0.0
        %4559 = vmatprep.subr.mxu0 0.0
        %4560 = vmatpush1.msra.mxu0 0.0
        %4561 = vmatprep.subr.mxu0 0.0
        %4562 = vmatpush1.msra.mxu0 0.0
        %4563 = vmatprep.subr.mxu0 0.0
        %4564 = vmatpush1.msra.mxu0 0.0
        %4565 = vmatprep.subr.mxu0 0.0
        %4566 = vmatpush1.msra.mxu0 0.0
        %4567 = vmatprep.subr.mxu0 0.0
        %4568 = vmatpush1.msra.mxu0 0.0
        %4569 = vmatprep.subr.mxu0 0.0
        %4570 = vmatpush1.msra.mxu0 0.0
        %4571 = vmatprep.subr.mxu0 0.0
        %4572 = vmatpush1.msra.mxu0 0.0
        %4573 = vmatprep.subr.mxu0 0.0
        %4574 = vmatpush1.msra.mxu0 0.0
        %4575 = vmatprep.subr.mxu0 0.0
        %4576 = vmatpush1.msra.mxu0 0.0
        %4577 = vmatprep.subr.mxu0 0.0
        %4578 = vmatpush1.msra.mxu0 0.0
        %4579 = vmatprep.subr.mxu0 0.0
        %4580 = vmatpush1.msra.mxu0 0.0
        %4581 = vmatprep.subr.mxu0 0.0
        %4582 = vmatpush1.msra.mxu0 0.0
        %4583 = vmatprep.subr.mxu0 0.0
        %4584 = vmatpush1.msra.mxu0 0.0
        %4585 = vmatprep.subr.mxu0 0.0
        %4586 = vmatpush1.msra.mxu0 0.0
        %4587 = vmatprep.subr.mxu0 0.0
        %4588 = vmatpush1.msra.mxu0 0.0
        %4589 = vmatprep.subr.mxu0 0.0
        %4590 = vmatpush1.msra.mxu0 0.0
        %4591 = vmatprep.subr.mxu0 0.0
        %4592 = vmatpush1.msra.mxu0 0.0
        %4593 = vmatprep.subr.mxu0 0.0
        %4594 = vmatpush1.msra.mxu0 0.0
        %4595 = vmatprep.mubr.f32.mxu0 0.0
        %4596 = vmatmul.mubr.f32.gmra.mrb[0].mxu0 %v4523
        %v4597 = vpop.f32.mrb[0].mxu0
        %v4598 = vadd.f32 0.0, %v4597
        %v4599 = vpop.f32.mrb[0].mxu0
        %4600 = vmatprep.mubr.f32.mxu0 0.0
        %4601 = vmatmul.mubr.f32.gmra.mrb[0].mxu0 %v4525
        %v4602 = vpop.f32.mrb[0].mxu0
        %v4603 = vadd.f32 0.0, %v4602
        %v4604 = vpop.f32.mrb[0].mxu0
        %4605 = vmatprep.mubr.f32.mxu0 0.0
        %4606 = vmatmul.mubr.f32.gmra.mrb[0].mxu0 %v4527
        %v4607 = vpop.f32.mrb[0].mxu0
        %v4608 = vadd.f32 0.0, %v4607
        %v4609 = vpop.f32.mrb[0].mxu0
        %4610 = vdwg.mxu0
        %v4611 = vadd.f32 %v4499, %v4598
        %v4612 = vadd.f32 %v4504, %v4603
        %v4613 = vadd.f32 %v4509, %v4608
        %4614 = vrot.lane.b32.xlu0 %v4315, 98
        %v4615 = vpop.permute.xlu0 %4614
        %4616 = vrot.lane.b32.xlu0 %v4316, 98
        %v4617 = vpop.permute.xlu0 %4616
        %4618 = vrot.lane.b32.xlu0 %v4317, 98
        %v4619 = vpop.permute.xlu0 %4618
        %4622 = vrot.lane.b32.xlu0 %v4311, 116
        %v4623 = vpop.permute.xlu0 %4622
        %4624 = vrot.lane.b32.xlu0 %v4312, 116
        %v4625 = vpop.permute.xlu0 %4624
        %4626 = vrot.lane.b32.xlu0 %v4313, 116
        %v4627 = vpop.permute.xlu0 %4626
        %4628 = vrot.lane.b32.xlu0 %v4314, 116
        %v4629 = vpop.permute.xlu0 %4628
        %vm4630 = vcmask 949248
        %v4631 = vsel %vm4630, %v4623, %v4625
        %v4632 = vsel %vm4630, %v4627, %v4629
        %v4634 = vsel %vm4334, %v4615, 0
        %v4636 = vsel %vm4334, %v4617, 0
        %v4638 = vsel %vm4334, %v4619, 0
        %v4640 = vsel %vm4341, %v4632, 0
        %4642 = vmatprep.subr.mxu0 0.0
        %4643 = vmatpush1.msra.mxu0 %v4631
        %4644 = vmatprep.subr.mxu0 0.0
        %4645 = vmatpush1.msra.mxu0 %v4640
        %4646 = vmatprep.subr.mxu0 0.0
        %4647 = vmatpush1.msra.mxu0 0.0
        %4648 = vmatprep.subr.mxu0 0.0
        %4649 = vmatpush1.msra.mxu0 0.0
        %4650 = vmatprep.subr.mxu0 0.0
        %4651 = vmatpush1.msra.mxu0 0.0
        %4652 = vmatprep.subr.mxu0 0.0
        %4653 = vmatpush1.msra.mxu0 0.0
        %4654 = vmatprep.subr.mxu0 0.0
        %4655 = vmatpush1.msra.mxu0 0.0
        %4656 = vmatprep.subr.mxu0 0.0
        %4657 = vmatpush1.msra.mxu0 0.0
        %4658 = vmatprep.subr.mxu0 0.0
        %4659 = vmatpush1.msra.mxu0 0.0
        %4660 = vmatprep.subr.mxu0 0.0
        %4661 = vmatpush1.msra.mxu0 0.0
        %4662 = vmatprep.subr.mxu0 0.0
        %4663 = vmatpush1.msra.mxu0 0.0
        %4664 = vmatprep.subr.mxu0 0.0
        %4665 = vmatpush1.msra.mxu0 0.0
        %4666 = vmatprep.subr.mxu0 0.0
        %4667 = vmatpush1.msra.mxu0 0.0
        %4668 = vmatprep.subr.mxu0 0.0
        %4669 = vmatpush1.msra.mxu0 0.0
        %4670 = vmatprep.subr.mxu0 0.0
        %4671 = vmatpush1.msra.mxu0 0.0
        %4672 = vmatprep.subr.mxu0 0.0
        %4673 = vmatpush1.msra.mxu0 0.0
        %4674 = vmatprep.subr.mxu0 0.0
        %4675 = vmatpush1.msra.mxu0 0.0
        %4676 = vmatprep.subr.mxu0 0.0
        %4677 = vmatpush1.msra.mxu0 0.0
        %4678 = vmatprep.subr.mxu0 0.0
        %4679 = vmatpush1.msra.mxu0 0.0
        %4680 = vmatprep.subr.mxu0 0.0
        %4681 = vmatpush1.msra.mxu0 0.0
        %4682 = vmatprep.subr.mxu0 0.0
        %4683 = vmatpush1.msra.mxu0 0.0
        %4684 = vmatprep.subr.mxu0 0.0
        %4685 = vmatpush1.msra.mxu0 0.0
        %4686 = vmatprep.subr.mxu0 0.0
        %4687 = vmatpush1.msra.mxu0 0.0
        %4688 = vmatprep.subr.mxu0 0.0
        %4689 = vmatpush1.msra.mxu0 0.0
        %4690 = vmatprep.subr.mxu0 0.0
        %4691 = vmatpush1.msra.mxu0 0.0
        %4692 = vmatprep.subr.mxu0 0.0
        %4693 = vmatpush1.msra.mxu0 0.0
        %4694 = vmatprep.subr.mxu0 0.0
        %4695 = vmatpush1.msra.mxu0 0.0
        %4696 = vmatprep.subr.mxu0 0.0
        %4697 = vmatpush1.msra.mxu0 0.0
        %4698 = vmatprep.subr.mxu0 0.0
        %4699 = vmatpush1.msra.mxu0 0.0
        %4700 = vmatprep.subr.mxu0 0.0
        %4701 = vmatpush1.msra.mxu0 0.0
        %4702 = vmatprep.subr.mxu0 0.0
        %4703 = vmatpush1.msra.mxu0 0.0
        %4704 = vmatprep.subr.mxu0 0.0
        %4705 = vmatpush1.msra.mxu0 0.0
        %4706 = vmatprep.mubr.f32.mxu0 0.0
        %4707 = vmatmul.mubr.f32.gmra.mrb[0].mxu0 %v4634
        %v4708 = vpop.f32.mrb[0].mxu0
        %v4709 = vadd.f32 0.0, %v4708
        %v4710 = vpop.f32.mrb[0].mxu0
        %4711 = vmatprep.mubr.f32.mxu0 0.0
        %4712 = vmatmul.mubr.f32.gmra.mrb[0].mxu0 %v4636
        %v4713 = vpop.f32.mrb[0].mxu0
        %v4714 = vadd.f32 0.0, %v4713
        %v4715 = vpop.f32.mrb[0].mxu0
        %4716 = vmatprep.mubr.f32.mxu0 0.0
        %4717 = vmatmul.mubr.f32.gmra.mrb[0].mxu0 %v4638
        %v4718 = vpop.f32.mrb[0].mxu0
        %v4719 = vadd.f32 0.0, %v4718
        %v4720 = vpop.f32.mrb[0].mxu0
        %4721 = vdwg.mxu0
        %v4722 = vadd.f32 %v4611, %v4709
        %v4723 = vadd.f32 %v4612, %v4714
        %v4724 = vadd.f32 %v4613, %v4719
        %4725 = vrot.lane.b32.xlu0 %v4315, 88
        %v4726 = vpop.permute.xlu0 %4725
        %4727 = vrot.lane.b32.xlu0 %v4316, 88
        %v4728 = vpop.permute.xlu0 %4727
        %4729 = vrot.lane.b32.xlu0 %v4317, 88
        %v4730 = vpop.permute.xlu0 %4729
        %4731 = vrot.lane.b32.xlu0 %v4311, 115
        %v4732 = vpop.permute.xlu0 %4731
        %4733 = vrot.lane.b32.xlu0 %v4312, 115
        %v4734 = vpop.permute.xlu0 %4733
        %4735 = vrot.lane.b32.xlu0 %v4313, 115
        %v4736 = vpop.permute.xlu0 %4735
        %4737 = vrot.lane.b32.xlu0 %v4314, 115
        %v4738 = vpop.permute.xlu0 %4737
        %vm4739 = vcmask 941056
        %v4740 = vsel %vm4739, %v4732, %v4734
        %v4741 = vsel %vm4739, %v4736, %v4738
        %v4743 = vsel %vm4334, %v4726, 0
        %v4745 = vsel %vm4334, %v4728, 0
        %v4747 = vsel %vm4334, %v4730, 0
        %v4749 = vsel %vm4341, %v4741, 0
        %4751 = vmatprep.subr.mxu0 0.0
        %4752 = vmatpush1.msra.mxu0 %v4740
        %4753 = vmatprep.subr.mxu0 0.0
        %4754 = vmatpush1.msra.mxu0 %v4749
        %4755 = vmatprep.subr.mxu0 0.0
        %4756 = vmatpush1.msra.mxu0 0.0
        %4757 = vmatprep.subr.mxu0 0.0
        %4758 = vmatpush1.msra.mxu0 0.0
        %4759 = vmatprep.subr.mxu0 0.0
        %4760 = vmatpush1.msra.mxu0 0.0
        %4761 = vmatprep.subr.mxu0 0.0
        %4762 = vmatpush1.msra.mxu0 0.0
        %4763 = vmatprep.subr.mxu0 0.0
        %4764 = vmatpush1.msra.mxu0 0.0
        %4765 = vmatprep.subr.mxu0 0.0
        %4766 = vmatpush1.msra.mxu0 0.0
        %4767 = vmatprep.subr.mxu0 0.0
        %4768 = vmatpush1.msra.mxu0 0.0
        %4769 = vmatprep.subr.mxu0 0.0
        %4770 = vmatpush1.msra.mxu0 0.0
        %4771 = vmatprep.subr.mxu0 0.0
        %4772 = vmatpush1.msra.mxu0 0.0
        %4773 = vmatprep.subr.mxu0 0.0
        %4774 = vmatpush1.msra.mxu0 0.0
        %4775 = vmatprep.subr.mxu0 0.0
        %4776 = vmatpush1.msra.mxu0 0.0
        %4777 = vmatprep.subr.mxu0 0.0
        %4778 = vmatpush1.msra.mxu0 0.0
        %4779 = vmatprep.subr.mxu0 0.0
        %4780 = vmatpush1.msra.mxu0 0.0
        %4781 = vmatprep.subr.mxu0 0.0
        %4782 = vmatpush1.msra.mxu0 0.0
        %4783 = vmatprep.subr.mxu0 0.0
        %4784 = vmatpush1.msra.mxu0 0.0
        %4785 = vmatprep.subr.mxu0 0.0
        %4786 = vmatpush1.msra.mxu0 0.0
        %4787 = vmatprep.subr.mxu0 0.0
        %4788 = vmatpush1.msra.mxu0 0.0
        %4789 = vmatprep.subr.mxu0 0.0
        %4790 = vmatpush1.msra.mxu0 0.0
        %4791 = vmatprep.subr.mxu0 0.0
        %4792 = vmatpush1.msra.mxu0 0.0
        %4793 = vmatprep.subr.mxu0 0.0
        %4794 = vmatpush1.msra.mxu0 0.0
        %4795 = vmatprep.subr.mxu0 0.0
        %4796 = vmatpush1.msra.mxu0 0.0
        %4797 = vmatprep.subr.mxu0 0.0
        %4798 = vmatpush1.msra.mxu0 0.0
        %4799 = vmatprep.subr.mxu0 0.0
        %4800 = vmatpush1.msra.mxu0 0.0
        %4801 = vmatprep.subr.mxu0 0.0
        %4802 = vmatpush1.msra.mxu0 0.0
        %4803 = vmatprep.subr.mxu0 0.0
        %4804 = vmatpush1.msra.mxu0 0.0
        %4805 = vmatprep.subr.mxu0 0.0
        %4806 = vmatpush1.msra.mxu0 0.0
        %4807 = vmatprep.subr.mxu0 0.0
        %4808 = vmatpush1.msra.mxu0 0.0
        %4809 = vmatprep.subr.mxu0 0.0
        %4810 = vmatpush1.msra.mxu0 0.0
        %4811 = vmatprep.subr.mxu0 0.0
        %4812 = vmatpush1.msra.mxu0 0.0
        %4813 = vmatprep.subr.mxu0 0.0
        %4814 = vmatpush1.msra.mxu0 0.0
        %4815 = vmatprep.mubr.f32.mxu0 0.0
        %4816 = vmatmul.mubr.f32.gmra.mrb[0].mxu0 %v4743
        %v4817 = vpop.f32.mrb[0].mxu0
        %v4818 = vadd.f32 0.0, %v4817
        %v4819 = vpop.f32.mrb[0].mxu0
        %4820 = vmatprep.mubr.f32.mxu0 0.0
        %4821 = vmatmul.mubr.f32.gmra.mrb[0].mxu0 %v4745
        %v4822 = vpop.f32.mrb[0].mxu0
        %v4823 = vadd.f32 0.0, %v4822
        %v4824 = vpop.f32.mrb[0].mxu0
        %4825 = vmatprep.mubr.f32.mxu0 0.0
        %4826 = vmatmul.mubr.f32.gmra.mrb[0].mxu0 %v4747
        %v4827 = vpop.f32.mrb[0].mxu0
        %v4828 = vadd.f32 0.0, %v4827
        %v4829 = vpop.f32.mrb[0].mxu0
        %4830 = vdwg.mxu0
        %v4831 = vadd.f32 %v4722, %v4818
        %v4832 = vadd.f32 %v4723, %v4823
        %v4833 = vadd.f32 %v4724, %v4828
        %4834 = vrot.lane.b32.xlu0 %v4315, 78
        %v4835 = vpop.permute.xlu0 %4834
        %4836 = vrot.lane.b32.xlu0 %v4316, 78
        %v4837 = vpop.permute.xlu0 %4836
        %4838 = vrot.lane.b32.xlu0 %v4317, 78
        %v4839 = vpop.permute.xlu0 %4838
        %4840 = vrot.lane.b32.xlu0 %v4311, 114
        %v4841 = vpop.permute.xlu0 %4840
        %4842 = vrot.lane.b32.xlu0 %v4312, 114
        %v4843 = vpop.permute.xlu0 %4842
        %4844 = vrot.lane.b32.xlu0 %v4313, 114
        %v4845 = vpop.permute.xlu0 %4844
        %4846 = vrot.lane.b32.xlu0 %v4314, 114
        %v4847 = vpop.permute.xlu0 %4846
        %vm4848 = vcmask 932864
        %v4849 = vsel %vm4848, %v4841, %v4843
        %v4850 = vsel %vm4848, %v4845, %v4847
        %v4852 = vsel %vm4334, %v4835, 0
        %v4854 = vsel %vm4334, %v4837, 0
        %v4856 = vsel %vm4334, %v4839, 0
        %v4858 = vsel %vm4341, %v4850, 0
        %4860 = vmatprep.subr.mxu0 0.0
        %4861 = vmatpush1.msra.mxu0 %v4849
        %4862 = vmatprep.subr.mxu0 0.0
        %4863 = vmatpush1.msra.mxu0 %v4858
        %4864 = vmatprep.subr.mxu0 0.0
        %4865 = vmatpush1.msra.mxu0 0.0
        %4866 = vmatprep.subr.mxu0 0.0
        %4867 = vmatpush1.msra.mxu0 0.0
        %4868 = vmatprep.subr.mxu0 0.0
        %4869 = vmatpush1.msra.mxu0 0.0
        %4870 = vmatprep.subr.mxu0 0.0
        %4871 = vmatpush1.msra.mxu0 0.0
        %4872 = vmatprep.subr.mxu0 0.0
        %4873 = vmatpush1.msra.mxu0 0.0
        %4874 = vmatprep.subr.mxu0 0.0
        %4875 = vmatpush1.msra.mxu0 0.0
        %4876 = vmatprep.subr.mxu0 0.0
        %4877 = vmatpush1.msra.mxu0 0.0
        %4878 = vmatprep.subr.mxu0 0.0
        %4879 = vmatpush1.msra.mxu0 0.0
        %4880 = vmatprep.subr.mxu0 0.0
        %4881 = vmatpush1.msra.mxu0 0.0
        %4882 = vmatprep.subr.mxu0 0.0
        %4883 = vmatpush1.msra.mxu0 0.0
        %4884 = vmatprep.subr.mxu0 0.0
        %4885 = vmatpush1.msra.mxu0 0.0
        %4886 = vmatprep.subr.mxu0 0.0
        %4887 = vmatpush1.msra.mxu0 0.0
        %4888 = vmatprep.subr.mxu0 0.0
        %4889 = vmatpush1.msra.mxu0 0.0
        %4890 = vmatprep.subr.mxu0 0.0
        %4891 = vmatpush1.msra.mxu0 0.0
        %4892 = vmatprep.subr.mxu0 0.0
        %4893 = vmatpush1.msra.mxu0 0.0
        %4894 = vmatprep.subr.mxu0 0.0
        %4895 = vmatpush1.msra.mxu0 0.0
        %4896 = vmatprep.subr.mxu0 0.0
        %4897 = vmatpush1.msra.mxu0 0.0
        %4898 = vmatprep.subr.mxu0 0.0
        %4899 = vmatpush1.msra.mxu0 0.0
        %4900 = vmatprep.subr.mxu0 0.0
        %4901 = vmatpush1.msra.mxu0 0.0
        %4902 = vmatprep.subr.mxu0 0.0
        %4903 = vmatpush1.msra.mxu0 0.0
        %4904 = vmatprep.subr.mxu0 0.0
        %4905 = vmatpush1.msra.mxu0 0.0
        %4906 = vmatprep.subr.mxu0 0.0
        %4907 = vmatpush1.msra.mxu0 0.0
        %4908 = vmatprep.subr.mxu0 0.0
        %4909 = vmatpush1.msra.mxu0 0.0
        %4910 = vmatprep.subr.mxu0 0.0
        %4911 = vmatpush1.msra.mxu0 0.0
        %4912 = vmatprep.subr.mxu0 0.0
        %4913 = vmatpush1.msra.mxu0 0.0
        %4914 = vmatprep.subr.mxu0 0.0
        %4915 = vmatpush1.msra.mxu0 0.0
        %4916 = vmatprep.subr.mxu0 0.0
        %4917 = vmatpush1.msra.mxu0 0.0
        %4918 = vmatprep.subr.mxu0 0.0
        %4919 = vmatpush1.msra.mxu0 0.0
        %4920 = vmatprep.subr.mxu0 0.0
        %4921 = vmatpush1.msra.mxu0 0.0
        %4922 = vmatprep.subr.mxu0 0.0
        %4923 = vmatpush1.msra.mxu0 0.0
        %4924 = vmatprep.mubr.f32.mxu0 0.0
        %4925 = vmatmul.mubr.f32.gmra.mrb[0].mxu0 %v4852
        %v4926 = vpop.f32.mrb[0].mxu0
        %v4927 = vadd.f32 0.0, %v4926
        %v4928 = vpop.f32.mrb[0].mxu0
        %4929 = vmatprep.mubr.f32.mxu0 0.0
        %4930 = vmatmul.mubr.f32.gmra.mrb[0].mxu0 %v4854
        %v4931 = vpop.f32.mrb[0].mxu0
        %v4932 = vadd.f32 0.0, %v4931
        %v4933 = vpop.f32.mrb[0].mxu0
        %4934 = vmatprep.mubr.f32.mxu0 0.0
        %4935 = vmatmul.mubr.f32.gmra.mrb[0].mxu0 %v4856
        %v4936 = vpop.f32.mrb[0].mxu0
        %v4937 = vadd.f32 0.0, %v4936
        %v4938 = vpop.f32.mrb[0].mxu0
        %4939 = vdwg.mxu0
        %v4940 = vadd.f32 %v4831, %v4927
        %v4941 = vadd.f32 %v4832, %v4932
        %v4942 = vadd.f32 %v4833, %v4937
        %4943 = vrot.lane.b32.xlu0 %v4315, 68
        %v4944 = vpop.permute.xlu0 %4943
        %4945 = vrot.lane.b32.xlu0 %v4316, 68
        %v4946 = vpop.permute.xlu0 %4945
        %4947 = vrot.lane.b32.xlu0 %v4317, 68
        %v4948 = vpop.permute.xlu0 %4947
        %4949 = vrot.lane.b32.xlu0 %v4311, 104
        %v4950 = vpop.permute.xlu0 %4949
        %4951 = vrot.lane.b32.xlu0 %v4312, 104
        %v4952 = vpop.permute.xlu0 %4951
        %4953 = vrot.lane.b32.xlu0 %v4313, 104
        %v4954 = vpop.permute.xlu0 %4953
        %4955 = vrot.lane.b32.xlu0 %v4314, 104
        %v4956 = vpop.permute.xlu0 %4955
        %vm4957 = vcmask 850944
        %v4958 = vsel %vm4957, %v4950, %v4952
        %v4959 = vsel %vm4957, %v4954, %v4956
        %v4961 = vsel %vm4334, %v4944, 0
        %v4963 = vsel %vm4334, %v4946, 0
        %v4965 = vsel %vm4334, %v4948, 0
        %v4967 = vsel %vm4341, %v4959, 0
        %4969 = vmatprep.subr.mxu0 0.0
        %4970 = vmatpush1.msra.mxu0 %v4958
        %4971 = vmatprep.subr.mxu0 0.0
        %4972 = vmatpush1.msra.mxu0 %v4967
        %4973 = vmatprep.subr.mxu0 0.0
        %4974 = vmatpush1.msra.mxu0 0.0
        %4975 = vmatprep.subr.mxu0 0.0
        %4976 = vmatpush1.msra.mxu0 0.0
        %4977 = vmatprep.subr.mxu0 0.0
        %4978 = vmatpush1.msra.mxu0 0.0
        %4979 = vmatprep.subr.mxu0 0.0
        %4980 = vmatpush1.msra.mxu0 0.0
        %4981 = vmatprep.subr.mxu0 0.0
        %4982 = vmatpush1.msra.mxu0 0.0
        %4983 = vmatprep.subr.mxu0 0.0
        %4984 = vmatpush1.msra.mxu0 0.0
        %4985 = vmatprep.subr.mxu0 0.0
        %4986 = vmatpush1.msra.mxu0 0.0
        %4987 = vmatprep.subr.mxu0 0.0
        %4988 = vmatpush1.msra.mxu0 0.0
        %4989 = vmatprep.subr.mxu0 0.0
        %4990 = vmatpush1.msra.mxu0 0.0
        %4991 = vmatprep.subr.mxu0 0.0
        %4992 = vmatpush1.msra.mxu0 0.0
        %4993 = vmatprep.subr.mxu0 0.0
        %4994 = vmatpush1.msra.mxu0 0.0
        %4995 = vmatprep.subr.mxu0 0.0
        %4996 = vmatpush1.msra.mxu0 0.0
        %4997 = vmatprep.subr.mxu0 0.0
        %4998 = vmatpush1.msra.mxu0 0.0
        %4999 = vmatprep.subr.mxu0 0.0
        %5000 = vmatpush1.msra.mxu0 0.0
        %5001 = vmatprep.subr.mxu0 0.0
        %5002 = vmatpush1.msra.mxu0 0.0
        %5003 = vmatprep.subr.mxu0 0.0
        %5004 = vmatpush1.msra.mxu0 0.0
        %5005 = vmatprep.subr.mxu0 0.0
        %5006 = vmatpush1.msra.mxu0 0.0
        %5007 = vmatprep.subr.mxu0 0.0
        %5008 = vmatpush1.msra.mxu0 0.0
        %5009 = vmatprep.subr.mxu0 0.0
        %5010 = vmatpush1.msra.mxu0 0.0
        %5011 = vmatprep.subr.mxu0 0.0
        %5012 = vmatpush1.msra.mxu0 0.0
        %5013 = vmatprep.subr.mxu0 0.0
        %5014 = vmatpush1.msra.mxu0 0.0
        %5015 = vmatprep.subr.mxu0 0.0
        %5016 = vmatpush1.msra.mxu0 0.0
        %5017 = vmatprep.subr.mxu0 0.0
        %5018 = vmatpush1.msra.mxu0 0.0
        %5019 = vmatprep.subr.mxu0 0.0
        %5020 = vmatpush1.msra.mxu0 0.0
        %5021 = vmatprep.subr.mxu0 0.0
        %5022 = vmatpush1.msra.mxu0 0.0
        %5023 = vmatprep.subr.mxu0 0.0
        %5024 = vmatpush1.msra.mxu0 0.0
        %5025 = vmatprep.subr.mxu0 0.0
        %5026 = vmatpush1.msra.mxu0 0.0
        %5027 = vmatprep.subr.mxu0 0.0
        %5028 = vmatpush1.msra.mxu0 0.0
        %5029 = vmatprep.subr.mxu0 0.0
        %5030 = vmatpush1.msra.mxu0 0.0
        %5031 = vmatprep.subr.mxu0 0.0
        %5032 = vmatpush1.msra.mxu0 0.0
        %5033 = vmatprep.mubr.f32.mxu0 0.0
        %5034 = vmatmul.mubr.f32.gmra.mrb[0].mxu0 %v4961
        %v5035 = vpop.f32.mrb[0].mxu0
        %v5036 = vadd.f32 0.0, %v5035
        %v5037 = vpop.f32.mrb[0].mxu0
        %5038 = vmatprep.mubr.f32.mxu0 0.0
        %5039 = vmatmul.mubr.f32.gmra.mrb[0].mxu0 %v4963
        %v5040 = vpop.f32.mrb[0].mxu0
        %v5041 = vadd.f32 0.0, %v5040
        %v5042 = vpop.f32.mrb[0].mxu0
        %5043 = vmatprep.mubr.f32.mxu0 0.0
        %5044 = vmatmul.mubr.f32.gmra.mrb[0].mxu0 %v4965
        %v5045 = vpop.f32.mrb[0].mxu0
        %v5046 = vadd.f32 0.0, %v5045
        %v5047 = vpop.f32.mrb[0].mxu0
        %5048 = vdwg.mxu0
        %v5049 = vadd.f32 %v4940, %v5036
        %v5050 = vadd.f32 %v4941, %v5041
        %v5051 = vadd.f32 %v4942, %v5046
        %5052 = vrot.lane.b32.xlu0 %v4315, 58
        %v5053 = vpop.permute.xlu0 %5052
        %5054 = vrot.lane.b32.xlu0 %v4316, 58
        %v5055 = vpop.permute.xlu0 %5054
        %5056 = vrot.lane.b32.xlu0 %v4317, 58
        %v5057 = vpop.permute.xlu0 %5056
        %5058 = vrot.lane.b32.xlu0 %v4311, 103
        %v5059 = vpop.permute.xlu0 %5058
        %5060 = vrot.lane.b32.xlu0 %v4312, 103
        %v5061 = vpop.permute.xlu0 %5060
        %5062 = vrot.lane.b32.xlu0 %v4313, 103
        %v5063 = vpop.permute.xlu0 %5062
        %5064 = vrot.lane.b32.xlu0 %v4314, 103
        %v5065 = vpop.permute.xlu0 %5064
        %vm5066 = vcmask 842752
        %v5067 = vsel %vm5066, %v5059, %v5061
        %v5068 = vsel %vm5066, %v5063, %v5065
        %v5070 = vsel %vm4334, %v5053, 0
        %v5072 = vsel %vm4334, %v5055, 0
        %v5074 = vsel %vm4334, %v5057, 0
        %v5076 = vsel %vm4341, %v5068, 0
        %5078 = vmatprep.subr.mxu0 0.0
        %5079 = vmatpush1.msra.mxu0 %v5067
        %5080 = vmatprep.subr.mxu0 0.0
        %5081 = vmatpush1.msra.mxu0 %v5076
        %5082 = vmatprep.subr.mxu0 0.0
        %5083 = vmatpush1.msra.mxu0 0.0
        %5084 = vmatprep.subr.mxu0 0.0
        %5085 = vmatpush1.msra.mxu0 0.0
        %5086 = vmatprep.subr.mxu0 0.0
        %5087 = vmatpush1.msra.mxu0 0.0
        %5088 = vmatprep.subr.mxu0 0.0
        %5089 = vmatpush1.msra.mxu0 0.0
        %5090 = vmatprep.subr.mxu0 0.0
        %5091 = vmatpush1.msra.mxu0 0.0
        %5092 = vmatprep.subr.mxu0 0.0
        %5093 = vmatpush1.msra.mxu0 0.0
        %5094 = vmatprep.subr.mxu0 0.0
        %5095 = vmatpush1.msra.mxu0 0.0
        %5096 = vmatprep.subr.mxu0 0.0
        %5097 = vmatpush1.msra.mxu0 0.0
        %5098 = vmatprep.subr.mxu0 0.0
        %5099 = vmatpush1.msra.mxu0 0.0
        %5100 = vmatprep.subr.mxu0 0.0
        %5101 = vmatpush1.msra.mxu0 0.0
        %5102 = vmatprep.subr.mxu0 0.0
        %5103 = vmatpush1.msra.mxu0 0.0
        %5104 = vmatprep.subr.mxu0 0.0
        %5105 = vmatpush1.msra.mxu0 0.0
        %5106 = vmatprep.subr.mxu0 0.0
        %5107 = vmatpush1.msra.mxu0 0.0
        %5108 = vmatprep.subr.mxu0 0.0
        %5109 = vmatpush1.msra.mxu0 0.0
        %5110 = vmatprep.subr.mxu0 0.0
        %5111 = vmatpush1.msra.mxu0 0.0
        %5112 = vmatprep.subr.mxu0 0.0
        %5113 = vmatpush1.msra.mxu0 0.0
        %5114 = vmatprep.subr.mxu0 0.0
        %5115 = vmatpush1.msra.mxu0 0.0
        %5116 = vmatprep.subr.mxu0 0.0
        %5117 = vmatpush1.msra.mxu0 0.0
        %5118 = vmatprep.subr.mxu0 0.0
        %5119 = vmatpush1.msra.mxu0 0.0
        %5120 = vmatprep.subr.mxu0 0.0
        %5121 = vmatpush1.msra.mxu0 0.0
        %5122 = vmatprep.subr.mxu0 0.0
        %5123 = vmatpush1.msra.mxu0 0.0
        %5124 = vmatprep.subr.mxu0 0.0
        %5125 = vmatpush1.msra.mxu0 0.0
        %5126 = vmatprep.subr.mxu0 0.0
        %5127 = vmatpush1.msra.mxu0 0.0
        %5128 = vmatprep.subr.mxu0 0.0
        %5129 = vmatpush1.msra.mxu0 0.0
        %5130 = vmatprep.subr.mxu0 0.0
        %5131 = vmatpush1.msra.mxu0 0.0
        %5132 = vmatprep.subr.mxu0 0.0
        %5133 = vmatpush1.msra.mxu0 0.0
        %5134 = vmatprep.subr.mxu0 0.0
        %5135 = vmatpush1.msra.mxu0 0.0
        %5136 = vmatprep.subr.mxu0 0.0
        %5137 = vmatpush1.msra.mxu0 0.0
        %5138 = vmatprep.subr.mxu0 0.0
        %5139 = vmatpush1.msra.mxu0 0.0
        %5140 = vmatprep.subr.mxu0 0.0
        %5141 = vmatpush1.msra.mxu0 0.0
        %5142 = vmatprep.mubr.f32.mxu0 0.0
        %5143 = vmatmul.mubr.f32.gmra.mrb[0].mxu0 %v5070
        %v5144 = vpop.f32.mrb[0].mxu0
        %v5145 = vadd.f32 0.0, %v5144
        %v5146 = vpop.f32.mrb[0].mxu0
        %5147 = vmatprep.mubr.f32.mxu0 0.0
        %5148 = vmatmul.mubr.f32.gmra.mrb[0].mxu0 %v5072
        %v5149 = vpop.f32.mrb[0].mxu0
        %v5150 = vadd.f32 0.0, %v5149
        %v5151 = vpop.f32.mrb[0].mxu0
        %5152 = vmatprep.mubr.f32.mxu0 0.0
        %5153 = vmatmul.mubr.f32.gmra.mrb[0].mxu0 %v5074
        %v5154 = vpop.f32.mrb[0].mxu0
        %v5155 = vadd.f32 0.0, %v5154
        %v5156 = vpop.f32.mrb[0].mxu0
        %5157 = vdwg.mxu0
        %v5158 = vadd.f32 %v5049, %v5145
        %v5159 = vadd.f32 %v5050, %v5150
        %v5160 = vadd.f32 %v5051, %v5155
        %5161 = vrot.lane.b32.xlu0 %v4315, 48
        %v5162 = vpop.permute.xlu0 %5161
        %5163 = vrot.lane.b32.xlu0 %v4316, 48
        %v5164 = vpop.permute.xlu0 %5163
        %5165 = vrot.lane.b32.xlu0 %v4317, 48
        %v5166 = vpop.permute.xlu0 %5165
        %5167 = vrot.lane.b32.xlu0 %v4311, 102
        %v5168 = vpop.permute.xlu0 %5167
        %5169 = vrot.lane.b32.xlu0 %v4312, 102
        %v5170 = vpop.permute.xlu0 %5169
        %5171 = vrot.lane.b32.xlu0 %v4313, 102
        %v5172 = vpop.permute.xlu0 %5171
        %5173 = vrot.lane.b32.xlu0 %v4314, 102
        %v5174 = vpop.permute.xlu0 %5173
        %vm5175 = vcmask 834560
        %v5176 = vsel %vm5175, %v5168, %v5170
        %v5177 = vsel %vm5175, %v5172, %v5174
        %v5179 = vsel %vm4334, %v5162, 0
        %v5181 = vsel %vm4334, %v5164, 0
        %v5183 = vsel %vm4334, %v5166, 0
        %v5185 = vsel %vm4341, %v5177, 0
        %5187 = vmatprep.subr.mxu0 0.0
        %5188 = vmatpush1.msra.mxu0 %v5176
        %5189 = vmatprep.subr.mxu0 0.0
        %5190 = vmatpush1.msra.mxu0 %v5185
        %5191 = vmatprep.subr.mxu0 0.0
        %5192 = vmatpush1.msra.mxu0 0.0
        %5193 = vmatprep.subr.mxu0 0.0
        %5194 = vmatpush1.msra.mxu0 0.0
        %5195 = vmatprep.subr.mxu0 0.0
        %5196 = vmatpush1.msra.mxu0 0.0
        %5197 = vmatprep.subr.mxu0 0.0
        %5198 = vmatpush1.msra.mxu0 0.0
        %5199 = vmatprep.subr.mxu0 0.0
        %5200 = vmatpush1.msra.mxu0 0.0
        %5201 = vmatprep.subr.mxu0 0.0
        %5202 = vmatpush1.msra.mxu0 0.0
        %5203 = vmatprep.subr.mxu0 0.0
        %5204 = vmatpush1.msra.mxu0 0.0
        %5205 = vmatprep.subr.mxu0 0.0
        %5206 = vmatpush1.msra.mxu0 0.0
        %5207 = vmatprep.subr.mxu0 0.0
        %5208 = vmatpush1.msra.mxu0 0.0
        %5209 = vmatprep.subr.mxu0 0.0
        %5210 = vmatpush1.msra.mxu0 0.0
        %5211 = vmatprep.subr.mxu0 0.0
        %5212 = vmatpush1.msra.mxu0 0.0
        %5213 = vmatprep.subr.mxu0 0.0
        %5214 = vmatpush1.msra.mxu0 0.0
        %5215 = vmatprep.subr.mxu0 0.0
        %5216 = vmatpush1.msra.mxu0 0.0
        %5217 = vmatprep.subr.mxu0 0.0
        %5218 = vmatpush1.msra.mxu0 0.0
        %5219 = vmatprep.subr.mxu0 0.0
        %5220 = vmatpush1.msra.mxu0 0.0
        %5221 = vmatprep.subr.mxu0 0.0
        %5222 = vmatpush1.msra.mxu0 0.0
        %5223 = vmatprep.subr.mxu0 0.0
        %5224 = vmatpush1.msra.mxu0 0.0
        %5225 = vmatprep.subr.mxu0 0.0
        %5226 = vmatpush1.msra.mxu0 0.0
        %5227 = vmatprep.subr.mxu0 0.0
        %5228 = vmatpush1.msra.mxu0 0.0
        %5229 = vmatprep.subr.mxu0 0.0
        %5230 = vmatpush1.msra.mxu0 0.0
        %5231 = vmatprep.subr.mxu0 0.0
        %5232 = vmatpush1.msra.mxu0 0.0
        %5233 = vmatprep.subr.mxu0 0.0
        %5234 = vmatpush1.msra.mxu0 0.0
        %5235 = vmatprep.subr.mxu0 0.0
        %5236 = vmatpush1.msra.mxu0 0.0
        %5237 = vmatprep.subr.mxu0 0.0
        %5238 = vmatpush1.msra.mxu0 0.0
        %5239 = vmatprep.subr.mxu0 0.0
        %5240 = vmatpush1.msra.mxu0 0.0
        %5241 = vmatprep.subr.mxu0 0.0
        %5242 = vmatpush1.msra.mxu0 0.0
        %5243 = vmatprep.subr.mxu0 0.0
        %5244 = vmatpush1.msra.mxu0 0.0
        %5245 = vmatprep.subr.mxu0 0.0
        %5246 = vmatpush1.msra.mxu0 0.0
        %5247 = vmatprep.subr.mxu0 0.0
        %5248 = vmatpush1.msra.mxu0 0.0
        %5249 = vmatprep.subr.mxu0 0.0
        %5250 = vmatpush1.msra.mxu0 0.0
        %5251 = vmatprep.mubr.f32.mxu0 0.0
        %5252 = vmatmul.mubr.f32.gmra.mrb[0].mxu0 %v5179
        %v5253 = vpop.f32.mrb[0].mxu0
        %v5254 = vadd.f32 0.0, %v5253
        %v5255 = vpop.f32.mrb[0].mxu0
        %5256 = vmatprep.mubr.f32.mxu0 0.0
        %5257 = vmatmul.mubr.f32.gmra.mrb[0].mxu0 %v5181
        %v5258 = vpop.f32.mrb[0].mxu0
        %v5259 = vadd.f32 0.0, %v5258
        %v5260 = vpop.f32.mrb[0].mxu0
        %5261 = vmatprep.mubr.f32.mxu0 0.0
        %5262 = vmatmul.mubr.f32.gmra.mrb[0].mxu0 %v5183
        %v5263 = vpop.f32.mrb[0].mxu0
        %v5264 = vadd.f32 0.0, %v5263
        %v5265 = vpop.f32.mrb[0].mxu0
        %5266 = vdwg.mxu0
        %v5267 = vadd.f32 %v5158, %v5254
        %v5268 = vadd.f32 %v5159, %v5259
        %v5269 = vadd.f32 %v5160, %v5264
        %v5270 = vld [vmem:[%s5] sm:$0xff]
        %v5271 = vld [vmem:[%s5 + $0x8] sm:$0xff]
        %v5272 = vld [vmem:[%s5 + $0x10] sm:$0xf]
        %5274 = vset.pattern.permute.xlu0 0
        %5275 = vperm.xlu0 %5274, %v5270
        %v5276 = vpop.permute.xlu0 %5275
        %5279 = vset.pattern.permute.xlu0 0
        %5280 = vperm.xlu0 %5279, %v5271
        %v5281 = vpop.permute.xlu0 %5280
        %5284 = vset.pattern.permute.xlu0 0
        %5285 = vperm.xlu0 %5284, %v5272
        %v5286 = vpop.permute.xlu0 %5285
        %v5288 = vadd.f32 %v5267, %v5276
        %v5289 = vadd.f32 %v5268, %v5281
        %v5290 = vadd.f32 %v5269, %v5286
        %v5291 = vmax.f32 %v5288, 0.0
        %v5292 = vmax.f32 %v5289, 0.0
        %v5293 = vmax.f32 %v5290, 0.0
        %v5294 = vld [vmem:[%s7] sm:$0xf]
        %v5295 = vld [vmem:[%s6] sm:$0xff]
        %v5296 = vld [vmem:[%s6 + $0x8] sm:$0xff]
        %v5297 = vld [vmem:[%s6 + $0x10] sm:$0xff]
        %v5298 = vld [vmem:[%s6 + $0x18] sm:$0xff]
        %v5299 = vld [vmem:[%s6 + $0x20] sm:$0xff]
        %v5300 = vld [vmem:[%s6 + $0x28] sm:$0xff]
        %v5301 = vld [vmem:[%s6 + $0x30] sm:$0xff]
        %v5302 = vld [vmem:[%s6 + $0x38] sm:$0xff]
        %v5303 = vld [vmem:[%s6 + $0x40] sm:$0xff]
        %v5304 = vld [vmem:[%s6 + $0x48] sm:$0xff]
        %v5305 = vld [vmem:[%s6 + $0x50] sm:$0xff]
        %v5306 = vld [vmem:[%s6 + $0x58] sm:$0xff]
        %v5307 = vld [vmem:[%s6 + $0x60] sm:$0xff]
        %v5308 = vld [vmem:[%s6 + $0x68] sm:$0xff]
        %v5309 = vld [vmem:[%s6 + $0x70] sm:$0xff]
        %v5310 = vld [vmem:[%s6 + $0x78] sm:$0xff]
        %v5311 = vld [vmem:[%s6 + $0x80] sm:$0xff]
        %v5312 = vld [vmem:[%s6 + $0x88] sm:$0xff]
        %v5313 = vld [vmem:[%s6 + $0x90] sm:$0xff]
        %v5314 = vld [vmem:[%s6 + $0x98] sm:$0xff]
        %v5315 = vld [vmem:[%s6 + $0xa0] sm:$0xff]
        %v5316 = vld [vmem:[%s6 + $0xa8] sm:$0xff]
        %v5317 = vld [vmem:[%s6 + $0xb0] sm:$0xff]
        %v5318 = vld [vmem:[%s6 + $0xb8] sm:$0xff]
        %v5319 = vld [vmem:[%s6 + $0xc0] sm:$0xff]
        %v5320 = vld [vmem:[%s6 + $0xc8] sm:$0xff]
        %v5321 = vld [vmem:[%s6 + $0xd0] sm:$0xff]
        %v5322 = vld [vmem:[%s6 + $0xd8] sm:$0xff]
        %v5323 = vld [vmem:[%s6 + $0xe0] sm:$0xff]
        %v5324 = vld [vmem:[%s6 + $0xe8] sm:$0xff]
        %v5325 = vld [vmem:[%s6 + $0xf0] sm:$0xff]
        %v5326 = vld [vmem:[%s6 + $0xf8] sm:$0xff]
        %v5327 = vld [vmem:[%s6 + $0x100] sm:$0xff]
        %v5328 = vld [vmem:[%s6 + $0x108] sm:$0xff]
        %v5329 = vld [vmem:[%s6 + $0x110] sm:$0xff]
        %v5330 = vld [vmem:[%s6 + $0x118] sm:$0xff]
        %v5331 = vld [vmem:[%s6 + $0x120] sm:$0xff]
        %v5332 = vld [vmem:[%s6 + $0x128] sm:$0xff]
        %v5333 = vld [vmem:[%s6 + $0x130] sm:$0xff]
        %v5334 = vld [vmem:[%s6 + $0x138] sm:$0xff]
        %v5335 = vld [vmem:[%s6 + $0x140] sm:$0xff]
        %v5336 = vld [vmem:[%s6 + $0x148] sm:$0xff]
        %v5337 = vld [vmem:[%s6 + $0x150] sm:$0xff]
        %v5338 = vld [vmem:[%s6 + $0x158] sm:$0xff]
        %v5339 = vld [vmem:[%s6 + $0x160] sm:$0xff]
        %v5340 = vld [vmem:[%s6 + $0x168] sm:$0xff]
        %v5341 = vld [vmem:[%s6 + $0x170] sm:$0xff]
        %v5342 = vld [vmem:[%s6 + $0x178] sm:$0xff]
        %v5343 = vld [vmem:[%s6 + $0x180] sm:$0xff]
        %v5344 = vld [vmem:[%s6 + $0x188] sm:$0xff]
        %v5345 = vld [vmem:[%s6 + $0x190] sm:$0xff]
        %v5346 = vld [vmem:[%s6 + $0x198] sm:$0xff]
        %v5347 = vld [vmem:[%s6 + $0x1a0] sm:$0xff]
        %v5348 = vld [vmem:[%s6 + $0x1a8] sm:$0xff]
        %v5349 = vld [vmem:[%s6 + $0x1b0] sm:$0xff]
        %v5350 = vld [vmem:[%s6 + $0x1b8] sm:$0xff]
        %v5351 = vld [vmem:[%s6 + $0x1c0] sm:$0xff]
        %v5352 = vld [vmem:[%s6 + $0x1c8] sm:$0xff]
        %v5353 = vld [vmem:[%s6 + $0x1d0] sm:$0xff]
        %v5354 = vld [vmem:[%s6 + $0x1d8] sm:$0xff]
        %vm5355 = vcmask 982016
        %v5357 = vsel %vm5355, %v5291, 0
        %5359 = vmatprep.subr.mxu0 %v5296
        %5360 = vmatpush1.msra.mxu0 %v5295
        %5361 = vmatprep.subr.mxu0 %v5300
        %5362 = vmatpush1.msra.mxu0 %v5299
        %5363 = vmatprep.subr.mxu0 %v5304
        %5364 = vmatpush1.msra.mxu0 %v5303
        %5365 = vmatprep.subr.mxu0 %v5308
        %5366 = vmatpush1.msra.mxu0 %v5307
        %5367 = vmatprep.subr.mxu0 %v5312
        %5368 = vmatpush1.msra.mxu0 %v5311
        %5369 = vmatprep.subr.mxu0 %v5316
        %5370 = vmatpush1.msra.mxu0 %v5315
        %5371 = vmatprep.subr.mxu0 %v5320
        %5372 = vmatpush1.msra.mxu0 %v5319
        %5373 = vmatprep.subr.mxu0 %v5324
        %5374 = vmatpush1.msra.mxu0 %v5323
        %5375 = vmatprep.subr.mxu0 %v5328
        %5376 = vmatpush1.msra.mxu0 %v5327
        %5377 = vmatprep.subr.mxu0 %v5332
        %5378 = vmatpush1.msra.mxu0 %v5331
        %5379 = vmatprep.subr.mxu0 %v5336
        %5380 = vmatpush1.msra.mxu0 %v5335
        %5381 = vmatprep.subr.mxu0 %v5340
        %5382 = vmatpush1.msra.mxu0 %v5339
        %5383 = vmatprep.subr.mxu0 %v5344
        %5384 = vmatpush1.msra.mxu0 %v5343
        %5385 = vmatprep.subr.mxu0 %v5348
        %5386 = vmatpush1.msra.mxu0 %v5347
        %5387 = vmatprep.subr.mxu0 %v5352
        %5388 = vmatpush1.msra.mxu0 %v5351
        %5389 = vmatprep.subr.mxu0 0.0
        %5390 = vmatpush1.msra.mxu0 0.0
        %5391 = vmatprep.subr.mxu0 0.0
        %5392 = vmatpush1.msra.mxu0 0.0
        %5393 = vmatprep.subr.mxu0 0.0
        %5394 = vmatpush1.msra.mxu0 0.0
        %5395 = vmatprep.subr.mxu0 0.0
        %5396 = vmatpush1.msra.mxu0 0.0
        %5397 = vmatprep.subr.mxu0 0.0
        %5398 = vmatpush1.msra.mxu0 0.0
        %5399 = vmatprep.subr.mxu0 0.0
        %5400 = vmatpush1.msra.mxu0 0.0
        %5401 = vmatprep.subr.mxu0 0.0
        %5402 = vmatpush1.msra.mxu0 0.0
        %5403 = vmatprep.subr.mxu0 0.0
        %5404 = vmatpush1.msra.mxu0 0.0
        %5405 = vmatprep.subr.mxu0 0.0
        %5406 = vmatpush1.msra.mxu0 0.0
        %5407 = vmatprep.subr.mxu0 0.0
        %5408 = vmatpush1.msra.mxu0 0.0
        %5409 = vmatprep.subr.mxu0 0.0
        %5410 = vmatpush1.msra.mxu0 0.0
        %5411 = vmatprep.subr.mxu0 0.0
        %5412 = vmatpush1.msra.mxu0 0.0
        %5413 = vmatprep.subr.mxu0 0.0
        %5414 = vmatpush1.msra.mxu0 0.0
        %5415 = vmatprep.subr.mxu0 0.0
        %5416 = vmatpush1.msra.mxu0 0.0
        %5417 = vmatprep.subr.mxu0 0.0
        %5418 = vmatpush1.msra.mxu0 0.0
        %5419 = vmatprep.subr.mxu0 0.0
        %5420 = vmatpush1.msra.mxu0 0.0
        %5421 = vmatprep.subr.mxu0 0.0
        %5422 = vmatpush1.msra.mxu0 0.0
        %5423 = vmatprep.mubr.f32.mxu0 0.0
        %5424 = vmatmul.mubr.f32.gmra.mrb[0].mxu0 %v5357
        %v5425 = vpop.f32.mrb[0].mxu0
        %v5426 = vadd.f32 0.0, %v5425
        %v5427 = vpop.f32.mrb[0].mxu0
        %v5428 = vadd.f32 0.0, %v5427
        %5429 = vdwg.mxu0
        %5430 = vmatprep.subr.mxu0 %v5298
        %5431 = vmatpush1.msra.mxu0 %v5297
        %5432 = vmatprep.subr.mxu0 %v5302
        %5433 = vmatpush1.msra.mxu0 %v5301
        %5434 = vmatprep.subr.mxu0 %v5306
        %5435 = vmatpush1.msra.mxu0 %v5305
        %5436 = vmatprep.subr.mxu0 %v5310
        %5437 = vmatpush1.msra.mxu0 %v5309
        %5438 = vmatprep.subr.mxu0 %v5314
        %5439 = vmatpush1.msra.mxu0 %v5313
        %5440 = vmatprep.subr.mxu0 %v5318
        %5441 = vmatpush1.msra.mxu0 %v5317
        %5442 = vmatprep.subr.mxu0 %v5322
        %5443 = vmatpush1.msra.mxu0 %v5321
        %5444 = vmatprep.subr.mxu0 %v5326
        %5445 = vmatpush1.msra.mxu0 %v5325
        %5446 = vmatprep.subr.mxu0 %v5330
        %5447 = vmatpush1.msra.mxu0 %v5329
        %5448 = vmatprep.subr.mxu0 %v5334
        %5449 = vmatpush1.msra.mxu0 %v5333
        %5450 = vmatprep.subr.mxu0 %v5338
        %5451 = vmatpush1.msra.mxu0 %v5337
        %5452 = vmatprep.subr.mxu0 %v5342
        %5453 = vmatpush1.msra.mxu0 %v5341
        %5454 = vmatprep.subr.mxu0 %v5346
        %5455 = vmatpush1.msra.mxu0 %v5345
        %5456 = vmatprep.subr.mxu0 %v5350
        %5457 = vmatpush1.msra.mxu0 %v5349
        %5458 = vmatprep.subr.mxu0 %v5354
        %5459 = vmatpush1.msra.mxu0 %v5353
        %5460 = vmatprep.subr.mxu0 0.0
        %5461 = vmatpush1.msra.mxu0 0.0
        %5462 = vmatprep.subr.mxu0 0.0
        %5463 = vmatpush1.msra.mxu0 0.0
        %5464 = vmatprep.subr.mxu0 0.0
        %5465 = vmatpush1.msra.mxu0 0.0
        %5466 = vmatprep.subr.mxu0 0.0
        %5467 = vmatpush1.msra.mxu0 0.0
        %5468 = vmatprep.subr.mxu0 0.0
        %5469 = vmatpush1.msra.mxu0 0.0
        %5470 = vmatprep.subr.mxu0 0.0
        %5471 = vmatpush1.msra.mxu0 0.0
        %5472 = vmatprep.subr.mxu0 0.0
        %5473 = vmatpush1.msra.mxu0 0.0
        %5474 = vmatprep.subr.mxu0 0.0
        %5475 = vmatpush1.msra.mxu0 0.0
        %5476 = vmatprep.subr.mxu0 0.0
        %5477 = vmatpush1.msra.mxu0 0.0
        %5478 = vmatprep.subr.mxu0 0.0
        %5479 = vmatpush1.msra.mxu0 0.0
        %5480 = vmatprep.subr.mxu0 0.0
        %5481 = vmatpush1.msra.mxu0 0.0
        %5482 = vmatprep.subr.mxu0 0.0
        %5483 = vmatpush1.msra.mxu0 0.0
        %5484 = vmatprep.subr.mxu0 0.0
        %5485 = vmatpush1.msra.mxu0 0.0
        %5486 = vmatprep.subr.mxu0 0.0
        %5487 = vmatpush1.msra.mxu0 0.0
        %5488 = vmatprep.subr.mxu0 0.0
        %5489 = vmatpush1.msra.mxu0 0.0
        %5490 = vmatprep.subr.mxu0 0.0
        %5491 = vmatpush1.msra.mxu0 0.0
        %5492 = vmatprep.subr.mxu0 0.0
        %5493 = vmatpush1.msra.mxu0 0.0
        %5494 = vmatprep.mubr.f32.mxu0 0.0
        %5495 = vmatmul.mubr.f32.gmra.mrb[0].mxu0 %v5357
        %v5496 = vpop.f32.mrb[0].mxu0
        %v5497 = vadd.f32 0.0, %v5496
        %v5498 = vpop.f32.mrb[0].mxu0
        %v5499 = vadd.f32 0.0, %v5498
        %5500 = vdwg.mxu0
        %v5505 = vcombine.low %v5426, %v5428
        %v5506 = vcombine.low %v5497, %v5499
        %v5508 = vunpack.c.l.s4 1966171168
        %v5509 = vunpack.c.0.s8 %v5508
        %v5510 = vlaneseq
        %v5511 = vshrl.u32 %v5510, 7
        %v5512 = vsub.s32 %v5509, %v5511
        %v5513 = vrot.slane %v5505, %v5512
        %v5515 = vunpack.c.l.s4 1966171168
        %v5516 = vunpack.c.0.s8 %v5515
        %v5517 = vlaneseq
        %v5518 = vshrl.u32 %v5517, 7
        %v5519 = vsub.s32 %v5516, %v5518
        %v5520 = vrot.slane %v5506, %v5519
        %v5521 = vcombine.low %v5513, %v5520
        %v5523 = vunpack.c.l.s4 1966171168
        %v5524 = vunpack.c.0.s8 %v5523
        %v5525 = vlaneseq
        %v5526 = vshrl.u32 %v5525, 7
        %v5527 = vsub.s32 %v5524, %v5526
        %v5528 = vrot.slane %v5521, %v5527
        %v5530 = vadd.f32 %v5294, %v5528
        %v5531 = vld [vmem:[%s6 + $0x1e0] sm:$0xff]
        %v5532 = vld [vmem:[%s6 + $0x1e8] sm:$0xff]
        %v5533 = vld [vmem:[%s6 + $0x1f0] sm:$0xff]
        %v5534 = vld [vmem:[%s6 + $0x1f8] sm:$0xff]
        %v5535 = vld [vmem:[%s6 + $0x200] sm:$0xff]
        %v5536 = vld [vmem:[%s6 + $0x208] sm:$0xff]
        %v5537 = vld [vmem:[%s6 + $0x210] sm:$0xff]
        %v5538 = vld [vmem:[%s6 + $0x218] sm:$0xff]
        %v5539 = vld [vmem:[%s6 + $0x220] sm:$0xff]
        %v5540 = vld [vmem:[%s6 + $0x228] sm:$0xff]
        %v5541 = vld [vmem:[%s6 + $0x230] sm:$0xff]
        %v5542 = vld [vmem:[%s6 + $0x238] sm:$0xff]
        %v5543 = vld [vmem:[%s6 + $0x240] sm:$0xff]
        %v5544 = vld [vmem:[%s6 + $0x248] sm:$0xff]
        %v5545 = vld [vmem:[%s6 + $0x250] sm:$0xff]
        %v5546 = vld [vmem:[%s6 + $0x258] sm:$0xff]
        %v5547 = vld [vmem:[%s6 + $0x260] sm:$0xff]
        %v5548 = vld [vmem:[%s6 + $0x268] sm:$0xff]
        %v5549 = vld [vmem:[%s6 + $0x270] sm:$0xff]
        %v5550 = vld [vmem:[%s6 + $0x278] sm:$0xff]
        %v5551 = vld [vmem:[%s6 + $0x280] sm:$0xff]
        %v5552 = vld [vmem:[%s6 + $0x288] sm:$0xff]
        %v5553 = vld [vmem:[%s6 + $0x290] sm:$0xff]
        %v5554 = vld [vmem:[%s6 + $0x298] sm:$0xff]
        %v5555 = vld [vmem:[%s6 + $0x2a0] sm:$0xff]
        %v5556 = vld [vmem:[%s6 + $0x2a8] sm:$0xff]
        %v5557 = vld [vmem:[%s6 + $0x2b0] sm:$0xff]
        %v5558 = vld [vmem:[%s6 + $0x2b8] sm:$0xff]
        %v5559 = vld [vmem:[%s6 + $0x2c0] sm:$0xff]
        %v5560 = vld [vmem:[%s6 + $0x2c8] sm:$0xff]
        %v5561 = vld [vmem:[%s6 + $0x2d0] sm:$0xff]
        %v5562 = vld [vmem:[%s6 + $0x2d8] sm:$0xff]
        %v5563 = vld [vmem:[%s6 + $0x2e0] sm:$0xff]
        %v5564 = vld [vmem:[%s6 + $0x2e8] sm:$0xff]
        %v5565 = vld [vmem:[%s6 + $0x2f0] sm:$0xff]
        %v5566 = vld [vmem:[%s6 + $0x2f8] sm:$0xff]
        %v5567 = vld [vmem:[%s6 + $0x300] sm:$0xff]
        %v5568 = vld [vmem:[%s6 + $0x308] sm:$0xff]
        %v5569 = vld [vmem:[%s6 + $0x310] sm:$0xff]
        %v5570 = vld [vmem:[%s6 + $0x318] sm:$0xff]
        %v5571 = vld [vmem:[%s6 + $0x320] sm:$0xff]
        %v5572 = vld [vmem:[%s6 + $0x328] sm:$0xff]
        %v5573 = vld [vmem:[%s6 + $0x330] sm:$0xff]
        %v5574 = vld [vmem:[%s6 + $0x338] sm:$0xff]
        %v5575 = vld [vmem:[%s6 + $0x340] sm:$0xff]
        %v5576 = vld [vmem:[%s6 + $0x348] sm:$0xff]
        %v5577 = vld [vmem:[%s6 + $0x350] sm:$0xff]
        %v5578 = vld [vmem:[%s6 + $0x358] sm:$0xff]
        %v5579 = vld [vmem:[%s6 + $0x360] sm:$0xff]
        %v5580 = vld [vmem:[%s6 + $0x368] sm:$0xff]
        %v5581 = vld [vmem:[%s6 + $0x370] sm:$0xff]
        %v5582 = vld [vmem:[%s6 + $0x378] sm:$0xff]
        %v5583 = vld [vmem:[%s6 + $0x380] sm:$0xff]
        %v5584 = vld [vmem:[%s6 + $0x388] sm:$0xff]
        %v5585 = vld [vmem:[%s6 + $0x390] sm:$0xff]
        %v5586 = vld [vmem:[%s6 + $0x398] sm:$0xff]
        %v5587 = vld [vmem:[%s6 + $0x3a0] sm:$0xff]
        %v5588 = vld [vmem:[%s6 + $0x3a8] sm:$0xff]
        %v5589 = vld [vmem:[%s6 + $0x3b0] sm:$0xff]
        %v5590 = vld [vmem:[%s6 + $0x3b8] sm:$0xff]
        %v5591 = vrot.slane %v5291, 1
        %v5592 = vsel %vm5355, %v5591, 0
        %5594 = vmatprep.subr.mxu0 %v5532
        %5595 = vmatpush1.msra.mxu0 %v5531
        %5596 = vmatprep.subr.mxu0 %v5536
        %5597 = vmatpush1.msra.mxu0 %v5535
        %5598 = vmatprep.subr.mxu0 %v5540
        %5599 = vmatpush1.msra.mxu0 %v5539
        %5600 = vmatprep.subr.mxu0 %v5544
        %5601 = vmatpush1.msra.mxu0 %v5543
        %5602 = vmatprep.subr.mxu0 %v5548
        %5603 = vmatpush1.msra.mxu0 %v5547
        %5604 = vmatprep.subr.mxu0 %v5552
        %5605 = vmatpush1.msra.mxu0 %v5551
        %5606 = vmatprep.subr.mxu0 %v5556
        %5607 = vmatpush1.msra.mxu0 %v5555
        %5608 = vmatprep.subr.mxu0 %v5560
        %5609 = vmatpush1.msra.mxu0 %v5559
        %5610 = vmatprep.subr.mxu0 %v5564
        %5611 = vmatpush1.msra.mxu0 %v5563
        %5612 = vmatprep.subr.mxu0 %v5568
        %5613 = vmatpush1.msra.mxu0 %v5567
        %5614 = vmatprep.subr.mxu0 %v5572
        %5615 = vmatpush1.msra.mxu0 %v5571
        %5616 = vmatprep.subr.mxu0 %v5576
        %5617 = vmatpush1.msra.mxu0 %v5575
        %5618 = vmatprep.subr.mxu0 %v5580
        %5619 = vmatpush1.msra.mxu0 %v5579
        %5620 = vmatprep.subr.mxu0 %v5584
        %5621 = vmatpush1.msra.mxu0 %v5583
        %5622 = vmatprep.subr.mxu0 %v5588
        %5623 = vmatpush1.msra.mxu0 %v5587
        %5624 = vmatprep.subr.mxu0 0.0
        %5625 = vmatpush1.msra.mxu0 0.0
        %5626 = vmatprep.subr.mxu0 0.0
        %5627 = vmatpush1.msra.mxu0 0.0
        %5628 = vmatprep.subr.mxu0 0.0
        %5629 = vmatpush1.msra.mxu0 0.0
        %5630 = vmatprep.subr.mxu0 0.0
        %5631 = vmatpush1.msra.mxu0 0.0
        %5632 = vmatprep.subr.mxu0 0.0
        %5633 = vmatpush1.msra.mxu0 0.0
        %5634 = vmatprep.subr.mxu0 0.0
        %5635 = vmatpush1.msra.mxu0 0.0
        %5636 = vmatprep.subr.mxu0 0.0
        %5637 = vmatpush1.msra.mxu0 0.0
        %5638 = vmatprep.subr.mxu0 0.0
        %5639 = vmatpush1.msra.mxu0 0.0
        %5640 = vmatprep.subr.mxu0 0.0
        %5641 = vmatpush1.msra.mxu0 0.0
        %5642 = vmatprep.subr.mxu0 0.0
        %5643 = vmatpush1.msra.mxu0 0.0
        %5644 = vmatprep.subr.mxu0 0.0
        %5645 = vmatpush1.msra.mxu0 0.0
        %5646 = vmatprep.subr.mxu0 0.0
        %5647 = vmatpush1.msra.mxu0 0.0
        %5648 = vmatprep.subr.mxu0 0.0
        %5649 = vmatpush1.msra.mxu0 0.0
        %5650 = vmatprep.subr.mxu0 0.0
        %5651 = vmatpush1.msra.mxu0 0.0
        %5652 = vmatprep.subr.mxu0 0.0
        %5653 = vmatpush1.msra.mxu0 0.0
        %5654 = vmatprep.subr.mxu0 0.0
        %5655 = vmatpush1.msra.mxu0 0.0
        %5656 = vmatprep.subr.mxu0 0.0
        %5657 = vmatpush1.msra.mxu0 0.0
        %5658 = vmatprep.mubr.f32.mxu0 0.0
        %5659 = vmatmul.mubr.f32.gmra.mrb[0].mxu0 %v5592
        %v5660 = vpop.f32.mrb[0].mxu0
        %v5661 = vadd.f32 0.0, %v5660
        %v5662 = vpop.f32.mrb[0].mxu0
        %v5663 = vadd.f32 0.0, %v5662
        %5664 = vdwg.mxu0
        %5665 = vmatprep.subr.mxu0 %v5534
        %5666 = vmatpush1.msra.mxu0 %v5533
        %5667 = vmatprep.subr.mxu0 %v5538
        %5668 = vmatpush1.msra.mxu0 %v5537
        %5669 = vmatprep.subr.mxu0 %v5542
        %5670 = vmatpush1.msra.mxu0 %v5541
        %5671 = vmatprep.subr.mxu0 %v5546
        %5672 = vmatpush1.msra.mxu0 %v5545
        %5673 = vmatprep.subr.mxu0 %v5550
        %5674 = vmatpush1.msra.mxu0 %v5549
        %5675 = vmatprep.subr.mxu0 %v5554
        %5676 = vmatpush1.msra.mxu0 %v5553
        %5677 = vmatprep.subr.mxu0 %v5558
        %5678 = vmatpush1.msra.mxu0 %v5557
        %5679 = vmatprep.subr.mxu0 %v5562
        %5680 = vmatpush1.msra.mxu0 %v5561
        %5681 = vmatprep.subr.mxu0 %v5566
        %5682 = vmatpush1.msra.mxu0 %v5565
        %5683 = vmatprep.subr.mxu0 %v5570
        %5684 = vmatpush1.msra.mxu0 %v5569
        %5685 = vmatprep.subr.mxu0 %v5574
        %5686 = vmatpush1.msra.mxu0 %v5573
        %5687 = vmatprep.subr.mxu0 %v5578
        %5688 = vmatpush1.msra.mxu0 %v5577
        %5689 = vmatprep.subr.mxu0 %v5582
        %5690 = vmatpush1.msra.mxu0 %v5581
        %5691 = vmatprep.subr.mxu0 %v5586
        %5692 = vmatpush1.msra.mxu0 %v5585
        %5693 = vmatprep.subr.mxu0 %v5590
        %5694 = vmatpush1.msra.mxu0 %v5589
        %5695 = vmatprep.subr.mxu0 0.0
        %5696 = vmatpush1.msra.mxu0 0.0
        %5697 = vmatprep.subr.mxu0 0.0
        %5698 = vmatpush1.msra.mxu0 0.0
        %5699 = vmatprep.subr.mxu0 0.0
        %5700 = vmatpush1.msra.mxu0 0.0
        %5701 = vmatprep.subr.mxu0 0.0
        %5702 = vmatpush1.msra.mxu0 0.0
        %5703 = vmatprep.subr.mxu0 0.0
        %5704 = vmatpush1.msra.mxu0 0.0
        %5705 = vmatprep.subr.mxu0 0.0
        %5706 = vmatpush1.msra.mxu0 0.0
        %5707 = vmatprep.subr.mxu0 0.0
        %5708 = vmatpush1.msra.mxu0 0.0
        %5709 = vmatprep.subr.mxu0 0.0
        %5710 = vmatpush1.msra.mxu0 0.0
        %5711 = vmatprep.subr.mxu0 0.0
        %5712 = vmatpush1.msra.mxu0 0.0
        %5713 = vmatprep.subr.mxu0 0.0
        %5714 = vmatpush1.msra.mxu0 0.0
        %5715 = vmatprep.subr.mxu0 0.0
        %5716 = vmatpush1.msra.mxu0 0.0
        %5717 = vmatprep.subr.mxu0 0.0
        %5718 = vmatpush1.msra.mxu0 0.0
        %5719 = vmatprep.subr.mxu0 0.0
        %5720 = vmatpush1.msra.mxu0 0.0
        %5721 = vmatprep.subr.mxu0 0.0
        %5722 = vmatpush1.msra.mxu0 0.0
        %5723 = vmatprep.subr.mxu0 0.0
        %5724 = vmatpush1.msra.mxu0 0.0
        %5725 = vmatprep.subr.mxu0 0.0
        %5726 = vmatpush1.msra.mxu0 0.0
        %5727 = vmatprep.subr.mxu0 0.0
        %5728 = vmatpush1.msra.mxu0 0.0
        %5729 = vmatprep.mubr.f32.mxu0 0.0
        %5730 = vmatmul.mubr.f32.gmra.mrb[0].mxu0 %v5592
        %v5731 = vpop.f32.mrb[0].mxu0
        %v5732 = vadd.f32 0.0, %v5731
        %v5733 = vpop.f32.mrb[0].mxu0
        %v5734 = vadd.f32 0.0, %v5733
        %5735 = vdwg.mxu0
        %v5740 = vcombine.low %v5661, %v5663
        %v5741 = vcombine.low %v5732, %v5734
        %v5743 = vunpack.c.l.s4 1966171168
        %v5744 = vunpack.c.0.s8 %v5743
        %v5745 = vlaneseq
        %v5746 = vshrl.u32 %v5745, 7
        %v5747 = vsub.s32 %v5744, %v5746
        %v5748 = vrot.slane %v5740, %v5747
        %v5750 = vunpack.c.l.s4 1966171168
        %v5751 = vunpack.c.0.s8 %v5750
        %v5752 = vlaneseq
        %v5753 = vshrl.u32 %v5752, 7
        %v5754 = vsub.s32 %v5751, %v5753
        %v5755 = vrot.slane %v5741, %v5754
        %v5756 = vcombine.low %v5748, %v5755
        %v5758 = vunpack.c.l.s4 1966171168
        %v5759 = vunpack.c.0.s8 %v5758
        %v5760 = vlaneseq
        %v5761 = vshrl.u32 %v5760, 7
        %v5762 = vsub.s32 %v5759, %v5761
        %v5763 = vrot.slane %v5756, %v5762
        %v5765 = vadd.f32 %v5530, %v5763
        %v5766 = vld [vmem:[%s6 + $0x3c0] sm:$0xff]
        %v5767 = vld [vmem:[%s6 + $0x3c8] sm:$0xff]
        %v5768 = vld [vmem:[%s6 + $0x3d0] sm:$0xff]
        %v5769 = vld [vmem:[%s6 + $0x3d8] sm:$0xff]
        %v5770 = vld [vmem:[%s6 + $0x3e0] sm:$0xff]
        %v5771 = vld [vmem:[%s6 + $0x3e8] sm:$0xff]
        %v5772 = vld [vmem:[%s6 + $0x3f0] sm:$0xff]
        %v5773 = vld [vmem:[%s6 + $0x3f8] sm:$0xff]
        %v5774 = vld [vmem:[%s6 + $0x400] sm:$0xff]
        %v5775 = vld [vmem:[%s6 + $0x408] sm:$0xff]
        %v5776 = vld [vmem:[%s6 + $0x410] sm:$0xff]
        %v5777 = vld [vmem:[%s6 + $0x418] sm:$0xff]
        %v5778 = vld [vmem:[%s6 + $0x420] sm:$0xff]
        %v5779 = vld [vmem:[%s6 + $0x428] sm:$0xff]
        %v5780 = vld [vmem:[%s6 + $0x430] sm:$0xff]
        %v5781 = vld [vmem:[%s6 + $0x438] sm:$0xff]
        %v5782 = vld [vmem:[%s6 + $0x440] sm:$0xff]
        %v5783 = vld [vmem:[%s6 + $0x448] sm:$0xff]
        %v5784 = vld [vmem:[%s6 + $0x450] sm:$0xff]
        %v5785 = vld [vmem:[%s6 + $0x458] sm:$0xff]
        %v5786 = vld [vmem:[%s6 + $0x460] sm:$0xff]
        %v5787 = vld [vmem:[%s6 + $0x468] sm:$0xff]
        %v5788 = vld [vmem:[%s6 + $0x470] sm:$0xff]
        %v5789 = vld [vmem:[%s6 + $0x478] sm:$0xff]
        %v5790 = vld [vmem:[%s6 + $0x480] sm:$0xff]
        %v5791 = vld [vmem:[%s6 + $0x488] sm:$0xff]
        %v5792 = vld [vmem:[%s6 + $0x490] sm:$0xff]
        %v5793 = vld [vmem:[%s6 + $0x498] sm:$0xff]
        %v5794 = vld [vmem:[%s6 + $0x4a0] sm:$0xff]
        %v5795 = vld [vmem:[%s6 + $0x4a8] sm:$0xff]
        %v5796 = vld [vmem:[%s6 + $0x4b0] sm:$0xff]
        %v5797 = vld [vmem:[%s6 + $0x4b8] sm:$0xff]
        %v5798 = vld [vmem:[%s6 + $0x4c0] sm:$0xff]
        %v5799 = vld [vmem:[%s6 + $0x4c8] sm:$0xff]
        %v5800 = vld [vmem:[%s6 + $0x4d0] sm:$0xff]
        %v5801 = vld [vmem:[%s6 + $0x4d8] sm:$0xff]
        %v5802 = vld [vmem:[%s6 + $0x4e0] sm:$0xff]
        %v5803 = vld [vmem:[%s6 + $0x4e8] sm:$0xff]
        %v5804 = vld [vmem:[%s6 + $0x4f0] sm:$0xff]
        %v5805 = vld [vmem:[%s6 + $0x4f8] sm:$0xff]
        %v5806 = vld [vmem:[%s6 + $0x500] sm:$0xff]
        %v5807 = vld [vmem:[%s6 + $0x508] sm:$0xff]
        %v5808 = vld [vmem:[%s6 + $0x510] sm:$0xff]
        %v5809 = vld [vmem:[%s6 + $0x518] sm:$0xff]
        %v5810 = vld [vmem:[%s6 + $0x520] sm:$0xff]
        %v5811 = vld [vmem:[%s6 + $0x528] sm:$0xff]
        %v5812 = vld [vmem:[%s6 + $0x530] sm:$0xff]
        %v5813 = vld [vmem:[%s6 + $0x538] sm:$0xff]
        %v5814 = vld [vmem:[%s6 + $0x540] sm:$0xff]
        %v5815 = vld [vmem:[%s6 + $0x548] sm:$0xff]
        %v5816 = vld [vmem:[%s6 + $0x550] sm:$0xff]
        %v5817 = vld [vmem:[%s6 + $0x558] sm:$0xff]
        %v5818 = vld [vmem:[%s6 + $0x560] sm:$0xff]
        %v5819 = vld [vmem:[%s6 + $0x568] sm:$0xff]
        %v5820 = vld [vmem:[%s6 + $0x570] sm:$0xff]
        %v5821 = vld [vmem:[%s6 + $0x578] sm:$0xff]
        %v5822 = vld [vmem:[%s6 + $0x580] sm:$0xff]
        %v5823 = vld [vmem:[%s6 + $0x588] sm:$0xff]
        %v5824 = vld [vmem:[%s6 + $0x590] sm:$0xff]
        %v5825 = vld [vmem:[%s6 + $0x598] sm:$0xff]
        %v5826 = vrot.slane %v5291, 2
        %v5827 = vsel %vm5355, %v5826, 0
        %5829 = vmatprep.subr.mxu0 %v5767
        %5830 = vmatpush1.msra.mxu0 %v5766
        %5831 = vmatprep.subr.mxu0 %v5771
        %5832 = vmatpush1.msra.mxu0 %v5770
        %5833 = vmatprep.subr.mxu0 %v5775
        %5834 = vmatpush1.msra.mxu0 %v5774
        %5835 = vmatprep.subr.mxu0 %v5779
        %5836 = vmatpush1.msra.mxu0 %v5778
        %5837 = vmatprep.subr.mxu0 %v5783
        %5838 = vmatpush1.msra.mxu0 %v5782
        %5839 = vmatprep.subr.mxu0 %v5787
        %5840 = vmatpush1.msra.mxu0 %v5786
        %5841 = vmatprep.subr.mxu0 %v5791
        %5842 = vmatpush1.msra.mxu0 %v5790
        %5843 = vmatprep.subr.mxu0 %v5795
        %5844 = vmatpush1.msra.mxu0 %v5794
        %5845 = vmatprep.subr.mxu0 %v5799
        %5846 = vmatpush1.msra.mxu0 %v5798
        %5847 = vmatprep.subr.mxu0 %v5803
        %5848 = vmatpush1.msra.mxu0 %v5802
        %5849 = vmatprep.subr.mxu0 %v5807
        %5850 = vmatpush1.msra.mxu0 %v5806
        %5851 = vmatprep.subr.mxu0 %v5811
        %5852 = vmatpush1.msra.mxu0 %v5810
        %5853 = vmatprep.subr.mxu0 %v5815
        %5854 = vmatpush1.msra.mxu0 %v5814
        %5855 = vmatprep.subr.mxu0 %v5819
        %5856 = vmatpush1.msra.mxu0 %v5818
        %5857 = vmatprep.subr.mxu0 %v5823
        %5858 = vmatpush1.msra.mxu0 %v5822
        %5859 = vmatprep.subr.mxu0 0.0
        %5860 = vmatpush1.msra.mxu0 0.0
        %5861 = vmatprep.subr.mxu0 0.0
        %5862 = vmatpush1.msra.mxu0 0.0
        %5863 = vmatprep.subr.mxu0 0.0
        %5864 = vmatpush1.msra.mxu0 0.0
        %5865 = vmatprep.subr.mxu0 0.0
        %5866 = vmatpush1.msra.mxu0 0.0
        %5867 = vmatprep.subr.mxu0 0.0
        %5868 = vmatpush1.msra.mxu0 0.0
        %5869 = vmatprep.subr.mxu0 0.0
        %5870 = vmatpush1.msra.mxu0 0.0
        %5871 = vmatprep.subr.mxu0 0.0
        %5872 = vmatpush1.msra.mxu0 0.0
        %5873 = vmatprep.subr.mxu0 0.0
        %5874 = vmatpush1.msra.mxu0 0.0
        %5875 = vmatprep.subr.mxu0 0.0
        %5876 = vmatpush1.msra.mxu0 0.0
        %5877 = vmatprep.subr.mxu0 0.0
        %5878 = vmatpush1.msra.mxu0 0.0
        %5879 = vmatprep.subr.mxu0 0.0
        %5880 = vmatpush1.msra.mxu0 0.0
        %5881 = vmatprep.subr.mxu0 0.0
        %5882 = vmatpush1.msra.mxu0 0.0
        %5883 = vmatprep.subr.mxu0 0.0
        %5884 = vmatpush1.msra.mxu0 0.0
        %5885 = vmatprep.subr.mxu0 0.0
        %5886 = vmatpush1.msra.mxu0 0.0
        %5887 = vmatprep.subr.mxu0 0.0
        %5888 = vmatpush1.msra.mxu0 0.0
        %5889 = vmatprep.subr.mxu0 0.0
        %5890 = vmatpush1.msra.mxu0 0.0
        %5891 = vmatprep.subr.mxu0 0.0
        %5892 = vmatpush1.msra.mxu0 0.0
        %5893 = vmatprep.mubr.f32.mxu0 0.0
        %5894 = vmatmul.mubr.f32.gmra.mrb[0].mxu0 %v5827
        %v5895 = vpop.f32.mrb[0].mxu0
        %v5896 = vadd.f32 0.0, %v5895
        %v5897 = vpop.f32.mrb[0].mxu0
        %v5898 = vadd.f32 0.0, %v5897
        %5899 = vdwg.mxu0
        %5900 = vmatprep.subr.mxu0 %v5769
        %5901 = vmatpush1.msra.mxu0 %v5768
        %5902 = vmatprep.subr.mxu0 %v5773
        %5903 = vmatpush1.msra.mxu0 %v5772
        %5904 = vmatprep.subr.mxu0 %v5777
        %5905 = vmatpush1.msra.mxu0 %v5776
        %5906 = vmatprep.subr.mxu0 %v5781
        %5907 = vmatpush1.msra.mxu0 %v5780
        %5908 = vmatprep.subr.mxu0 %v5785
        %5909 = vmatpush1.msra.mxu0 %v5784
        %5910 = vmatprep.subr.mxu0 %v5789
        %5911 = vmatpush1.msra.mxu0 %v5788
        %5912 = vmatprep.subr.mxu0 %v5793
        %5913 = vmatpush1.msra.mxu0 %v5792
        %5914 = vmatprep.subr.mxu0 %v5797
        %5915 = vmatpush1.msra.mxu0 %v5796
        %5916 = vmatprep.subr.mxu0 %v5801
        %5917 = vmatpush1.msra.mxu0 %v5800
        %5918 = vmatprep.subr.mxu0 %v5805
        %5919 = vmatpush1.msra.mxu0 %v5804
        %5920 = vmatprep.subr.mxu0 %v5809
        %5921 = vmatpush1.msra.mxu0 %v5808
        %5922 = vmatprep.subr.mxu0 %v5813
        %5923 = vmatpush1.msra.mxu0 %v5812
        %5924 = vmatprep.subr.mxu0 %v5817
        %5925 = vmatpush1.msra.mxu0 %v5816
        %5926 = vmatprep.subr.mxu0 %v5821
        %5927 = vmatpush1.msra.mxu0 %v5820
        %5928 = vmatprep.subr.mxu0 %v5825
        %5929 = vmatpush1.msra.mxu0 %v5824
        %5930 = vmatprep.subr.mxu0 0.0
        %5931 = vmatpush1.msra.mxu0 0.0
        %5932 = vmatprep.subr.mxu0 0.0
        %5933 = vmatpush1.msra.mxu0 0.0
        %5934 = vmatprep.subr.mxu0 0.0
        %5935 = vmatpush1.msra.mxu0 0.0
        %5936 = vmatprep.subr.mxu0 0.0
        %5937 = vmatpush1.msra.mxu0 0.0
        %5938 = vmatprep.subr.mxu0 0.0
        %5939 = vmatpush1.msra.mxu0 0.0
        %5940 = vmatprep.subr.mxu0 0.0
        %5941 = vmatpush1.msra.mxu0 0.0
        %5942 = vmatprep.subr.mxu0 0.0
        %5943 = vmatpush1.msra.mxu0 0.0
        %5944 = vmatprep.subr.mxu0 0.0
        %5945 = vmatpush1.msra.mxu0 0.0
        %5946 = vmatprep.subr.mxu0 0.0
        %5947 = vmatpush1.msra.mxu0 0.0
        %5948 = vmatprep.subr.mxu0 0.0
        %5949 = vmatpush1.msra.mxu0 0.0
        %5950 = vmatprep.subr.mxu0 0.0
        %5951 = vmatpush1.msra.mxu0 0.0
        %5952 = vmatprep.subr.mxu0 0.0
        %5953 = vmatpush1.msra.mxu0 0.0
        %5954 = vmatprep.subr.mxu0 0.0
        %5955 = vmatpush1.msra.mxu0 0.0
        %5956 = vmatprep.subr.mxu0 0.0
        %5957 = vmatpush1.msra.mxu0 0.0
        %5958 = vmatprep.subr.mxu0 0.0
        %5959 = vmatpush1.msra.mxu0 0.0
        %5960 = vmatprep.subr.mxu0 0.0
        %5961 = vmatpush1.msra.mxu0 0.0
        %5962 = vmatprep.subr.mxu0 0.0
        %5963 = vmatpush1.msra.mxu0 0.0
        %5964 = vmatprep.mubr.f32.mxu0 0.0
        %5965 = vmatmul.mubr.f32.gmra.mrb[0].mxu0 %v5827
        %v5966 = vpop.f32.mrb[0].mxu0
        %v5967 = vadd.f32 0.0, %v5966
        %v5968 = vpop.f32.mrb[0].mxu0
        %v5969 = vadd.f32 0.0, %v5968
        %5970 = vdwg.mxu0
        %v5975 = vcombine.low %v5896, %v5898
        %v5976 = vcombine.low %v5967, %v5969
        %v5978 = vunpack.c.l.s4 1966171168
        %v5979 = vunpack.c.0.s8 %v5978
        %v5980 = vlaneseq
        %v5981 = vshrl.u32 %v5980, 7
        %v5982 = vsub.s32 %v5979, %v5981
        %v5983 = vrot.slane %v5975, %v5982
        %v5985 = vunpack.c.l.s4 1966171168
        %v5986 = vunpack.c.0.s8 %v5985
        %v5987 = vlaneseq
        %v5988 = vshrl.u32 %v5987, 7
        %v5989 = vsub.s32 %v5986, %v5988
        %v5990 = vrot.slane %v5976, %v5989
        %v5991 = vcombine.low %v5983, %v5990
        %v5993 = vunpack.c.l.s4 1966171168
        %v5994 = vunpack.c.0.s8 %v5993
        %v5995 = vlaneseq
        %v5996 = vshrl.u32 %v5995, 7
        %v5997 = vsub.s32 %v5994, %v5996
        %v5998 = vrot.slane %v5991, %v5997
        %v6000 = vadd.f32 %v5765, %v5998
        %v6001 = vld [vmem:[%s6 + $0x5a0] sm:$0xff]
        %v6002 = vld [vmem:[%s6 + $0x5a8] sm:$0xff]
        %v6003 = vld [vmem:[%s6 + $0x5b0] sm:$0xff]
        %v6004 = vld [vmem:[%s6 + $0x5b8] sm:$0xff]
        %v6005 = vld [vmem:[%s6 + $0x5c0] sm:$0xff]
        %v6006 = vld [vmem:[%s6 + $0x5c8] sm:$0xff]
        %v6007 = vld [vmem:[%s6 + $0x5d0] sm:$0xff]
        %v6008 = vld [vmem:[%s6 + $0x5d8] sm:$0xff]
        %v6009 = vld [vmem:[%s6 + $0x5e0] sm:$0xff]
        %v6010 = vld [vmem:[%s6 + $0x5e8] sm:$0xff]
        %v6011 = vld [vmem:[%s6 + $0x5f0] sm:$0xff]
        %v6012 = vld [vmem:[%s6 + $0x5f8] sm:$0xff]
        %v6013 = vld [vmem:[%s6 + $0x600] sm:$0xff]
        %v6014 = vld [vmem:[%s6 + $0x608] sm:$0xff]
        %v6015 = vld [vmem:[%s6 + $0x610] sm:$0xff]
        %v6016 = vld [vmem:[%s6 + $0x618] sm:$0xff]
        %v6017 = vld [vmem:[%s6 + $0x620] sm:$0xff]
        %v6018 = vld [vmem:[%s6 + $0x628] sm:$0xff]
        %v6019 = vld [vmem:[%s6 + $0x630] sm:$0xff]
        %v6020 = vld [vmem:[%s6 + $0x638] sm:$0xff]
        %v6021 = vld [vmem:[%s6 + $0x640] sm:$0xff]
        %v6022 = vld [vmem:[%s6 + $0x648] sm:$0xff]
        %v6023 = vld [vmem:[%s6 + $0x650] sm:$0xff]
        %v6024 = vld [vmem:[%s6 + $0x658] sm:$0xff]
        %v6025 = vld [vmem:[%s6 + $0x660] sm:$0xff]
        %v6026 = vld [vmem:[%s6 + $0x668] sm:$0xff]
        %v6027 = vld [vmem:[%s6 + $0x670] sm:$0xff]
        %v6028 = vld [vmem:[%s6 + $0x678] sm:$0xff]
        %v6029 = vld [vmem:[%s6 + $0x680] sm:$0xff]
        %v6030 = vld [vmem:[%s6 + $0x688] sm:$0xff]
        %v6031 = vld [vmem:[%s6 + $0x690] sm:$0xff]
        %v6032 = vld [vmem:[%s6 + $0x698] sm:$0xff]
        %v6033 = vld [vmem:[%s6 + $0x6a0] sm:$0xff]
        %v6034 = vld [vmem:[%s6 + $0x6a8] sm:$0xff]
        %v6035 = vld [vmem:[%s6 + $0x6b0] sm:$0xff]
        %v6036 = vld [vmem:[%s6 + $0x6b8] sm:$0xff]
        %v6037 = vld [vmem:[%s6 + $0x6c0] sm:$0xff]
        %v6038 = vld [vmem:[%s6 + $0x6c8] sm:$0xff]
        %v6039 = vld [vmem:[%s6 + $0x6d0] sm:$0xff]
        %v6040 = vld [vmem:[%s6 + $0x6d8] sm:$0xff]
        %v6041 = vld [vmem:[%s6 + $0x6e0] sm:$0xff]
        %v6042 = vld [vmem:[%s6 + $0x6e8] sm:$0xff]
        %v6043 = vld [vmem:[%s6 + $0x6f0] sm:$0xff]
        %v6044 = vld [vmem:[%s6 + $0x6f8] sm:$0xff]
        %v6045 = vld [vmem:[%s6 + $0x700] sm:$0xff]
        %v6046 = vld [vmem:[%s6 + $0x708] sm:$0xff]
        %v6047 = vld [vmem:[%s6 + $0x710] sm:$0xff]
        %v6048 = vld [vmem:[%s6 + $0x718] sm:$0xff]
        %v6049 = vld [vmem:[%s6 + $0x720] sm:$0xff]
        %v6050 = vld [vmem:[%s6 + $0x728] sm:$0xff]
        %v6051 = vld [vmem:[%s6 + $0x730] sm:$0xff]
        %v6052 = vld [vmem:[%s6 + $0x738] sm:$0xff]
        %v6053 = vld [vmem:[%s6 + $0x740] sm:$0xff]
        %v6054 = vld [vmem:[%s6 + $0x748] sm:$0xff]
        %v6055 = vld [vmem:[%s6 + $0x750] sm:$0xff]
        %v6056 = vld [vmem:[%s6 + $0x758] sm:$0xff]
        %v6057 = vld [vmem:[%s6 + $0x760] sm:$0xff]
        %v6058 = vld [vmem:[%s6 + $0x768] sm:$0xff]
        %v6059 = vld [vmem:[%s6 + $0x770] sm:$0xff]
        %v6060 = vld [vmem:[%s6 + $0x778] sm:$0xff]
        %v6061 = vrot.slane %v5291, 3
        %v6062 = vsel %vm5355, %v6061, 0
        %6064 = vmatprep.subr.mxu0 %v6002
        %6065 = vmatpush1.msra.mxu0 %v6001
        %6066 = vmatprep.subr.mxu0 %v6006
        %6067 = vmatpush1.msra.mxu0 %v6005
        %6068 = vmatprep.subr.mxu0 %v6010
        %6069 = vmatpush1.msra.mxu0 %v6009
        %6070 = vmatprep.subr.mxu0 %v6014
        %6071 = vmatpush1.msra.mxu0 %v6013
        %6072 = vmatprep.subr.mxu0 %v6018
        %6073 = vmatpush1.msra.mxu0 %v6017
        %6074 = vmatprep.subr.mxu0 %v6022
        %6075 = vmatpush1.msra.mxu0 %v6021
        %6076 = vmatprep.subr.mxu0 %v6026
        %6077 = vmatpush1.msra.mxu0 %v6025
        %6078 = vmatprep.subr.mxu0 %v6030
        %6079 = vmatpush1.msra.mxu0 %v6029
        %6080 = vmatprep.subr.mxu0 %v6034
        %6081 = vmatpush1.msra.mxu0 %v6033
        %6082 = vmatprep.subr.mxu0 %v6038
        %6083 = vmatpush1.msra.mxu0 %v6037
        %6084 = vmatprep.subr.mxu0 %v6042
        %6085 = vmatpush1.msra.mxu0 %v6041
        %6086 = vmatprep.subr.mxu0 %v6046
        %6087 = vmatpush1.msra.mxu0 %v6045
        %6088 = vmatprep.subr.mxu0 %v6050
        %6089 = vmatpush1.msra.mxu0 %v6049
        %6090 = vmatprep.subr.mxu0 %v6054
        %6091 = vmatpush1.msra.mxu0 %v6053
        %6092 = vmatprep.subr.mxu0 %v6058
        %6093 = vmatpush1.msra.mxu0 %v6057
        %6094 = vmatprep.subr.mxu0 0.0
        %6095 = vmatpush1.msra.mxu0 0.0
        %6096 = vmatprep.subr.mxu0 0.0
        %6097 = vmatpush1.msra.mxu0 0.0
        %6098 = vmatprep.subr.mxu0 0.0
        %6099 = vmatpush1.msra.mxu0 0.0
        %6100 = vmatprep.subr.mxu0 0.0
        %6101 = vmatpush1.msra.mxu0 0.0
        %6102 = vmatprep.subr.mxu0 0.0
        %6103 = vmatpush1.msra.mxu0 0.0
        %6104 = vmatprep.subr.mxu0 0.0
        %6105 = vmatpush1.msra.mxu0 0.0
        %6106 = vmatprep.subr.mxu0 0.0
        %6107 = vmatpush1.msra.mxu0 0.0
        %6108 = vmatprep.subr.mxu0 0.0
        %6109 = vmatpush1.msra.mxu0 0.0
        %6110 = vmatprep.subr.mxu0 0.0
        %6111 = vmatpush1.msra.mxu0 0.0
        %6112 = vmatprep.subr.mxu0 0.0
        %6113 = vmatpush1.msra.mxu0 0.0
        %6114 = vmatprep.subr.mxu0 0.0
        %6115 = vmatpush1.msra.mxu0 0.0
        %6116 = vmatprep.subr.mxu0 0.0
        %6117 = vmatpush1.msra.mxu0 0.0
        %6118 = vmatprep.subr.mxu0 0.0
        %6119 = vmatpush1.msra.mxu0 0.0
        %6120 = vmatprep.subr.mxu0 0.0
        %6121 = vmatpush1.msra.mxu0 0.0
        %6122 = vmatprep.subr.mxu0 0.0
        %6123 = vmatpush1.msra.mxu0 0.0
        %6124 = vmatprep.subr.mxu0 0.0
        %6125 = vmatpush1.msra.mxu0 0.0
        %6126 = vmatprep.subr.mxu0 0.0
        %6127 = vmatpush1.msra.mxu0 0.0
        %6128 = vmatprep.mubr.f32.mxu0 0.0
        %6129 = vmatmul.mubr.f32.gmra.mrb[0].mxu0 %v6062
        %v6130 = vpop.f32.mrb[0].mxu0
        %v6131 = vadd.f32 0.0, %v6130
        %v6132 = vpop.f32.mrb[0].mxu0
        %v6133 = vadd.f32 0.0, %v6132
        %6134 = vdwg.mxu0
        %6135 = vmatprep.subr.mxu0 %v6004
        %6136 = vmatpush1.msra.mxu0 %v6003
        %6137 = vmatprep.subr.mxu0 %v6008
        %6138 = vmatpush1.msra.mxu0 %v6007
        %6139 = vmatprep.subr.mxu0 %v6012
        %6140 = vmatpush1.msra.mxu0 %v6011
        %6141 = vmatprep.subr.mxu0 %v6016
        %6142 = vmatpush1.msra.mxu0 %v6015
        %6143 = vmatprep.subr.mxu0 %v6020
        %6144 = vmatpush1.msra.mxu0 %v6019
        %6145 = vmatprep.subr.mxu0 %v6024
        %6146 = vmatpush1.msra.mxu0 %v6023
        %6147 = vmatprep.subr.mxu0 %v6028
        %6148 = vmatpush1.msra.mxu0 %v6027
        %6149 = vmatprep.subr.mxu0 %v6032
        %6150 = vmatpush1.msra.mxu0 %v6031
        %6151 = vmatprep.subr.mxu0 %v6036
        %6152 = vmatpush1.msra.mxu0 %v6035
        %6153 = vmatprep.subr.mxu0 %v6040
        %6154 = vmatpush1.msra.mxu0 %v6039
        %6155 = vmatprep.subr.mxu0 %v6044
        %6156 = vmatpush1.msra.mxu0 %v6043
        %6157 = vmatprep.subr.mxu0 %v6048
        %6158 = vmatpush1.msra.mxu0 %v6047
        %6159 = vmatprep.subr.mxu0 %v6052
        %6160 = vmatpush1.msra.mxu0 %v6051
        %6161 = vmatprep.subr.mxu0 %v6056
        %6162 = vmatpush1.msra.mxu0 %v6055
        %6163 = vmatprep.subr.mxu0 %v6060
        %6164 = vmatpush1.msra.mxu0 %v6059
        %6165 = vmatprep.subr.mxu0 0.0
        %6166 = vmatpush1.msra.mxu0 0.0
        %6167 = vmatprep.subr.mxu0 0.0
        %6168 = vmatpush1.msra.mxu0 0.0
        %6169 = vmatprep.subr.mxu0 0.0
        %6170 = vmatpush1.msra.mxu0 0.0
        %6171 = vmatprep.subr.mxu0 0.0
        %6172 = vmatpush1.msra.mxu0 0.0
        %6173 = vmatprep.subr.mxu0 0.0
        %6174 = vmatpush1.msra.mxu0 0.0
        %6175 = vmatprep.subr.mxu0 0.0
        %6176 = vmatpush1.msra.mxu0 0.0
        %6177 = vmatprep.subr.mxu0 0.0
        %6178 = vmatpush1.msra.mxu0 0.0
        %6179 = vmatprep.subr.mxu0 0.0
        %6180 = vmatpush1.msra.mxu0 0.0
        %6181 = vmatprep.subr.mxu0 0.0
        %6182 = vmatpush1.msra.mxu0 0.0
        %6183 = vmatprep.subr.mxu0 0.0
        %6184 = vmatpush1.msra.mxu0 0.0
        %6185 = vmatprep.subr.mxu0 0.0
        %6186 = vmatpush1.msra.mxu0 0.0
        %6187 = vmatprep.subr.mxu0 0.0
        %6188 = vmatpush1.msra.mxu0 0.0
        %6189 = vmatprep.subr.mxu0 0.0
        %6190 = vmatpush1.msra.mxu0 0.0
        %6191 = vmatprep.subr.mxu0 0.0
        %6192 = vmatpush1.msra.mxu0 0.0
        %6193 = vmatprep.subr.mxu0 0.0
        %6194 = vmatpush1.msra.mxu0 0.0
        %6195 = vmatprep.subr.mxu0 0.0
        %6196 = vmatpush1.msra.mxu0 0.0
        %6197 = vmatprep.subr.mxu0 0.0
        %6198 = vmatpush1.msra.mxu0 0.0
        %6199 = vmatprep.mubr.f32.mxu0 0.0
        %6200 = vmatmul.mubr.f32.gmra.mrb[0].mxu0 %v6062
        %v6201 = vpop.f32.mrb[0].mxu0
        %v6202 = vadd.f32 0.0, %v6201
        %v6203 = vpop.f32.mrb[0].mxu0
        %v6204 = vadd.f32 0.0, %v6203
        %6205 = vdwg.mxu0
        %v6210 = vcombine.low %v6131, %v6133
        %v6211 = vcombine.low %v6202, %v6204
        %v6213 = vunpack.c.l.s4 1966171168
        %v6214 = vunpack.c.0.s8 %v6213
        %v6215 = vlaneseq
        %v6216 = vshrl.u32 %v6215, 7
        %v6217 = vsub.s32 %v6214, %v6216
        %v6218 = vrot.slane %v6210, %v6217
        %v6220 = vunpack.c.l.s4 1966171168
        %v6221 = vunpack.c.0.s8 %v6220
        %v6222 = vlaneseq
        %v6223 = vshrl.u32 %v6222, 7
        %v6224 = vsub.s32 %v6221, %v6223
        %v6225 = vrot.slane %v6211, %v6224
        %v6226 = vcombine.low %v6218, %v6225
        %v6228 = vunpack.c.l.s4 1966171168
        %v6229 = vunpack.c.0.s8 %v6228
        %v6230 = vlaneseq
        %v6231 = vshrl.u32 %v6230, 7
        %v6232 = vsub.s32 %v6229, %v6231
        %v6233 = vrot.slane %v6226, %v6232
        %v6235 = vadd.f32 %v6000, %v6233
        %v6236 = vld [vmem:[%s6 + $0x780] sm:$0xff]
        %v6237 = vld [vmem:[%s6 + $0x788] sm:$0xff]
        %v6238 = vld [vmem:[%s6 + $0x790] sm:$0xff]
        %v6239 = vld [vmem:[%s6 + $0x798] sm:$0xff]
        %v6240 = vld [vmem:[%s6 + $0x7a0] sm:$0xff]
        %v6241 = vld [vmem:[%s6 + $0x7a8] sm:$0xff]
        %v6242 = vld [vmem:[%s6 + $0x7b0] sm:$0xff]
        %v6243 = vld [vmem:[%s6 + $0x7b8] sm:$0xff]
        %v6244 = vld [vmem:[%s6 + $0x7c0] sm:$0xff]
        %v6245 = vld [vmem:[%s6 + $0x7c8] sm:$0xff]
        %v6246 = vld [vmem:[%s6 + $0x7d0] sm:$0xff]
        %v6247 = vld [vmem:[%s6 + $0x7d8] sm:$0xff]
        %v6248 = vld [vmem:[%s6 + $0x7e0] sm:$0xff]
        %v6249 = vld [vmem:[%s6 + $0x7e8] sm:$0xff]
        %v6250 = vld [vmem:[%s6 + $0x7f0] sm:$0xff]
        %v6251 = vld [vmem:[%s6 + $0x7f8] sm:$0xff]
        %v6252 = vld [vmem:[%s6 + $0x800] sm:$0xff]
        %v6253 = vld [vmem:[%s6 + $0x808] sm:$0xff]
        %v6254 = vld [vmem:[%s6 + $0x810] sm:$0xff]
        %v6255 = vld [vmem:[%s6 + $0x818] sm:$0xff]
        %v6256 = vld [vmem:[%s6 + $0x820] sm:$0xff]
        %v6257 = vld [vmem:[%s6 + $0x828] sm:$0xff]
        %v6258 = vld [vmem:[%s6 + $0x830] sm:$0xff]
        %v6259 = vld [vmem:[%s6 + $0x838] sm:$0xff]
        %v6260 = vld [vmem:[%s6 + $0x840] sm:$0xff]
        %v6261 = vld [vmem:[%s6 + $0x848] sm:$0xff]
        %v6262 = vld [vmem:[%s6 + $0x850] sm:$0xff]
        %v6263 = vld [vmem:[%s6 + $0x858] sm:$0xff]
        %v6264 = vld [vmem:[%s6 + $0x860] sm:$0xff]
        %v6265 = vld [vmem:[%s6 + $0x868] sm:$0xff]
        %v6266 = vld [vmem:[%s6 + $0x870] sm:$0xff]
        %v6267 = vld [vmem:[%s6 + $0x878] sm:$0xff]
        %v6268 = vld [vmem:[%s6 + $0x880] sm:$0xff]
        %v6269 = vld [vmem:[%s6 + $0x888] sm:$0xff]
        %v6270 = vld [vmem:[%s6 + $0x890] sm:$0xff]
        %v6271 = vld [vmem:[%s6 + $0x898] sm:$0xff]
        %v6272 = vld [vmem:[%s6 + $0x8a0] sm:$0xff]
        %v6273 = vld [vmem:[%s6 + $0x8a8] sm:$0xff]
        %v6274 = vld [vmem:[%s6 + $0x8b0] sm:$0xff]
        %v6275 = vld [vmem:[%s6 + $0x8b8] sm:$0xff]
        %v6276 = vld [vmem:[%s6 + $0x8c0] sm:$0xff]
        %v6277 = vld [vmem:[%s6 + $0x8c8] sm:$0xff]
        %v6278 = vld [vmem:[%s6 + $0x8d0] sm:$0xff]
        %v6279 = vld [vmem:[%s6 + $0x8d8] sm:$0xff]
        %v6280 = vld [vmem:[%s6 + $0x8e0] sm:$0xff]
        %v6281 = vld [vmem:[%s6 + $0x8e8] sm:$0xff]
        %v6282 = vld [vmem:[%s6 + $0x8f0] sm:$0xff]
        %v6283 = vld [vmem:[%s6 + $0x8f8] sm:$0xff]
        %v6284 = vld [vmem:[%s6 + $0x900] sm:$0xff]
        %v6285 = vld [vmem:[%s6 + $0x908] sm:$0xff]
        %v6286 = vld [vmem:[%s6 + $0x910] sm:$0xff]
        %v6287 = vld [vmem:[%s6 + $0x918] sm:$0xff]
        %v6288 = vld [vmem:[%s6 + $0x920] sm:$0xff]
        %v6289 = vld [vmem:[%s6 + $0x928] sm:$0xff]
        %v6290 = vld [vmem:[%s6 + $0x930] sm:$0xff]
        %v6291 = vld [vmem:[%s6 + $0x938] sm:$0xff]
        %v6292 = vld [vmem:[%s6 + $0x940] sm:$0xff]
        %v6293 = vld [vmem:[%s6 + $0x948] sm:$0xff]
        %v6294 = vld [vmem:[%s6 + $0x950] sm:$0xff]
        %v6295 = vld [vmem:[%s6 + $0x958] sm:$0xff]
        %v6296 = vrot.slane %v5291, 4
        %v6297 = vsel %vm5355, %v6296, 0
        %6299 = vmatprep.subr.mxu0 %v6237
        %6300 = vmatpush1.msra.mxu0 %v6236
        %6301 = vmatprep.subr.mxu0 %v6241
        %6302 = vmatpush1.msra.mxu0 %v6240
        %6303 = vmatprep.subr.mxu0 %v6245
        %6304 = vmatpush1.msra.mxu0 %v6244
        %6305 = vmatprep.subr.mxu0 %v6249
        %6306 = vmatpush1.msra.mxu0 %v6248
        %6307 = vmatprep.subr.mxu0 %v6253
        %6308 = vmatpush1.msra.mxu0 %v6252
        %6309 = vmatprep.subr.mxu0 %v6257
        %6310 = vmatpush1.msra.mxu0 %v6256
        %6311 = vmatprep.subr.mxu0 %v6261
        %6312 = vmatpush1.msra.mxu0 %v6260
        %6313 = vmatprep.subr.mxu0 %v6265
        %6314 = vmatpush1.msra.mxu0 %v6264
        %6315 = vmatprep.subr.mxu0 %v6269
        %6316 = vmatpush1.msra.mxu0 %v6268
        %6317 = vmatprep.subr.mxu0 %v6273
        %6318 = vmatpush1.msra.mxu0 %v6272
        %6319 = vmatprep.subr.mxu0 %v6277
        %6320 = vmatpush1.msra.mxu0 %v6276
        %6321 = vmatprep.subr.mxu0 %v6281
        %6322 = vmatpush1.msra.mxu0 %v6280
        %6323 = vmatprep.subr.mxu0 %v6285
        %6324 = vmatpush1.msra.mxu0 %v6284
        %6325 = vmatprep.subr.mxu0 %v6289
        %6326 = vmatpush1.msra.mxu0 %v6288
        %6327 = vmatprep.subr.mxu0 %v6293
        %6328 = vmatpush1.msra.mxu0 %v6292
        %6329 = vmatprep.subr.mxu0 0.0
        %6330 = vmatpush1.msra.mxu0 0.0
        %6331 = vmatprep.subr.mxu0 0.0
        %6332 = vmatpush1.msra.mxu0 0.0
        %6333 = vmatprep.subr.mxu0 0.0
        %6334 = vmatpush1.msra.mxu0 0.0
        %6335 = vmatprep.subr.mxu0 0.0
        %6336 = vmatpush1.msra.mxu0 0.0
        %6337 = vmatprep.subr.mxu0 0.0
        %6338 = vmatpush1.msra.mxu0 0.0
        %6339 = vmatprep.subr.mxu0 0.0
        %6340 = vmatpush1.msra.mxu0 0.0
        %6341 = vmatprep.subr.mxu0 0.0
        %6342 = vmatpush1.msra.mxu0 0.0
        %6343 = vmatprep.subr.mxu0 0.0
        %6344 = vmatpush1.msra.mxu0 0.0
        %6345 = vmatprep.subr.mxu0 0.0
        %6346 = vmatpush1.msra.mxu0 0.0
        %6347 = vmatprep.subr.mxu0 0.0
        %6348 = vmatpush1.msra.mxu0 0.0
        %6349 = vmatprep.subr.mxu0 0.0
        %6350 = vmatpush1.msra.mxu0 0.0
        %6351 = vmatprep.subr.mxu0 0.0
        %6352 = vmatpush1.msra.mxu0 0.0
        %6353 = vmatprep.subr.mxu0 0.0
        %6354 = vmatpush1.msra.mxu0 0.0
        %6355 = vmatprep.subr.mxu0 0.0
        %6356 = vmatpush1.msra.mxu0 0.0
        %6357 = vmatprep.subr.mxu0 0.0
        %6358 = vmatpush1.msra.mxu0 0.0
        %6359 = vmatprep.subr.mxu0 0.0
        %6360 = vmatpush1.msra.mxu0 0.0
        %6361 = vmatprep.subr.mxu0 0.0
        %6362 = vmatpush1.msra.mxu0 0.0
        %6363 = vmatprep.mubr.f32.mxu0 0.0
        %6364 = vmatmul.mubr.f32.gmra.mrb[0].mxu0 %v6297
        %v6365 = vpop.f32.mrb[0].mxu0
        %v6366 = vadd.f32 0.0, %v6365
        %v6367 = vpop.f32.mrb[0].mxu0
        %v6368 = vadd.f32 0.0, %v6367
        %6369 = vdwg.mxu0
        %6370 = vmatprep.subr.mxu0 %v6239
        %6371 = vmatpush1.msra.mxu0 %v6238
        %6372 = vmatprep.subr.mxu0 %v6243
        %6373 = vmatpush1.msra.mxu0 %v6242
        %6374 = vmatprep.subr.mxu0 %v6247
        %6375 = vmatpush1.msra.mxu0 %v6246
        %6376 = vmatprep.subr.mxu0 %v6251
        %6377 = vmatpush1.msra.mxu0 %v6250
        %6378 = vmatprep.subr.mxu0 %v6255
        %6379 = vmatpush1.msra.mxu0 %v6254
        %6380 = vmatprep.subr.mxu0 %v6259
        %6381 = vmatpush1.msra.mxu0 %v6258
        %6382 = vmatprep.subr.mxu0 %v6263
        %6383 = vmatpush1.msra.mxu0 %v6262
        %6384 = vmatprep.subr.mxu0 %v6267
        %6385 = vmatpush1.msra.mxu0 %v6266
        %6386 = vmatprep.subr.mxu0 %v6271
        %6387 = vmatpush1.msra.mxu0 %v6270
        %6388 = vmatprep.subr.mxu0 %v6275
        %6389 = vmatpush1.msra.mxu0 %v6274
        %6390 = vmatprep.subr.mxu0 %v6279
        %6391 = vmatpush1.msra.mxu0 %v6278
        %6392 = vmatprep.subr.mxu0 %v6283
        %6393 = vmatpush1.msra.mxu0 %v6282
        %6394 = vmatprep.subr.mxu0 %v6287
        %6395 = vmatpush1.msra.mxu0 %v6286
        %6396 = vmatprep.subr.mxu0 %v6291
        %6397 = vmatpush1.msra.mxu0 %v6290
        %6398 = vmatprep.subr.mxu0 %v6295
        %6399 = vmatpush1.msra.mxu0 %v6294
        %6400 = vmatprep.subr.mxu0 0.0
        %6401 = vmatpush1.msra.mxu0 0.0
        %6402 = vmatprep.subr.mxu0 0.0
        %6403 = vmatpush1.msra.mxu0 0.0
        %6404 = vmatprep.subr.mxu0 0.0
        %6405 = vmatpush1.msra.mxu0 0.0
        %6406 = vmatprep.subr.mxu0 0.0
        %6407 = vmatpush1.msra.mxu0 0.0
        %6408 = vmatprep.subr.mxu0 0.0
        %6409 = vmatpush1.msra.mxu0 0.0
        %6410 = vmatprep.subr.mxu0 0.0
        %6411 = vmatpush1.msra.mxu0 0.0
        %6412 = vmatprep.subr.mxu0 0.0
        %6413 = vmatpush1.msra.mxu0 0.0
        %6414 = vmatprep.subr.mxu0 0.0
        %6415 = vmatpush1.msra.mxu0 0.0
        %6416 = vmatprep.subr.mxu0 0.0
        %6417 = vmatpush1.msra.mxu0 0.0
        %6418 = vmatprep.subr.mxu0 0.0
        %6419 = vmatpush1.msra.mxu0 0.0
        %6420 = vmatprep.subr.mxu0 0.0
        %6421 = vmatpush1.msra.mxu0 0.0
        %6422 = vmatprep.subr.mxu0 0.0
        %6423 = vmatpush1.msra.mxu0 0.0
        %6424 = vmatprep.subr.mxu0 0.0
        %6425 = vmatpush1.msra.mxu0 0.0
        %6426 = vmatprep.subr.mxu0 0.0
        %6427 = vmatpush1.msra.mxu0 0.0
        %6428 = vmatprep.subr.mxu0 0.0
        %6429 = vmatpush1.msra.mxu0 0.0
        %6430 = vmatprep.subr.mxu0 0.0
        %6431 = vmatpush1.msra.mxu0 0.0
        %6432 = vmatprep.subr.mxu0 0.0
        %6433 = vmatpush1.msra.mxu0 0.0
        %6434 = vmatprep.mubr.f32.mxu0 0.0
        %6435 = vmatmul.mubr.f32.gmra.mrb[0].mxu0 %v6297
        %v6436 = vpop.f32.mrb[0].mxu0
        %v6437 = vadd.f32 0.0, %v6436
        %v6438 = vpop.f32.mrb[0].mxu0
        %v6439 = vadd.f32 0.0, %v6438
        %6440 = vdwg.mxu0
        %v6445 = vcombine.low %v6366, %v6368
        %v6446 = vcombine.low %v6437, %v6439
        %v6448 = vunpack.c.l.s4 1966171168
        %v6449 = vunpack.c.0.s8 %v6448
        %v6450 = vlaneseq
        %v6451 = vshrl.u32 %v6450, 7
        %v6452 = vsub.s32 %v6449, %v6451
        %v6453 = vrot.slane %v6445, %v6452
        %v6455 = vunpack.c.l.s4 1966171168
        %v6456 = vunpack.c.0.s8 %v6455
        %v6457 = vlaneseq
        %v6458 = vshrl.u32 %v6457, 7
        %v6459 = vsub.s32 %v6456, %v6458
        %v6460 = vrot.slane %v6446, %v6459
        %v6461 = vcombine.low %v6453, %v6460
        %v6463 = vunpack.c.l.s4 1966171168
        %v6464 = vunpack.c.0.s8 %v6463
        %v6465 = vlaneseq
        %v6466 = vshrl.u32 %v6465, 7
        %v6467 = vsub.s32 %v6464, %v6466
        %v6468 = vrot.slane %v6461, %v6467
        %v6470 = vadd.f32 %v6235, %v6468
        %v6471 = vld [vmem:[%s6 + $0x960] sm:$0xff]
        %v6472 = vld [vmem:[%s6 + $0x968] sm:$0xff]
        %v6473 = vld [vmem:[%s6 + $0x970] sm:$0xff]
        %v6474 = vld [vmem:[%s6 + $0x978] sm:$0xff]
        %v6475 = vld [vmem:[%s6 + $0x980] sm:$0xff]
        %v6476 = vld [vmem:[%s6 + $0x988] sm:$0xff]
        %v6477 = vld [vmem:[%s6 + $0x990] sm:$0xff]
        %v6478 = vld [vmem:[%s6 + $0x998] sm:$0xff]
        %v6479 = vld [vmem:[%s6 + $0x9a0] sm:$0xff]
        %v6480 = vld [vmem:[%s6 + $0x9a8] sm:$0xff]
        %v6481 = vld [vmem:[%s6 + $0x9b0] sm:$0xff]
        %v6482 = vld [vmem:[%s6 + $0x9b8] sm:$0xff]
        %v6483 = vld [vmem:[%s6 + $0x9c0] sm:$0xff]
        %v6484 = vld [vmem:[%s6 + $0x9c8] sm:$0xff]
        %v6485 = vld [vmem:[%s6 + $0x9d0] sm:$0xff]
        %v6486 = vld [vmem:[%s6 + $0x9d8] sm:$0xff]
        %v6487 = vld [vmem:[%s6 + $0x9e0] sm:$0xff]
        %v6488 = vld [vmem:[%s6 + $0x9e8] sm:$0xff]
        %v6489 = vld [vmem:[%s6 + $0x9f0] sm:$0xff]
        %v6490 = vld [vmem:[%s6 + $0x9f8] sm:$0xff]
        %v6491 = vld [vmem:[%s6 + $0xa00] sm:$0xff]
        %v6492 = vld [vmem:[%s6 + $0xa08] sm:$0xff]
        %v6493 = vld [vmem:[%s6 + $0xa10] sm:$0xff]
        %v6494 = vld [vmem:[%s6 + $0xa18] sm:$0xff]
        %v6495 = vld [vmem:[%s6 + $0xa20] sm:$0xff]
        %v6496 = vld [vmem:[%s6 + $0xa28] sm:$0xff]
        %v6497 = vld [vmem:[%s6 + $0xa30] sm:$0xff]
        %v6498 = vld [vmem:[%s6 + $0xa38] sm:$0xff]
        %v6499 = vld [vmem:[%s6 + $0xa40] sm:$0xff]
        %v6500 = vld [vmem:[%s6 + $0xa48] sm:$0xff]
        %v6501 = vld [vmem:[%s6 + $0xa50] sm:$0xff]
        %v6502 = vld [vmem:[%s6 + $0xa58] sm:$0xff]
        %v6503 = vld [vmem:[%s6 + $0xa60] sm:$0xff]
        %v6504 = vld [vmem:[%s6 + $0xa68] sm:$0xff]
        %v6505 = vld [vmem:[%s6 + $0xa70] sm:$0xff]
        %v6506 = vld [vmem:[%s6 + $0xa78] sm:$0xff]
        %v6507 = vld [vmem:[%s6 + $0xa80] sm:$0xff]
        %v6508 = vld [vmem:[%s6 + $0xa88] sm:$0xff]
        %v6509 = vld [vmem:[%s6 + $0xa90] sm:$0xff]
        %v6510 = vld [vmem:[%s6 + $0xa98] sm:$0xff]
        %v6511 = vld [vmem:[%s6 + $0xaa0] sm:$0xff]
        %v6512 = vld [vmem:[%s6 + $0xaa8] sm:$0xff]
        %v6513 = vld [vmem:[%s6 + $0xab0] sm:$0xff]
        %v6514 = vld [vmem:[%s6 + $0xab8] sm:$0xff]
        %v6515 = vld [vmem:[%s6 + $0xac0] sm:$0xff]
        %v6516 = vld [vmem:[%s6 + $0xac8] sm:$0xff]
        %v6517 = vld [vmem:[%s6 + $0xad0] sm:$0xff]
        %v6518 = vld [vmem:[%s6 + $0xad8] sm:$0xff]
        %v6519 = vld [vmem:[%s6 + $0xae0] sm:$0xff]
        %v6520 = vld [vmem:[%s6 + $0xae8] sm:$0xff]
        %v6521 = vld [vmem:[%s6 + $0xaf0] sm:$0xff]
        %v6522 = vld [vmem:[%s6 + $0xaf8] sm:$0xff]
        %v6523 = vld [vmem:[%s6 + $0xb00] sm:$0xff]
        %v6524 = vld [vmem:[%s6 + $0xb08] sm:$0xff]
        %v6525 = vld [vmem:[%s6 + $0xb10] sm:$0xff]
        %v6526 = vld [vmem:[%s6 + $0xb18] sm:$0xff]
        %v6527 = vld [vmem:[%s6 + $0xb20] sm:$0xff]
        %v6528 = vld [vmem:[%s6 + $0xb28] sm:$0xff]
        %v6529 = vld [vmem:[%s6 + $0xb30] sm:$0xff]
        %v6530 = vld [vmem:[%s6 + $0xb38] sm:$0xff]
        %v6531 = vrot.slane %v5291, 5
        %v6532 = vsel %vm5355, %v6531, 0
        %6534 = vmatprep.subr.mxu0 %v6472
        %6535 = vmatpush1.msra.mxu0 %v6471
        %6536 = vmatprep.subr.mxu0 %v6476
        %6537 = vmatpush1.msra.mxu0 %v6475
        %6538 = vmatprep.subr.mxu0 %v6480
        %6539 = vmatpush1.msra.mxu0 %v6479
        %6540 = vmatprep.subr.mxu0 %v6484
        %6541 = vmatpush1.msra.mxu0 %v6483
        %6542 = vmatprep.subr.mxu0 %v6488
        %6543 = vmatpush1.msra.mxu0 %v6487
        %6544 = vmatprep.subr.mxu0 %v6492
        %6545 = vmatpush1.msra.mxu0 %v6491
        %6546 = vmatprep.subr.mxu0 %v6496
        %6547 = vmatpush1.msra.mxu0 %v6495
        %6548 = vmatprep.subr.mxu0 %v6500
        %6549 = vmatpush1.msra.mxu0 %v6499
        %6550 = vmatprep.subr.mxu0 %v6504
        %6551 = vmatpush1.msra.mxu0 %v6503
        %6552 = vmatprep.subr.mxu0 %v6508
        %6553 = vmatpush1.msra.mxu0 %v6507
        %6554 = vmatprep.subr.mxu0 %v6512
        %6555 = vmatpush1.msra.mxu0 %v6511
        %6556 = vmatprep.subr.mxu0 %v6516
        %6557 = vmatpush1.msra.mxu0 %v6515
        %6558 = vmatprep.subr.mxu0 %v6520
        %6559 = vmatpush1.msra.mxu0 %v6519
        %6560 = vmatprep.subr.mxu0 %v6524
        %6561 = vmatpush1.msra.mxu0 %v6523
        %6562 = vmatprep.subr.mxu0 %v6528
        %6563 = vmatpush1.msra.mxu0 %v6527
        %6564 = vmatprep.subr.mxu0 0.0
        %6565 = vmatpush1.msra.mxu0 0.0
        %6566 = vmatprep.subr.mxu0 0.0
        %6567 = vmatpush1.msra.mxu0 0.0
        %6568 = vmatprep.subr.mxu0 0.0
        %6569 = vmatpush1.msra.mxu0 0.0
        %6570 = vmatprep.subr.mxu0 0.0
        %6571 = vmatpush1.msra.mxu0 0.0
        %6572 = vmatprep.subr.mxu0 0.0
        %6573 = vmatpush1.msra.mxu0 0.0
        %6574 = vmatprep.subr.mxu0 0.0
        %6575 = vmatpush1.msra.mxu0 0.0
        %6576 = vmatprep.subr.mxu0 0.0
        %6577 = vmatpush1.msra.mxu0 0.0
        %6578 = vmatprep.subr.mxu0 0.0
        %6579 = vmatpush1.msra.mxu0 0.0
        %6580 = vmatprep.subr.mxu0 0.0
        %6581 = vmatpush1.msra.mxu0 0.0
        %6582 = vmatprep.subr.mxu0 0.0
        %6583 = vmatpush1.msra.mxu0 0.0
        %6584 = vmatprep.subr.mxu0 0.0
        %6585 = vmatpush1.msra.mxu0 0.0
        %6586 = vmatprep.subr.mxu0 0.0
        %6587 = vmatpush1.msra.mxu0 0.0
        %6588 = vmatprep.subr.mxu0 0.0
        %6589 = vmatpush1.msra.mxu0 0.0
        %6590 = vmatprep.subr.mxu0 0.0
        %6591 = vmatpush1.msra.mxu0 0.0
        %6592 = vmatprep.subr.mxu0 0.0
        %6593 = vmatpush1.msra.mxu0 0.0
        %6594 = vmatprep.subr.mxu0 0.0
        %6595 = vmatpush1.msra.mxu0 0.0
        %6596 = vmatprep.subr.mxu0 0.0
        %6597 = vmatpush1.msra.mxu0 0.0
        %6598 = vmatprep.mubr.f32.mxu0 0.0
        %6599 = vmatmul.mubr.f32.gmra.mrb[0].mxu0 %v6532
        %v6600 = vpop.f32.mrb[0].mxu0
        %v6601 = vadd.f32 0.0, %v6600
        %v6602 = vpop.f32.mrb[0].mxu0
        %v6603 = vadd.f32 0.0, %v6602
        %6604 = vdwg.mxu0
        %6605 = vmatprep.subr.mxu0 %v6474
        %6606 = vmatpush1.msra.mxu0 %v6473
        %6607 = vmatprep.subr.mxu0 %v6478
        %6608 = vmatpush1.msra.mxu0 %v6477
        %6609 = vmatprep.subr.mxu0 %v6482
        %6610 = vmatpush1.msra.mxu0 %v6481
        %6611 = vmatprep.subr.mxu0 %v6486
        %6612 = vmatpush1.msra.mxu0 %v6485
        %6613 = vmatprep.subr.mxu0 %v6490
        %6614 = vmatpush1.msra.mxu0 %v6489
        %6615 = vmatprep.subr.mxu0 %v6494
        %6616 = vmatpush1.msra.mxu0 %v6493
        %6617 = vmatprep.subr.mxu0 %v6498
        %6618 = vmatpush1.msra.mxu0 %v6497
        %6619 = vmatprep.subr.mxu0 %v6502
        %6620 = vmatpush1.msra.mxu0 %v6501
        %6621 = vmatprep.subr.mxu0 %v6506
        %6622 = vmatpush1.msra.mxu0 %v6505
        %6623 = vmatprep.subr.mxu0 %v6510
        %6624 = vmatpush1.msra.mxu0 %v6509
        %6625 = vmatprep.subr.mxu0 %v6514
        %6626 = vmatpush1.msra.mxu0 %v6513
        %6627 = vmatprep.subr.mxu0 %v6518
        %6628 = vmatpush1.msra.mxu0 %v6517
        %6629 = vmatprep.subr.mxu0 %v6522
        %6630 = vmatpush1.msra.mxu0 %v6521
        %6631 = vmatprep.subr.mxu0 %v6526
        %6632 = vmatpush1.msra.mxu0 %v6525
        %6633 = vmatprep.subr.mxu0 %v6530
        %6634 = vmatpush1.msra.mxu0 %v6529
        %6635 = vmatprep.subr.mxu0 0.0
        %6636 = vmatpush1.msra.mxu0 0.0
        %6637 = vmatprep.subr.mxu0 0.0
        %6638 = vmatpush1.msra.mxu0 0.0
        %6639 = vmatprep.subr.mxu0 0.0
        %6640 = vmatpush1.msra.mxu0 0.0
        %6641 = vmatprep.subr.mxu0 0.0
        %6642 = vmatpush1.msra.mxu0 0.0
        %6643 = vmatprep.subr.mxu0 0.0
        %6644 = vmatpush1.msra.mxu0 0.0
        %6645 = vmatprep.subr.mxu0 0.0
        %6646 = vmatpush1.msra.mxu0 0.0
        %6647 = vmatprep.subr.mxu0 0.0
        %6648 = vmatpush1.msra.mxu0 0.0
        %6649 = vmatprep.subr.mxu0 0.0
        %6650 = vmatpush1.msra.mxu0 0.0
        %6651 = vmatprep.subr.mxu0 0.0
        %6652 = vmatpush1.msra.mxu0 0.0
        %6653 = vmatprep.subr.mxu0 0.0
        %6654 = vmatpush1.msra.mxu0 0.0
        %6655 = vmatprep.subr.mxu0 0.0
        %6656 = vmatpush1.msra.mxu0 0.0
        %6657 = vmatprep.subr.mxu0 0.0
        %6658 = vmatpush1.msra.mxu0 0.0
        %6659 = vmatprep.subr.mxu0 0.0
        %6660 = vmatpush1.msra.mxu0 0.0
        %6661 = vmatprep.subr.mxu0 0.0
        %6662 = vmatpush1.msra.mxu0 0.0
        %6663 = vmatprep.subr.mxu0 0.0
        %6664 = vmatpush1.msra.mxu0 0.0
        %6665 = vmatprep.subr.mxu0 0.0
        %6666 = vmatpush1.msra.mxu0 0.0
        %6667 = vmatprep.subr.mxu0 0.0
        %6668 = vmatpush1.msra.mxu0 0.0
        %6669 = vmatprep.mubr.f32.mxu0 0.0
        %6670 = vmatmul.mubr.f32.gmra.mrb[0].mxu0 %v6532
        %v6671 = vpop.f32.mrb[0].mxu0
        %v6672 = vadd.f32 0.0, %v6671
        %v6673 = vpop.f32.mrb[0].mxu0
        %v6674 = vadd.f32 0.0, %v6673
        %6675 = vdwg.mxu0
        %v6680 = vcombine.low %v6601, %v6603
        %v6681 = vcombine.low %v6672, %v6674
        %v6683 = vunpack.c.l.s4 1966171168
        %v6684 = vunpack.c.0.s8 %v6683
        %v6685 = vlaneseq
        %v6686 = vshrl.u32 %v6685, 7
        %v6687 = vsub.s32 %v6684, %v6686
        %v6688 = vrot.slane %v6680, %v6687
        %v6690 = vunpack.c.l.s4 1966171168
        %v6691 = vunpack.c.0.s8 %v6690
        %v6692 = vlaneseq
        %v6693 = vshrl.u32 %v6692, 7
        %v6694 = vsub.s32 %v6691, %v6693
        %v6695 = vrot.slane %v6681, %v6694
        %v6696 = vcombine.low %v6688, %v6695
        %v6698 = vunpack.c.l.s4 1966171168
        %v6699 = vunpack.c.0.s8 %v6698
        %v6700 = vlaneseq
        %v6701 = vshrl.u32 %v6700, 7
        %v6702 = vsub.s32 %v6699, %v6701
        %v6703 = vrot.slane %v6696, %v6702
        %v6705 = vadd.f32 %v6470, %v6703
        %v6706 = vld [vmem:[%s6 + $0xb40] sm:$0xff]
        %v6707 = vld [vmem:[%s6 + $0xb48] sm:$0xff]
        %v6708 = vld [vmem:[%s6 + $0xb50] sm:$0xff]
        %v6709 = vld [vmem:[%s6 + $0xb58] sm:$0xff]
        %v6710 = vld [vmem:[%s6 + $0xb60] sm:$0xff]
        %v6711 = vld [vmem:[%s6 + $0xb68] sm:$0xff]
        %v6712 = vld [vmem:[%s6 + $0xb70] sm:$0xff]
        %v6713 = vld [vmem:[%s6 + $0xb78] sm:$0xff]
        %v6714 = vld [vmem:[%s6 + $0xb80] sm:$0xff]
        %v6715 = vld [vmem:[%s6 + $0xb88] sm:$0xff]
        %v6716 = vld [vmem:[%s6 + $0xb90] sm:$0xff]
        %v6717 = vld [vmem:[%s6 + $0xb98] sm:$0xff]
        %v6718 = vld [vmem:[%s6 + $0xba0] sm:$0xff]
        %v6719 = vld [vmem:[%s6 + $0xba8] sm:$0xff]
        %v6720 = vld [vmem:[%s6 + $0xbb0] sm:$0xff]
        %v6721 = vld [vmem:[%s6 + $0xbb8] sm:$0xff]
        %v6722 = vld [vmem:[%s6 + $0xbc0] sm:$0xff]
        %v6723 = vld [vmem:[%s6 + $0xbc8] sm:$0xff]
        %v6724 = vld [vmem:[%s6 + $0xbd0] sm:$0xff]
        %v6725 = vld [vmem:[%s6 + $0xbd8] sm:$0xff]
        %v6726 = vld [vmem:[%s6 + $0xbe0] sm:$0xff]
        %v6727 = vld [vmem:[%s6 + $0xbe8] sm:$0xff]
        %v6728 = vld [vmem:[%s6 + $0xbf0] sm:$0xff]
        %v6729 = vld [vmem:[%s6 + $0xbf8] sm:$0xff]
        %v6730 = vld [vmem:[%s6 + $0xc00] sm:$0xff]
        %v6731 = vld [vmem:[%s6 + $0xc08] sm:$0xff]
        %v6732 = vld [vmem:[%s6 + $0xc10] sm:$0xff]
        %v6733 = vld [vmem:[%s6 + $0xc18] sm:$0xff]
        %v6734 = vld [vmem:[%s6 + $0xc20] sm:$0xff]
        %v6735 = vld [vmem:[%s6 + $0xc28] sm:$0xff]
        %v6736 = vld [vmem:[%s6 + $0xc30] sm:$0xff]
        %v6737 = vld [vmem:[%s6 + $0xc38] sm:$0xff]
        %v6738 = vld [vmem:[%s6 + $0xc40] sm:$0xff]
        %v6739 = vld [vmem:[%s6 + $0xc48] sm:$0xff]
        %v6740 = vld [vmem:[%s6 + $0xc50] sm:$0xff]
        %v6741 = vld [vmem:[%s6 + $0xc58] sm:$0xff]
        %v6742 = vld [vmem:[%s6 + $0xc60] sm:$0xff]
        %v6743 = vld [vmem:[%s6 + $0xc68] sm:$0xff]
        %v6744 = vld [vmem:[%s6 + $0xc70] sm:$0xff]
        %v6745 = vld [vmem:[%s6 + $0xc78] sm:$0xff]
        %v6746 = vld [vmem:[%s6 + $0xc80] sm:$0xff]
        %v6747 = vld [vmem:[%s6 + $0xc88] sm:$0xff]
        %v6748 = vld [vmem:[%s6 + $0xc90] sm:$0xff]
        %v6749 = vld [vmem:[%s6 + $0xc98] sm:$0xff]
        %v6750 = vld [vmem:[%s6 + $0xca0] sm:$0xff]
        %v6751 = vld [vmem:[%s6 + $0xca8] sm:$0xff]
        %v6752 = vld [vmem:[%s6 + $0xcb0] sm:$0xff]
        %v6753 = vld [vmem:[%s6 + $0xcb8] sm:$0xff]
        %v6754 = vld [vmem:[%s6 + $0xcc0] sm:$0xff]
        %v6755 = vld [vmem:[%s6 + $0xcc8] sm:$0xff]
        %v6756 = vld [vmem:[%s6 + $0xcd0] sm:$0xff]
        %v6757 = vld [vmem:[%s6 + $0xcd8] sm:$0xff]
        %v6758 = vld [vmem:[%s6 + $0xce0] sm:$0xff]
        %v6759 = vld [vmem:[%s6 + $0xce8] sm:$0xff]
        %v6760 = vld [vmem:[%s6 + $0xcf0] sm:$0xff]
        %v6761 = vld [vmem:[%s6 + $0xcf8] sm:$0xff]
        %v6762 = vld [vmem:[%s6 + $0xd00] sm:$0xff]
        %v6763 = vld [vmem:[%s6 + $0xd08] sm:$0xff]
        %v6764 = vld [vmem:[%s6 + $0xd10] sm:$0xff]
        %v6765 = vld [vmem:[%s6 + $0xd18] sm:$0xff]
        %v6766 = vrot.slane %v5291, 6
        %v6767 = vsel %vm5355, %v6766, 0
        %6769 = vmatprep.subr.mxu0 %v6707
        %6770 = vmatpush1.msra.mxu0 %v6706
        %6771 = vmatprep.subr.mxu0 %v6711
        %6772 = vmatpush1.msra.mxu0 %v6710
        %6773 = vmatprep.subr.mxu0 %v6715
        %6774 = vmatpush1.msra.mxu0 %v6714
        %6775 = vmatprep.subr.mxu0 %v6719
        %6776 = vmatpush1.msra.mxu0 %v6718
        %6777 = vmatprep.subr.mxu0 %v6723
        %6778 = vmatpush1.msra.mxu0 %v6722
        %6779 = vmatprep.subr.mxu0 %v6727
        %6780 = vmatpush1.msra.mxu0 %v6726
        %6781 = vmatprep.subr.mxu0 %v6731
        %6782 = vmatpush1.msra.mxu0 %v6730
        %6783 = vmatprep.subr.mxu0 %v6735
        %6784 = vmatpush1.msra.mxu0 %v6734
        %6785 = vmatprep.subr.mxu0 %v6739
        %6786 = vmatpush1.msra.mxu0 %v6738
        %6787 = vmatprep.subr.mxu0 %v6743
        %6788 = vmatpush1.msra.mxu0 %v6742
        %6789 = vmatprep.subr.mxu0 %v6747
        %6790 = vmatpush1.msra.mxu0 %v6746
        %6791 = vmatprep.subr.mxu0 %v6751
        %6792 = vmatpush1.msra.mxu0 %v6750
        %6793 = vmatprep.subr.mxu0 %v6755
        %6794 = vmatpush1.msra.mxu0 %v6754
        %6795 = vmatprep.subr.mxu0 %v6759
        %6796 = vmatpush1.msra.mxu0 %v6758
        %6797 = vmatprep.subr.mxu0 %v6763
        %6798 = vmatpush1.msra.mxu0 %v6762
        %6799 = vmatprep.subr.mxu0 0.0
        %6800 = vmatpush1.msra.mxu0 0.0
        %6801 = vmatprep.subr.mxu0 0.0
        %6802 = vmatpush1.msra.mxu0 0.0
        %6803 = vmatprep.subr.mxu0 0.0
        %6804 = vmatpush1.msra.mxu0 0.0
        %6805 = vmatprep.subr.mxu0 0.0
        %6806 = vmatpush1.msra.mxu0 0.0
        %6807 = vmatprep.subr.mxu0 0.0
        %6808 = vmatpush1.msra.mxu0 0.0
        %6809 = vmatprep.subr.mxu0 0.0
        %6810 = vmatpush1.msra.mxu0 0.0
        %6811 = vmatprep.subr.mxu0 0.0
        %6812 = vmatpush1.msra.mxu0 0.0
        %6813 = vmatprep.subr.mxu0 0.0
        %6814 = vmatpush1.msra.mxu0 0.0
        %6815 = vmatprep.subr.mxu0 0.0
        %6816 = vmatpush1.msra.mxu0 0.0
        %6817 = vmatprep.subr.mxu0 0.0
        %6818 = vmatpush1.msra.mxu0 0.0
        %6819 = vmatprep.subr.mxu0 0.0
        %6820 = vmatpush1.msra.mxu0 0.0
        %6821 = vmatprep.subr.mxu0 0.0
        %6822 = vmatpush1.msra.mxu0 0.0
        %6823 = vmatprep.subr.mxu0 0.0
        %6824 = vmatpush1.msra.mxu0 0.0
        %6825 = vmatprep.subr.mxu0 0.0
        %6826 = vmatpush1.msra.mxu0 0.0
        %6827 = vmatprep.subr.mxu0 0.0
        %6828 = vmatpush1.msra.mxu0 0.0
        %6829 = vmatprep.subr.mxu0 0.0
        %6830 = vmatpush1.msra.mxu0 0.0
        %6831 = vmatprep.subr.mxu0 0.0
        %6832 = vmatpush1.msra.mxu0 0.0
        %6833 = vmatprep.mubr.f32.mxu0 0.0
        %6834 = vmatmul.mubr.f32.gmra.mrb[0].mxu0 %v6767
        %v6835 = vpop.f32.mrb[0].mxu0
        %v6836 = vadd.f32 0.0, %v6835
        %v6837 = vpop.f32.mrb[0].mxu0
        %v6838 = vadd.f32 0.0, %v6837
        %6839 = vdwg.mxu0
        %6840 = vmatprep.subr.mxu0 %v6709
        %6841 = vmatpush1.msra.mxu0 %v6708
        %6842 = vmatprep.subr.mxu0 %v6713
        %6843 = vmatpush1.msra.mxu0 %v6712
        %6844 = vmatprep.subr.mxu0 %v6717
        %6845 = vmatpush1.msra.mxu0 %v6716
        %6846 = vmatprep.subr.mxu0 %v6721
        %6847 = vmatpush1.msra.mxu0 %v6720
        %6848 = vmatprep.subr.mxu0 %v6725
        %6849 = vmatpush1.msra.mxu0 %v6724
        %6850 = vmatprep.subr.mxu0 %v6729
        %6851 = vmatpush1.msra.mxu0 %v6728
        %6852 = vmatprep.subr.mxu0 %v6733
        %6853 = vmatpush1.msra.mxu0 %v6732
        %6854 = vmatprep.subr.mxu0 %v6737
        %6855 = vmatpush1.msra.mxu0 %v6736
        %6856 = vmatprep.subr.mxu0 %v6741
        %6857 = vmatpush1.msra.mxu0 %v6740
        %6858 = vmatprep.subr.mxu0 %v6745
        %6859 = vmatpush1.msra.mxu0 %v6744
        %6860 = vmatprep.subr.mxu0 %v6749
        %6861 = vmatpush1.msra.mxu0 %v6748
        %6862 = vmatprep.subr.mxu0 %v6753
        %6863 = vmatpush1.msra.mxu0 %v6752
        %6864 = vmatprep.subr.mxu0 %v6757
        %6865 = vmatpush1.msra.mxu0 %v6756
        %6866 = vmatprep.subr.mxu0 %v6761
        %6867 = vmatpush1.msra.mxu0 %v6760
        %6868 = vmatprep.subr.mxu0 %v6765
        %6869 = vmatpush1.msra.mxu0 %v6764
        %6870 = vmatprep.subr.mxu0 0.0
        %6871 = vmatpush1.msra.mxu0 0.0
        %6872 = vmatprep.subr.mxu0 0.0
        %6873 = vmatpush1.msra.mxu0 0.0
        %6874 = vmatprep.subr.mxu0 0.0
        %6875 = vmatpush1.msra.mxu0 0.0
        %6876 = vmatprep.subr.mxu0 0.0
        %6877 = vmatpush1.msra.mxu0 0.0
        %6878 = vmatprep.subr.mxu0 0.0
        %6879 = vmatpush1.msra.mxu0 0.0
        %6880 = vmatprep.subr.mxu0 0.0
        %6881 = vmatpush1.msra.mxu0 0.0
        %6882 = vmatprep.subr.mxu0 0.0
        %6883 = vmatpush1.msra.mxu0 0.0
        %6884 = vmatprep.subr.mxu0 0.0
        %6885 = vmatpush1.msra.mxu0 0.0
        %6886 = vmatprep.subr.mxu0 0.0
        %6887 = vmatpush1.msra.mxu0 0.0
        %6888 = vmatprep.subr.mxu0 0.0
        %6889 = vmatpush1.msra.mxu0 0.0
        %6890 = vmatprep.subr.mxu0 0.0
        %6891 = vmatpush1.msra.mxu0 0.0
        %6892 = vmatprep.subr.mxu0 0.0
        %6893 = vmatpush1.msra.mxu0 0.0
        %6894 = vmatprep.subr.mxu0 0.0
        %6895 = vmatpush1.msra.mxu0 0.0
        %6896 = vmatprep.subr.mxu0 0.0
        %6897 = vmatpush1.msra.mxu0 0.0
        %6898 = vmatprep.subr.mxu0 0.0
        %6899 = vmatpush1.msra.mxu0 0.0
        %6900 = vmatprep.subr.mxu0 0.0
        %6901 = vmatpush1.msra.mxu0 0.0
        %6902 = vmatprep.subr.mxu0 0.0
        %6903 = vmatpush1.msra.mxu0 0.0
        %6904 = vmatprep.mubr.f32.mxu0 0.0
        %6905 = vmatmul.mubr.f32.gmra.mrb[0].mxu0 %v6767
        %v6906 = vpop.f32.mrb[0].mxu0
        %v6907 = vadd.f32 0.0, %v6906
        %v6908 = vpop.f32.mrb[0].mxu0
        %v6909 = vadd.f32 0.0, %v6908
        %6910 = vdwg.mxu0
        %v6915 = vcombine.low %v6836, %v6838
        %v6916 = vcombine.low %v6907, %v6909
        %v6918 = vunpack.c.l.s4 1966171168
        %v6919 = vunpack.c.0.s8 %v6918
        %v6920 = vlaneseq
        %v6921 = vshrl.u32 %v6920, 7
        %v6922 = vsub.s32 %v6919, %v6921
        %v6923 = vrot.slane %v6915, %v6922
        %v6925 = vunpack.c.l.s4 1966171168
        %v6926 = vunpack.c.0.s8 %v6925
        %v6927 = vlaneseq
        %v6928 = vshrl.u32 %v6927, 7
        %v6929 = vsub.s32 %v6926, %v6928
        %v6930 = vrot.slane %v6916, %v6929
        %v6931 = vcombine.low %v6923, %v6930
        %v6933 = vunpack.c.l.s4 1966171168
        %v6934 = vunpack.c.0.s8 %v6933
        %v6935 = vlaneseq
        %v6936 = vshrl.u32 %v6935, 7
        %v6937 = vsub.s32 %v6934, %v6936
        %v6938 = vrot.slane %v6931, %v6937
        %v6940 = vadd.f32 %v6705, %v6938
        %v6941 = vld [vmem:[%s6 + $0xd20] sm:$0xff]
        %v6942 = vld [vmem:[%s6 + $0xd28] sm:$0xff]
        %v6943 = vld [vmem:[%s6 + $0xd30] sm:$0xff]
        %v6944 = vld [vmem:[%s6 + $0xd38] sm:$0xff]
        %v6945 = vld [vmem:[%s6 + $0xd40] sm:$0xff]
        %v6946 = vld [vmem:[%s6 + $0xd48] sm:$0xff]
        %v6947 = vld [vmem:[%s6 + $0xd50] sm:$0xff]
        %v6948 = vld [vmem:[%s6 + $0xd58] sm:$0xff]
        %v6949 = vld [vmem:[%s6 + $0xd60] sm:$0xff]
        %v6950 = vld [vmem:[%s6 + $0xd68] sm:$0xff]
        %v6951 = vld [vmem:[%s6 + $0xd70] sm:$0xff]
        %v6952 = vld [vmem:[%s6 + $0xd78] sm:$0xff]
        %v6953 = vld [vmem:[%s6 + $0xd80] sm:$0xff]
        %v6954 = vld [vmem:[%s6 + $0xd88] sm:$0xff]
        %v6955 = vld [vmem:[%s6 + $0xd90] sm:$0xff]
        %v6956 = vld [vmem:[%s6 + $0xd98] sm:$0xff]
        %v6957 = vld [vmem:[%s6 + $0xda0] sm:$0xff]
        %v6958 = vld [vmem:[%s6 + $0xda8] sm:$0xff]
        %v6959 = vld [vmem:[%s6 + $0xdb0] sm:$0xff]
        %v6960 = vld [vmem:[%s6 + $0xdb8] sm:$0xff]
        %v6961 = vld [vmem:[%s6 + $0xdc0] sm:$0xff]
        %v6962 = vld [vmem:[%s6 + $0xdc8] sm:$0xff]
        %v6963 = vld [vmem:[%s6 + $0xdd0] sm:$0xff]
        %v6964 = vld [vmem:[%s6 + $0xdd8] sm:$0xff]
        %v6965 = vld [vmem:[%s6 + $0xde0] sm:$0xff]
        %v6966 = vld [vmem:[%s6 + $0xde8] sm:$0xff]
        %v6967 = vld [vmem:[%s6 + $0xdf0] sm:$0xff]
        %v6968 = vld [vmem:[%s6 + $0xdf8] sm:$0xff]
        %v6969 = vld [vmem:[%s6 + $0xe00] sm:$0xff]
        %v6970 = vld [vmem:[%s6 + $0xe08] sm:$0xff]
        %v6971 = vld [vmem:[%s6 + $0xe10] sm:$0xff]
        %v6972 = vld [vmem:[%s6 + $0xe18] sm:$0xff]
        %v6973 = vld [vmem:[%s6 + $0xe20] sm:$0xff]
        %v6974 = vld [vmem:[%s6 + $0xe28] sm:$0xff]
        %v6975 = vld [vmem:[%s6 + $0xe30] sm:$0xff]
        %v6976 = vld [vmem:[%s6 + $0xe38] sm:$0xff]
        %v6977 = vld [vmem:[%s6 + $0xe40] sm:$0xff]
        %v6978 = vld [vmem:[%s6 + $0xe48] sm:$0xff]
        %v6979 = vld [vmem:[%s6 + $0xe50] sm:$0xff]
        %v6980 = vld [vmem:[%s6 + $0xe58] sm:$0xff]
        %v6981 = vld [vmem:[%s6 + $0xe60] sm:$0xff]
        %v6982 = vld [vmem:[%s6 + $0xe68] sm:$0xff]
        %v6983 = vld [vmem:[%s6 + $0xe70] sm:$0xff]
        %v6984 = vld [vmem:[%s6 + $0xe78] sm:$0xff]
        %v6985 = vld [vmem:[%s6 + $0xe80] sm:$0xff]
        %v6986 = vld [vmem:[%s6 + $0xe88] sm:$0xff]
        %v6987 = vld [vmem:[%s6 + $0xe90] sm:$0xff]
        %v6988 = vld [vmem:[%s6 + $0xe98] sm:$0xff]
        %v6989 = vld [vmem:[%s6 + $0xea0] sm:$0xff]
        %v6990 = vld [vmem:[%s6 + $0xea8] sm:$0xff]
        %v6991 = vld [vmem:[%s6 + $0xeb0] sm:$0xff]
        %v6992 = vld [vmem:[%s6 + $0xeb8] sm:$0xff]
        %v6993 = vld [vmem:[%s6 + $0xec0] sm:$0xff]
        %v6994 = vld [vmem:[%s6 + $0xec8] sm:$0xff]
        %v6995 = vld [vmem:[%s6 + $0xed0] sm:$0xff]
        %v6996 = vld [vmem:[%s6 + $0xed8] sm:$0xff]
        %v6997 = vld [vmem:[%s6 + $0xee0] sm:$0xff]
        %v6998 = vld [vmem:[%s6 + $0xee8] sm:$0xff]
        %v6999 = vld [vmem:[%s6 + $0xef0] sm:$0xff]
        %v7000 = vld [vmem:[%s6 + $0xef8] sm:$0xff]
        %v7001 = vrot.slane %v5291, 7
        %v7002 = vsel %vm5355, %v7001, 0
        %7004 = vmatprep.subr.mxu0 %v6942
        %7005 = vmatpush1.msra.mxu0 %v6941
        %7006 = vmatprep.subr.mxu0 %v6946
        %7007 = vmatpush1.msra.mxu0 %v6945
        %7008 = vmatprep.subr.mxu0 %v6950
        %7009 = vmatpush1.msra.mxu0 %v6949
        %7010 = vmatprep.subr.mxu0 %v6954
        %7011 = vmatpush1.msra.mxu0 %v6953
        %7012 = vmatprep.subr.mxu0 %v6958
        %7013 = vmatpush1.msra.mxu0 %v6957
        %7014 = vmatprep.subr.mxu0 %v6962
        %7015 = vmatpush1.msra.mxu0 %v6961
        %7016 = vmatprep.subr.mxu0 %v6966
        %7017 = vmatpush1.msra.mxu0 %v6965
        %7018 = vmatprep.subr.mxu0 %v6970
        %7019 = vmatpush1.msra.mxu0 %v6969
        %7020 = vmatprep.subr.mxu0 %v6974
        %7021 = vmatpush1.msra.mxu0 %v6973
        %7022 = vmatprep.subr.mxu0 %v6978
        %7023 = vmatpush1.msra.mxu0 %v6977
        %7024 = vmatprep.subr.mxu0 %v6982
        %7025 = vmatpush1.msra.mxu0 %v6981
        %7026 = vmatprep.subr.mxu0 %v6986
        %7027 = vmatpush1.msra.mxu0 %v6985
        %7028 = vmatprep.subr.mxu0 %v6990
        %7029 = vmatpush1.msra.mxu0 %v6989
        %7030 = vmatprep.subr.mxu0 %v6994
        %7031 = vmatpush1.msra.mxu0 %v6993
        %7032 = vmatprep.subr.mxu0 %v6998
        %7033 = vmatpush1.msra.mxu0 %v6997
        %7034 = vmatprep.subr.mxu0 0.0
        %7035 = vmatpush1.msra.mxu0 0.0
        %7036 = vmatprep.subr.mxu0 0.0
        %7037 = vmatpush1.msra.mxu0 0.0
        %7038 = vmatprep.subr.mxu0 0.0
        %7039 = vmatpush1.msra.mxu0 0.0
        %7040 = vmatprep.subr.mxu0 0.0
        %7041 = vmatpush1.msra.mxu0 0.0
        %7042 = vmatprep.subr.mxu0 0.0
        %7043 = vmatpush1.msra.mxu0 0.0
        %7044 = vmatprep.subr.mxu0 0.0
        %7045 = vmatpush1.msra.mxu0 0.0
        %7046 = vmatprep.subr.mxu0 0.0
        %7047 = vmatpush1.msra.mxu0 0.0
        %7048 = vmatprep.subr.mxu0 0.0
        %7049 = vmatpush1.msra.mxu0 0.0
        %7050 = vmatprep.subr.mxu0 0.0
        %7051 = vmatpush1.msra.mxu0 0.0
        %7052 = vmatprep.subr.mxu0 0.0
        %7053 = vmatpush1.msra.mxu0 0.0
        %7054 = vmatprep.subr.mxu0 0.0
        %7055 = vmatpush1.msra.mxu0 0.0
        %7056 = vmatprep.subr.mxu0 0.0
        %7057 = vmatpush1.msra.mxu0 0.0
        %7058 = vmatprep.subr.mxu0 0.0
        %7059 = vmatpush1.msra.mxu0 0.0
        %7060 = vmatprep.subr.mxu0 0.0
        %7061 = vmatpush1.msra.mxu0 0.0
        %7062 = vmatprep.subr.mxu0 0.0
        %7063 = vmatpush1.msra.mxu0 0.0
        %7064 = vmatprep.subr.mxu0 0.0
        %7065 = vmatpush1.msra.mxu0 0.0
        %7066 = vmatprep.subr.mxu0 0.0
        %7067 = vmatpush1.msra.mxu0 0.0
        %7068 = vmatprep.mubr.f32.mxu0 0.0
        %7069 = vmatmul.mubr.f32.gmra.mrb[0].mxu0 %v7002
        %v7070 = vpop.f32.mrb[0].mxu0
        %v7071 = vadd.f32 0.0, %v7070
        %v7072 = vpop.f32.mrb[0].mxu0
        %v7073 = vadd.f32 0.0, %v7072
        %7074 = vdwg.mxu0
        %7075 = vmatprep.subr.mxu0 %v6944
        %7076 = vmatpush1.msra.mxu0 %v6943
        %7077 = vmatprep.subr.mxu0 %v6948
        %7078 = vmatpush1.msra.mxu0 %v6947
        %7079 = vmatprep.subr.mxu0 %v6952
        %7080 = vmatpush1.msra.mxu0 %v6951
        %7081 = vmatprep.subr.mxu0 %v6956
        %7082 = vmatpush1.msra.mxu0 %v6955
        %7083 = vmatprep.subr.mxu0 %v6960
        %7084 = vmatpush1.msra.mxu0 %v6959
        %7085 = vmatprep.subr.mxu0 %v6964
        %7086 = vmatpush1.msra.mxu0 %v6963
        %7087 = vmatprep.subr.mxu0 %v6968
        %7088 = vmatpush1.msra.mxu0 %v6967
        %7089 = vmatprep.subr.mxu0 %v6972
        %7090 = vmatpush1.msra.mxu0 %v6971
        %7091 = vmatprep.subr.mxu0 %v6976
        %7092 = vmatpush1.msra.mxu0 %v6975
        %7093 = vmatprep.subr.mxu0 %v6980
        %7094 = vmatpush1.msra.mxu0 %v6979
        %7095 = vmatprep.subr.mxu0 %v6984
        %7096 = vmatpush1.msra.mxu0 %v6983
        %7097 = vmatprep.subr.mxu0 %v6988
        %7098 = vmatpush1.msra.mxu0 %v6987
        %7099 = vmatprep.subr.mxu0 %v6992
        %7100 = vmatpush1.msra.mxu0 %v6991
        %7101 = vmatprep.subr.mxu0 %v6996
        %7102 = vmatpush1.msra.mxu0 %v6995
        %7103 = vmatprep.subr.mxu0 %v7000
        %7104 = vmatpush1.msra.mxu0 %v6999
        %7105 = vmatprep.subr.mxu0 0.0
        %7106 = vmatpush1.msra.mxu0 0.0
        %7107 = vmatprep.subr.mxu0 0.0
        %7108 = vmatpush1.msra.mxu0 0.0
        %7109 = vmatprep.subr.mxu0 0.0
        %7110 = vmatpush1.msra.mxu0 0.0
        %7111 = vmatprep.subr.mxu0 0.0
        %7112 = vmatpush1.msra.mxu0 0.0
        %7113 = vmatprep.subr.mxu0 0.0
        %7114 = vmatpush1.msra.mxu0 0.0
        %7115 = vmatprep.subr.mxu0 0.0
        %7116 = vmatpush1.msra.mxu0 0.0
        %7117 = vmatprep.subr.mxu0 0.0
        %7118 = vmatpush1.msra.mxu0 0.0
        %7119 = vmatprep.subr.mxu0 0.0
        %7120 = vmatpush1.msra.mxu0 0.0
        %7121 = vmatprep.subr.mxu0 0.0
        %7122 = vmatpush1.msra.mxu0 0.0
        %7123 = vmatprep.subr.mxu0 0.0
        %7124 = vmatpush1.msra.mxu0 0.0
        %7125 = vmatprep.subr.mxu0 0.0
        %7126 = vmatpush1.msra.mxu0 0.0
        %7127 = vmatprep.subr.mxu0 0.0
        %7128 = vmatpush1.msra.mxu0 0.0
        %7129 = vmatprep.subr.mxu0 0.0
        %7130 = vmatpush1.msra.mxu0 0.0
        %7131 = vmatprep.subr.mxu0 0.0
        %7132 = vmatpush1.msra.mxu0 0.0
        %7133 = vmatprep.subr.mxu0 0.0
        %7134 = vmatpush1.msra.mxu0 0.0
        %7135 = vmatprep.subr.mxu0 0.0
        %7136 = vmatpush1.msra.mxu0 0.0
        %7137 = vmatprep.subr.mxu0 0.0
        %7138 = vmatpush1.msra.mxu0 0.0
        %7139 = vmatprep.mubr.f32.mxu0 0.0
        %7140 = vmatmul.mubr.f32.gmra.mrb[0].mxu0 %v7002
        %v7141 = vpop.f32.mrb[0].mxu0
        %v7142 = vadd.f32 0.0, %v7141
        %v7143 = vpop.f32.mrb[0].mxu0
        %v7144 = vadd.f32 0.0, %v7143
        %7145 = vdwg.mxu0
        %v7150 = vcombine.low %v7071, %v7073
        %v7151 = vcombine.low %v7142, %v7144
        %v7153 = vunpack.c.l.s4 1966171168
        %v7154 = vunpack.c.0.s8 %v7153
        %v7155 = vlaneseq
        %v7156 = vshrl.u32 %v7155, 7
        %v7157 = vsub.s32 %v7154, %v7156
        %v7158 = vrot.slane %v7150, %v7157
        %v7160 = vunpack.c.l.s4 1966171168
        %v7161 = vunpack.c.0.s8 %v7160
        %v7162 = vlaneseq
        %v7163 = vshrl.u32 %v7162, 7
        %v7164 = vsub.s32 %v7161, %v7163
        %v7165 = vrot.slane %v7151, %v7164
        %v7166 = vcombine.low %v7158, %v7165
        %v7168 = vunpack.c.l.s4 1966171168
        %v7169 = vunpack.c.0.s8 %v7168
        %v7170 = vlaneseq
        %v7171 = vshrl.u32 %v7170, 7
        %v7172 = vsub.s32 %v7169, %v7171
        %v7173 = vrot.slane %v7166, %v7172
        %v7175 = vadd.f32 %v6940, %v7173
        %v7176 = vld [vmem:[%s6 + $0xf00] sm:$0xff]
        %v7177 = vld [vmem:[%s6 + $0xf08] sm:$0xff]
        %v7178 = vld [vmem:[%s6 + $0xf10] sm:$0xff]
        %v7179 = vld [vmem:[%s6 + $0xf18] sm:$0xff]
        %v7180 = vld [vmem:[%s6 + $0xf20] sm:$0xff]
        %v7181 = vld [vmem:[%s6 + $0xf28] sm:$0xff]
        %v7182 = vld [vmem:[%s6 + $0xf30] sm:$0xff]
        %v7183 = vld [vmem:[%s6 + $0xf38] sm:$0xff]
        %v7184 = vld [vmem:[%s6 + $0xf40] sm:$0xff]
        %v7185 = vld [vmem:[%s6 + $0xf48] sm:$0xff]
        %v7186 = vld [vmem:[%s6 + $0xf50] sm:$0xff]
        %v7187 = vld [vmem:[%s6 + $0xf58] sm:$0xff]
        %v7188 = vld [vmem:[%s6 + $0xf60] sm:$0xff]
        %v7189 = vld [vmem:[%s6 + $0xf68] sm:$0xff]
        %v7190 = vld [vmem:[%s6 + $0xf70] sm:$0xff]
        %v7191 = vld [vmem:[%s6 + $0xf78] sm:$0xff]
        %v7192 = vld [vmem:[%s6 + $0xf80] sm:$0xff]
        %v7193 = vld [vmem:[%s6 + $0xf88] sm:$0xff]
        %v7194 = vld [vmem:[%s6 + $0xf90] sm:$0xff]
        %v7195 = vld [vmem:[%s6 + $0xf98] sm:$0xff]
        %v7196 = vld [vmem:[%s6 + $0xfa0] sm:$0xff]
        %v7197 = vld [vmem:[%s6 + $0xfa8] sm:$0xff]
        %v7198 = vld [vmem:[%s6 + $0xfb0] sm:$0xff]
        %v7199 = vld [vmem:[%s6 + $0xfb8] sm:$0xff]
        %v7200 = vld [vmem:[%s6 + $0xfc0] sm:$0xff]
        %v7201 = vld [vmem:[%s6 + $0xfc8] sm:$0xff]
        %v7202 = vld [vmem:[%s6 + $0xfd0] sm:$0xff]
        %v7203 = vld [vmem:[%s6 + $0xfd8] sm:$0xff]
        %v7204 = vld [vmem:[%s6 + $0xfe0] sm:$0xff]
        %v7205 = vld [vmem:[%s6 + $0xfe8] sm:$0xff]
        %v7206 = vld [vmem:[%s6 + $0xff0] sm:$0xff]
        %v7207 = vld [vmem:[%s6 + $0xff8] sm:$0xff]
        %v7208 = vld [vmem:[%s6 + $0x1000] sm:$0xff]
        %v7209 = vld [vmem:[%s6 + $0x1008] sm:$0xff]
        %v7210 = vld [vmem:[%s6 + $0x1010] sm:$0xff]
        %v7211 = vld [vmem:[%s6 + $0x1018] sm:$0xff]
        %v7212 = vld [vmem:[%s6 + $0x1020] sm:$0xff]
        %v7213 = vld [vmem:[%s6 + $0x1028] sm:$0xff]
        %v7214 = vld [vmem:[%s6 + $0x1030] sm:$0xff]
        %v7215 = vld [vmem:[%s6 + $0x1038] sm:$0xff]
        %v7216 = vld [vmem:[%s6 + $0x1040] sm:$0xff]
        %v7217 = vld [vmem:[%s6 + $0x1048] sm:$0xff]
        %v7218 = vld [vmem:[%s6 + $0x1050] sm:$0xff]
        %v7219 = vld [vmem:[%s6 + $0x1058] sm:$0xff]
        %v7220 = vld [vmem:[%s6 + $0x1060] sm:$0xff]
        %v7221 = vld [vmem:[%s6 + $0x1068] sm:$0xff]
        %v7222 = vld [vmem:[%s6 + $0x1070] sm:$0xff]
        %v7223 = vld [vmem:[%s6 + $0x1078] sm:$0xff]
        %v7224 = vld [vmem:[%s6 + $0x1080] sm:$0xff]
        %v7225 = vld [vmem:[%s6 + $0x1088] sm:$0xff]
        %v7226 = vld [vmem:[%s6 + $0x1090] sm:$0xff]
        %v7227 = vld [vmem:[%s6 + $0x1098] sm:$0xff]
        %v7228 = vld [vmem:[%s6 + $0x10a0] sm:$0xff]
        %v7229 = vld [vmem:[%s6 + $0x10a8] sm:$0xff]
        %v7230 = vld [vmem:[%s6 + $0x10b0] sm:$0xff]
        %v7231 = vld [vmem:[%s6 + $0x10b8] sm:$0xff]
        %v7232 = vld [vmem:[%s6 + $0x10c0] sm:$0xff]
        %v7233 = vld [vmem:[%s6 + $0x10c8] sm:$0xff]
        %v7234 = vld [vmem:[%s6 + $0x10d0] sm:$0xff]
        %v7235 = vld [vmem:[%s6 + $0x10d8] sm:$0xff]
        %v7237 = vsel %vm5355, %v5292, 0
        %7239 = vmatprep.subr.mxu0 %v7177
        %7240 = vmatpush1.msra.mxu0 %v7176
        %7241 = vmatprep.subr.mxu0 %v7181
        %7242 = vmatpush1.msra.mxu0 %v7180
        %7243 = vmatprep.subr.mxu0 %v7185
        %7244 = vmatpush1.msra.mxu0 %v7184
        %7245 = vmatprep.subr.mxu0 %v7189
        %7246 = vmatpush1.msra.mxu0 %v7188
        %7247 = vmatprep.subr.mxu0 %v7193
        %7248 = vmatpush1.msra.mxu0 %v7192
        %7249 = vmatprep.subr.mxu0 %v7197
        %7250 = vmatpush1.msra.mxu0 %v7196
        %7251 = vmatprep.subr.mxu0 %v7201
        %7252 = vmatpush1.msra.mxu0 %v7200
        %7253 = vmatprep.subr.mxu0 %v7205
        %7254 = vmatpush1.msra.mxu0 %v7204
        %7255 = vmatprep.subr.mxu0 %v7209
        %7256 = vmatpush1.msra.mxu0 %v7208
        %7257 = vmatprep.subr.mxu0 %v7213
        %7258 = vmatpush1.msra.mxu0 %v7212
        %7259 = vmatprep.subr.mxu0 %v7217
        %7260 = vmatpush1.msra.mxu0 %v7216
        %7261 = vmatprep.subr.mxu0 %v7221
        %7262 = vmatpush1.msra.mxu0 %v7220
        %7263 = vmatprep.subr.mxu0 %v7225
        %7264 = vmatpush1.msra.mxu0 %v7224
        %7265 = vmatprep.subr.mxu0 %v7229
        %7266 = vmatpush1.msra.mxu0 %v7228
        %7267 = vmatprep.subr.mxu0 %v7233
        %7268 = vmatpush1.msra.mxu0 %v7232
        %7269 = vmatprep.subr.mxu0 0.0
        %7270 = vmatpush1.msra.mxu0 0.0
        %7271 = vmatprep.subr.mxu0 0.0
        %7272 = vmatpush1.msra.mxu0 0.0
        %7273 = vmatprep.subr.mxu0 0.0
        %7274 = vmatpush1.msra.mxu0 0.0
        %7275 = vmatprep.subr.mxu0 0.0
        %7276 = vmatpush1.msra.mxu0 0.0
        %7277 = vmatprep.subr.mxu0 0.0
        %7278 = vmatpush1.msra.mxu0 0.0
        %7279 = vmatprep.subr.mxu0 0.0
        %7280 = vmatpush1.msra.mxu0 0.0
        %7281 = vmatprep.subr.mxu0 0.0
        %7282 = vmatpush1.msra.mxu0 0.0
        %7283 = vmatprep.subr.mxu0 0.0
        %7284 = vmatpush1.msra.mxu0 0.0
        %7285 = vmatprep.subr.mxu0 0.0
        %7286 = vmatpush1.msra.mxu0 0.0
        %7287 = vmatprep.subr.mxu0 0.0
        %7288 = vmatpush1.msra.mxu0 0.0
        %7289 = vmatprep.subr.mxu0 0.0
        %7290 = vmatpush1.msra.mxu0 0.0
        %7291 = vmatprep.subr.mxu0 0.0
        %7292 = vmatpush1.msra.mxu0 0.0
        %7293 = vmatprep.subr.mxu0 0.0
        %7294 = vmatpush1.msra.mxu0 0.0
        %7295 = vmatprep.subr.mxu0 0.0
        %7296 = vmatpush1.msra.mxu0 0.0
        %7297 = vmatprep.subr.mxu0 0.0
        %7298 = vmatpush1.msra.mxu0 0.0
        %7299 = vmatprep.subr.mxu0 0.0
        %7300 = vmatpush1.msra.mxu0 0.0
        %7301 = vmatprep.subr.mxu0 0.0
        %7302 = vmatpush1.msra.mxu0 0.0
        %7303 = vmatprep.mubr.f32.mxu0 0.0
        %7304 = vmatmul.mubr.f32.gmra.mrb[0].mxu0 %v7237
        %v7305 = vpop.f32.mrb[0].mxu0
        %v7306 = vadd.f32 0.0, %v7305
        %v7307 = vpop.f32.mrb[0].mxu0
        %v7308 = vadd.f32 0.0, %v7307
        %7309 = vdwg.mxu0
        %7310 = vmatprep.subr.mxu0 %v7179
        %7311 = vmatpush1.msra.mxu0 %v7178
        %7312 = vmatprep.subr.mxu0 %v7183
        %7313 = vmatpush1.msra.mxu0 %v7182
        %7314 = vmatprep.subr.mxu0 %v7187
        %7315 = vmatpush1.msra.mxu0 %v7186
        %7316 = vmatprep.subr.mxu0 %v7191
        %7317 = vmatpush1.msra.mxu0 %v7190
        %7318 = vmatprep.subr.mxu0 %v7195
        %7319 = vmatpush1.msra.mxu0 %v7194
        %7320 = vmatprep.subr.mxu0 %v7199
        %7321 = vmatpush1.msra.mxu0 %v7198
        %7322 = vmatprep.subr.mxu0 %v7203
        %7323 = vmatpush1.msra.mxu0 %v7202
        %7324 = vmatprep.subr.mxu0 %v7207
        %7325 = vmatpush1.msra.mxu0 %v7206
        %7326 = vmatprep.subr.mxu0 %v7211
        %7327 = vmatpush1.msra.mxu0 %v7210
        %7328 = vmatprep.subr.mxu0 %v7215
        %7329 = vmatpush1.msra.mxu0 %v7214
        %7330 = vmatprep.subr.mxu0 %v7219
        %7331 = vmatpush1.msra.mxu0 %v7218
        %7332 = vmatprep.subr.mxu0 %v7223
        %7333 = vmatpush1.msra.mxu0 %v7222
        %7334 = vmatprep.subr.mxu0 %v7227
        %7335 = vmatpush1.msra.mxu0 %v7226
        %7336 = vmatprep.subr.mxu0 %v7231
        %7337 = vmatpush1.msra.mxu0 %v7230
        %7338 = vmatprep.subr.mxu0 %v7235
        %7339 = vmatpush1.msra.mxu0 %v7234
        %7340 = vmatprep.subr.mxu0 0.0
        %7341 = vmatpush1.msra.mxu0 0.0
        %7342 = vmatprep.subr.mxu0 0.0
        %7343 = vmatpush1.msra.mxu0 0.0
        %7344 = vmatprep.subr.mxu0 0.0
        %7345 = vmatpush1.msra.mxu0 0.0
        %7346 = vmatprep.subr.mxu0 0.0
        %7347 = vmatpush1.msra.mxu0 0.0
        %7348 = vmatprep.subr.mxu0 0.0
        %7349 = vmatpush1.msra.mxu0 0.0
        %7350 = vmatprep.subr.mxu0 0.0
        %7351 = vmatpush1.msra.mxu0 0.0
        %7352 = vmatprep.subr.mxu0 0.0
        %7353 = vmatpush1.msra.mxu0 0.0
        %7354 = vmatprep.subr.mxu0 0.0
        %7355 = vmatpush1.msra.mxu0 0.0
        %7356 = vmatprep.subr.mxu0 0.0
        %7357 = vmatpush1.msra.mxu0 0.0
        %7358 = vmatprep.subr.mxu0 0.0
        %7359 = vmatpush1.msra.mxu0 0.0
        %7360 = vmatprep.subr.mxu0 0.0
        %7361 = vmatpush1.msra.mxu0 0.0
        %7362 = vmatprep.subr.mxu0 0.0
        %7363 = vmatpush1.msra.mxu0 0.0
        %7364 = vmatprep.subr.mxu0 0.0
        %7365 = vmatpush1.msra.mxu0 0.0
        %7366 = vmatprep.subr.mxu0 0.0
        %7367 = vmatpush1.msra.mxu0 0.0
        %7368 = vmatprep.subr.mxu0 0.0
        %7369 = vmatpush1.msra.mxu0 0.0
        %7370 = vmatprep.subr.mxu0 0.0
        %7371 = vmatpush1.msra.mxu0 0.0
        %7372 = vmatprep.subr.mxu0 0.0
        %7373 = vmatpush1.msra.mxu0 0.0
        %7374 = vmatprep.mubr.f32.mxu0 0.0
        %7375 = vmatmul.mubr.f32.gmra.mrb[0].mxu0 %v7237
        %v7376 = vpop.f32.mrb[0].mxu0
        %v7377 = vadd.f32 0.0, %v7376
        %v7378 = vpop.f32.mrb[0].mxu0
        %v7379 = vadd.f32 0.0, %v7378
        %7380 = vdwg.mxu0
        %v7385 = vcombine.low %v7306, %v7308
        %v7386 = vcombine.low %v7377, %v7379
        %v7388 = vunpack.c.l.s4 1966171168
        %v7389 = vunpack.c.0.s8 %v7388
        %v7390 = vlaneseq
        %v7391 = vshrl.u32 %v7390, 7
        %v7392 = vsub.s32 %v7389, %v7391
        %v7393 = vrot.slane %v7385, %v7392
        %v7395 = vunpack.c.l.s4 1966171168
        %v7396 = vunpack.c.0.s8 %v7395
        %v7397 = vlaneseq
        %v7398 = vshrl.u32 %v7397, 7
        %v7399 = vsub.s32 %v7396, %v7398
        %v7400 = vrot.slane %v7386, %v7399
        %v7401 = vcombine.low %v7393, %v7400
        %v7403 = vunpack.c.l.s4 1966171168
        %v7404 = vunpack.c.0.s8 %v7403
        %v7405 = vlaneseq
        %v7406 = vshrl.u32 %v7405, 7
        %v7407 = vsub.s32 %v7404, %v7406
        %v7408 = vrot.slane %v7401, %v7407
        %v7410 = vadd.f32 %v7175, %v7408
        %v7411 = vld [vmem:[%s6 + $0x10e0] sm:$0xff]
        %v7412 = vld [vmem:[%s6 + $0x10e8] sm:$0xff]
        %v7413 = vld [vmem:[%s6 + $0x10f0] sm:$0xff]
        %v7414 = vld [vmem:[%s6 + $0x10f8] sm:$0xff]
        %v7415 = vld [vmem:[%s6 + $0x1100] sm:$0xff]
        %v7416 = vld [vmem:[%s6 + $0x1108] sm:$0xff]
        %v7417 = vld [vmem:[%s6 + $0x1110] sm:$0xff]
        %v7418 = vld [vmem:[%s6 + $0x1118] sm:$0xff]
        %v7419 = vld [vmem:[%s6 + $0x1120] sm:$0xff]
        %v7420 = vld [vmem:[%s6 + $0x1128] sm:$0xff]
        %v7421 = vld [vmem:[%s6 + $0x1130] sm:$0xff]
        %v7422 = vld [vmem:[%s6 + $0x1138] sm:$0xff]
        %v7423 = vld [vmem:[%s6 + $0x1140] sm:$0xff]
        %v7424 = vld [vmem:[%s6 + $0x1148] sm:$0xff]
        %v7425 = vld [vmem:[%s6 + $0x1150] sm:$0xff]
        %v7426 = vld [vmem:[%s6 + $0x1158] sm:$0xff]
        %v7427 = vld [vmem:[%s6 + $0x1160] sm:$0xff]
        %v7428 = vld [vmem:[%s6 + $0x1168] sm:$0xff]
        %v7429 = vld [vmem:[%s6 + $0x1170] sm:$0xff]
        %v7430 = vld [vmem:[%s6 + $0x1178] sm:$0xff]
        %v7431 = vld [vmem:[%s6 + $0x1180] sm:$0xff]
        %v7432 = vld [vmem:[%s6 + $0x1188] sm:$0xff]
        %v7433 = vld [vmem:[%s6 + $0x1190] sm:$0xff]
        %v7434 = vld [vmem:[%s6 + $0x1198] sm:$0xff]
        %v7435 = vld [vmem:[%s6 + $0x11a0] sm:$0xff]
        %v7436 = vld [vmem:[%s6 + $0x11a8] sm:$0xff]
        %v7437 = vld [vmem:[%s6 + $0x11b0] sm:$0xff]
        %v7438 = vld [vmem:[%s6 + $0x11b8] sm:$0xff]
        %v7439 = vld [vmem:[%s6 + $0x11c0] sm:$0xff]
        %v7440 = vld [vmem:[%s6 + $0x11c8] sm:$0xff]
        %v7441 = vld [vmem:[%s6 + $0x11d0] sm:$0xff]
        %v7442 = vld [vmem:[%s6 + $0x11d8] sm:$0xff]
        %v7443 = vld [vmem:[%s6 + $0x11e0] sm:$0xff]
        %v7444 = vld [vmem:[%s6 + $0x11e8] sm:$0xff]
        %v7445 = vld [vmem:[%s6 + $0x11f0] sm:$0xff]
        %v7446 = vld [vmem:[%s6 + $0x11f8] sm:$0xff]
        %v7447 = vld [vmem:[%s6 + $0x1200] sm:$0xff]
        %v7448 = vld [vmem:[%s6 + $0x1208] sm:$0xff]
        %v7449 = vld [vmem:[%s6 + $0x1210] sm:$0xff]
        %v7450 = vld [vmem:[%s6 + $0x1218] sm:$0xff]
        %v7451 = vld [vmem:[%s6 + $0x1220] sm:$0xff]
        %v7452 = vld [vmem:[%s6 + $0x1228] sm:$0xff]
        %v7453 = vld [vmem:[%s6 + $0x1230] sm:$0xff]
        %v7454 = vld [vmem:[%s6 + $0x1238] sm:$0xff]
        %v7455 = vld [vmem:[%s6 + $0x1240] sm:$0xff]
        %v7456 = vld [vmem:[%s6 + $0x1248] sm:$0xff]
        %v7457 = vld [vmem:[%s6 + $0x1250] sm:$0xff]
        %v7458 = vld [vmem:[%s6 + $0x1258] sm:$0xff]
        %v7459 = vld [vmem:[%s6 + $0x1260] sm:$0xff]
        %v7460 = vld [vmem:[%s6 + $0x1268] sm:$0xff]
        %v7461 = vld [vmem:[%s6 + $0x1270] sm:$0xff]
        %v7462 = vld [vmem:[%s6 + $0x1278] sm:$0xff]
        %v7463 = vld [vmem:[%s6 + $0x1280] sm:$0xff]
        %v7464 = vld [vmem:[%s6 + $0x1288] sm:$0xff]
        %v7465 = vld [vmem:[%s6 + $0x1290] sm:$0xff]
        %v7466 = vld [vmem:[%s6 + $0x1298] sm:$0xff]
        %v7467 = vld [vmem:[%s6 + $0x12a0] sm:$0xff]
        %v7468 = vld [vmem:[%s6 + $0x12a8] sm:$0xff]
        %v7469 = vld [vmem:[%s6 + $0x12b0] sm:$0xff]
        %v7470 = vld [vmem:[%s6 + $0x12b8] sm:$0xff]
        %v7471 = vrot.slane %v5292, 1
        %v7472 = vsel %vm5355, %v7471, 0
        %7474 = vmatprep.subr.mxu0 %v7412
        %7475 = vmatpush1.msra.mxu0 %v7411
        %7476 = vmatprep.subr.mxu0 %v7416
        %7477 = vmatpush1.msra.mxu0 %v7415
        %7478 = vmatprep.subr.mxu0 %v7420
        %7479 = vmatpush1.msra.mxu0 %v7419
        %7480 = vmatprep.subr.mxu0 %v7424
        %7481 = vmatpush1.msra.mxu0 %v7423
        %7482 = vmatprep.subr.mxu0 %v7428
        %7483 = vmatpush1.msra.mxu0 %v7427
        %7484 = vmatprep.subr.mxu0 %v7432
        %7485 = vmatpush1.msra.mxu0 %v7431
        %7486 = vmatprep.subr.mxu0 %v7436
        %7487 = vmatpush1.msra.mxu0 %v7435
        %7488 = vmatprep.subr.mxu0 %v7440
        %7489 = vmatpush1.msra.mxu0 %v7439
        %7490 = vmatprep.subr.mxu0 %v7444
        %7491 = vmatpush1.msra.mxu0 %v7443
        %7492 = vmatprep.subr.mxu0 %v7448
        %7493 = vmatpush1.msra.mxu0 %v7447
        %7494 = vmatprep.subr.mxu0 %v7452
        %7495 = vmatpush1.msra.mxu0 %v7451
        %7496 = vmatprep.subr.mxu0 %v7456
        %7497 = vmatpush1.msra.mxu0 %v7455
        %7498 = vmatprep.subr.mxu0 %v7460
        %7499 = vmatpush1.msra.mxu0 %v7459
        %7500 = vmatprep.subr.mxu0 %v7464
        %7501 = vmatpush1.msra.mxu0 %v7463
        %7502 = vmatprep.subr.mxu0 %v7468
        %7503 = vmatpush1.msra.mxu0 %v7467
        %7504 = vmatprep.subr.mxu0 0.0
        %7505 = vmatpush1.msra.mxu0 0.0
        %7506 = vmatprep.subr.mxu0 0.0
        %7507 = vmatpush1.msra.mxu0 0.0
        %7508 = vmatprep.subr.mxu0 0.0
        %7509 = vmatpush1.msra.mxu0 0.0
        %7510 = vmatprep.subr.mxu0 0.0
        %7511 = vmatpush1.msra.mxu0 0.0
        %7512 = vmatprep.subr.mxu0 0.0
        %7513 = vmatpush1.msra.mxu0 0.0
        %7514 = vmatprep.subr.mxu0 0.0
        %7515 = vmatpush1.msra.mxu0 0.0
        %7516 = vmatprep.subr.mxu0 0.0
        %7517 = vmatpush1.msra.mxu0 0.0
        %7518 = vmatprep.subr.mxu0 0.0
        %7519 = vmatpush1.msra.mxu0 0.0
        %7520 = vmatprep.subr.mxu0 0.0
        %7521 = vmatpush1.msra.mxu0 0.0
        %7522 = vmatprep.subr.mxu0 0.0
        %7523 = vmatpush1.msra.mxu0 0.0
        %7524 = vmatprep.subr.mxu0 0.0
        %7525 = vmatpush1.msra.mxu0 0.0
        %7526 = vmatprep.subr.mxu0 0.0
        %7527 = vmatpush1.msra.mxu0 0.0
        %7528 = vmatprep.subr.mxu0 0.0
        %7529 = vmatpush1.msra.mxu0 0.0
        %7530 = vmatprep.subr.mxu0 0.0
        %7531 = vmatpush1.msra.mxu0 0.0
        %7532 = vmatprep.subr.mxu0 0.0
        %7533 = vmatpush1.msra.mxu0 0.0
        %7534 = vmatprep.subr.mxu0 0.0
        %7535 = vmatpush1.msra.mxu0 0.0
        %7536 = vmatprep.subr.mxu0 0.0
        %7537 = vmatpush1.msra.mxu0 0.0
        %7538 = vmatprep.mubr.f32.mxu0 0.0
        %7539 = vmatmul.mubr.f32.gmra.mrb[0].mxu0 %v7472
        %v7540 = vpop.f32.mrb[0].mxu0
        %v7541 = vadd.f32 0.0, %v7540
        %v7542 = vpop.f32.mrb[0].mxu0
        %v7543 = vadd.f32 0.0, %v7542
        %7544 = vdwg.mxu0
        %7545 = vmatprep.subr.mxu0 %v7414
        %7546 = vmatpush1.msra.mxu0 %v7413
        %7547 = vmatprep.subr.mxu0 %v7418
        %7548 = vmatpush1.msra.mxu0 %v7417
        %7549 = vmatprep.subr.mxu0 %v7422
        %7550 = vmatpush1.msra.mxu0 %v7421
        %7551 = vmatprep.subr.mxu0 %v7426
        %7552 = vmatpush1.msra.mxu0 %v7425
        %7553 = vmatprep.subr.mxu0 %v7430
        %7554 = vmatpush1.msra.mxu0 %v7429
        %7555 = vmatprep.subr.mxu0 %v7434
        %7556 = vmatpush1.msra.mxu0 %v7433
        %7557 = vmatprep.subr.mxu0 %v7438
        %7558 = vmatpush1.msra.mxu0 %v7437
        %7559 = vmatprep.subr.mxu0 %v7442
        %7560 = vmatpush1.msra.mxu0 %v7441
        %7561 = vmatprep.subr.mxu0 %v7446
        %7562 = vmatpush1.msra.mxu0 %v7445
        %7563 = vmatprep.subr.mxu0 %v7450
        %7564 = vmatpush1.msra.mxu0 %v7449
        %7565 = vmatprep.subr.mxu0 %v7454
        %7566 = vmatpush1.msra.mxu0 %v7453
        %7567 = vmatprep.subr.mxu0 %v7458
        %7568 = vmatpush1.msra.mxu0 %v7457
        %7569 = vmatprep.subr.mxu0 %v7462
        %7570 = vmatpush1.msra.mxu0 %v7461
        %7571 = vmatprep.subr.mxu0 %v7466
        %7572 = vmatpush1.msra.mxu0 %v7465
        %7573 = vmatprep.subr.mxu0 %v7470
        %7574 = vmatpush1.msra.mxu0 %v7469
        %7575 = vmatprep.subr.mxu0 0.0
        %7576 = vmatpush1.msra.mxu0 0.0
        %7577 = vmatprep.subr.mxu0 0.0
        %7578 = vmatpush1.msra.mxu0 0.0
        %7579 = vmatprep.subr.mxu0 0.0
        %7580 = vmatpush1.msra.mxu0 0.0
        %7581 = vmatprep.subr.mxu0 0.0
        %7582 = vmatpush1.msra.mxu0 0.0
        %7583 = vmatprep.subr.mxu0 0.0
        %7584 = vmatpush1.msra.mxu0 0.0
        %7585 = vmatprep.subr.mxu0 0.0
        %7586 = vmatpush1.msra.mxu0 0.0
        %7587 = vmatprep.subr.mxu0 0.0
        %7588 = vmatpush1.msra.mxu0 0.0
        %7589 = vmatprep.subr.mxu0 0.0
        %7590 = vmatpush1.msra.mxu0 0.0
        %7591 = vmatprep.subr.mxu0 0.0
        %7592 = vmatpush1.msra.mxu0 0.0
        %7593 = vmatprep.subr.mxu0 0.0
        %7594 = vmatpush1.msra.mxu0 0.0
        %7595 = vmatprep.subr.mxu0 0.0
        %7596 = vmatpush1.msra.mxu0 0.0
        %7597 = vmatprep.subr.mxu0 0.0
        %7598 = vmatpush1.msra.mxu0 0.0
        %7599 = vmatprep.subr.mxu0 0.0
        %7600 = vmatpush1.msra.mxu0 0.0
        %7601 = vmatprep.subr.mxu0 0.0
        %7602 = vmatpush1.msra.mxu0 0.0
        %7603 = vmatprep.subr.mxu0 0.0
        %7604 = vmatpush1.msra.mxu0 0.0
        %7605 = vmatprep.subr.mxu0 0.0
        %7606 = vmatpush1.msra.mxu0 0.0
        %7607 = vmatprep.subr.mxu0 0.0
        %7608 = vmatpush1.msra.mxu0 0.0
        %7609 = vmatprep.mubr.f32.mxu0 0.0
        %7610 = vmatmul.mubr.f32.gmra.mrb[0].mxu0 %v7472
        %v7611 = vpop.f32.mrb[0].mxu0
        %v7612 = vadd.f32 0.0, %v7611
        %v7613 = vpop.f32.mrb[0].mxu0
        %v7614 = vadd.f32 0.0, %v7613
        %7615 = vdwg.mxu0
        %v7620 = vcombine.low %v7541, %v7543
        %v7621 = vcombine.low %v7612, %v7614
        %v7623 = vunpack.c.l.s4 1966171168
        %v7624 = vunpack.c.0.s8 %v7623
        %v7625 = vlaneseq
        %v7626 = vshrl.u32 %v7625, 7
        %v7627 = vsub.s32 %v7624, %v7626
        %v7628 = vrot.slane %v7620, %v7627
        %v7630 = vunpack.c.l.s4 1966171168
        %v7631 = vunpack.c.0.s8 %v7630
        %v7632 = vlaneseq
        %v7633 = vshrl.u32 %v7632, 7
        %v7634 = vsub.s32 %v7631, %v7633
        %v7635 = vrot.slane %v7621, %v7634
        %v7636 = vcombine.low %v7628, %v7635
        %v7638 = vunpack.c.l.s4 1966171168
        %v7639 = vunpack.c.0.s8 %v7638
        %v7640 = vlaneseq
        %v7641 = vshrl.u32 %v7640, 7
        %v7642 = vsub.s32 %v7639, %v7641
        %v7643 = vrot.slane %v7636, %v7642
        %v7645 = vadd.f32 %v7410, %v7643
        %v7646 = vld [vmem:[%s6 + $0x12c0] sm:$0xff]
        %v7647 = vld [vmem:[%s6 + $0x12c8] sm:$0xff]
        %v7648 = vld [vmem:[%s6 + $0x12d0] sm:$0xff]
        %v7649 = vld [vmem:[%s6 + $0x12d8] sm:$0xff]
        %v7650 = vld [vmem:[%s6 + $0x12e0] sm:$0xff]
        %v7651 = vld [vmem:[%s6 + $0x12e8] sm:$0xff]
        %v7652 = vld [vmem:[%s6 + $0x12f0] sm:$0xff]
        %v7653 = vld [vmem:[%s6 + $0x12f8] sm:$0xff]
        %v7654 = vld [vmem:[%s6 + $0x1300] sm:$0xff]
        %v7655 = vld [vmem:[%s6 + $0x1308] sm:$0xff]
        %v7656 = vld [vmem:[%s6 + $0x1310] sm:$0xff]
        %v7657 = vld [vmem:[%s6 + $0x1318] sm:$0xff]
        %v7658 = vld [vmem:[%s6 + $0x1320] sm:$0xff]
        %v7659 = vld [vmem:[%s6 + $0x1328] sm:$0xff]
        %v7660 = vld [vmem:[%s6 + $0x1330] sm:$0xff]
        %v7661 = vld [vmem:[%s6 + $0x1338] sm:$0xff]
        %v7662 = vld [vmem:[%s6 + $0x1340] sm:$0xff]
        %v7663 = vld [vmem:[%s6 + $0x1348] sm:$0xff]
        %v7664 = vld [vmem:[%s6 + $0x1350] sm:$0xff]
        %v7665 = vld [vmem:[%s6 + $0x1358] sm:$0xff]
        %v7666 = vld [vmem:[%s6 + $0x1360] sm:$0xff]
        %v7667 = vld [vmem:[%s6 + $0x1368] sm:$0xff]
        %v7668 = vld [vmem:[%s6 + $0x1370] sm:$0xff]
        %v7669 = vld [vmem:[%s6 + $0x1378] sm:$0xff]
        %v7670 = vld [vmem:[%s6 + $0x1380] sm:$0xff]
        %v7671 = vld [vmem:[%s6 + $0x1388] sm:$0xff]
        %v7672 = vld [vmem:[%s6 + $0x1390] sm:$0xff]
        %v7673 = vld [vmem:[%s6 + $0x1398] sm:$0xff]
        %v7674 = vld [vmem:[%s6 + $0x13a0] sm:$0xff]
        %v7675 = vld [vmem:[%s6 + $0x13a8] sm:$0xff]
        %v7676 = vld [vmem:[%s6 + $0x13b0] sm:$0xff]
        %v7677 = vld [vmem:[%s6 + $0x13b8] sm:$0xff]
        %v7678 = vld [vmem:[%s6 + $0x13c0] sm:$0xff]
        %v7679 = vld [vmem:[%s6 + $0x13c8] sm:$0xff]
        %v7680 = vld [vmem:[%s6 + $0x13d0] sm:$0xff]
        %v7681 = vld [vmem:[%s6 + $0x13d8] sm:$0xff]
        %v7682 = vld [vmem:[%s6 + $0x13e0] sm:$0xff]
        %v7683 = vld [vmem:[%s6 + $0x13e8] sm:$0xff]
        %v7684 = vld [vmem:[%s6 + $0x13f0] sm:$0xff]
        %v7685 = vld [vmem:[%s6 + $0x13f8] sm:$0xff]
        %v7686 = vld [vmem:[%s6 + $0x1400] sm:$0xff]
        %v7687 = vld [vmem:[%s6 + $0x1408] sm:$0xff]
        %v7688 = vld [vmem:[%s6 + $0x1410] sm:$0xff]
        %v7689 = vld [vmem:[%s6 + $0x1418] sm:$0xff]
        %v7690 = vld [vmem:[%s6 + $0x1420] sm:$0xff]
        %v7691 = vld [vmem:[%s6 + $0x1428] sm:$0xff]
        %v7692 = vld [vmem:[%s6 + $0x1430] sm:$0xff]
        %v7693 = vld [vmem:[%s6 + $0x1438] sm:$0xff]
        %v7694 = vld [vmem:[%s6 + $0x1440] sm:$0xff]
        %v7695 = vld [vmem:[%s6 + $0x1448] sm:$0xff]
        %v7696 = vld [vmem:[%s6 + $0x1450] sm:$0xff]
        %v7697 = vld [vmem:[%s6 + $0x1458] sm:$0xff]
        %v7698 = vld [vmem:[%s6 + $0x1460] sm:$0xff]
        %v7699 = vld [vmem:[%s6 + $0x1468] sm:$0xff]
        %v7700 = vld [vmem:[%s6 + $0x1470] sm:$0xff]
        %v7701 = vld [vmem:[%s6 + $0x1478] sm:$0xff]
        %v7702 = vld [vmem:[%s6 + $0x1480] sm:$0xff]
        %v7703 = vld [vmem:[%s6 + $0x1488] sm:$0xff]
        %v7704 = vld [vmem:[%s6 + $0x1490] sm:$0xff]
        %v7705 = vld [vmem:[%s6 + $0x1498] sm:$0xff]
        %v7706 = vrot.slane %v5292, 2
        %v7707 = vsel %vm5355, %v7706, 0
        %7709 = vmatprep.subr.mxu0 %v7647
        %7710 = vmatpush1.msra.mxu0 %v7646
        %7711 = vmatprep.subr.mxu0 %v7651
        %7712 = vmatpush1.msra.mxu0 %v7650
        %7713 = vmatprep.subr.mxu0 %v7655
        %7714 = vmatpush1.msra.mxu0 %v7654
        %7715 = vmatprep.subr.mxu0 %v7659
        %7716 = vmatpush1.msra.mxu0 %v7658
        %7717 = vmatprep.subr.mxu0 %v7663
        %7718 = vmatpush1.msra.mxu0 %v7662
        %7719 = vmatprep.subr.mxu0 %v7667
        %7720 = vmatpush1.msra.mxu0 %v7666
        %7721 = vmatprep.subr.mxu0 %v7671
        %7722 = vmatpush1.msra.mxu0 %v7670
        %7723 = vmatprep.subr.mxu0 %v7675
        %7724 = vmatpush1.msra.mxu0 %v7674
        %7725 = vmatprep.subr.mxu0 %v7679
        %7726 = vmatpush1.msra.mxu0 %v7678
        %7727 = vmatprep.subr.mxu0 %v7683
        %7728 = vmatpush1.msra.mxu0 %v7682
        %7729 = vmatprep.subr.mxu0 %v7687
        %7730 = vmatpush1.msra.mxu0 %v7686
        %7731 = vmatprep.subr.mxu0 %v7691
        %7732 = vmatpush1.msra.mxu0 %v7690
        %7733 = vmatprep.subr.mxu0 %v7695
        %7734 = vmatpush1.msra.mxu0 %v7694
        %7735 = vmatprep.subr.mxu0 %v7699
        %7736 = vmatpush1.msra.mxu0 %v7698
        %7737 = vmatprep.subr.mxu0 %v7703
        %7738 = vmatpush1.msra.mxu0 %v7702
        %7739 = vmatprep.subr.mxu0 0.0
        %7740 = vmatpush1.msra.mxu0 0.0
        %7741 = vmatprep.subr.mxu0 0.0
        %7742 = vmatpush1.msra.mxu0 0.0
        %7743 = vmatprep.subr.mxu0 0.0
        %7744 = vmatpush1.msra.mxu0 0.0
        %7745 = vmatprep.subr.mxu0 0.0
        %7746 = vmatpush1.msra.mxu0 0.0
        %7747 = vmatprep.subr.mxu0 0.0
        %7748 = vmatpush1.msra.mxu0 0.0
        %7749 = vmatprep.subr.mxu0 0.0
        %7750 = vmatpush1.msra.mxu0 0.0
        %7751 = vmatprep.subr.mxu0 0.0
        %7752 = vmatpush1.msra.mxu0 0.0
        %7753 = vmatprep.subr.mxu0 0.0
        %7754 = vmatpush1.msra.mxu0 0.0
        %7755 = vmatprep.subr.mxu0 0.0
        %7756 = vmatpush1.msra.mxu0 0.0
        %7757 = vmatprep.subr.mxu0 0.0
        %7758 = vmatpush1.msra.mxu0 0.0
        %7759 = vmatprep.subr.mxu0 0.0
        %7760 = vmatpush1.msra.mxu0 0.0
        %7761 = vmatprep.subr.mxu0 0.0
        %7762 = vmatpush1.msra.mxu0 0.0
        %7763 = vmatprep.subr.mxu0 0.0
        %7764 = vmatpush1.msra.mxu0 0.0
        %7765 = vmatprep.subr.mxu0 0.0
        %7766 = vmatpush1.msra.mxu0 0.0
        %7767 = vmatprep.subr.mxu0 0.0
        %7768 = vmatpush1.msra.mxu0 0.0
        %7769 = vmatprep.subr.mxu0 0.0
        %7770 = vmatpush1.msra.mxu0 0.0
        %7771 = vmatprep.subr.mxu0 0.0
        %7772 = vmatpush1.msra.mxu0 0.0
        %7773 = vmatprep.mubr.f32.mxu0 0.0
        %7774 = vmatmul.mubr.f32.gmra.mrb[0].mxu0 %v7707
        %v7775 = vpop.f32.mrb[0].mxu0
        %v7776 = vadd.f32 0.0, %v7775
        %v7777 = vpop.f32.mrb[0].mxu0
        %v7778 = vadd.f32 0.0, %v7777
        %7779 = vdwg.mxu0
        %7780 = vmatprep.subr.mxu0 %v7649
        %7781 = vmatpush1.msra.mxu0 %v7648
        %7782 = vmatprep.subr.mxu0 %v7653
        %7783 = vmatpush1.msra.mxu0 %v7652
        %7784 = vmatprep.subr.mxu0 %v7657
        %7785 = vmatpush1.msra.mxu0 %v7656
        %7786 = vmatprep.subr.mxu0 %v7661
        %7787 = vmatpush1.msra.mxu0 %v7660
        %7788 = vmatprep.subr.mxu0 %v7665
        %7789 = vmatpush1.msra.mxu0 %v7664
        %7790 = vmatprep.subr.mxu0 %v7669
        %7791 = vmatpush1.msra.mxu0 %v7668
        %7792 = vmatprep.subr.mxu0 %v7673
        %7793 = vmatpush1.msra.mxu0 %v7672
        %7794 = vmatprep.subr.mxu0 %v7677
        %7795 = vmatpush1.msra.mxu0 %v7676
        %7796 = vmatprep.subr.mxu0 %v7681
        %7797 = vmatpush1.msra.mxu0 %v7680
        %7798 = vmatprep.subr.mxu0 %v7685
        %7799 = vmatpush1.msra.mxu0 %v7684
        %7800 = vmatprep.subr.mxu0 %v7689
        %7801 = vmatpush1.msra.mxu0 %v7688
        %7802 = vmatprep.subr.mxu0 %v7693
        %7803 = vmatpush1.msra.mxu0 %v7692
        %7804 = vmatprep.subr.mxu0 %v7697
        %7805 = vmatpush1.msra.mxu0 %v7696
        %7806 = vmatprep.subr.mxu0 %v7701
        %7807 = vmatpush1.msra.mxu0 %v7700
        %7808 = vmatprep.subr.mxu0 %v7705
        %7809 = vmatpush1.msra.mxu0 %v7704
        %7810 = vmatprep.subr.mxu0 0.0
        %7811 = vmatpush1.msra.mxu0 0.0
        %7812 = vmatprep.subr.mxu0 0.0
        %7813 = vmatpush1.msra.mxu0 0.0
        %7814 = vmatprep.subr.mxu0 0.0
        %7815 = vmatpush1.msra.mxu0 0.0
        %7816 = vmatprep.subr.mxu0 0.0
        %7817 = vmatpush1.msra.mxu0 0.0
        %7818 = vmatprep.subr.mxu0 0.0
        %7819 = vmatpush1.msra.mxu0 0.0
        %7820 = vmatprep.subr.mxu0 0.0
        %7821 = vmatpush1.msra.mxu0 0.0
        %7822 = vmatprep.subr.mxu0 0.0
        %7823 = vmatpush1.msra.mxu0 0.0
        %7824 = vmatprep.subr.mxu0 0.0
        %7825 = vmatpush1.msra.mxu0 0.0
        %7826 = vmatprep.subr.mxu0 0.0
        %7827 = vmatpush1.msra.mxu0 0.0
        %7828 = vmatprep.subr.mxu0 0.0
        %7829 = vmatpush1.msra.mxu0 0.0
        %7830 = vmatprep.subr.mxu0 0.0
        %7831 = vmatpush1.msra.mxu0 0.0
        %7832 = vmatprep.subr.mxu0 0.0
        %7833 = vmatpush1.msra.mxu0 0.0
        %7834 = vmatprep.subr.mxu0 0.0
        %7835 = vmatpush1.msra.mxu0 0.0
        %7836 = vmatprep.subr.mxu0 0.0
        %7837 = vmatpush1.msra.mxu0 0.0
        %7838 = vmatprep.subr.mxu0 0.0
        %7839 = vmatpush1.msra.mxu0 0.0
        %7840 = vmatprep.subr.mxu0 0.0
        %7841 = vmatpush1.msra.mxu0 0.0
        %7842 = vmatprep.subr.mxu0 0.0
        %7843 = vmatpush1.msra.mxu0 0.0
        %7844 = vmatprep.mubr.f32.mxu0 0.0
        %7845 = vmatmul.mubr.f32.gmra.mrb[0].mxu0 %v7707
        %v7846 = vpop.f32.mrb[0].mxu0
        %v7847 = vadd.f32 0.0, %v7846
        %v7848 = vpop.f32.mrb[0].mxu0
        %v7849 = vadd.f32 0.0, %v7848
        %7850 = vdwg.mxu0
        %v7855 = vcombine.low %v7776, %v7778
        %v7856 = vcombine.low %v7847, %v7849
        %v7858 = vunpack.c.l.s4 1966171168
        %v7859 = vunpack.c.0.s8 %v7858
        %v7860 = vlaneseq
        %v7861 = vshrl.u32 %v7860, 7
        %v7862 = vsub.s32 %v7859, %v7861
        %v7863 = vrot.slane %v7855, %v7862
        %v7865 = vunpack.c.l.s4 1966171168
        %v7866 = vunpack.c.0.s8 %v7865
        %v7867 = vlaneseq
        %v7868 = vshrl.u32 %v7867, 7
        %v7869 = vsub.s32 %v7866, %v7868
        %v7870 = vrot.slane %v7856, %v7869
        %v7871 = vcombine.low %v7863, %v7870
        %v7873 = vunpack.c.l.s4 1966171168
        %v7874 = vunpack.c.0.s8 %v7873
        %v7875 = vlaneseq
        %v7876 = vshrl.u32 %v7875, 7
        %v7877 = vsub.s32 %v7874, %v7876
        %v7878 = vrot.slane %v7871, %v7877
        %v7880 = vadd.f32 %v7645, %v7878
        %v7881 = vld [vmem:[%s6 + $0x14a0] sm:$0xff]
        %v7882 = vld [vmem:[%s6 + $0x14a8] sm:$0xff]
        %v7883 = vld [vmem:[%s6 + $0x14b0] sm:$0xff]
        %v7884 = vld [vmem:[%s6 + $0x14b8] sm:$0xff]
        %v7885 = vld [vmem:[%s6 + $0x14c0] sm:$0xff]
        %v7886 = vld [vmem:[%s6 + $0x14c8] sm:$0xff]
        %v7887 = vld [vmem:[%s6 + $0x14d0] sm:$0xff]
        %v7888 = vld [vmem:[%s6 + $0x14d8] sm:$0xff]
        %v7889 = vld [vmem:[%s6 + $0x14e0] sm:$0xff]
        %v7890 = vld [vmem:[%s6 + $0x14e8] sm:$0xff]
        %v7891 = vld [vmem:[%s6 + $0x14f0] sm:$0xff]
        %v7892 = vld [vmem:[%s6 + $0x14f8] sm:$0xff]
        %v7893 = vld [vmem:[%s6 + $0x1500] sm:$0xff]
        %v7894 = vld [vmem:[%s6 + $0x1508] sm:$0xff]
        %v7895 = vld [vmem:[%s6 + $0x1510] sm:$0xff]
        %v7896 = vld [vmem:[%s6 + $0x1518] sm:$0xff]
        %v7897 = vld [vmem:[%s6 + $0x1520] sm:$0xff]
        %v7898 = vld [vmem:[%s6 + $0x1528] sm:$0xff]
        %v7899 = vld [vmem:[%s6 + $0x1530] sm:$0xff]
        %v7900 = vld [vmem:[%s6 + $0x1538] sm:$0xff]
        %v7901 = vld [vmem:[%s6 + $0x1540] sm:$0xff]
        %v7902 = vld [vmem:[%s6 + $0x1548] sm:$0xff]
        %v7903 = vld [vmem:[%s6 + $0x1550] sm:$0xff]
        %v7904 = vld [vmem:[%s6 + $0x1558] sm:$0xff]
        %v7905 = vld [vmem:[%s6 + $0x1560] sm:$0xff]
        %v7906 = vld [vmem:[%s6 + $0x1568] sm:$0xff]
        %v7907 = vld [vmem:[%s6 + $0x1570] sm:$0xff]
        %v7908 = vld [vmem:[%s6 + $0x1578] sm:$0xff]
        %v7909 = vld [vmem:[%s6 + $0x1580] sm:$0xff]
        %v7910 = vld [vmem:[%s6 + $0x1588] sm:$0xff]
        %v7911 = vld [vmem:[%s6 + $0x1590] sm:$0xff]
        %v7912 = vld [vmem:[%s6 + $0x1598] sm:$0xff]
        %v7913 = vld [vmem:[%s6 + $0x15a0] sm:$0xff]
        %v7914 = vld [vmem:[%s6 + $0x15a8] sm:$0xff]
        %v7915 = vld [vmem:[%s6 + $0x15b0] sm:$0xff]
        %v7916 = vld [vmem:[%s6 + $0x15b8] sm:$0xff]
        %v7917 = vld [vmem:[%s6 + $0x15c0] sm:$0xff]
        %v7918 = vld [vmem:[%s6 + $0x15c8] sm:$0xff]
        %v7919 = vld [vmem:[%s6 + $0x15d0] sm:$0xff]
        %v7920 = vld [vmem:[%s6 + $0x15d8] sm:$0xff]
        %v7921 = vld [vmem:[%s6 + $0x15e0] sm:$0xff]
        %v7922 = vld [vmem:[%s6 + $0x15e8] sm:$0xff]
        %v7923 = vld [vmem:[%s6 + $0x15f0] sm:$0xff]
        %v7924 = vld [vmem:[%s6 + $0x15f8] sm:$0xff]
        %v7925 = vld [vmem:[%s6 + $0x1600] sm:$0xff]
        %v7926 = vld [vmem:[%s6 + $0x1608] sm:$0xff]
        %v7927 = vld [vmem:[%s6 + $0x1610] sm:$0xff]
        %v7928 = vld [vmem:[%s6 + $0x1618] sm:$0xff]
        %v7929 = vld [vmem:[%s6 + $0x1620] sm:$0xff]
        %v7930 = vld [vmem:[%s6 + $0x1628] sm:$0xff]
        %v7931 = vld [vmem:[%s6 + $0x1630] sm:$0xff]
        %v7932 = vld [vmem:[%s6 + $0x1638] sm:$0xff]
        %v7933 = vld [vmem:[%s6 + $0x1640] sm:$0xff]
        %v7934 = vld [vmem:[%s6 + $0x1648] sm:$0xff]
        %v7935 = vld [vmem:[%s6 + $0x1650] sm:$0xff]
        %v7936 = vld [vmem:[%s6 + $0x1658] sm:$0xff]
        %v7937 = vld [vmem:[%s6 + $0x1660] sm:$0xff]
        %v7938 = vld [vmem:[%s6 + $0x1668] sm:$0xff]
        %v7939 = vld [vmem:[%s6 + $0x1670] sm:$0xff]
        %v7940 = vld [vmem:[%s6 + $0x1678] sm:$0xff]
        %v7941 = vrot.slane %v5292, 3
        %v7942 = vsel %vm5355, %v7941, 0
        %7944 = vmatprep.subr.mxu0 %v7882
        %7945 = vmatpush1.msra.mxu0 %v7881
        %7946 = vmatprep.subr.mxu0 %v7886
        %7947 = vmatpush1.msra.mxu0 %v7885
        %7948 = vmatprep.subr.mxu0 %v7890
        %7949 = vmatpush1.msra.mxu0 %v7889
        %7950 = vmatprep.subr.mxu0 %v7894
        %7951 = vmatpush1.msra.mxu0 %v7893
        %7952 = vmatprep.subr.mxu0 %v7898
        %7953 = vmatpush1.msra.mxu0 %v7897
        %7954 = vmatprep.subr.mxu0 %v7902
        %7955 = vmatpush1.msra.mxu0 %v7901
        %7956 = vmatprep.subr.mxu0 %v7906
        %7957 = vmatpush1.msra.mxu0 %v7905
        %7958 = vmatprep.subr.mxu0 %v7910
        %7959 = vmatpush1.msra.mxu0 %v7909
        %7960 = vmatprep.subr.mxu0 %v7914
        %7961 = vmatpush1.msra.mxu0 %v7913
        %7962 = vmatprep.subr.mxu0 %v7918
        %7963 = vmatpush1.msra.mxu0 %v7917
        %7964 = vmatprep.subr.mxu0 %v7922
        %7965 = vmatpush1.msra.mxu0 %v7921
        %7966 = vmatprep.subr.mxu0 %v7926
        %7967 = vmatpush1.msra.mxu0 %v7925
        %7968 = vmatprep.subr.mxu0 %v7930
        %7969 = vmatpush1.msra.mxu0 %v7929
        %7970 = vmatprep.subr.mxu0 %v7934
        %7971 = vmatpush1.msra.mxu0 %v7933
        %7972 = vmatprep.subr.mxu0 %v7938
        %7973 = vmatpush1.msra.mxu0 %v7937
        %7974 = vmatprep.subr.mxu0 0.0
        %7975 = vmatpush1.msra.mxu0 0.0
        %7976 = vmatprep.subr.mxu0 0.0
        %7977 = vmatpush1.msra.mxu0 0.0
        %7978 = vmatprep.subr.mxu0 0.0
        %7979 = vmatpush1.msra.mxu0 0.0
        %7980 = vmatprep.subr.mxu0 0.0
        %7981 = vmatpush1.msra.mxu0 0.0
        %7982 = vmatprep.subr.mxu0 0.0
        %7983 = vmatpush1.msra.mxu0 0.0
        %7984 = vmatprep.subr.mxu0 0.0
        %7985 = vmatpush1.msra.mxu0 0.0
        %7986 = vmatprep.subr.mxu0 0.0
        %7987 = vmatpush1.msra.mxu0 0.0
        %7988 = vmatprep.subr.mxu0 0.0
        %7989 = vmatpush1.msra.mxu0 0.0
        %7990 = vmatprep.subr.mxu0 0.0
        %7991 = vmatpush1.msra.mxu0 0.0
        %7992 = vmatprep.subr.mxu0 0.0
        %7993 = vmatpush1.msra.mxu0 0.0
        %7994 = vmatprep.subr.mxu0 0.0
        %7995 = vmatpush1.msra.mxu0 0.0
        %7996 = vmatprep.subr.mxu0 0.0
        %7997 = vmatpush1.msra.mxu0 0.0
        %7998 = vmatprep.subr.mxu0 0.0
        %7999 = vmatpush1.msra.mxu0 0.0
        %8000 = vmatprep.subr.mxu0 0.0
        %8001 = vmatpush1.msra.mxu0 0.0
        %8002 = vmatprep.subr.mxu0 0.0
        %8003 = vmatpush1.msra.mxu0 0.0
        %8004 = vmatprep.subr.mxu0 0.0
        %8005 = vmatpush1.msra.mxu0 0.0
        %8006 = vmatprep.subr.mxu0 0.0
        %8007 = vmatpush1.msra.mxu0 0.0
        %8008 = vmatprep.mubr.f32.mxu0 0.0
        %8009 = vmatmul.mubr.f32.gmra.mrb[0].mxu0 %v7942
        %v8010 = vpop.f32.mrb[0].mxu0
        %v8011 = vadd.f32 0.0, %v8010
        %v8012 = vpop.f32.mrb[0].mxu0
        %v8013 = vadd.f32 0.0, %v8012
        %8014 = vdwg.mxu0
        %8015 = vmatprep.subr.mxu0 %v7884
        %8016 = vmatpush1.msra.mxu0 %v7883
        %8017 = vmatprep.subr.mxu0 %v7888
        %8018 = vmatpush1.msra.mxu0 %v7887
        %8019 = vmatprep.subr.mxu0 %v7892
        %8020 = vmatpush1.msra.mxu0 %v7891
        %8021 = vmatprep.subr.mxu0 %v7896
        %8022 = vmatpush1.msra.mxu0 %v7895
        %8023 = vmatprep.subr.mxu0 %v7900
        %8024 = vmatpush1.msra.mxu0 %v7899
        %8025 = vmatprep.subr.mxu0 %v7904
        %8026 = vmatpush1.msra.mxu0 %v7903
        %8027 = vmatprep.subr.mxu0 %v7908
        %8028 = vmatpush1.msra.mxu0 %v7907
        %8029 = vmatprep.subr.mxu0 %v7912
        %8030 = vmatpush1.msra.mxu0 %v7911
        %8031 = vmatprep.subr.mxu0 %v7916
        %8032 = vmatpush1.msra.mxu0 %v7915
        %8033 = vmatprep.subr.mxu0 %v7920
        %8034 = vmatpush1.msra.mxu0 %v7919
        %8035 = vmatprep.subr.mxu0 %v7924
        %8036 = vmatpush1.msra.mxu0 %v7923
        %8037 = vmatprep.subr.mxu0 %v7928
        %8038 = vmatpush1.msra.mxu0 %v7927
        %8039 = vmatprep.subr.mxu0 %v7932
        %8040 = vmatpush1.msra.mxu0 %v7931
        %8041 = vmatprep.subr.mxu0 %v7936
        %8042 = vmatpush1.msra.mxu0 %v7935
        %8043 = vmatprep.subr.mxu0 %v7940
        %8044 = vmatpush1.msra.mxu0 %v7939
        %8045 = vmatprep.subr.mxu0 0.0
        %8046 = vmatpush1.msra.mxu0 0.0
        %8047 = vmatprep.subr.mxu0 0.0
        %8048 = vmatpush1.msra.mxu0 0.0
        %8049 = vmatprep.subr.mxu0 0.0
        %8050 = vmatpush1.msra.mxu0 0.0
        %8051 = vmatprep.subr.mxu0 0.0
        %8052 = vmatpush1.msra.mxu0 0.0
        %8053 = vmatprep.subr.mxu0 0.0
        %8054 = vmatpush1.msra.mxu0 0.0
        %8055 = vmatprep.subr.mxu0 0.0
        %8056 = vmatpush1.msra.mxu0 0.0
        %8057 = vmatprep.subr.mxu0 0.0
        %8058 = vmatpush1.msra.mxu0 0.0
        %8059 = vmatprep.subr.mxu0 0.0
        %8060 = vmatpush1.msra.mxu0 0.0
        %8061 = vmatprep.subr.mxu0 0.0
        %8062 = vmatpush1.msra.mxu0 0.0
        %8063 = vmatprep.subr.mxu0 0.0
        %8064 = vmatpush1.msra.mxu0 0.0
        %8065 = vmatprep.subr.mxu0 0.0
        %8066 = vmatpush1.msra.mxu0 0.0
        %8067 = vmatprep.subr.mxu0 0.0
        %8068 = vmatpush1.msra.mxu0 0.0
        %8069 = vmatprep.subr.mxu0 0.0
        %8070 = vmatpush1.msra.mxu0 0.0
        %8071 = vmatprep.subr.mxu0 0.0
        %8072 = vmatpush1.msra.mxu0 0.0
        %8073 = vmatprep.subr.mxu0 0.0
        %8074 = vmatpush1.msra.mxu0 0.0
        %8075 = vmatprep.subr.mxu0 0.0
        %8076 = vmatpush1.msra.mxu0 0.0
        %8077 = vmatprep.subr.mxu0 0.0
        %8078 = vmatpush1.msra.mxu0 0.0
        %8079 = vmatprep.mubr.f32.mxu0 0.0
        %8080 = vmatmul.mubr.f32.gmra.mrb[0].mxu0 %v7942
        %v8081 = vpop.f32.mrb[0].mxu0
        %v8082 = vadd.f32 0.0, %v8081
        %v8083 = vpop.f32.mrb[0].mxu0
        %v8084 = vadd.f32 0.0, %v8083
        %8085 = vdwg.mxu0
        %v8090 = vcombine.low %v8011, %v8013
        %v8091 = vcombine.low %v8082, %v8084
        %v8093 = vunpack.c.l.s4 1966171168
        %v8094 = vunpack.c.0.s8 %v8093
        %v8095 = vlaneseq
        %v8096 = vshrl.u32 %v8095, 7
        %v8097 = vsub.s32 %v8094, %v8096
        %v8098 = vrot.slane %v8090, %v8097
        %v8100 = vunpack.c.l.s4 1966171168
        %v8101 = vunpack.c.0.s8 %v8100
        %v8102 = vlaneseq
        %v8103 = vshrl.u32 %v8102, 7
        %v8104 = vsub.s32 %v8101, %v8103
        %v8105 = vrot.slane %v8091, %v8104
        %v8106 = vcombine.low %v8098, %v8105
        %v8108 = vunpack.c.l.s4 1966171168
        %v8109 = vunpack.c.0.s8 %v8108
        %v8110 = vlaneseq
        %v8111 = vshrl.u32 %v8110, 7
        %v8112 = vsub.s32 %v8109, %v8111
        %v8113 = vrot.slane %v8106, %v8112
        %v8115 = vadd.f32 %v7880, %v8113
        %v8116 = vld [vmem:[%s6 + $0x1680] sm:$0xff]
        %v8117 = vld [vmem:[%s6 + $0x1688] sm:$0xff]
        %v8118 = vld [vmem:[%s6 + $0x1690] sm:$0xff]
        %v8119 = vld [vmem:[%s6 + $0x1698] sm:$0xff]
        %v8120 = vld [vmem:[%s6 + $0x16a0] sm:$0xff]
        %v8121 = vld [vmem:[%s6 + $0x16a8] sm:$0xff]
        %v8122 = vld [vmem:[%s6 + $0x16b0] sm:$0xff]
        %v8123 = vld [vmem:[%s6 + $0x16b8] sm:$0xff]
        %v8124 = vld [vmem:[%s6 + $0x16c0] sm:$0xff]
        %v8125 = vld [vmem:[%s6 + $0x16c8] sm:$0xff]
        %v8126 = vld [vmem:[%s6 + $0x16d0] sm:$0xff]
        %v8127 = vld [vmem:[%s6 + $0x16d8] sm:$0xff]
        %v8128 = vld [vmem:[%s6 + $0x16e0] sm:$0xff]
        %v8129 = vld [vmem:[%s6 + $0x16e8] sm:$0xff]
        %v8130 = vld [vmem:[%s6 + $0x16f0] sm:$0xff]
        %v8131 = vld [vmem:[%s6 + $0x16f8] sm:$0xff]
        %v8132 = vld [vmem:[%s6 + $0x1700] sm:$0xff]
        %v8133 = vld [vmem:[%s6 + $0x1708] sm:$0xff]
        %v8134 = vld [vmem:[%s6 + $0x1710] sm:$0xff]
        %v8135 = vld [vmem:[%s6 + $0x1718] sm:$0xff]
        %v8136 = vld [vmem:[%s6 + $0x1720] sm:$0xff]
        %v8137 = vld [vmem:[%s6 + $0x1728] sm:$0xff]
        %v8138 = vld [vmem:[%s6 + $0x1730] sm:$0xff]
        %v8139 = vld [vmem:[%s6 + $0x1738] sm:$0xff]
        %v8140 = vld [vmem:[%s6 + $0x1740] sm:$0xff]
        %v8141 = vld [vmem:[%s6 + $0x1748] sm:$0xff]
        %v8142 = vld [vmem:[%s6 + $0x1750] sm:$0xff]
        %v8143 = vld [vmem:[%s6 + $0x1758] sm:$0xff]
        %v8144 = vld [vmem:[%s6 + $0x1760] sm:$0xff]
        %v8145 = vld [vmem:[%s6 + $0x1768] sm:$0xff]
        %v8146 = vld [vmem:[%s6 + $0x1770] sm:$0xff]
        %v8147 = vld [vmem:[%s6 + $0x1778] sm:$0xff]
        %v8148 = vld [vmem:[%s6 + $0x1780] sm:$0xff]
        %v8149 = vld [vmem:[%s6 + $0x1788] sm:$0xff]
        %v8150 = vld [vmem:[%s6 + $0x1790] sm:$0xff]
        %v8151 = vld [vmem:[%s6 + $0x1798] sm:$0xff]
        %v8152 = vld [vmem:[%s6 + $0x17a0] sm:$0xff]
        %v8153 = vld [vmem:[%s6 + $0x17a8] sm:$0xff]
        %v8154 = vld [vmem:[%s6 + $0x17b0] sm:$0xff]
        %v8155 = vld [vmem:[%s6 + $0x17b8] sm:$0xff]
        %v8156 = vld [vmem:[%s6 + $0x17c0] sm:$0xff]
        %v8157 = vld [vmem:[%s6 + $0x17c8] sm:$0xff]
        %v8158 = vld [vmem:[%s6 + $0x17d0] sm:$0xff]
        %v8159 = vld [vmem:[%s6 + $0x17d8] sm:$0xff]
        %v8160 = vld [vmem:[%s6 + $0x17e0] sm:$0xff]
        %v8161 = vld [vmem:[%s6 + $0x17e8] sm:$0xff]
        %v8162 = vld [vmem:[%s6 + $0x17f0] sm:$0xff]
        %v8163 = vld [vmem:[%s6 + $0x17f8] sm:$0xff]
        %v8164 = vld [vmem:[%s6 + $0x1800] sm:$0xff]
        %v8165 = vld [vmem:[%s6 + $0x1808] sm:$0xff]
        %v8166 = vld [vmem:[%s6 + $0x1810] sm:$0xff]
        %v8167 = vld [vmem:[%s6 + $0x1818] sm:$0xff]
        %v8168 = vld [vmem:[%s6 + $0x1820] sm:$0xff]
        %v8169 = vld [vmem:[%s6 + $0x1828] sm:$0xff]
        %v8170 = vld [vmem:[%s6 + $0x1830] sm:$0xff]
        %v8171 = vld [vmem:[%s6 + $0x1838] sm:$0xff]
        %v8172 = vld [vmem:[%s6 + $0x1840] sm:$0xff]
        %v8173 = vld [vmem:[%s6 + $0x1848] sm:$0xff]
        %v8174 = vld [vmem:[%s6 + $0x1850] sm:$0xff]
        %v8175 = vld [vmem:[%s6 + $0x1858] sm:$0xff]
        %v8176 = vrot.slane %v5292, 4
        %v8177 = vsel %vm5355, %v8176, 0
        %8179 = vmatprep.subr.mxu0 %v8117
        %8180 = vmatpush1.msra.mxu0 %v8116
        %8181 = vmatprep.subr.mxu0 %v8121
        %8182 = vmatpush1.msra.mxu0 %v8120
        %8183 = vmatprep.subr.mxu0 %v8125
        %8184 = vmatpush1.msra.mxu0 %v8124
        %8185 = vmatprep.subr.mxu0 %v8129
        %8186 = vmatpush1.msra.mxu0 %v8128
        %8187 = vmatprep.subr.mxu0 %v8133
        %8188 = vmatpush1.msra.mxu0 %v8132
        %8189 = vmatprep.subr.mxu0 %v8137
        %8190 = vmatpush1.msra.mxu0 %v8136
        %8191 = vmatprep.subr.mxu0 %v8141
        %8192 = vmatpush1.msra.mxu0 %v8140
        %8193 = vmatprep.subr.mxu0 %v8145
        %8194 = vmatpush1.msra.mxu0 %v8144
        %8195 = vmatprep.subr.mxu0 %v8149
        %8196 = vmatpush1.msra.mxu0 %v8148
        %8197 = vmatprep.subr.mxu0 %v8153
        %8198 = vmatpush1.msra.mxu0 %v8152
        %8199 = vmatprep.subr.mxu0 %v8157
        %8200 = vmatpush1.msra.mxu0 %v8156
        %8201 = vmatprep.subr.mxu0 %v8161
        %8202 = vmatpush1.msra.mxu0 %v8160
        %8203 = vmatprep.subr.mxu0 %v8165
        %8204 = vmatpush1.msra.mxu0 %v8164
        %8205 = vmatprep.subr.mxu0 %v8169
        %8206 = vmatpush1.msra.mxu0 %v8168
        %8207 = vmatprep.subr.mxu0 %v8173
        %8208 = vmatpush1.msra.mxu0 %v8172
        %8209 = vmatprep.subr.mxu0 0.0
        %8210 = vmatpush1.msra.mxu0 0.0
        %8211 = vmatprep.subr.mxu0 0.0
        %8212 = vmatpush1.msra.mxu0 0.0
        %8213 = vmatprep.subr.mxu0 0.0
        %8214 = vmatpush1.msra.mxu0 0.0
        %8215 = vmatprep.subr.mxu0 0.0
        %8216 = vmatpush1.msra.mxu0 0.0
        %8217 = vmatprep.subr.mxu0 0.0
        %8218 = vmatpush1.msra.mxu0 0.0
        %8219 = vmatprep.subr.mxu0 0.0
        %8220 = vmatpush1.msra.mxu0 0.0
        %8221 = vmatprep.subr.mxu0 0.0
        %8222 = vmatpush1.msra.mxu0 0.0
        %8223 = vmatprep.subr.mxu0 0.0
        %8224 = vmatpush1.msra.mxu0 0.0
        %8225 = vmatprep.subr.mxu0 0.0
        %8226 = vmatpush1.msra.mxu0 0.0
        %8227 = vmatprep.subr.mxu0 0.0
        %8228 = vmatpush1.msra.mxu0 0.0
        %8229 = vmatprep.subr.mxu0 0.0
        %8230 = vmatpush1.msra.mxu0 0.0
        %8231 = vmatprep.subr.mxu0 0.0
        %8232 = vmatpush1.msra.mxu0 0.0
        %8233 = vmatprep.subr.mxu0 0.0
        %8234 = vmatpush1.msra.mxu0 0.0
        %8235 = vmatprep.subr.mxu0 0.0
        %8236 = vmatpush1.msra.mxu0 0.0
        %8237 = vmatprep.subr.mxu0 0.0
        %8238 = vmatpush1.msra.mxu0 0.0
        %8239 = vmatprep.subr.mxu0 0.0
        %8240 = vmatpush1.msra.mxu0 0.0
        %8241 = vmatprep.subr.mxu0 0.0
        %8242 = vmatpush1.msra.mxu0 0.0
        %8243 = vmatprep.mubr.f32.mxu0 0.0
        %8244 = vmatmul.mubr.f32.gmra.mrb[0].mxu0 %v8177
        %v8245 = vpop.f32.mrb[0].mxu0
        %v8246 = vadd.f32 0.0, %v8245
        %v8247 = vpop.f32.mrb[0].mxu0
        %v8248 = vadd.f32 0.0, %v8247
        %8249 = vdwg.mxu0
        %8250 = vmatprep.subr.mxu0 %v8119
        %8251 = vmatpush1.msra.mxu0 %v8118
        %8252 = vmatprep.subr.mxu0 %v8123
        %8253 = vmatpush1.msra.mxu0 %v8122
        %8254 = vmatprep.subr.mxu0 %v8127
        %8255 = vmatpush1.msra.mxu0 %v8126
        %8256 = vmatprep.subr.mxu0 %v8131
        %8257 = vmatpush1.msra.mxu0 %v8130
        %8258 = vmatprep.subr.mxu0 %v8135
        %8259 = vmatpush1.msra.mxu0 %v8134
        %8260 = vmatprep.subr.mxu0 %v8139
        %8261 = vmatpush1.msra.mxu0 %v8138
        %8262 = vmatprep.subr.mxu0 %v8143
        %8263 = vmatpush1.msra.mxu0 %v8142
        %8264 = vmatprep.subr.mxu0 %v8147
        %8265 = vmatpush1.msra.mxu0 %v8146
        %8266 = vmatprep.subr.mxu0 %v8151
        %8267 = vmatpush1.msra.mxu0 %v8150
        %8268 = vmatprep.subr.mxu0 %v8155
        %8269 = vmatpush1.msra.mxu0 %v8154
        %8270 = vmatprep.subr.mxu0 %v8159
        %8271 = vmatpush1.msra.mxu0 %v8158
        %8272 = vmatprep.subr.mxu0 %v8163
        %8273 = vmatpush1.msra.mxu0 %v8162
        %8274 = vmatprep.subr.mxu0 %v8167
        %8275 = vmatpush1.msra.mxu0 %v8166
        %8276 = vmatprep.subr.mxu0 %v8171
        %8277 = vmatpush1.msra.mxu0 %v8170
        %8278 = vmatprep.subr.mxu0 %v8175
        %8279 = vmatpush1.msra.mxu0 %v8174
        %8280 = vmatprep.subr.mxu0 0.0
        %8281 = vmatpush1.msra.mxu0 0.0
        %8282 = vmatprep.subr.mxu0 0.0
        %8283 = vmatpush1.msra.mxu0 0.0
        %8284 = vmatprep.subr.mxu0 0.0
        %8285 = vmatpush1.msra.mxu0 0.0
        %8286 = vmatprep.subr.mxu0 0.0
        %8287 = vmatpush1.msra.mxu0 0.0
        %8288 = vmatprep.subr.mxu0 0.0
        %8289 = vmatpush1.msra.mxu0 0.0
        %8290 = vmatprep.subr.mxu0 0.0
        %8291 = vmatpush1.msra.mxu0 0.0
        %8292 = vmatprep.subr.mxu0 0.0
        %8293 = vmatpush1.msra.mxu0 0.0
        %8294 = vmatprep.subr.mxu0 0.0
        %8295 = vmatpush1.msra.mxu0 0.0
        %8296 = vmatprep.subr.mxu0 0.0
        %8297 = vmatpush1.msra.mxu0 0.0
        %8298 = vmatprep.subr.mxu0 0.0
        %8299 = vmatpush1.msra.mxu0 0.0
        %8300 = vmatprep.subr.mxu0 0.0
        %8301 = vmatpush1.msra.mxu0 0.0
        %8302 = vmatprep.subr.mxu0 0.0
        %8303 = vmatpush1.msra.mxu0 0.0
        %8304 = vmatprep.subr.mxu0 0.0
        %8305 = vmatpush1.msra.mxu0 0.0
        %8306 = vmatprep.subr.mxu0 0.0
        %8307 = vmatpush1.msra.mxu0 0.0
        %8308 = vmatprep.subr.mxu0 0.0
        %8309 = vmatpush1.msra.mxu0 0.0
        %8310 = vmatprep.subr.mxu0 0.0
        %8311 = vmatpush1.msra.mxu0 0.0
        %8312 = vmatprep.subr.mxu0 0.0
        %8313 = vmatpush1.msra.mxu0 0.0
        %8314 = vmatprep.mubr.f32.mxu0 0.0
        %8315 = vmatmul.mubr.f32.gmra.mrb[0].mxu0 %v8177
        %v8316 = vpop.f32.mrb[0].mxu0
        %v8317 = vadd.f32 0.0, %v8316
        %v8318 = vpop.f32.mrb[0].mxu0
        %v8319 = vadd.f32 0.0, %v8318
        %8320 = vdwg.mxu0
        %v8325 = vcombine.low %v8246, %v8248
        %v8326 = vcombine.low %v8317, %v8319
        %v8328 = vunpack.c.l.s4 1966171168
        %v8329 = vunpack.c.0.s8 %v8328
        %v8330 = vlaneseq
        %v8331 = vshrl.u32 %v8330, 7
        %v8332 = vsub.s32 %v8329, %v8331
        %v8333 = vrot.slane %v8325, %v8332
        %v8335 = vunpack.c.l.s4 1966171168
        %v8336 = vunpack.c.0.s8 %v8335
        %v8337 = vlaneseq
        %v8338 = vshrl.u32 %v8337, 7
        %v8339 = vsub.s32 %v8336, %v8338
        %v8340 = vrot.slane %v8326, %v8339
        %v8341 = vcombine.low %v8333, %v8340
        %v8343 = vunpack.c.l.s4 1966171168
        %v8344 = vunpack.c.0.s8 %v8343
        %v8345 = vlaneseq
        %v8346 = vshrl.u32 %v8345, 7
        %v8347 = vsub.s32 %v8344, %v8346
        %v8348 = vrot.slane %v8341, %v8347
        %v8350 = vadd.f32 %v8115, %v8348
        %v8351 = vld [vmem:[%s6 + $0x1860] sm:$0xff]
        %v8352 = vld [vmem:[%s6 + $0x1868] sm:$0xff]
        %v8353 = vld [vmem:[%s6 + $0x1870] sm:$0xff]
        %v8354 = vld [vmem:[%s6 + $0x1878] sm:$0xff]
        %v8355 = vld [vmem:[%s6 + $0x1880] sm:$0xff]
        %v8356 = vld [vmem:[%s6 + $0x1888] sm:$0xff]
        %v8357 = vld [vmem:[%s6 + $0x1890] sm:$0xff]
        %v8358 = vld [vmem:[%s6 + $0x1898] sm:$0xff]
        %v8359 = vld [vmem:[%s6 + $0x18a0] sm:$0xff]
        %v8360 = vld [vmem:[%s6 + $0x18a8] sm:$0xff]
        %v8361 = vld [vmem:[%s6 + $0x18b0] sm:$0xff]
        %v8362 = vld [vmem:[%s6 + $0x18b8] sm:$0xff]
        %v8363 = vld [vmem:[%s6 + $0x18c0] sm:$0xff]
        %v8364 = vld [vmem:[%s6 + $0x18c8] sm:$0xff]
        %v8365 = vld [vmem:[%s6 + $0x18d0] sm:$0xff]
        %v8366 = vld [vmem:[%s6 + $0x18d8] sm:$0xff]
        %v8367 = vld [vmem:[%s6 + $0x18e0] sm:$0xff]
        %v8368 = vld [vmem:[%s6 + $0x18e8] sm:$0xff]
        %v8369 = vld [vmem:[%s6 + $0x18f0] sm:$0xff]
        %v8370 = vld [vmem:[%s6 + $0x18f8] sm:$0xff]
        %v8371 = vld [vmem:[%s6 + $0x1900] sm:$0xff]
        %v8372 = vld [vmem:[%s6 + $0x1908] sm:$0xff]
        %v8373 = vld [vmem:[%s6 + $0x1910] sm:$0xff]
        %v8374 = vld [vmem:[%s6 + $0x1918] sm:$0xff]
        %v8375 = vld [vmem:[%s6 + $0x1920] sm:$0xff]
        %v8376 = vld [vmem:[%s6 + $0x1928] sm:$0xff]
        %v8377 = vld [vmem:[%s6 + $0x1930] sm:$0xff]
        %v8378 = vld [vmem:[%s6 + $0x1938] sm:$0xff]
        %v8379 = vld [vmem:[%s6 + $0x1940] sm:$0xff]
        %v8380 = vld [vmem:[%s6 + $0x1948] sm:$0xff]
        %v8381 = vld [vmem:[%s6 + $0x1950] sm:$0xff]
        %v8382 = vld [vmem:[%s6 + $0x1958] sm:$0xff]
        %v8383 = vld [vmem:[%s6 + $0x1960] sm:$0xff]
        %v8384 = vld [vmem:[%s6 + $0x1968] sm:$0xff]
        %v8385 = vld [vmem:[%s6 + $0x1970] sm:$0xff]
        %v8386 = vld [vmem:[%s6 + $0x1978] sm:$0xff]
        %v8387 = vld [vmem:[%s6 + $0x1980] sm:$0xff]
        %v8388 = vld [vmem:[%s6 + $0x1988] sm:$0xff]
        %v8389 = vld [vmem:[%s6 + $0x1990] sm:$0xff]
        %v8390 = vld [vmem:[%s6 + $0x1998] sm:$0xff]
        %v8391 = vld [vmem:[%s6 + $0x19a0] sm:$0xff]
        %v8392 = vld [vmem:[%s6 + $0x19a8] sm:$0xff]
        %v8393 = vld [vmem:[%s6 + $0x19b0] sm:$0xff]
        %v8394 = vld [vmem:[%s6 + $0x19b8] sm:$0xff]
        %v8395 = vld [vmem:[%s6 + $0x19c0] sm:$0xff]
        %v8396 = vld [vmem:[%s6 + $0x19c8] sm:$0xff]
        %v8397 = vld [vmem:[%s6 + $0x19d0] sm:$0xff]
        %v8398 = vld [vmem:[%s6 + $0x19d8] sm:$0xff]
        %v8399 = vld [vmem:[%s6 + $0x19e0] sm:$0xff]
        %v8400 = vld [vmem:[%s6 + $0x19e8] sm:$0xff]
        %v8401 = vld [vmem:[%s6 + $0x19f0] sm:$0xff]
        %v8402 = vld [vmem:[%s6 + $0x19f8] sm:$0xff]
        %v8403 = vld [vmem:[%s6 + $0x1a00] sm:$0xff]
        %v8404 = vld [vmem:[%s6 + $0x1a08] sm:$0xff]
        %v8405 = vld [vmem:[%s6 + $0x1a10] sm:$0xff]
        %v8406 = vld [vmem:[%s6 + $0x1a18] sm:$0xff]
        %v8407 = vld [vmem:[%s6 + $0x1a20] sm:$0xff]
        %v8408 = vld [vmem:[%s6 + $0x1a28] sm:$0xff]
        %v8409 = vld [vmem:[%s6 + $0x1a30] sm:$0xff]
        %v8410 = vld [vmem:[%s6 + $0x1a38] sm:$0xff]
        %v8411 = vrot.slane %v5292, 5
        %v8412 = vsel %vm5355, %v8411, 0
        %8414 = vmatprep.subr.mxu0 %v8352
        %8415 = vmatpush1.msra.mxu0 %v8351
        %8416 = vmatprep.subr.mxu0 %v8356
        %8417 = vmatpush1.msra.mxu0 %v8355
        %8418 = vmatprep.subr.mxu0 %v8360
        %8419 = vmatpush1.msra.mxu0 %v8359
        %8420 = vmatprep.subr.mxu0 %v8364
        %8421 = vmatpush1.msra.mxu0 %v8363
        %8422 = vmatprep.subr.mxu0 %v8368
        %8423 = vmatpush1.msra.mxu0 %v8367
        %8424 = vmatprep.subr.mxu0 %v8372
        %8425 = vmatpush1.msra.mxu0 %v8371
        %8426 = vmatprep.subr.mxu0 %v8376
        %8427 = vmatpush1.msra.mxu0 %v8375
        %8428 = vmatprep.subr.mxu0 %v8380
        %8429 = vmatpush1.msra.mxu0 %v8379
        %8430 = vmatprep.subr.mxu0 %v8384
        %8431 = vmatpush1.msra.mxu0 %v8383
        %8432 = vmatprep.subr.mxu0 %v8388
        %8433 = vmatpush1.msra.mxu0 %v8387
        %8434 = vmatprep.subr.mxu0 %v8392
        %8435 = vmatpush1.msra.mxu0 %v8391
        %8436 = vmatprep.subr.mxu0 %v8396
        %8437 = vmatpush1.msra.mxu0 %v8395
        %8438 = vmatprep.subr.mxu0 %v8400
        %8439 = vmatpush1.msra.mxu0 %v8399
        %8440 = vmatprep.subr.mxu0 %v8404
        %8441 = vmatpush1.msra.mxu0 %v8403
        %8442 = vmatprep.subr.mxu0 %v8408
        %8443 = vmatpush1.msra.mxu0 %v8407
        %8444 = vmatprep.subr.mxu0 0.0
        %8445 = vmatpush1.msra.mxu0 0.0
        %8446 = vmatprep.subr.mxu0 0.0
        %8447 = vmatpush1.msra.mxu0 0.0
        %8448 = vmatprep.subr.mxu0 0.0
        %8449 = vmatpush1.msra.mxu0 0.0
        %8450 = vmatprep.subr.mxu0 0.0
        %8451 = vmatpush1.msra.mxu0 0.0
        %8452 = vmatprep.subr.mxu0 0.0
        %8453 = vmatpush1.msra.mxu0 0.0
        %8454 = vmatprep.subr.mxu0 0.0
        %8455 = vmatpush1.msra.mxu0 0.0
        %8456 = vmatprep.subr.mxu0 0.0
        %8457 = vmatpush1.msra.mxu0 0.0
        %8458 = vmatprep.subr.mxu0 0.0
        %8459 = vmatpush1.msra.mxu0 0.0
        %8460 = vmatprep.subr.mxu0 0.0
        %8461 = vmatpush1.msra.mxu0 0.0
        %8462 = vmatprep.subr.mxu0 0.0
        %8463 = vmatpush1.msra.mxu0 0.0
        %8464 = vmatprep.subr.mxu0 0.0
        %8465 = vmatpush1.msra.mxu0 0.0
        %8466 = vmatprep.subr.mxu0 0.0
        %8467 = vmatpush1.msra.mxu0 0.0
        %8468 = vmatprep.subr.mxu0 0.0
        %8469 = vmatpush1.msra.mxu0 0.0
        %8470 = vmatprep.subr.mxu0 0.0
        %8471 = vmatpush1.msra.mxu0 0.0
        %8472 = vmatprep.subr.mxu0 0.0
        %8473 = vmatpush1.msra.mxu0 0.0
        %8474 = vmatprep.subr.mxu0 0.0
        %8475 = vmatpush1.msra.mxu0 0.0
        %8476 = vmatprep.subr.mxu0 0.0
        %8477 = vmatpush1.msra.mxu0 0.0
        %8478 = vmatprep.mubr.f32.mxu0 0.0
        %8479 = vmatmul.mubr.f32.gmra.mrb[0].mxu0 %v8412
        %v8480 = vpop.f32.mrb[0].mxu0
        %v8481 = vadd.f32 0.0, %v8480
        %v8482 = vpop.f32.mrb[0].mxu0
        %v8483 = vadd.f32 0.0, %v8482
        %8484 = vdwg.mxu0
        %8485 = vmatprep.subr.mxu0 %v8354
        %8486 = vmatpush1.msra.mxu0 %v8353
        %8487 = vmatprep.subr.mxu0 %v8358
        %8488 = vmatpush1.msra.mxu0 %v8357
        %8489 = vmatprep.subr.mxu0 %v8362
        %8490 = vmatpush1.msra.mxu0 %v8361
        %8491 = vmatprep.subr.mxu0 %v8366
        %8492 = vmatpush1.msra.mxu0 %v8365
        %8493 = vmatprep.subr.mxu0 %v8370
        %8494 = vmatpush1.msra.mxu0 %v8369
        %8495 = vmatprep.subr.mxu0 %v8374
        %8496 = vmatpush1.msra.mxu0 %v8373
        %8497 = vmatprep.subr.mxu0 %v8378
        %8498 = vmatpush1.msra.mxu0 %v8377
        %8499 = vmatprep.subr.mxu0 %v8382
        %8500 = vmatpush1.msra.mxu0 %v8381
        %8501 = vmatprep.subr.mxu0 %v8386
        %8502 = vmatpush1.msra.mxu0 %v8385
        %8503 = vmatprep.subr.mxu0 %v8390
        %8504 = vmatpush1.msra.mxu0 %v8389
        %8505 = vmatprep.subr.mxu0 %v8394
        %8506 = vmatpush1.msra.mxu0 %v8393
        %8507 = vmatprep.subr.mxu0 %v8398
        %8508 = vmatpush1.msra.mxu0 %v8397
        %8509 = vmatprep.subr.mxu0 %v8402
        %8510 = vmatpush1.msra.mxu0 %v8401
        %8511 = vmatprep.subr.mxu0 %v8406
        %8512 = vmatpush1.msra.mxu0 %v8405
        %8513 = vmatprep.subr.mxu0 %v8410
        %8514 = vmatpush1.msra.mxu0 %v8409
        %8515 = vmatprep.subr.mxu0 0.0
        %8516 = vmatpush1.msra.mxu0 0.0
        %8517 = vmatprep.subr.mxu0 0.0
        %8518 = vmatpush1.msra.mxu0 0.0
        %8519 = vmatprep.subr.mxu0 0.0
        %8520 = vmatpush1.msra.mxu0 0.0
        %8521 = vmatprep.subr.mxu0 0.0
        %8522 = vmatpush1.msra.mxu0 0.0
        %8523 = vmatprep.subr.mxu0 0.0
        %8524 = vmatpush1.msra.mxu0 0.0
        %8525 = vmatprep.subr.mxu0 0.0
        %8526 = vmatpush1.msra.mxu0 0.0
        %8527 = vmatprep.subr.mxu0 0.0
        %8528 = vmatpush1.msra.mxu0 0.0
        %8529 = vmatprep.subr.mxu0 0.0
        %8530 = vmatpush1.msra.mxu0 0.0
        %8531 = vmatprep.subr.mxu0 0.0
        %8532 = vmatpush1.msra.mxu0 0.0
        %8533 = vmatprep.subr.mxu0 0.0
        %8534 = vmatpush1.msra.mxu0 0.0
        %8535 = vmatprep.subr.mxu0 0.0
        %8536 = vmatpush1.msra.mxu0 0.0
        %8537 = vmatprep.subr.mxu0 0.0
        %8538 = vmatpush1.msra.mxu0 0.0
        %8539 = vmatprep.subr.mxu0 0.0
        %8540 = vmatpush1.msra.mxu0 0.0
        %8541 = vmatprep.subr.mxu0 0.0
        %8542 = vmatpush1.msra.mxu0 0.0
        %8543 = vmatprep.subr.mxu0 0.0
        %8544 = vmatpush1.msra.mxu0 0.0
        %8545 = vmatprep.subr.mxu0 0.0
        %8546 = vmatpush1.msra.mxu0 0.0
        %8547 = vmatprep.subr.mxu0 0.0
        %8548 = vmatpush1.msra.mxu0 0.0
        %8549 = vmatprep.mubr.f32.mxu0 0.0
        %8550 = vmatmul.mubr.f32.gmra.mrb[0].mxu0 %v8412
        %v8551 = vpop.f32.mrb[0].mxu0
        %v8552 = vadd.f32 0.0, %v8551
        %v8553 = vpop.f32.mrb[0].mxu0
        %v8554 = vadd.f32 0.0, %v8553
        %8555 = vdwg.mxu0
        %v8560 = vcombine.low %v8481, %v8483
        %v8561 = vcombine.low %v8552, %v8554
        %v8563 = vunpack.c.l.s4 1966171168
        %v8564 = vunpack.c.0.s8 %v8563
        %v8565 = vlaneseq
        %v8566 = vshrl.u32 %v8565, 7
        %v8567 = vsub.s32 %v8564, %v8566
        %v8568 = vrot.slane %v8560, %v8567
        %v8570 = vunpack.c.l.s4 1966171168
        %v8571 = vunpack.c.0.s8 %v8570
        %v8572 = vlaneseq
        %v8573 = vshrl.u32 %v8572, 7
        %v8574 = vsub.s32 %v8571, %v8573
        %v8575 = vrot.slane %v8561, %v8574
        %v8576 = vcombine.low %v8568, %v8575
        %v8578 = vunpack.c.l.s4 1966171168
        %v8579 = vunpack.c.0.s8 %v8578
        %v8580 = vlaneseq
        %v8581 = vshrl.u32 %v8580, 7
        %v8582 = vsub.s32 %v8579, %v8581
        %v8583 = vrot.slane %v8576, %v8582
        %v8585 = vadd.f32 %v8350, %v8583
        %v8586 = vld [vmem:[%s6 + $0x1a40] sm:$0xff]
        %v8587 = vld [vmem:[%s6 + $0x1a48] sm:$0xff]
        %v8588 = vld [vmem:[%s6 + $0x1a50] sm:$0xff]
        %v8589 = vld [vmem:[%s6 + $0x1a58] sm:$0xff]
        %v8590 = vld [vmem:[%s6 + $0x1a60] sm:$0xff]
        %v8591 = vld [vmem:[%s6 + $0x1a68] sm:$0xff]
        %v8592 = vld [vmem:[%s6 + $0x1a70] sm:$0xff]
        %v8593 = vld [vmem:[%s6 + $0x1a78] sm:$0xff]
        %v8594 = vld [vmem:[%s6 + $0x1a80] sm:$0xff]
        %v8595 = vld [vmem:[%s6 + $0x1a88] sm:$0xff]
        %v8596 = vld [vmem:[%s6 + $0x1a90] sm:$0xff]
        %v8597 = vld [vmem:[%s6 + $0x1a98] sm:$0xff]
        %v8598 = vld [vmem:[%s6 + $0x1aa0] sm:$0xff]
        %v8599 = vld [vmem:[%s6 + $0x1aa8] sm:$0xff]
        %v8600 = vld [vmem:[%s6 + $0x1ab0] sm:$0xff]
        %v8601 = vld [vmem:[%s6 + $0x1ab8] sm:$0xff]
        %v8602 = vld [vmem:[%s6 + $0x1ac0] sm:$0xff]
        %v8603 = vld [vmem:[%s6 + $0x1ac8] sm:$0xff]
        %v8604 = vld [vmem:[%s6 + $0x1ad0] sm:$0xff]
        %v8605 = vld [vmem:[%s6 + $0x1ad8] sm:$0xff]
        %v8606 = vld [vmem:[%s6 + $0x1ae0] sm:$0xff]
        %v8607 = vld [vmem:[%s6 + $0x1ae8] sm:$0xff]
        %v8608 = vld [vmem:[%s6 + $0x1af0] sm:$0xff]
        %v8609 = vld [vmem:[%s6 + $0x1af8] sm:$0xff]
        %v8610 = vld [vmem:[%s6 + $0x1b00] sm:$0xff]
        %v8611 = vld [vmem:[%s6 + $0x1b08] sm:$0xff]
        %v8612 = vld [vmem:[%s6 + $0x1b10] sm:$0xff]
        %v8613 = vld [vmem:[%s6 + $0x1b18] sm:$0xff]
        %v8614 = vld [vmem:[%s6 + $0x1b20] sm:$0xff]
        %v8615 = vld [vmem:[%s6 + $0x1b28] sm:$0xff]
        %v8616 = vld [vmem:[%s6 + $0x1b30] sm:$0xff]
        %v8617 = vld [vmem:[%s6 + $0x1b38] sm:$0xff]
        %v8618 = vld [vmem:[%s6 + $0x1b40] sm:$0xff]
        %v8619 = vld [vmem:[%s6 + $0x1b48] sm:$0xff]
        %v8620 = vld [vmem:[%s6 + $0x1b50] sm:$0xff]
        %v8621 = vld [vmem:[%s6 + $0x1b58] sm:$0xff]
        %v8622 = vld [vmem:[%s6 + $0x1b60] sm:$0xff]
        %v8623 = vld [vmem:[%s6 + $0x1b68] sm:$0xff]
        %v8624 = vld [vmem:[%s6 + $0x1b70] sm:$0xff]
        %v8625 = vld [vmem:[%s6 + $0x1b78] sm:$0xff]
        %v8626 = vld [vmem:[%s6 + $0x1b80] sm:$0xff]
        %v8627 = vld [vmem:[%s6 + $0x1b88] sm:$0xff]
        %v8628 = vld [vmem:[%s6 + $0x1b90] sm:$0xff]
        %v8629 = vld [vmem:[%s6 + $0x1b98] sm:$0xff]
        %v8630 = vld [vmem:[%s6 + $0x1ba0] sm:$0xff]
        %v8631 = vld [vmem:[%s6 + $0x1ba8] sm:$0xff]
        %v8632 = vld [vmem:[%s6 + $0x1bb0] sm:$0xff]
        %v8633 = vld [vmem:[%s6 + $0x1bb8] sm:$0xff]
        %v8634 = vld [vmem:[%s6 + $0x1bc0] sm:$0xff]
        %v8635 = vld [vmem:[%s6 + $0x1bc8] sm:$0xff]
        %v8636 = vld [vmem:[%s6 + $0x1bd0] sm:$0xff]
        %v8637 = vld [vmem:[%s6 + $0x1bd8] sm:$0xff]
        %v8638 = vld [vmem:[%s6 + $0x1be0] sm:$0xff]
        %v8639 = vld [vmem:[%s6 + $0x1be8] sm:$0xff]
        %v8640 = vld [vmem:[%s6 + $0x1bf0] sm:$0xff]
        %v8641 = vld [vmem:[%s6 + $0x1bf8] sm:$0xff]
        %v8642 = vld [vmem:[%s6 + $0x1c00] sm:$0xff]
        %v8643 = vld [vmem:[%s6 + $0x1c08] sm:$0xff]
        %v8644 = vld [vmem:[%s6 + $0x1c10] sm:$0xff]
        %v8645 = vld [vmem:[%s6 + $0x1c18] sm:$0xff]
        %v8646 = vrot.slane %v5292, 6
        %v8647 = vsel %vm5355, %v8646, 0
        %8649 = vmatprep.subr.mxu0 %v8587
        %8650 = vmatpush1.msra.mxu0 %v8586
        %8651 = vmatprep.subr.mxu0 %v8591
        %8652 = vmatpush1.msra.mxu0 %v8590
        %8653 = vmatprep.subr.mxu0 %v8595
        %8654 = vmatpush1.msra.mxu0 %v8594
        %8655 = vmatprep.subr.mxu0 %v8599
        %8656 = vmatpush1.msra.mxu0 %v8598
        %8657 = vmatprep.subr.mxu0 %v8603
        %8658 = vmatpush1.msra.mxu0 %v8602
        %8659 = vmatprep.subr.mxu0 %v8607
        %8660 = vmatpush1.msra.mxu0 %v8606
        %8661 = vmatprep.subr.mxu0 %v8611
        %8662 = vmatpush1.msra.mxu0 %v8610
        %8663 = vmatprep.subr.mxu0 %v8615
        %8664 = vmatpush1.msra.mxu0 %v8614
        %8665 = vmatprep.subr.mxu0 %v8619
        %8666 = vmatpush1.msra.mxu0 %v8618
        %8667 = vmatprep.subr.mxu0 %v8623
        %8668 = vmatpush1.msra.mxu0 %v8622
        %8669 = vmatprep.subr.mxu0 %v8627
        %8670 = vmatpush1.msra.mxu0 %v8626
        %8671 = vmatprep.subr.mxu0 %v8631
        %8672 = vmatpush1.msra.mxu0 %v8630
        %8673 = vmatprep.subr.mxu0 %v8635
        %8674 = vmatpush1.msra.mxu0 %v8634
        %8675 = vmatprep.subr.mxu0 %v8639
        %8676 = vmatpush1.msra.mxu0 %v8638
        %8677 = vmatprep.subr.mxu0 %v8643
        %8678 = vmatpush1.msra.mxu0 %v8642
        %8679 = vmatprep.subr.mxu0 0.0
        %8680 = vmatpush1.msra.mxu0 0.0
        %8681 = vmatprep.subr.mxu0 0.0
        %8682 = vmatpush1.msra.mxu0 0.0
        %8683 = vmatprep.subr.mxu0 0.0
        %8684 = vmatpush1.msra.mxu0 0.0
        %8685 = vmatprep.subr.mxu0 0.0
        %8686 = vmatpush1.msra.mxu0 0.0
        %8687 = vmatprep.subr.mxu0 0.0
        %8688 = vmatpush1.msra.mxu0 0.0
        %8689 = vmatprep.subr.mxu0 0.0
        %8690 = vmatpush1.msra.mxu0 0.0
        %8691 = vmatprep.subr.mxu0 0.0
        %8692 = vmatpush1.msra.mxu0 0.0
        %8693 = vmatprep.subr.mxu0 0.0
        %8694 = vmatpush1.msra.mxu0 0.0
        %8695 = vmatprep.subr.mxu0 0.0
        %8696 = vmatpush1.msra.mxu0 0.0
        %8697 = vmatprep.subr.mxu0 0.0
        %8698 = vmatpush1.msra.mxu0 0.0
        %8699 = vmatprep.subr.mxu0 0.0
        %8700 = vmatpush1.msra.mxu0 0.0
        %8701 = vmatprep.subr.mxu0 0.0
        %8702 = vmatpush1.msra.mxu0 0.0
        %8703 = vmatprep.subr.mxu0 0.0
        %8704 = vmatpush1.msra.mxu0 0.0
        %8705 = vmatprep.subr.mxu0 0.0
        %8706 = vmatpush1.msra.mxu0 0.0
        %8707 = vmatprep.subr.mxu0 0.0
        %8708 = vmatpush1.msra.mxu0 0.0
        %8709 = vmatprep.subr.mxu0 0.0
        %8710 = vmatpush1.msra.mxu0 0.0
        %8711 = vmatprep.subr.mxu0 0.0
        %8712 = vmatpush1.msra.mxu0 0.0
        %8713 = vmatprep.mubr.f32.mxu0 0.0
        %8714 = vmatmul.mubr.f32.gmra.mrb[0].mxu0 %v8647
        %v8715 = vpop.f32.mrb[0].mxu0
        %v8716 = vadd.f32 0.0, %v8715
        %v8717 = vpop.f32.mrb[0].mxu0
        %v8718 = vadd.f32 0.0, %v8717
        %8719 = vdwg.mxu0
        %8720 = vmatprep.subr.mxu0 %v8589
        %8721 = vmatpush1.msra.mxu0 %v8588
        %8722 = vmatprep.subr.mxu0 %v8593
        %8723 = vmatpush1.msra.mxu0 %v8592
        %8724 = vmatprep.subr.mxu0 %v8597
        %8725 = vmatpush1.msra.mxu0 %v8596
        %8726 = vmatprep.subr.mxu0 %v8601
        %8727 = vmatpush1.msra.mxu0 %v8600
        %8728 = vmatprep.subr.mxu0 %v8605
        %8729 = vmatpush1.msra.mxu0 %v8604
        %8730 = vmatprep.subr.mxu0 %v8609
        %8731 = vmatpush1.msra.mxu0 %v8608
        %8732 = vmatprep.subr.mxu0 %v8613
        %8733 = vmatpush1.msra.mxu0 %v8612
        %8734 = vmatprep.subr.mxu0 %v8617
        %8735 = vmatpush1.msra.mxu0 %v8616
        %8736 = vmatprep.subr.mxu0 %v8621
        %8737 = vmatpush1.msra.mxu0 %v8620
        %8738 = vmatprep.subr.mxu0 %v8625
        %8739 = vmatpush1.msra.mxu0 %v8624
        %8740 = vmatprep.subr.mxu0 %v8629
        %8741 = vmatpush1.msra.mxu0 %v8628
        %8742 = vmatprep.subr.mxu0 %v8633
        %8743 = vmatpush1.msra.mxu0 %v8632
        %8744 = vmatprep.subr.mxu0 %v8637
        %8745 = vmatpush1.msra.mxu0 %v8636
        %8746 = vmatprep.subr.mxu0 %v8641
        %8747 = vmatpush1.msra.mxu0 %v8640
        %8748 = vmatprep.subr.mxu0 %v8645
        %8749 = vmatpush1.msra.mxu0 %v8644
        %8750 = vmatprep.subr.mxu0 0.0
        %8751 = vmatpush1.msra.mxu0 0.0
        %8752 = vmatprep.subr.mxu0 0.0
        %8753 = vmatpush1.msra.mxu0 0.0
        %8754 = vmatprep.subr.mxu0 0.0
        %8755 = vmatpush1.msra.mxu0 0.0
        %8756 = vmatprep.subr.mxu0 0.0
        %8757 = vmatpush1.msra.mxu0 0.0
        %8758 = vmatprep.subr.mxu0 0.0
        %8759 = vmatpush1.msra.mxu0 0.0
        %8760 = vmatprep.subr.mxu0 0.0
        %8761 = vmatpush1.msra.mxu0 0.0
        %8762 = vmatprep.subr.mxu0 0.0
        %8763 = vmatpush1.msra.mxu0 0.0
        %8764 = vmatprep.subr.mxu0 0.0
        %8765 = vmatpush1.msra.mxu0 0.0
        %8766 = vmatprep.subr.mxu0 0.0
        %8767 = vmatpush1.msra.mxu0 0.0
        %8768 = vmatprep.subr.mxu0 0.0
        %8769 = vmatpush1.msra.mxu0 0.0
        %8770 = vmatprep.subr.mxu0 0.0
        %8771 = vmatpush1.msra.mxu0 0.0
        %8772 = vmatprep.subr.mxu0 0.0
        %8773 = vmatpush1.msra.mxu0 0.0
        %8774 = vmatprep.subr.mxu0 0.0
        %8775 = vmatpush1.msra.mxu0 0.0
        %8776 = vmatprep.subr.mxu0 0.0
        %8777 = vmatpush1.msra.mxu0 0.0
        %8778 = vmatprep.subr.mxu0 0.0
        %8779 = vmatpush1.msra.mxu0 0.0
        %8780 = vmatprep.subr.mxu0 0.0
        %8781 = vmatpush1.msra.mxu0 0.0
        %8782 = vmatprep.subr.mxu0 0.0
        %8783 = vmatpush1.msra.mxu0 0.0
        %8784 = vmatprep.mubr.f32.mxu0 0.0
        %8785 = vmatmul.mubr.f32.gmra.mrb[0].mxu0 %v8647
        %v8786 = vpop.f32.mrb[0].mxu0
        %v8787 = vadd.f32 0.0, %v8786
        %v8788 = vpop.f32.mrb[0].mxu0
        %v8789 = vadd.f32 0.0, %v8788
        %8790 = vdwg.mxu0
        %v8795 = vcombine.low %v8716, %v8718
        %v8796 = vcombine.low %v8787, %v8789
        %v8798 = vunpack.c.l.s4 1966171168
        %v8799 = vunpack.c.0.s8 %v8798
        %v8800 = vlaneseq
        %v8801 = vshrl.u32 %v8800, 7
        %v8802 = vsub.s32 %v8799, %v8801
        %v8803 = vrot.slane %v8795, %v8802
        %v8805 = vunpack.c.l.s4 1966171168
        %v8806 = vunpack.c.0.s8 %v8805
        %v8807 = vlaneseq
        %v8808 = vshrl.u32 %v8807, 7
        %v8809 = vsub.s32 %v8806, %v8808
        %v8810 = vrot.slane %v8796, %v8809
        %v8811 = vcombine.low %v8803, %v8810
        %v8813 = vunpack.c.l.s4 1966171168
        %v8814 = vunpack.c.0.s8 %v8813
        %v8815 = vlaneseq
        %v8816 = vshrl.u32 %v8815, 7
        %v8817 = vsub.s32 %v8814, %v8816
        %v8818 = vrot.slane %v8811, %v8817
        %v8820 = vadd.f32 %v8585, %v8818
        %v8821 = vld [vmem:[%s6 + $0x1c20] sm:$0xff]
        %v8822 = vld [vmem:[%s6 + $0x1c28] sm:$0xff]
        %v8823 = vld [vmem:[%s6 + $0x1c30] sm:$0xff]
        %v8824 = vld [vmem:[%s6 + $0x1c38] sm:$0xff]
        %v8825 = vld [vmem:[%s6 + $0x1c40] sm:$0xff]
        %v8826 = vld [vmem:[%s6 + $0x1c48] sm:$0xff]
        %v8827 = vld [vmem:[%s6 + $0x1c50] sm:$0xff]
        %v8828 = vld [vmem:[%s6 + $0x1c58] sm:$0xff]
        %v8829 = vld [vmem:[%s6 + $0x1c60] sm:$0xff]
        %v8830 = vld [vmem:[%s6 + $0x1c68] sm:$0xff]
        %v8831 = vld [vmem:[%s6 + $0x1c70] sm:$0xff]
        %v8832 = vld [vmem:[%s6 + $0x1c78] sm:$0xff]
        %v8833 = vld [vmem:[%s6 + $0x1c80] sm:$0xff]
        %v8834 = vld [vmem:[%s6 + $0x1c88] sm:$0xff]
        %v8835 = vld [vmem:[%s6 + $0x1c90] sm:$0xff]
        %v8836 = vld [vmem:[%s6 + $0x1c98] sm:$0xff]
        %v8837 = vld [vmem:[%s6 + $0x1ca0] sm:$0xff]
        %v8838 = vld [vmem:[%s6 + $0x1ca8] sm:$0xff]
        %v8839 = vld [vmem:[%s6 + $0x1cb0] sm:$0xff]
        %v8840 = vld [vmem:[%s6 + $0x1cb8] sm:$0xff]
        %v8841 = vld [vmem:[%s6 + $0x1cc0] sm:$0xff]
        %v8842 = vld [vmem:[%s6 + $0x1cc8] sm:$0xff]
        %v8843 = vld [vmem:[%s6 + $0x1cd0] sm:$0xff]
        %v8844 = vld [vmem:[%s6 + $0x1cd8] sm:$0xff]
        %v8845 = vld [vmem:[%s6 + $0x1ce0] sm:$0xff]
        %v8846 = vld [vmem:[%s6 + $0x1ce8] sm:$0xff]
        %v8847 = vld [vmem:[%s6 + $0x1cf0] sm:$0xff]
        %v8848 = vld [vmem:[%s6 + $0x1cf8] sm:$0xff]
        %v8849 = vld [vmem:[%s6 + $0x1d00] sm:$0xff]
        %v8850 = vld [vmem:[%s6 + $0x1d08] sm:$0xff]
        %v8851 = vld [vmem:[%s6 + $0x1d10] sm:$0xff]
        %v8852 = vld [vmem:[%s6 + $0x1d18] sm:$0xff]
        %v8853 = vld [vmem:[%s6 + $0x1d20] sm:$0xff]
        %v8854 = vld [vmem:[%s6 + $0x1d28] sm:$0xff]
        %v8855 = vld [vmem:[%s6 + $0x1d30] sm:$0xff]
        %v8856 = vld [vmem:[%s6 + $0x1d38] sm:$0xff]
        %v8857 = vld [vmem:[%s6 + $0x1d40] sm:$0xff]
        %v8858 = vld [vmem:[%s6 + $0x1d48] sm:$0xff]
        %v8859 = vld [vmem:[%s6 + $0x1d50] sm:$0xff]
        %v8860 = vld [vmem:[%s6 + $0x1d58] sm:$0xff]
        %v8861 = vld [vmem:[%s6 + $0x1d60] sm:$0xff]
        %v8862 = vld [vmem:[%s6 + $0x1d68] sm:$0xff]
        %v8863 = vld [vmem:[%s6 + $0x1d70] sm:$0xff]
        %v8864 = vld [vmem:[%s6 + $0x1d78] sm:$0xff]
        %v8865 = vld [vmem:[%s6 + $0x1d80] sm:$0xff]
        %v8866 = vld [vmem:[%s6 + $0x1d88] sm:$0xff]
        %v8867 = vld [vmem:[%s6 + $0x1d90] sm:$0xff]
        %v8868 = vld [vmem:[%s6 + $0x1d98] sm:$0xff]
        %v8869 = vld [vmem:[%s6 + $0x1da0] sm:$0xff]
        %v8870 = vld [vmem:[%s6 + $0x1da8] sm:$0xff]
        %v8871 = vld [vmem:[%s6 + $0x1db0] sm:$0xff]
        %v8872 = vld [vmem:[%s6 + $0x1db8] sm:$0xff]
        %v8873 = vld [vmem:[%s6 + $0x1dc0] sm:$0xff]
        %v8874 = vld [vmem:[%s6 + $0x1dc8] sm:$0xff]
        %v8875 = vld [vmem:[%s6 + $0x1dd0] sm:$0xff]
        %v8876 = vld [vmem:[%s6 + $0x1dd8] sm:$0xff]
        %v8877 = vld [vmem:[%s6 + $0x1de0] sm:$0xff]
        %v8878 = vld [vmem:[%s6 + $0x1de8] sm:$0xff]
        %v8879 = vld [vmem:[%s6 + $0x1df0] sm:$0xff]
        %v8880 = vld [vmem:[%s6 + $0x1df8] sm:$0xff]
        %v8881 = vrot.slane %v5292, 7
        %v8882 = vsel %vm5355, %v8881, 0
        %8884 = vmatprep.subr.mxu0 %v8822
        %8885 = vmatpush1.msra.mxu0 %v8821
        %8886 = vmatprep.subr.mxu0 %v8826
        %8887 = vmatpush1.msra.mxu0 %v8825
        %8888 = vmatprep.subr.mxu0 %v8830
        %8889 = vmatpush1.msra.mxu0 %v8829
        %8890 = vmatprep.subr.mxu0 %v8834
        %8891 = vmatpush1.msra.mxu0 %v8833
        %8892 = vmatprep.subr.mxu0 %v8838
        %8893 = vmatpush1.msra.mxu0 %v8837
        %8894 = vmatprep.subr.mxu0 %v8842
        %8895 = vmatpush1.msra.mxu0 %v8841
        %8896 = vmatprep.subr.mxu0 %v8846
        %8897 = vmatpush1.msra.mxu0 %v8845
        %8898 = vmatprep.subr.mxu0 %v8850
        %8899 = vmatpush1.msra.mxu0 %v8849
        %8900 = vmatprep.subr.mxu0 %v8854
        %8901 = vmatpush1.msra.mxu0 %v8853
        %8902 = vmatprep.subr.mxu0 %v8858
        %8903 = vmatpush1.msra.mxu0 %v8857
        %8904 = vmatprep.subr.mxu0 %v8862
        %8905 = vmatpush1.msra.mxu0 %v8861
        %8906 = vmatprep.subr.mxu0 %v8866
        %8907 = vmatpush1.msra.mxu0 %v8865
        %8908 = vmatprep.subr.mxu0 %v8870
        %8909 = vmatpush1.msra.mxu0 %v8869
        %8910 = vmatprep.subr.mxu0 %v8874
        %8911 = vmatpush1.msra.mxu0 %v8873
        %8912 = vmatprep.subr.mxu0 %v8878
        %8913 = vmatpush1.msra.mxu0 %v8877
        %8914 = vmatprep.subr.mxu0 0.0
        %8915 = vmatpush1.msra.mxu0 0.0
        %8916 = vmatprep.subr.mxu0 0.0
        %8917 = vmatpush1.msra.mxu0 0.0
        %8918 = vmatprep.subr.mxu0 0.0
        %8919 = vmatpush1.msra.mxu0 0.0
        %8920 = vmatprep.subr.mxu0 0.0
        %8921 = vmatpush1.msra.mxu0 0.0
        %8922 = vmatprep.subr.mxu0 0.0
        %8923 = vmatpush1.msra.mxu0 0.0
        %8924 = vmatprep.subr.mxu0 0.0
        %8925 = vmatpush1.msra.mxu0 0.0
        %8926 = vmatprep.subr.mxu0 0.0
        %8927 = vmatpush1.msra.mxu0 0.0
        %8928 = vmatprep.subr.mxu0 0.0
        %8929 = vmatpush1.msra.mxu0 0.0
        %8930 = vmatprep.subr.mxu0 0.0
        %8931 = vmatpush1.msra.mxu0 0.0
        %8932 = vmatprep.subr.mxu0 0.0
        %8933 = vmatpush1.msra.mxu0 0.0
        %8934 = vmatprep.subr.mxu0 0.0
        %8935 = vmatpush1.msra.mxu0 0.0
        %8936 = vmatprep.subr.mxu0 0.0
        %8937 = vmatpush1.msra.mxu0 0.0
        %8938 = vmatprep.subr.mxu0 0.0
        %8939 = vmatpush1.msra.mxu0 0.0
        %8940 = vmatprep.subr.mxu0 0.0
        %8941 = vmatpush1.msra.mxu0 0.0
        %8942 = vmatprep.subr.mxu0 0.0
        %8943 = vmatpush1.msra.mxu0 0.0
        %8944 = vmatprep.subr.mxu0 0.0
        %8945 = vmatpush1.msra.mxu0 0.0
        %8946 = vmatprep.subr.mxu0 0.0
        %8947 = vmatpush1.msra.mxu0 0.0
        %8948 = vmatprep.mubr.f32.mxu0 0.0
        %8949 = vmatmul.mubr.f32.gmra.mrb[0].mxu0 %v8882
        %v8950 = vpop.f32.mrb[0].mxu0
        %v8951 = vadd.f32 0.0, %v8950
        %v8952 = vpop.f32.mrb[0].mxu0
        %v8953 = vadd.f32 0.0, %v8952
        %8954 = vdwg.mxu0
        %8955 = vmatprep.subr.mxu0 %v8824
        %8956 = vmatpush1.msra.mxu0 %v8823
        %8957 = vmatprep.subr.mxu0 %v8828
        %8958 = vmatpush1.msra.mxu0 %v8827
        %8959 = vmatprep.subr.mxu0 %v8832
        %8960 = vmatpush1.msra.mxu0 %v8831
        %8961 = vmatprep.subr.mxu0 %v8836
        %8962 = vmatpush1.msra.mxu0 %v8835
        %8963 = vmatprep.subr.mxu0 %v8840
        %8964 = vmatpush1.msra.mxu0 %v8839
        %8965 = vmatprep.subr.mxu0 %v8844
        %8966 = vmatpush1.msra.mxu0 %v8843
        %8967 = vmatprep.subr.mxu0 %v8848
        %8968 = vmatpush1.msra.mxu0 %v8847
        %8969 = vmatprep.subr.mxu0 %v8852
        %8970 = vmatpush1.msra.mxu0 %v8851
        %8971 = vmatprep.subr.mxu0 %v8856
        %8972 = vmatpush1.msra.mxu0 %v8855
        %8973 = vmatprep.subr.mxu0 %v8860
        %8974 = vmatpush1.msra.mxu0 %v8859
        %8975 = vmatprep.subr.mxu0 %v8864
        %8976 = vmatpush1.msra.mxu0 %v8863
        %8977 = vmatprep.subr.mxu0 %v8868
        %8978 = vmatpush1.msra.mxu0 %v8867
        %8979 = vmatprep.subr.mxu0 %v8872
        %8980 = vmatpush1.msra.mxu0 %v8871
        %8981 = vmatprep.subr.mxu0 %v8876
        %8982 = vmatpush1.msra.mxu0 %v8875
        %8983 = vmatprep.subr.mxu0 %v8880
        %8984 = vmatpush1.msra.mxu0 %v8879
        %8985 = vmatprep.subr.mxu0 0.0
        %8986 = vmatpush1.msra.mxu0 0.0
        %8987 = vmatprep.subr.mxu0 0.0
        %8988 = vmatpush1.msra.mxu0 0.0
        %8989 = vmatprep.subr.mxu0 0.0
        %8990 = vmatpush1.msra.mxu0 0.0
        %8991 = vmatprep.subr.mxu0 0.0
        %8992 = vmatpush1.msra.mxu0 0.0
        %8993 = vmatprep.subr.mxu0 0.0
        %8994 = vmatpush1.msra.mxu0 0.0
        %8995 = vmatprep.subr.mxu0 0.0
        %8996 = vmatpush1.msra.mxu0 0.0
        %8997 = vmatprep.subr.mxu0 0.0
        %8998 = vmatpush1.msra.mxu0 0.0
        %8999 = vmatprep.subr.mxu0 0.0
        %9000 = vmatpush1.msra.mxu0 0.0
        %9001 = vmatprep.subr.mxu0 0.0
        %9002 = vmatpush1.msra.mxu0 0.0
        %9003 = vmatprep.subr.mxu0 0.0
        %9004 = vmatpush1.msra.mxu0 0.0
        %9005 = vmatprep.subr.mxu0 0.0
        %9006 = vmatpush1.msra.mxu0 0.0
        %9007 = vmatprep.subr.mxu0 0.0
        %9008 = vmatpush1.msra.mxu0 0.0
        %9009 = vmatprep.subr.mxu0 0.0
        %9010 = vmatpush1.msra.mxu0 0.0
        %9011 = vmatprep.subr.mxu0 0.0
        %9012 = vmatpush1.msra.mxu0 0.0
        %9013 = vmatprep.subr.mxu0 0.0
        %9014 = vmatpush1.msra.mxu0 0.0
        %9015 = vmatprep.subr.mxu0 0.0
        %9016 = vmatpush1.msra.mxu0 0.0
        %9017 = vmatprep.subr.mxu0 0.0
        %9018 = vmatpush1.msra.mxu0 0.0
        %9019 = vmatprep.mubr.f32.mxu0 0.0
        %9020 = vmatmul.mubr.f32.gmra.mrb[0].mxu0 %v8882
        %v9021 = vpop.f32.mrb[0].mxu0
        %v9022 = vadd.f32 0.0, %v9021
        %v9023 = vpop.f32.mrb[0].mxu0
        %v9024 = vadd.f32 0.0, %v9023
        %9025 = vdwg.mxu0
        %v9030 = vcombine.low %v8951, %v8953
        %v9031 = vcombine.low %v9022, %v9024
        %v9033 = vunpack.c.l.s4 1966171168
        %v9034 = vunpack.c.0.s8 %v9033
        %v9035 = vlaneseq
        %v9036 = vshrl.u32 %v9035, 7
        %v9037 = vsub.s32 %v9034, %v9036
        %v9038 = vrot.slane %v9030, %v9037
        %v9040 = vunpack.c.l.s4 1966171168
        %v9041 = vunpack.c.0.s8 %v9040
        %v9042 = vlaneseq
        %v9043 = vshrl.u32 %v9042, 7
        %v9044 = vsub.s32 %v9041, %v9043
        %v9045 = vrot.slane %v9031, %v9044
        %v9046 = vcombine.low %v9038, %v9045
        %v9048 = vunpack.c.l.s4 1966171168
        %v9049 = vunpack.c.0.s8 %v9048
        %v9050 = vlaneseq
        %v9051 = vshrl.u32 %v9050, 7
        %v9052 = vsub.s32 %v9049, %v9051
        %v9053 = vrot.slane %v9046, %v9052
        %v9055 = vadd.f32 %v8820, %v9053
        %v9056 = vld [vmem:[%s6 + $0x1e00] sm:$0xff]
        %v9057 = vld [vmem:[%s6 + $0x1e08] sm:$0xff]
        %v9058 = vld [vmem:[%s6 + $0x1e10] sm:$0xff]
        %v9059 = vld [vmem:[%s6 + $0x1e18] sm:$0xff]
        %v9060 = vld [vmem:[%s6 + $0x1e20] sm:$0xff]
        %v9061 = vld [vmem:[%s6 + $0x1e28] sm:$0xff]
        %v9062 = vld [vmem:[%s6 + $0x1e30] sm:$0xff]
        %v9063 = vld [vmem:[%s6 + $0x1e38] sm:$0xff]
        %v9064 = vld [vmem:[%s6 + $0x1e40] sm:$0xff]
        %v9065 = vld [vmem:[%s6 + $0x1e48] sm:$0xff]
        %v9066 = vld [vmem:[%s6 + $0x1e50] sm:$0xff]
        %v9067 = vld [vmem:[%s6 + $0x1e58] sm:$0xff]
        %v9068 = vld [vmem:[%s6 + $0x1e60] sm:$0xff]
        %v9069 = vld [vmem:[%s6 + $0x1e68] sm:$0xff]
        %v9070 = vld [vmem:[%s6 + $0x1e70] sm:$0xff]
        %v9071 = vld [vmem:[%s6 + $0x1e78] sm:$0xff]
        %v9072 = vld [vmem:[%s6 + $0x1e80] sm:$0xff]
        %v9073 = vld [vmem:[%s6 + $0x1e88] sm:$0xff]
        %v9074 = vld [vmem:[%s6 + $0x1e90] sm:$0xff]
        %v9075 = vld [vmem:[%s6 + $0x1e98] sm:$0xff]
        %v9076 = vld [vmem:[%s6 + $0x1ea0] sm:$0xff]
        %v9077 = vld [vmem:[%s6 + $0x1ea8] sm:$0xff]
        %v9078 = vld [vmem:[%s6 + $0x1eb0] sm:$0xff]
        %v9079 = vld [vmem:[%s6 + $0x1eb8] sm:$0xff]
        %v9080 = vld [vmem:[%s6 + $0x1ec0] sm:$0xff]
        %v9081 = vld [vmem:[%s6 + $0x1ec8] sm:$0xff]
        %v9082 = vld [vmem:[%s6 + $0x1ed0] sm:$0xff]
        %v9083 = vld [vmem:[%s6 + $0x1ed8] sm:$0xff]
        %v9084 = vld [vmem:[%s6 + $0x1ee0] sm:$0xff]
        %v9085 = vld [vmem:[%s6 + $0x1ee8] sm:$0xff]
        %v9086 = vld [vmem:[%s6 + $0x1ef0] sm:$0xff]
        %v9087 = vld [vmem:[%s6 + $0x1ef8] sm:$0xff]
        %v9088 = vld [vmem:[%s6 + $0x1f00] sm:$0xff]
        %v9089 = vld [vmem:[%s6 + $0x1f08] sm:$0xff]
        %v9090 = vld [vmem:[%s6 + $0x1f10] sm:$0xff]
        %v9091 = vld [vmem:[%s6 + $0x1f18] sm:$0xff]
        %v9092 = vld [vmem:[%s6 + $0x1f20] sm:$0xff]
        %v9093 = vld [vmem:[%s6 + $0x1f28] sm:$0xff]
        %v9094 = vld [vmem:[%s6 + $0x1f30] sm:$0xff]
        %v9095 = vld [vmem:[%s6 + $0x1f38] sm:$0xff]
        %v9096 = vld [vmem:[%s6 + $0x1f40] sm:$0xff]
        %v9097 = vld [vmem:[%s6 + $0x1f48] sm:$0xff]
        %v9098 = vld [vmem:[%s6 + $0x1f50] sm:$0xff]
        %v9099 = vld [vmem:[%s6 + $0x1f58] sm:$0xff]
        %v9100 = vld [vmem:[%s6 + $0x1f60] sm:$0xff]
        %v9101 = vld [vmem:[%s6 + $0x1f68] sm:$0xff]
        %v9102 = vld [vmem:[%s6 + $0x1f70] sm:$0xff]
        %v9103 = vld [vmem:[%s6 + $0x1f78] sm:$0xff]
        %v9104 = vld [vmem:[%s6 + $0x1f80] sm:$0xff]
        %v9105 = vld [vmem:[%s6 + $0x1f88] sm:$0xff]
        %v9106 = vld [vmem:[%s6 + $0x1f90] sm:$0xff]
        %v9107 = vld [vmem:[%s6 + $0x1f98] sm:$0xff]
        %v9108 = vld [vmem:[%s6 + $0x1fa0] sm:$0xff]
        %v9109 = vld [vmem:[%s6 + $0x1fa8] sm:$0xff]
        %v9110 = vld [vmem:[%s6 + $0x1fb0] sm:$0xff]
        %v9111 = vld [vmem:[%s6 + $0x1fb8] sm:$0xff]
        %v9112 = vld [vmem:[%s6 + $0x1fc0] sm:$0xff]
        %v9113 = vld [vmem:[%s6 + $0x1fc8] sm:$0xff]
        %v9114 = vld [vmem:[%s6 + $0x1fd0] sm:$0xff]
        %v9115 = vld [vmem:[%s6 + $0x1fd8] sm:$0xff]
        %v9117 = vsel %vm5355, %v5293, 0
        %9119 = vmatprep.subr.mxu0 %v9057
        %9120 = vmatpush1.msra.mxu0 %v9056
        %9121 = vmatprep.subr.mxu0 %v9061
        %9122 = vmatpush1.msra.mxu0 %v9060
        %9123 = vmatprep.subr.mxu0 %v9065
        %9124 = vmatpush1.msra.mxu0 %v9064
        %9125 = vmatprep.subr.mxu0 %v9069
        %9126 = vmatpush1.msra.mxu0 %v9068
        %9127 = vmatprep.subr.mxu0 %v9073
        %9128 = vmatpush1.msra.mxu0 %v9072
        %9129 = vmatprep.subr.mxu0 %v9077
        %9130 = vmatpush1.msra.mxu0 %v9076
        %9131 = vmatprep.subr.mxu0 %v9081
        %9132 = vmatpush1.msra.mxu0 %v9080
        %9133 = vmatprep.subr.mxu0 %v9085
        %9134 = vmatpush1.msra.mxu0 %v9084
        %9135 = vmatprep.subr.mxu0 %v9089
        %9136 = vmatpush1.msra.mxu0 %v9088
        %9137 = vmatprep.subr.mxu0 %v9093
        %9138 = vmatpush1.msra.mxu0 %v9092
        %9139 = vmatprep.subr.mxu0 %v9097
        %9140 = vmatpush1.msra.mxu0 %v9096
        %9141 = vmatprep.subr.mxu0 %v9101
        %9142 = vmatpush1.msra.mxu0 %v9100
        %9143 = vmatprep.subr.mxu0 %v9105
        %9144 = vmatpush1.msra.mxu0 %v9104
        %9145 = vmatprep.subr.mxu0 %v9109
        %9146 = vmatpush1.msra.mxu0 %v9108
        %9147 = vmatprep.subr.mxu0 %v9113
        %9148 = vmatpush1.msra.mxu0 %v9112
        %9149 = vmatprep.subr.mxu0 0.0
        %9150 = vmatpush1.msra.mxu0 0.0
        %9151 = vmatprep.subr.mxu0 0.0
        %9152 = vmatpush1.msra.mxu0 0.0
        %9153 = vmatprep.subr.mxu0 0.0
        %9154 = vmatpush1.msra.mxu0 0.0
        %9155 = vmatprep.subr.mxu0 0.0
        %9156 = vmatpush1.msra.mxu0 0.0
        %9157 = vmatprep.subr.mxu0 0.0
        %9158 = vmatpush1.msra.mxu0 0.0
        %9159 = vmatprep.subr.mxu0 0.0
        %9160 = vmatpush1.msra.mxu0 0.0
        %9161 = vmatprep.subr.mxu0 0.0
        %9162 = vmatpush1.msra.mxu0 0.0
        %9163 = vmatprep.subr.mxu0 0.0
        %9164 = vmatpush1.msra.mxu0 0.0
        %9165 = vmatprep.subr.mxu0 0.0
        %9166 = vmatpush1.msra.mxu0 0.0
        %9167 = vmatprep.subr.mxu0 0.0
        %9168 = vmatpush1.msra.mxu0 0.0
        %9169 = vmatprep.subr.mxu0 0.0
        %9170 = vmatpush1.msra.mxu0 0.0
        %9171 = vmatprep.subr.mxu0 0.0
        %9172 = vmatpush1.msra.mxu0 0.0
        %9173 = vmatprep.subr.mxu0 0.0
        %9174 = vmatpush1.msra.mxu0 0.0
        %9175 = vmatprep.subr.mxu0 0.0
        %9176 = vmatpush1.msra.mxu0 0.0
        %9177 = vmatprep.subr.mxu0 0.0
        %9178 = vmatpush1.msra.mxu0 0.0
        %9179 = vmatprep.subr.mxu0 0.0
        %9180 = vmatpush1.msra.mxu0 0.0
        %9181 = vmatprep.subr.mxu0 0.0
        %9182 = vmatpush1.msra.mxu0 0.0
        %9183 = vmatprep.mubr.f32.mxu0 0.0
        %9184 = vmatmul.mubr.f32.gmra.mrb[0].mxu0 %v9117
        %v9185 = vpop.f32.mrb[0].mxu0
        %v9186 = vadd.f32 0.0, %v9185
        %v9187 = vpop.f32.mrb[0].mxu0
        %v9188 = vadd.f32 0.0, %v9187
        %9189 = vdwg.mxu0
        %9190 = vmatprep.subr.mxu0 %v9059
        %9191 = vmatpush1.msra.mxu0 %v9058
        %9192 = vmatprep.subr.mxu0 %v9063
        %9193 = vmatpush1.msra.mxu0 %v9062
        %9194 = vmatprep.subr.mxu0 %v9067
        %9195 = vmatpush1.msra.mxu0 %v9066
        %9196 = vmatprep.subr.mxu0 %v9071
        %9197 = vmatpush1.msra.mxu0 %v9070
        %9198 = vmatprep.subr.mxu0 %v9075
        %9199 = vmatpush1.msra.mxu0 %v9074
        %9200 = vmatprep.subr.mxu0 %v9079
        %9201 = vmatpush1.msra.mxu0 %v9078
        %9202 = vmatprep.subr.mxu0 %v9083
        %9203 = vmatpush1.msra.mxu0 %v9082
        %9204 = vmatprep.subr.mxu0 %v9087
        %9205 = vmatpush1.msra.mxu0 %v9086
        %9206 = vmatprep.subr.mxu0 %v9091
        %9207 = vmatpush1.msra.mxu0 %v9090
        %9208 = vmatprep.subr.mxu0 %v9095
        %9209 = vmatpush1.msra.mxu0 %v9094
        %9210 = vmatprep.subr.mxu0 %v9099
        %9211 = vmatpush1.msra.mxu0 %v9098
        %9212 = vmatprep.subr.mxu0 %v9103
        %9213 = vmatpush1.msra.mxu0 %v9102
        %9214 = vmatprep.subr.mxu0 %v9107
        %9215 = vmatpush1.msra.mxu0 %v9106
        %9216 = vmatprep.subr.mxu0 %v9111
        %9217 = vmatpush1.msra.mxu0 %v9110
        %9218 = vmatprep.subr.mxu0 %v9115
        %9219 = vmatpush1.msra.mxu0 %v9114
        %9220 = vmatprep.subr.mxu0 0.0
        %9221 = vmatpush1.msra.mxu0 0.0
        %9222 = vmatprep.subr.mxu0 0.0
        %9223 = vmatpush1.msra.mxu0 0.0
        %9224 = vmatprep.subr.mxu0 0.0
        %9225 = vmatpush1.msra.mxu0 0.0
        %9226 = vmatprep.subr.mxu0 0.0
        %9227 = vmatpush1.msra.mxu0 0.0
        %9228 = vmatprep.subr.mxu0 0.0
        %9229 = vmatpush1.msra.mxu0 0.0
        %9230 = vmatprep.subr.mxu0 0.0
        %9231 = vmatpush1.msra.mxu0 0.0
        %9232 = vmatprep.subr.mxu0 0.0
        %9233 = vmatpush1.msra.mxu0 0.0
        %9234 = vmatprep.subr.mxu0 0.0
        %9235 = vmatpush1.msra.mxu0 0.0
        %9236 = vmatprep.subr.mxu0 0.0
        %9237 = vmatpush1.msra.mxu0 0.0
        %9238 = vmatprep.subr.mxu0 0.0
        %9239 = vmatpush1.msra.mxu0 0.0
        %9240 = vmatprep.subr.mxu0 0.0
        %9241 = vmatpush1.msra.mxu0 0.0
        %9242 = vmatprep.subr.mxu0 0.0
        %9243 = vmatpush1.msra.mxu0 0.0
        %9244 = vmatprep.subr.mxu0 0.0
        %9245 = vmatpush1.msra.mxu0 0.0
        %9246 = vmatprep.subr.mxu0 0.0
        %9247 = vmatpush1.msra.mxu0 0.0
        %9248 = vmatprep.subr.mxu0 0.0
        %9249 = vmatpush1.msra.mxu0 0.0
        %9250 = vmatprep.subr.mxu0 0.0
        %9251 = vmatpush1.msra.mxu0 0.0
        %9252 = vmatprep.subr.mxu0 0.0
        %9253 = vmatpush1.msra.mxu0 0.0
        %9254 = vmatprep.mubr.f32.mxu0 0.0
        %9255 = vmatmul.mubr.f32.gmra.mrb[0].mxu0 %v9117
        %v9256 = vpop.f32.mrb[0].mxu0
        %v9257 = vadd.f32 0.0, %v9256
        %v9258 = vpop.f32.mrb[0].mxu0
        %v9259 = vadd.f32 0.0, %v9258
        %9260 = vdwg.mxu0
        %v9265 = vcombine.low %v9186, %v9188
        %v9266 = vcombine.low %v9257, %v9259
        %v9268 = vunpack.c.l.s4 1966171168
        %v9269 = vunpack.c.0.s8 %v9268
        %v9270 = vlaneseq
        %v9271 = vshrl.u32 %v9270, 7
        %v9272 = vsub.s32 %v9269, %v9271
        %v9273 = vrot.slane %v9265, %v9272
        %v9275 = vunpack.c.l.s4 1966171168
        %v9276 = vunpack.c.0.s8 %v9275
        %v9277 = vlaneseq
        %v9278 = vshrl.u32 %v9277, 7
        %v9279 = vsub.s32 %v9276, %v9278
        %v9280 = vrot.slane %v9266, %v9279
        %v9281 = vcombine.low %v9273, %v9280
        %v9283 = vunpack.c.l.s4 1966171168
        %v9284 = vunpack.c.0.s8 %v9283
        %v9285 = vlaneseq
        %v9286 = vshrl.u32 %v9285, 7
        %v9287 = vsub.s32 %v9284, %v9286
        %v9288 = vrot.slane %v9281, %v9287
        %v9290 = vadd.f32 %v9055, %v9288
        %v9291 = vld [vmem:[%s6 + $0x1fe0] sm:$0xff]
        %v9292 = vld [vmem:[%s6 + $0x1fe8] sm:$0xff]
        %v9293 = vld [vmem:[%s6 + $0x1ff0] sm:$0xff]
        %v9294 = vld [vmem:[%s6 + $0x1ff8] sm:$0xff]
        %v9295 = vld [vmem:[%s6 + $0x2000] sm:$0xff]
        %v9296 = vld [vmem:[%s6 + $0x2008] sm:$0xff]
        %v9297 = vld [vmem:[%s6 + $0x2010] sm:$0xff]
        %v9298 = vld [vmem:[%s6 + $0x2018] sm:$0xff]
        %v9299 = vld [vmem:[%s6 + $0x2020] sm:$0xff]
        %v9300 = vld [vmem:[%s6 + $0x2028] sm:$0xff]
        %v9301 = vld [vmem:[%s6 + $0x2030] sm:$0xff]
        %v9302 = vld [vmem:[%s6 + $0x2038] sm:$0xff]
        %v9303 = vld [vmem:[%s6 + $0x2040] sm:$0xff]
        %v9304 = vld [vmem:[%s6 + $0x2048] sm:$0xff]
        %v9305 = vld [vmem:[%s6 + $0x2050] sm:$0xff]
        %v9306 = vld [vmem:[%s6 + $0x2058] sm:$0xff]
        %v9307 = vld [vmem:[%s6 + $0x2060] sm:$0xff]
        %v9308 = vld [vmem:[%s6 + $0x2068] sm:$0xff]
        %v9309 = vld [vmem:[%s6 + $0x2070] sm:$0xff]
        %v9310 = vld [vmem:[%s6 + $0x2078] sm:$0xff]
        %v9311 = vld [vmem:[%s6 + $0x2080] sm:$0xff]
        %v9312 = vld [vmem:[%s6 + $0x2088] sm:$0xff]
        %v9313 = vld [vmem:[%s6 + $0x2090] sm:$0xff]
        %v9314 = vld [vmem:[%s6 + $0x2098] sm:$0xff]
        %v9315 = vld [vmem:[%s6 + $0x20a0] sm:$0xff]
        %v9316 = vld [vmem:[%s6 + $0x20a8] sm:$0xff]
        %v9317 = vld [vmem:[%s6 + $0x20b0] sm:$0xff]
        %v9318 = vld [vmem:[%s6 + $0x20b8] sm:$0xff]
        %v9319 = vld [vmem:[%s6 + $0x20c0] sm:$0xff]
        %v9320 = vld [vmem:[%s6 + $0x20c8] sm:$0xff]
        %v9321 = vld [vmem:[%s6 + $0x20d0] sm:$0xff]
        %v9322 = vld [vmem:[%s6 + $0x20d8] sm:$0xff]
        %v9323 = vld [vmem:[%s6 + $0x20e0] sm:$0xff]
        %v9324 = vld [vmem:[%s6 + $0x20e8] sm:$0xff]
        %v9325 = vld [vmem:[%s6 + $0x20f0] sm:$0xff]
        %v9326 = vld [vmem:[%s6 + $0x20f8] sm:$0xff]
        %v9327 = vld [vmem:[%s6 + $0x2100] sm:$0xff]
        %v9328 = vld [vmem:[%s6 + $0x2108] sm:$0xff]
        %v9329 = vld [vmem:[%s6 + $0x2110] sm:$0xff]
        %v9330 = vld [vmem:[%s6 + $0x2118] sm:$0xff]
        %v9331 = vld [vmem:[%s6 + $0x2120] sm:$0xff]
        %v9332 = vld [vmem:[%s6 + $0x2128] sm:$0xff]
        %v9333 = vld [vmem:[%s6 + $0x2130] sm:$0xff]
        %v9334 = vld [vmem:[%s6 + $0x2138] sm:$0xff]
        %v9335 = vld [vmem:[%s6 + $0x2140] sm:$0xff]
        %v9336 = vld [vmem:[%s6 + $0x2148] sm:$0xff]
        %v9337 = vld [vmem:[%s6 + $0x2150] sm:$0xff]
        %v9338 = vld [vmem:[%s6 + $0x2158] sm:$0xff]
        %v9339 = vld [vmem:[%s6 + $0x2160] sm:$0xff]
        %v9340 = vld [vmem:[%s6 + $0x2168] sm:$0xff]
        %v9341 = vld [vmem:[%s6 + $0x2170] sm:$0xff]
        %v9342 = vld [vmem:[%s6 + $0x2178] sm:$0xff]
        %v9343 = vld [vmem:[%s6 + $0x2180] sm:$0xff]
        %v9344 = vld [vmem:[%s6 + $0x2188] sm:$0xff]
        %v9345 = vld [vmem:[%s6 + $0x2190] sm:$0xff]
        %v9346 = vld [vmem:[%s6 + $0x2198] sm:$0xff]
        %v9347 = vld [vmem:[%s6 + $0x21a0] sm:$0xff]
        %v9348 = vld [vmem:[%s6 + $0x21a8] sm:$0xff]
        %v9349 = vld [vmem:[%s6 + $0x21b0] sm:$0xff]
        %v9350 = vld [vmem:[%s6 + $0x21b8] sm:$0xff]
        %v9351 = vrot.slane %v5293, 1
        %v9352 = vsel %vm5355, %v9351, 0
        %9354 = vmatprep.subr.mxu0 %v9292
        %9355 = vmatpush1.msra.mxu0 %v9291
        %9356 = vmatprep.subr.mxu0 %v9296
        %9357 = vmatpush1.msra.mxu0 %v9295
        %9358 = vmatprep.subr.mxu0 %v9300
        %9359 = vmatpush1.msra.mxu0 %v9299
        %9360 = vmatprep.subr.mxu0 %v9304
        %9361 = vmatpush1.msra.mxu0 %v9303
        %9362 = vmatprep.subr.mxu0 %v9308
        %9363 = vmatpush1.msra.mxu0 %v9307
        %9364 = vmatprep.subr.mxu0 %v9312
        %9365 = vmatpush1.msra.mxu0 %v9311
        %9366 = vmatprep.subr.mxu0 %v9316
        %9367 = vmatpush1.msra.mxu0 %v9315
        %9368 = vmatprep.subr.mxu0 %v9320
        %9369 = vmatpush1.msra.mxu0 %v9319
        %9370 = vmatprep.subr.mxu0 %v9324
        %9371 = vmatpush1.msra.mxu0 %v9323
        %9372 = vmatprep.subr.mxu0 %v9328
        %9373 = vmatpush1.msra.mxu0 %v9327
        %9374 = vmatprep.subr.mxu0 %v9332
        %9375 = vmatpush1.msra.mxu0 %v9331
        %9376 = vmatprep.subr.mxu0 %v9336
        %9377 = vmatpush1.msra.mxu0 %v9335
        %9378 = vmatprep.subr.mxu0 %v9340
        %9379 = vmatpush1.msra.mxu0 %v9339
        %9380 = vmatprep.subr.mxu0 %v9344
        %9381 = vmatpush1.msra.mxu0 %v9343
        %9382 = vmatprep.subr.mxu0 %v9348
        %9383 = vmatpush1.msra.mxu0 %v9347
        %9384 = vmatprep.subr.mxu0 0.0
        %9385 = vmatpush1.msra.mxu0 0.0
        %9386 = vmatprep.subr.mxu0 0.0
        %9387 = vmatpush1.msra.mxu0 0.0
        %9388 = vmatprep.subr.mxu0 0.0
        %9389 = vmatpush1.msra.mxu0 0.0
        %9390 = vmatprep.subr.mxu0 0.0
        %9391 = vmatpush1.msra.mxu0 0.0
        %9392 = vmatprep.subr.mxu0 0.0
        %9393 = vmatpush1.msra.mxu0 0.0
        %9394 = vmatprep.subr.mxu0 0.0
        %9395 = vmatpush1.msra.mxu0 0.0
        %9396 = vmatprep.subr.mxu0 0.0
        %9397 = vmatpush1.msra.mxu0 0.0
        %9398 = vmatprep.subr.mxu0 0.0
        %9399 = vmatpush1.msra.mxu0 0.0
        %9400 = vmatprep.subr.mxu0 0.0
        %9401 = vmatpush1.msra.mxu0 0.0
        %9402 = vmatprep.subr.mxu0 0.0
        %9403 = vmatpush1.msra.mxu0 0.0
        %9404 = vmatprep.subr.mxu0 0.0
        %9405 = vmatpush1.msra.mxu0 0.0
        %9406 = vmatprep.subr.mxu0 0.0
        %9407 = vmatpush1.msra.mxu0 0.0
        %9408 = vmatprep.subr.mxu0 0.0
        %9409 = vmatpush1.msra.mxu0 0.0
        %9410 = vmatprep.subr.mxu0 0.0
        %9411 = vmatpush1.msra.mxu0 0.0
        %9412 = vmatprep.subr.mxu0 0.0
        %9413 = vmatpush1.msra.mxu0 0.0
        %9414 = vmatprep.subr.mxu0 0.0
        %9415 = vmatpush1.msra.mxu0 0.0
        %9416 = vmatprep.subr.mxu0 0.0
        %9417 = vmatpush1.msra.mxu0 0.0
        %9418 = vmatprep.mubr.f32.mxu0 0.0
        %9419 = vmatmul.mubr.f32.gmra.mrb[0].mxu0 %v9352
        %v9420 = vpop.f32.mrb[0].mxu0
        %v9421 = vadd.f32 0.0, %v9420
        %v9422 = vpop.f32.mrb[0].mxu0
        %v9423 = vadd.f32 0.0, %v9422
        %9424 = vdwg.mxu0
        %9425 = vmatprep.subr.mxu0 %v9294
        %9426 = vmatpush1.msra.mxu0 %v9293
        %9427 = vmatprep.subr.mxu0 %v9298
        %9428 = vmatpush1.msra.mxu0 %v9297
        %9429 = vmatprep.subr.mxu0 %v9302
        %9430 = vmatpush1.msra.mxu0 %v9301
        %9431 = vmatprep.subr.mxu0 %v9306
        %9432 = vmatpush1.msra.mxu0 %v9305
        %9433 = vmatprep.subr.mxu0 %v9310
        %9434 = vmatpush1.msra.mxu0 %v9309
        %9435 = vmatprep.subr.mxu0 %v9314
        %9436 = vmatpush1.msra.mxu0 %v9313
        %9437 = vmatprep.subr.mxu0 %v9318
        %9438 = vmatpush1.msra.mxu0 %v9317
        %9439 = vmatprep.subr.mxu0 %v9322
        %9440 = vmatpush1.msra.mxu0 %v9321
        %9441 = vmatprep.subr.mxu0 %v9326
        %9442 = vmatpush1.msra.mxu0 %v9325
        %9443 = vmatprep.subr.mxu0 %v9330
        %9444 = vmatpush1.msra.mxu0 %v9329
        %9445 = vmatprep.subr.mxu0 %v9334
        %9446 = vmatpush1.msra.mxu0 %v9333
        %9447 = vmatprep.subr.mxu0 %v9338
        %9448 = vmatpush1.msra.mxu0 %v9337
        %9449 = vmatprep.subr.mxu0 %v9342
        %9450 = vmatpush1.msra.mxu0 %v9341
        %9451 = vmatprep.subr.mxu0 %v9346
        %9452 = vmatpush1.msra.mxu0 %v9345
        %9453 = vmatprep.subr.mxu0 %v9350
        %9454 = vmatpush1.msra.mxu0 %v9349
        %9455 = vmatprep.subr.mxu0 0.0
        %9456 = vmatpush1.msra.mxu0 0.0
        %9457 = vmatprep.subr.mxu0 0.0
        %9458 = vmatpush1.msra.mxu0 0.0
        %9459 = vmatprep.subr.mxu0 0.0
        %9460 = vmatpush1.msra.mxu0 0.0
        %9461 = vmatprep.subr.mxu0 0.0
        %9462 = vmatpush1.msra.mxu0 0.0
        %9463 = vmatprep.subr.mxu0 0.0
        %9464 = vmatpush1.msra.mxu0 0.0
        %9465 = vmatprep.subr.mxu0 0.0
        %9466 = vmatpush1.msra.mxu0 0.0
        %9467 = vmatprep.subr.mxu0 0.0
        %9468 = vmatpush1.msra.mxu0 0.0
        %9469 = vmatprep.subr.mxu0 0.0
        %9470 = vmatpush1.msra.mxu0 0.0
        %9471 = vmatprep.subr.mxu0 0.0
        %9472 = vmatpush1.msra.mxu0 0.0
        %9473 = vmatprep.subr.mxu0 0.0
        %9474 = vmatpush1.msra.mxu0 0.0
        %9475 = vmatprep.subr.mxu0 0.0
        %9476 = vmatpush1.msra.mxu0 0.0
        %9477 = vmatprep.subr.mxu0 0.0
        %9478 = vmatpush1.msra.mxu0 0.0
        %9479 = vmatprep.subr.mxu0 0.0
        %9480 = vmatpush1.msra.mxu0 0.0
        %9481 = vmatprep.subr.mxu0 0.0
        %9482 = vmatpush1.msra.mxu0 0.0
        %9483 = vmatprep.subr.mxu0 0.0
        %9484 = vmatpush1.msra.mxu0 0.0
        %9485 = vmatprep.subr.mxu0 0.0
        %9486 = vmatpush1.msra.mxu0 0.0
        %9487 = vmatprep.subr.mxu0 0.0
        %9488 = vmatpush1.msra.mxu0 0.0
        %9489 = vmatprep.mubr.f32.mxu0 0.0
        %9490 = vmatmul.mubr.f32.gmra.mrb[0].mxu0 %v9352
        %v9491 = vpop.f32.mrb[0].mxu0
        %v9492 = vadd.f32 0.0, %v9491
        %v9493 = vpop.f32.mrb[0].mxu0
        %v9494 = vadd.f32 0.0, %v9493
        %9495 = vdwg.mxu0
        %v9500 = vcombine.low %v9421, %v9423
        %v9501 = vcombine.low %v9492, %v9494
        %v9503 = vunpack.c.l.s4 1966171168
        %v9504 = vunpack.c.0.s8 %v9503
        %v9505 = vlaneseq
        %v9506 = vshrl.u32 %v9505, 7
        %v9507 = vsub.s32 %v9504, %v9506
        %v9508 = vrot.slane %v9500, %v9507
        %v9510 = vunpack.c.l.s4 1966171168
        %v9511 = vunpack.c.0.s8 %v9510
        %v9512 = vlaneseq
        %v9513 = vshrl.u32 %v9512, 7
        %v9514 = vsub.s32 %v9511, %v9513
        %v9515 = vrot.slane %v9501, %v9514
        %v9516 = vcombine.low %v9508, %v9515
        %v9518 = vunpack.c.l.s4 1966171168
        %v9519 = vunpack.c.0.s8 %v9518
        %v9520 = vlaneseq
        %v9521 = vshrl.u32 %v9520, 7
        %v9522 = vsub.s32 %v9519, %v9521
        %v9523 = vrot.slane %v9516, %v9522
        %v9525 = vadd.f32 %v9290, %v9523
        %v9526 = vld [vmem:[%s6 + $0x21c0] sm:$0xff]
        %v9527 = vld [vmem:[%s6 + $0x21c8] sm:$0xff]
        %v9528 = vld [vmem:[%s6 + $0x21d0] sm:$0xff]
        %v9529 = vld [vmem:[%s6 + $0x21d8] sm:$0xff]
        %v9530 = vld [vmem:[%s6 + $0x21e0] sm:$0xff]
        %v9531 = vld [vmem:[%s6 + $0x21e8] sm:$0xff]
        %v9532 = vld [vmem:[%s6 + $0x21f0] sm:$0xff]
        %v9533 = vld [vmem:[%s6 + $0x21f8] sm:$0xff]
        %v9534 = vld [vmem:[%s6 + $0x2200] sm:$0xff]
        %v9535 = vld [vmem:[%s6 + $0x2208] sm:$0xff]
        %v9536 = vld [vmem:[%s6 + $0x2210] sm:$0xff]
        %v9537 = vld [vmem:[%s6 + $0x2218] sm:$0xff]
        %v9538 = vld [vmem:[%s6 + $0x2220] sm:$0xff]
        %v9539 = vld [vmem:[%s6 + $0x2228] sm:$0xff]
        %v9540 = vld [vmem:[%s6 + $0x2230] sm:$0xff]
        %v9541 = vld [vmem:[%s6 + $0x2238] sm:$0xff]
        %v9542 = vld [vmem:[%s6 + $0x2240] sm:$0xff]
        %v9543 = vld [vmem:[%s6 + $0x2248] sm:$0xff]
        %v9544 = vld [vmem:[%s6 + $0x2250] sm:$0xff]
        %v9545 = vld [vmem:[%s6 + $0x2258] sm:$0xff]
        %v9546 = vld [vmem:[%s6 + $0x2260] sm:$0xff]
        %v9547 = vld [vmem:[%s6 + $0x2268] sm:$0xff]
        %v9548 = vld [vmem:[%s6 + $0x2270] sm:$0xff]
        %v9549 = vld [vmem:[%s6 + $0x2278] sm:$0xff]
        %v9550 = vld [vmem:[%s6 + $0x2280] sm:$0xff]
        %v9551 = vld [vmem:[%s6 + $0x2288] sm:$0xff]
        %v9552 = vld [vmem:[%s6 + $0x2290] sm:$0xff]
        %v9553 = vld [vmem:[%s6 + $0x2298] sm:$0xff]
        %v9554 = vld [vmem:[%s6 + $0x22a0] sm:$0xff]
        %v9555 = vld [vmem:[%s6 + $0x22a8] sm:$0xff]
        %v9556 = vld [vmem:[%s6 + $0x22b0] sm:$0xff]
        %v9557 = vld [vmem:[%s6 + $0x22b8] sm:$0xff]
        %v9558 = vld [vmem:[%s6 + $0x22c0] sm:$0xff]
        %v9559 = vld [vmem:[%s6 + $0x22c8] sm:$0xff]
        %v9560 = vld [vmem:[%s6 + $0x22d0] sm:$0xff]
        %v9561 = vld [vmem:[%s6 + $0x22d8] sm:$0xff]
        %v9562 = vld [vmem:[%s6 + $0x22e0] sm:$0xff]
        %v9563 = vld [vmem:[%s6 + $0x22e8] sm:$0xff]
        %v9564 = vld [vmem:[%s6 + $0x22f0] sm:$0xff]
        %v9565 = vld [vmem:[%s6 + $0x22f8] sm:$0xff]
        %v9566 = vld [vmem:[%s6 + $0x2300] sm:$0xff]
        %v9567 = vld [vmem:[%s6 + $0x2308] sm:$0xff]
        %v9568 = vld [vmem:[%s6 + $0x2310] sm:$0xff]
        %v9569 = vld [vmem:[%s6 + $0x2318] sm:$0xff]
        %v9570 = vld [vmem:[%s6 + $0x2320] sm:$0xff]
        %v9571 = vld [vmem:[%s6 + $0x2328] sm:$0xff]
        %v9572 = vld [vmem:[%s6 + $0x2330] sm:$0xff]
        %v9573 = vld [vmem:[%s6 + $0x2338] sm:$0xff]
        %v9574 = vld [vmem:[%s6 + $0x2340] sm:$0xff]
        %v9575 = vld [vmem:[%s6 + $0x2348] sm:$0xff]
        %v9576 = vld [vmem:[%s6 + $0x2350] sm:$0xff]
        %v9577 = vld [vmem:[%s6 + $0x2358] sm:$0xff]
        %v9578 = vld [vmem:[%s6 + $0x2360] sm:$0xff]
        %v9579 = vld [vmem:[%s6 + $0x2368] sm:$0xff]
        %v9580 = vld [vmem:[%s6 + $0x2370] sm:$0xff]
        %v9581 = vld [vmem:[%s6 + $0x2378] sm:$0xff]
        %v9582 = vld [vmem:[%s6 + $0x2380] sm:$0xff]
        %v9583 = vld [vmem:[%s6 + $0x2388] sm:$0xff]
        %v9584 = vld [vmem:[%s6 + $0x2390] sm:$0xff]
        %v9585 = vld [vmem:[%s6 + $0x2398] sm:$0xff]
        %v9586 = vrot.slane %v5293, 2
        %v9587 = vsel %vm5355, %v9586, 0
        %9589 = vmatprep.subr.mxu0 %v9527
        %9590 = vmatpush1.msra.mxu0 %v9526
        %9591 = vmatprep.subr.mxu0 %v9531
        %9592 = vmatpush1.msra.mxu0 %v9530
        %9593 = vmatprep.subr.mxu0 %v9535
        %9594 = vmatpush1.msra.mxu0 %v9534
        %9595 = vmatprep.subr.mxu0 %v9539
        %9596 = vmatpush1.msra.mxu0 %v9538
        %9597 = vmatprep.subr.mxu0 %v9543
        %9598 = vmatpush1.msra.mxu0 %v9542
        %9599 = vmatprep.subr.mxu0 %v9547
        %9600 = vmatpush1.msra.mxu0 %v9546
        %9601 = vmatprep.subr.mxu0 %v9551
        %9602 = vmatpush1.msra.mxu0 %v9550
        %9603 = vmatprep.subr.mxu0 %v9555
        %9604 = vmatpush1.msra.mxu0 %v9554
        %9605 = vmatprep.subr.mxu0 %v9559
        %9606 = vmatpush1.msra.mxu0 %v9558
        %9607 = vmatprep.subr.mxu0 %v9563
        %9608 = vmatpush1.msra.mxu0 %v9562
        %9609 = vmatprep.subr.mxu0 %v9567
        %9610 = vmatpush1.msra.mxu0 %v9566
        %9611 = vmatprep.subr.mxu0 %v9571
        %9612 = vmatpush1.msra.mxu0 %v9570
        %9613 = vmatprep.subr.mxu0 %v9575
        %9614 = vmatpush1.msra.mxu0 %v9574
        %9615 = vmatprep.subr.mxu0 %v9579
        %9616 = vmatpush1.msra.mxu0 %v9578
        %9617 = vmatprep.subr.mxu0 %v9583
        %9618 = vmatpush1.msra.mxu0 %v9582
        %9619 = vmatprep.subr.mxu0 0.0
        %9620 = vmatpush1.msra.mxu0 0.0
        %9621 = vmatprep.subr.mxu0 0.0
        %9622 = vmatpush1.msra.mxu0 0.0
        %9623 = vmatprep.subr.mxu0 0.0
        %9624 = vmatpush1.msra.mxu0 0.0
        %9625 = vmatprep.subr.mxu0 0.0
        %9626 = vmatpush1.msra.mxu0 0.0
        %9627 = vmatprep.subr.mxu0 0.0
        %9628 = vmatpush1.msra.mxu0 0.0
        %9629 = vmatprep.subr.mxu0 0.0
        %9630 = vmatpush1.msra.mxu0 0.0
        %9631 = vmatprep.subr.mxu0 0.0
        %9632 = vmatpush1.msra.mxu0 0.0
        %9633 = vmatprep.subr.mxu0 0.0
        %9634 = vmatpush1.msra.mxu0 0.0
        %9635 = vmatprep.subr.mxu0 0.0
        %9636 = vmatpush1.msra.mxu0 0.0
        %9637 = vmatprep.subr.mxu0 0.0
        %9638 = vmatpush1.msra.mxu0 0.0
        %9639 = vmatprep.subr.mxu0 0.0
        %9640 = vmatpush1.msra.mxu0 0.0
        %9641 = vmatprep.subr.mxu0 0.0
        %9642 = vmatpush1.msra.mxu0 0.0
        %9643 = vmatprep.subr.mxu0 0.0
        %9644 = vmatpush1.msra.mxu0 0.0
        %9645 = vmatprep.subr.mxu0 0.0
        %9646 = vmatpush1.msra.mxu0 0.0
        %9647 = vmatprep.subr.mxu0 0.0
        %9648 = vmatpush1.msra.mxu0 0.0
        %9649 = vmatprep.subr.mxu0 0.0
        %9650 = vmatpush1.msra.mxu0 0.0
        %9651 = vmatprep.subr.mxu0 0.0
        %9652 = vmatpush1.msra.mxu0 0.0
        %9653 = vmatprep.mubr.f32.mxu0 0.0
        %9654 = vmatmul.mubr.f32.gmra.mrb[0].mxu0 %v9587
        %v9655 = vpop.f32.mrb[0].mxu0
        %v9656 = vadd.f32 0.0, %v9655
        %v9657 = vpop.f32.mrb[0].mxu0
        %v9658 = vadd.f32 0.0, %v9657
        %9659 = vdwg.mxu0
        %9660 = vmatprep.subr.mxu0 %v9529
        %9661 = vmatpush1.msra.mxu0 %v9528
        %9662 = vmatprep.subr.mxu0 %v9533
        %9663 = vmatpush1.msra.mxu0 %v9532
        %9664 = vmatprep.subr.mxu0 %v9537
        %9665 = vmatpush1.msra.mxu0 %v9536
        %9666 = vmatprep.subr.mxu0 %v9541
        %9667 = vmatpush1.msra.mxu0 %v9540
        %9668 = vmatprep.subr.mxu0 %v9545
        %9669 = vmatpush1.msra.mxu0 %v9544
        %9670 = vmatprep.subr.mxu0 %v9549
        %9671 = vmatpush1.msra.mxu0 %v9548
        %9672 = vmatprep.subr.mxu0 %v9553
        %9673 = vmatpush1.msra.mxu0 %v9552
        %9674 = vmatprep.subr.mxu0 %v9557
        %9675 = vmatpush1.msra.mxu0 %v9556
        %9676 = vmatprep.subr.mxu0 %v9561
        %9677 = vmatpush1.msra.mxu0 %v9560
        %9678 = vmatprep.subr.mxu0 %v9565
        %9679 = vmatpush1.msra.mxu0 %v9564
        %9680 = vmatprep.subr.mxu0 %v9569
        %9681 = vmatpush1.msra.mxu0 %v9568
        %9682 = vmatprep.subr.mxu0 %v9573
        %9683 = vmatpush1.msra.mxu0 %v9572
        %9684 = vmatprep.subr.mxu0 %v9577
        %9685 = vmatpush1.msra.mxu0 %v9576
        %9686 = vmatprep.subr.mxu0 %v9581
        %9687 = vmatpush1.msra.mxu0 %v9580
        %9688 = vmatprep.subr.mxu0 %v9585
        %9689 = vmatpush1.msra.mxu0 %v9584
        %9690 = vmatprep.subr.mxu0 0.0
        %9691 = vmatpush1.msra.mxu0 0.0
        %9692 = vmatprep.subr.mxu0 0.0
        %9693 = vmatpush1.msra.mxu0 0.0
        %9694 = vmatprep.subr.mxu0 0.0
        %9695 = vmatpush1.msra.mxu0 0.0
        %9696 = vmatprep.subr.mxu0 0.0
        %9697 = vmatpush1.msra.mxu0 0.0
        %9698 = vmatprep.subr.mxu0 0.0
        %9699 = vmatpush1.msra.mxu0 0.0
        %9700 = vmatprep.subr.mxu0 0.0
        %9701 = vmatpush1.msra.mxu0 0.0
        %9702 = vmatprep.subr.mxu0 0.0
        %9703 = vmatpush1.msra.mxu0 0.0
        %9704 = vmatprep.subr.mxu0 0.0
        %9705 = vmatpush1.msra.mxu0 0.0
        %9706 = vmatprep.subr.mxu0 0.0
        %9707 = vmatpush1.msra.mxu0 0.0
        %9708 = vmatprep.subr.mxu0 0.0
        %9709 = vmatpush1.msra.mxu0 0.0
        %9710 = vmatprep.subr.mxu0 0.0
        %9711 = vmatpush1.msra.mxu0 0.0
        %9712 = vmatprep.subr.mxu0 0.0
        %9713 = vmatpush1.msra.mxu0 0.0
        %9714 = vmatprep.subr.mxu0 0.0
        %9715 = vmatpush1.msra.mxu0 0.0
        %9716 = vmatprep.subr.mxu0 0.0
        %9717 = vmatpush1.msra.mxu0 0.0
        %9718 = vmatprep.subr.mxu0 0.0
        %9719 = vmatpush1.msra.mxu0 0.0
        %9720 = vmatprep.subr.mxu0 0.0
        %9721 = vmatpush1.msra.mxu0 0.0
        %9722 = vmatprep.subr.mxu0 0.0
        %9723 = vmatpush1.msra.mxu0 0.0
        %9724 = vmatprep.mubr.f32.mxu0 0.0
        %9725 = vmatmul.mubr.f32.gmra.mrb[0].mxu0 %v9587
        %v9726 = vpop.f32.mrb[0].mxu0
        %v9727 = vadd.f32 0.0, %v9726
        %v9728 = vpop.f32.mrb[0].mxu0
        %v9729 = vadd.f32 0.0, %v9728
        %9730 = vdwg.mxu0
        %v9735 = vcombine.low %v9656, %v9658
        %v9736 = vcombine.low %v9727, %v9729
        %v9738 = vunpack.c.l.s4 1966171168
        %v9739 = vunpack.c.0.s8 %v9738
        %v9740 = vlaneseq
        %v9741 = vshrl.u32 %v9740, 7
        %v9742 = vsub.s32 %v9739, %v9741
        %v9743 = vrot.slane %v9735, %v9742
        %v9745 = vunpack.c.l.s4 1966171168
        %v9746 = vunpack.c.0.s8 %v9745
        %v9747 = vlaneseq
        %v9748 = vshrl.u32 %v9747, 7
        %v9749 = vsub.s32 %v9746, %v9748
        %v9750 = vrot.slane %v9736, %v9749
        %v9751 = vcombine.low %v9743, %v9750
        %v9753 = vunpack.c.l.s4 1966171168
        %v9754 = vunpack.c.0.s8 %v9753
        %v9755 = vlaneseq
        %v9756 = vshrl.u32 %v9755, 7
        %v9757 = vsub.s32 %v9754, %v9756
        %v9758 = vrot.slane %v9751, %v9757
        %v9760 = vadd.f32 %v9525, %v9758
        %v9761 = vld [vmem:[%s6 + $0x23a0] sm:$0xff]
        %v9762 = vld [vmem:[%s6 + $0x23a8] sm:$0xff]
        %v9763 = vld [vmem:[%s6 + $0x23b0] sm:$0xff]
        %v9764 = vld [vmem:[%s6 + $0x23b8] sm:$0xff]
        %v9765 = vld [vmem:[%s6 + $0x23c0] sm:$0xff]
        %v9766 = vld [vmem:[%s6 + $0x23c8] sm:$0xff]
        %v9767 = vld [vmem:[%s6 + $0x23d0] sm:$0xff]
        %v9768 = vld [vmem:[%s6 + $0x23d8] sm:$0xff]
        %v9769 = vld [vmem:[%s6 + $0x23e0] sm:$0xff]
        %v9770 = vld [vmem:[%s6 + $0x23e8] sm:$0xff]
        %v9771 = vld [vmem:[%s6 + $0x23f0] sm:$0xff]
        %v9772 = vld [vmem:[%s6 + $0x23f8] sm:$0xff]
        %v9773 = vld [vmem:[%s6 + $0x2400] sm:$0xff]
        %v9774 = vld [vmem:[%s6 + $0x2408] sm:$0xff]
        %v9775 = vld [vmem:[%s6 + $0x2410] sm:$0xff]
        %v9776 = vld [vmem:[%s6 + $0x2418] sm:$0xff]
        %v9777 = vld [vmem:[%s6 + $0x2420] sm:$0xff]
        %v9778 = vld [vmem:[%s6 + $0x2428] sm:$0xff]
        %v9779 = vld [vmem:[%s6 + $0x2430] sm:$0xff]
        %v9780 = vld [vmem:[%s6 + $0x2438] sm:$0xff]
        %v9781 = vld [vmem:[%s6 + $0x2440] sm:$0xff]
        %v9782 = vld [vmem:[%s6 + $0x2448] sm:$0xff]
        %v9783 = vld [vmem:[%s6 + $0x2450] sm:$0xff]
        %v9784 = vld [vmem:[%s6 + $0x2458] sm:$0xff]
        %v9785 = vld [vmem:[%s6 + $0x2460] sm:$0xff]
        %v9786 = vld [vmem:[%s6 + $0x2468] sm:$0xff]
        %v9787 = vld [vmem:[%s6 + $0x2470] sm:$0xff]
        %v9788 = vld [vmem:[%s6 + $0x2478] sm:$0xff]
        %v9789 = vld [vmem:[%s6 + $0x2480] sm:$0xff]
        %v9790 = vld [vmem:[%s6 + $0x2488] sm:$0xff]
        %v9791 = vld [vmem:[%s6 + $0x2490] sm:$0xff]
        %v9792 = vld [vmem:[%s6 + $0x2498] sm:$0xff]
        %v9793 = vld [vmem:[%s6 + $0x24a0] sm:$0xff]
        %v9794 = vld [vmem:[%s6 + $0x24a8] sm:$0xff]
        %v9795 = vld [vmem:[%s6 + $0x24b0] sm:$0xff]
        %v9796 = vld [vmem:[%s6 + $0x24b8] sm:$0xff]
        %v9797 = vld [vmem:[%s6 + $0x24c0] sm:$0xff]
        %v9798 = vld [vmem:[%s6 + $0x24c8] sm:$0xff]
        %v9799 = vld [vmem:[%s6 + $0x24d0] sm:$0xff]
        %v9800 = vld [vmem:[%s6 + $0x24d8] sm:$0xff]
        %v9801 = vld [vmem:[%s6 + $0x24e0] sm:$0xff]
        %v9802 = vld [vmem:[%s6 + $0x24e8] sm:$0xff]
        %v9803 = vld [vmem:[%s6 + $0x24f0] sm:$0xff]
        %v9804 = vld [vmem:[%s6 + $0x24f8] sm:$0xff]
        %v9805 = vld [vmem:[%s6 + $0x2500] sm:$0xff]
        %v9806 = vld [vmem:[%s6 + $0x2508] sm:$0xff]
        %v9807 = vld [vmem:[%s6 + $0x2510] sm:$0xff]
        %v9808 = vld [vmem:[%s6 + $0x2518] sm:$0xff]
        %v9809 = vld [vmem:[%s6 + $0x2520] sm:$0xff]
        %v9810 = vld [vmem:[%s6 + $0x2528] sm:$0xff]
        %v9811 = vld [vmem:[%s6 + $0x2530] sm:$0xff]
        %v9812 = vld [vmem:[%s6 + $0x2538] sm:$0xff]
        %v9813 = vld [vmem:[%s6 + $0x2540] sm:$0xff]
        %v9814 = vld [vmem:[%s6 + $0x2548] sm:$0xff]
        %v9815 = vld [vmem:[%s6 + $0x2550] sm:$0xff]
        %v9816 = vld [vmem:[%s6 + $0x2558] sm:$0xff]
        %v9817 = vld [vmem:[%s6 + $0x2560] sm:$0xff]
        %v9818 = vld [vmem:[%s6 + $0x2568] sm:$0xff]
        %v9819 = vld [vmem:[%s6 + $0x2570] sm:$0xff]
        %v9820 = vld [vmem:[%s6 + $0x2578] sm:$0xff]
        %v9821 = vrot.slane %v5293, 3
        %v9822 = vsel %vm5355, %v9821, 0
        %9824 = vmatprep.subr.mxu0 %v9762
        %9825 = vmatpush1.msra.mxu0 %v9761
        %9826 = vmatprep.subr.mxu0 %v9766
        %9827 = vmatpush1.msra.mxu0 %v9765
        %9828 = vmatprep.subr.mxu0 %v9770
        %9829 = vmatpush1.msra.mxu0 %v9769
        %9830 = vmatprep.subr.mxu0 %v9774
        %9831 = vmatpush1.msra.mxu0 %v9773
        %9832 = vmatprep.subr.mxu0 %v9778
        %9833 = vmatpush1.msra.mxu0 %v9777
        %9834 = vmatprep.subr.mxu0 %v9782
        %9835 = vmatpush1.msra.mxu0 %v9781
        %9836 = vmatprep.subr.mxu0 %v9786
        %9837 = vmatpush1.msra.mxu0 %v9785
        %9838 = vmatprep.subr.mxu0 %v9790
        %9839 = vmatpush1.msra.mxu0 %v9789
        %9840 = vmatprep.subr.mxu0 %v9794
        %9841 = vmatpush1.msra.mxu0 %v9793
        %9842 = vmatprep.subr.mxu0 %v9798
        %9843 = vmatpush1.msra.mxu0 %v9797
        %9844 = vmatprep.subr.mxu0 %v9802
        %9845 = vmatpush1.msra.mxu0 %v9801
        %9846 = vmatprep.subr.mxu0 %v9806
        %9847 = vmatpush1.msra.mxu0 %v9805
        %9848 = vmatprep.subr.mxu0 %v9810
        %9849 = vmatpush1.msra.mxu0 %v9809
        %9850 = vmatprep.subr.mxu0 %v9814
        %9851 = vmatpush1.msra.mxu0 %v9813
        %9852 = vmatprep.subr.mxu0 %v9818
        %9853 = vmatpush1.msra.mxu0 %v9817
        %9854 = vmatprep.subr.mxu0 0.0
        %9855 = vmatpush1.msra.mxu0 0.0
        %9856 = vmatprep.subr.mxu0 0.0
        %9857 = vmatpush1.msra.mxu0 0.0
        %9858 = vmatprep.subr.mxu0 0.0
        %9859 = vmatpush1.msra.mxu0 0.0
        %9860 = vmatprep.subr.mxu0 0.0
        %9861 = vmatpush1.msra.mxu0 0.0
        %9862 = vmatprep.subr.mxu0 0.0
        %9863 = vmatpush1.msra.mxu0 0.0
        %9864 = vmatprep.subr.mxu0 0.0
        %9865 = vmatpush1.msra.mxu0 0.0
        %9866 = vmatprep.subr.mxu0 0.0
        %9867 = vmatpush1.msra.mxu0 0.0
        %9868 = vmatprep.subr.mxu0 0.0
        %9869 = vmatpush1.msra.mxu0 0.0
        %9870 = vmatprep.subr.mxu0 0.0
        %9871 = vmatpush1.msra.mxu0 0.0
        %9872 = vmatprep.subr.mxu0 0.0
        %9873 = vmatpush1.msra.mxu0 0.0
        %9874 = vmatprep.subr.mxu0 0.0
        %9875 = vmatpush1.msra.mxu0 0.0
        %9876 = vmatprep.subr.mxu0 0.0
        %9877 = vmatpush1.msra.mxu0 0.0
        %9878 = vmatprep.subr.mxu0 0.0
        %9879 = vmatpush1.msra.mxu0 0.0
        %9880 = vmatprep.subr.mxu0 0.0
        %9881 = vmatpush1.msra.mxu0 0.0
        %9882 = vmatprep.subr.mxu0 0.0
        %9883 = vmatpush1.msra.mxu0 0.0
        %9884 = vmatprep.subr.mxu0 0.0
        %9885 = vmatpush1.msra.mxu0 0.0
        %9886 = vmatprep.subr.mxu0 0.0
        %9887 = vmatpush1.msra.mxu0 0.0
        %9888 = vmatprep.mubr.f32.mxu0 0.0
        %9889 = vmatmul.mubr.f32.gmra.mrb[0].mxu0 %v9822
        %v9890 = vpop.f32.mrb[0].mxu0
        %v9891 = vadd.f32 0.0, %v9890
        %v9892 = vpop.f32.mrb[0].mxu0
        %v9893 = vadd.f32 0.0, %v9892
        %9894 = vdwg.mxu0
        %9895 = vmatprep.subr.mxu0 %v9764
        %9896 = vmatpush1.msra.mxu0 %v9763
        %9897 = vmatprep.subr.mxu0 %v9768
        %9898 = vmatpush1.msra.mxu0 %v9767
        %9899 = vmatprep.subr.mxu0 %v9772
        %9900 = vmatpush1.msra.mxu0 %v9771
        %9901 = vmatprep.subr.mxu0 %v9776
        %9902 = vmatpush1.msra.mxu0 %v9775
        %9903 = vmatprep.subr.mxu0 %v9780
        %9904 = vmatpush1.msra.mxu0 %v9779
        %9905 = vmatprep.subr.mxu0 %v9784
        %9906 = vmatpush1.msra.mxu0 %v9783
        %9907 = vmatprep.subr.mxu0 %v9788
        %9908 = vmatpush1.msra.mxu0 %v9787
        %9909 = vmatprep.subr.mxu0 %v9792
        %9910 = vmatpush1.msra.mxu0 %v9791
        %9911 = vmatprep.subr.mxu0 %v9796
        %9912 = vmatpush1.msra.mxu0 %v9795
        %9913 = vmatprep.subr.mxu0 %v9800
        %9914 = vmatpush1.msra.mxu0 %v9799
        %9915 = vmatprep.subr.mxu0 %v9804
        %9916 = vmatpush1.msra.mxu0 %v9803
        %9917 = vmatprep.subr.mxu0 %v9808
        %9918 = vmatpush1.msra.mxu0 %v9807
        %9919 = vmatprep.subr.mxu0 %v9812
        %9920 = vmatpush1.msra.mxu0 %v9811
        %9921 = vmatprep.subr.mxu0 %v9816
        %9922 = vmatpush1.msra.mxu0 %v9815
        %9923 = vmatprep.subr.mxu0 %v9820
        %9924 = vmatpush1.msra.mxu0 %v9819
        %9925 = vmatprep.subr.mxu0 0.0
        %9926 = vmatpush1.msra.mxu0 0.0
        %9927 = vmatprep.subr.mxu0 0.0
        %9928 = vmatpush1.msra.mxu0 0.0
        %9929 = vmatprep.subr.mxu0 0.0
        %9930 = vmatpush1.msra.mxu0 0.0
        %9931 = vmatprep.subr.mxu0 0.0
        %9932 = vmatpush1.msra.mxu0 0.0
        %9933 = vmatprep.subr.mxu0 0.0
        %9934 = vmatpush1.msra.mxu0 0.0
        %9935 = vmatprep.subr.mxu0 0.0
        %9936 = vmatpush1.msra.mxu0 0.0
        %9937 = vmatprep.subr.mxu0 0.0
        %9938 = vmatpush1.msra.mxu0 0.0
        %9939 = vmatprep.subr.mxu0 0.0
        %9940 = vmatpush1.msra.mxu0 0.0
        %9941 = vmatprep.subr.mxu0 0.0
        %9942 = vmatpush1.msra.mxu0 0.0
        %9943 = vmatprep.subr.mxu0 0.0
        %9944 = vmatpush1.msra.mxu0 0.0
        %9945 = vmatprep.subr.mxu0 0.0
        %9946 = vmatpush1.msra.mxu0 0.0
        %9947 = vmatprep.subr.mxu0 0.0
        %9948 = vmatpush1.msra.mxu0 0.0
        %9949 = vmatprep.subr.mxu0 0.0
        %9950 = vmatpush1.msra.mxu0 0.0
        %9951 = vmatprep.subr.mxu0 0.0
        %9952 = vmatpush1.msra.mxu0 0.0
        %9953 = vmatprep.subr.mxu0 0.0
        %9954 = vmatpush1.msra.mxu0 0.0
        %9955 = vmatprep.subr.mxu0 0.0
        %9956 = vmatpush1.msra.mxu0 0.0
        %9957 = vmatprep.subr.mxu0 0.0
        %9958 = vmatpush1.msra.mxu0 0.0
        %9959 = vmatprep.mubr.f32.mxu0 0.0
        %9960 = vmatmul.mubr.f32.gmra.mrb[0].mxu0 %v9822
        %v9961 = vpop.f32.mrb[0].mxu0
        %v9962 = vadd.f32 0.0, %v9961
        %v9963 = vpop.f32.mrb[0].mxu0
        %v9964 = vadd.f32 0.0, %v9963
        %9965 = vdwg.mxu0
        %v9970 = vcombine.low %v9891, %v9893
        %v9971 = vcombine.low %v9962, %v9964
        %v9973 = vunpack.c.l.s4 1966171168
        %v9974 = vunpack.c.0.s8 %v9973
        %v9975 = vlaneseq
        %v9976 = vshrl.u32 %v9975, 7
        %v9977 = vsub.s32 %v9974, %v9976
        %v9978 = vrot.slane %v9970, %v9977
        %v9980 = vunpack.c.l.s4 1966171168
        %v9981 = vunpack.c.0.s8 %v9980
        %v9982 = vlaneseq
        %v9983 = vshrl.u32 %v9982, 7
        %v9984 = vsub.s32 %v9981, %v9983
        %v9985 = vrot.slane %v9971, %v9984
        %v9986 = vcombine.low %v9978, %v9985
        %v9988 = vunpack.c.l.s4 1966171168
        %v9989 = vunpack.c.0.s8 %v9988
        %v9990 = vlaneseq
        %v9991 = vshrl.u32 %v9990, 7
        %v9992 = vsub.s32 %v9989, %v9991
        %v9993 = vrot.slane %v9986, %v9992
        %v9995 = vadd.f32 %v9760, %v9993
        %v9996 = vmax.f32 %v9995, 0.0
        %v9997 = vld [vmem:[%s8] sm:$0xff]
        %v9998 = vld [vmem:[%s8 + $0x8] sm:$0xff]
        %v9999 = vld [vmem:[%s8 + $0x10] sm:$0xff]
        %v10000 = vld [vmem:[%s8 + $0x18] sm:$0xff]
        %v10001 = vld [vmem:[%s8 + $0x20] sm:$0xff]
        %v10002 = vld [vmem:[%s8 + $0x28] sm:$0xff]
        %v10003 = vld [vmem:[%s8 + $0x30] sm:$0xff]
        %v10004 = vld [vmem:[%s8 + $0x38] sm:$0xff]
        %v10005 = vld [vmem:[%s8 + $0x40] sm:$0xff]
        %v10006 = vld [vmem:[%s8 + $0x48] sm:$0xff]
        %v10007 = vld [vmem:[%s8 + $0x50] sm:$0xff]
        %v10008 = vld [vmem:[%s8 + $0x58] sm:$0xff]
        %v10009 = vld [vmem:[%s8 + $0x60] sm:$0xff]
        %v10010 = vld [vmem:[%s8 + $0x68] sm:$0xff]
        %v10011 = vld [vmem:[%s8 + $0x70] sm:$0xff]
        %v10012 = vld [vmem:[%s8 + $0x78] sm:$0xff]
        %v10013 = vld [vmem:[%s8 + $0x80] sm:$0xff]
        %v10014 = vld [vmem:[%s8 + $0x88] sm:$0xff]
        %v10015 = vld [vmem:[%s8 + $0x90] sm:$0xff]
        %v10016 = vld [vmem:[%s8 + $0x98] sm:$0xff]
        %v10017 = vld [vmem:[%s8 + $0xa0] sm:$0xff]
        %v10018 = vld [vmem:[%s8 + $0xa8] sm:$0xff]
        %v10019 = vld [vmem:[%s8 + $0xb0] sm:$0xff]
        %v10020 = vld [vmem:[%s8 + $0xb8] sm:$0xff]
        %v10021 = vld [vmem:[%s8 + $0xc0] sm:$0xff]
        %v10022 = vld [vmem:[%s8 + $0xc8] sm:$0xff]
        %v10023 = vld [vmem:[%s8 + $0xd0] sm:$0xff]
        %v10024 = vld [vmem:[%s8 + $0xd8] sm:$0xff]
        %v10025 = vld [vmem:[%s8 + $0xe0] sm:$0xff]
        %v10026 = vld [vmem:[%s8 + $0xe8] sm:$0xff]
        %v10027 = vld [vmem:[%s8 + $0xf0] sm:$0xff]
        %v10028 = vld [vmem:[%s8 + $0xf8] sm:$0xff]
        %v10029 = vld [vmem:[%s8 + $0x100] sm:$0xff]
        %v10030 = vld [vmem:[%s8 + $0x108] sm:$0xff]
        %v10031 = vld [vmem:[%s8 + $0x110] sm:$0xff]
        %v10032 = vld [vmem:[%s8 + $0x118] sm:$0xff]
        %v10033 = vld [vmem:[%s8 + $0x120] sm:$0xff]
        %v10034 = vld [vmem:[%s8 + $0x128] sm:$0xff]
        %v10035 = vld [vmem:[%s8 + $0x130] sm:$0xff]
        %v10036 = vld [vmem:[%s8 + $0x138] sm:$0xff]
        %v10037 = vld [vmem:[%s8 + $0x140] sm:$0xff]
        %v10038 = vld [vmem:[%s8 + $0x148] sm:$0xff]
        %v10039 = vld [vmem:[%s8 + $0x150] sm:$0xff]
        %v10040 = vld [vmem:[%s8 + $0x158] sm:$0xff]
        %v10041 = vld [vmem:[%s8 + $0x160] sm:$0xff]
        %v10042 = vld [vmem:[%s8 + $0x168] sm:$0xff]
        %v10043 = vld [vmem:[%s8 + $0x170] sm:$0xff]
        %v10044 = vld [vmem:[%s8 + $0x178] sm:$0xff]
        %v10045 = vld [vmem:[%s8 + $0x180] sm:$0xff]
        %v10046 = vld [vmem:[%s8 + $0x188] sm:$0xff]
        %v10047 = vld [vmem:[%s8 + $0x190] sm:$0xff]
        %v10048 = vld [vmem:[%s8 + $0x198] sm:$0xff]
        %v10049 = vld [vmem:[%s8 + $0x1a0] sm:$0xff]
        %v10050 = vld [vmem:[%s8 + $0x1a8] sm:$0xff]
        %v10051 = vld [vmem:[%s8 + $0x1b0] sm:$0xff]
        %v10052 = vld [vmem:[%s8 + $0x1b8] sm:$0xff]
        %v10053 = vld [vmem:[%s8 + $0x1c0] sm:$0xff]
        %v10054 = vld [vmem:[%s8 + $0x1c8] sm:$0xff]
        %v10055 = vld [vmem:[%s8 + $0x1d0] sm:$0xff]
        %v10056 = vld [vmem:[%s8 + $0x1d8] sm:$0xff]
        %v10057 = vld [vmem:[%s8 + $0x1e0] sm:$0xff]
        %v10058 = vld [vmem:[%s8 + $0x1e8] sm:$0xff]
        %v10059 = vld [vmem:[%s8 + $0x1f0] sm:$0xff]
        %v10060 = vld [vmem:[%s8 + $0x1f8] sm:$0xff]
        %v10061 = vld [vmem:[%s9] sm:$0x1]
        %v10063 = vlaneseq
        %v10064 = vshrl.u32 %v10063, 7
        %v10065 = vsub.s32 0, %v10064
        %v10066 = vrot.slane %v9996, %v10065
        %v10067 = vlaneseq
        %v10068 = vshrl.u32 %v10067, 7
        %v10069 = vsub.s32 1, %v10068
        %v10070 = vrot.slane %v9996, %v10069
        %v10071 = vlaneseq
        %v10072 = vshrl.u32 %v10071, 7
        %v10073 = vsub.s32 2, %v10072
        %v10074 = vrot.slane %v9996, %v10073
        %v10075 = vlaneseq
        %v10076 = vshrl.u32 %v10075, 7
        %v10077 = vsub.s32 3, %v10076
        %v10078 = vrot.slane %v9996, %v10077
        %10083 = vmatprep.subr.mxu0 0.0
        %10084 = vmatpush1.msra.mxu0 %v9997
        %10085 = vmatprep.subr.mxu0 0.0
        %10086 = vmatpush1.msra.mxu0 %v9998
        %10087 = vmatprep.subr.mxu0 0.0
        %10088 = vmatpush1.msra.mxu0 %v9999
        %10089 = vmatprep.subr.mxu0 0.0
        %10090 = vmatpush1.msra.mxu0 %v10000
        %10091 = vmatprep.subr.mxu0 0.0
        %10092 = vmatpush1.msra.mxu0 %v10001
        %10093 = vmatprep.subr.mxu0 0.0
        %10094 = vmatpush1.msra.mxu0 %v10002
        %10095 = vmatprep.subr.mxu0 0.0
        %10096 = vmatpush1.msra.mxu0 %v10003
        %10097 = vmatprep.subr.mxu0 0.0
        %10098 = vmatpush1.msra.mxu0 %v10004
        %10099 = vmatprep.subr.mxu0 0.0
        %10100 = vmatpush1.msra.mxu0 %v10005
        %10101 = vmatprep.subr.mxu0 0.0
        %10102 = vmatpush1.msra.mxu0 %v10006
        %10103 = vmatprep.subr.mxu0 0.0
        %10104 = vmatpush1.msra.mxu0 %v10007
        %10105 = vmatprep.subr.mxu0 0.0
        %10106 = vmatpush1.msra.mxu0 %v10008
        %10107 = vmatprep.subr.mxu0 0.0
        %10108 = vmatpush1.msra.mxu0 %v10009
        %10109 = vmatprep.subr.mxu0 0.0
        %10110 = vmatpush1.msra.mxu0 %v10010
        %10111 = vmatprep.subr.mxu0 0.0
        %10112 = vmatpush1.msra.mxu0 %v10011
        %10113 = vmatprep.subr.mxu0 0.0
        %10114 = vmatpush1.msra.mxu0 %v10012
        %10115 = vmatprep.subr.mxu0 0.0
        %10116 = vmatpush1.msra.mxu0 %v10013
        %10117 = vmatprep.subr.mxu0 0.0
        %10118 = vmatpush1.msra.mxu0 %v10014
        %10119 = vmatprep.subr.mxu0 0.0
        %10120 = vmatpush1.msra.mxu0 %v10015
        %10121 = vmatprep.subr.mxu0 0.0
        %10122 = vmatpush1.msra.mxu0 %v10016
        %10123 = vmatprep.subr.mxu0 0.0
        %10124 = vmatpush1.msra.mxu0 %v10017
        %10125 = vmatprep.subr.mxu0 0.0
        %10126 = vmatpush1.msra.mxu0 %v10018
        %10127 = vmatprep.subr.mxu0 0.0
        %10128 = vmatpush1.msra.mxu0 %v10019
        %10129 = vmatprep.subr.mxu0 0.0
        %10130 = vmatpush1.msra.mxu0 %v10020
        %10131 = vmatprep.subr.mxu0 0.0
        %10132 = vmatpush1.msra.mxu0 %v10021
        %10133 = vmatprep.subr.mxu0 0.0
        %10134 = vmatpush1.msra.mxu0 %v10022
        %10135 = vmatprep.subr.mxu0 0.0
        %10136 = vmatpush1.msra.mxu0 %v10023
        %10137 = vmatprep.subr.mxu0 0.0
        %10138 = vmatpush1.msra.mxu0 %v10024
        %10139 = vmatprep.subr.mxu0 0.0
        %10140 = vmatpush1.msra.mxu0 %v10025
        %10141 = vmatprep.subr.mxu0 0.0
        %10142 = vmatpush1.msra.mxu0 %v10026
        %10143 = vmatprep.subr.mxu0 0.0
        %10144 = vmatpush1.msra.mxu0 %v10027
        %10145 = vmatprep.subr.mxu0 0.0
        %10146 = vmatpush1.msra.mxu0 %v10028
        %10147 = vmatprep.mubr.f32.mxu0 %v10070
        %10148 = vmatmul.mubr.f32.gmra.mrb[0].mxu0 %v10066
        %v10149 = vpop.f32.mrb[0].mxu0
        %v10150 = vadd.f32 %v10061, %v10149
        %v10151 = vpop.f32.mrb[0].mxu0
        %10152 = vdwg.mxu0
        %10153 = vmatprep.subr.mxu0 0.0
        %10154 = vmatpush1.msra.mxu0 %v10029
        %10155 = vmatprep.subr.mxu0 0.0
        %10156 = vmatpush1.msra.mxu0 %v10030
        %10157 = vmatprep.subr.mxu0 0.0
        %10158 = vmatpush1.msra.mxu0 %v10031
        %10159 = vmatprep.subr.mxu0 0.0
        %10160 = vmatpush1.msra.mxu0 %v10032
        %10161 = vmatprep.subr.mxu0 0.0
        %10162 = vmatpush1.msra.mxu0 %v10033
        %10163 = vmatprep.subr.mxu0 0.0
        %10164 = vmatpush1.msra.mxu0 %v10034
        %10165 = vmatprep.subr.mxu0 0.0
        %10166 = vmatpush1.msra.mxu0 %v10035
        %10167 = vmatprep.subr.mxu0 0.0
        %10168 = vmatpush1.msra.mxu0 %v10036
        %10169 = vmatprep.subr.mxu0 0.0
        %10170 = vmatpush1.msra.mxu0 %v10037
        %10171 = vmatprep.subr.mxu0 0.0
        %10172 = vmatpush1.msra.mxu0 %v10038
        %10173 = vmatprep.subr.mxu0 0.0
        %10174 = vmatpush1.msra.mxu0 %v10039
        %10175 = vmatprep.subr.mxu0 0.0
        %10176 = vmatpush1.msra.mxu0 %v10040
        %10177 = vmatprep.subr.mxu0 0.0
        %10178 = vmatpush1.msra.mxu0 %v10041
        %10179 = vmatprep.subr.mxu0 0.0
        %10180 = vmatpush1.msra.mxu0 %v10042
        %10181 = vmatprep.subr.mxu0 0.0
        %10182 = vmatpush1.msra.mxu0 %v10043
        %10183 = vmatprep.subr.mxu0 0.0
        %10184 = vmatpush1.msra.mxu0 %v10044
        %10185 = vmatprep.subr.mxu0 0.0
        %10186 = vmatpush1.msra.mxu0 %v10045
        %10187 = vmatprep.subr.mxu0 0.0
        %10188 = vmatpush1.msra.mxu0 %v10046
        %10189 = vmatprep.subr.mxu0 0.0
        %10190 = vmatpush1.msra.mxu0 %v10047
        %10191 = vmatprep.subr.mxu0 0.0
        %10192 = vmatpush1.msra.mxu0 %v10048
        %10193 = vmatprep.subr.mxu0 0.0
        %10194 = vmatpush1.msra.mxu0 %v10049
        %10195 = vmatprep.subr.mxu0 0.0
        %10196 = vmatpush1.msra.mxu0 %v10050
        %10197 = vmatprep.subr.mxu0 0.0
        %10198 = vmatpush1.msra.mxu0 %v10051
        %10199 = vmatprep.subr.mxu0 0.0
        %10200 = vmatpush1.msra.mxu0 %v10052
        %10201 = vmatprep.subr.mxu0 0.0
        %10202 = vmatpush1.msra.mxu0 %v10053
        %10203 = vmatprep.subr.mxu0 0.0
        %10204 = vmatpush1.msra.mxu0 %v10054
        %10205 = vmatprep.subr.mxu0 0.0
        %10206 = vmatpush1.msra.mxu0 %v10055
        %10207 = vmatprep.subr.mxu0 0.0
        %10208 = vmatpush1.msra.mxu0 %v10056
        %10209 = vmatprep.subr.mxu0 0.0
        %10210 = vmatpush1.msra.mxu0 %v10057
        %10211 = vmatprep.subr.mxu0 0.0
        %10212 = vmatpush1.msra.mxu0 %v10058
        %10213 = vmatprep.subr.mxu0 0.0
        %10214 = vmatpush1.msra.mxu0 %v10059
        %10215 = vmatprep.subr.mxu0 0.0
        %10216 = vmatpush1.msra.mxu0 %v10060
        %10217 = vmatprep.mubr.f32.mxu0 %v10078
        %10218 = vmatmul.mubr.f32.gmra.mrb[0].mxu0 %v10074
        %v10219 = vpop.f32.mrb[0].mxu0
        %v10220 = vadd.f32 %v10150, %v10219
        %v10221 = vpop.f32.mrb[0].mxu0
        %10222 = vdwg.mxu0
        %vm10223 = vcmask 1040384
        %v10224 = vsel %vm10223, %v10220, -inf
        %10225 = vmax.xlane.f32.xlu0 %v10224
        %v10226 = vpop.xlane.xlu0 %10225
        %v10227 = vsub.f32 %v10220, %v10226
        %v10228 = vmul.f32 %v10227, 1.442695
        %v10229 = vpow.pop %v10228
        %v10230 = vsel %vm10223, %v10229, 0.0
        %10231 = vadd.xlane.f32.xlu0 %v10230
        %v10232 = vpop.xlane.xlu0 %10231
        %v10233 = vlog2.pop %v10232
        %v10234 = vmul.f32 %v10233, 0.6931472
        %v10235 = vadd.f32 %v10234, %v10226
        %v10236 = vsub.f32 %v10220, %v10235
        %10237 = vst [vmem:[%s349] sm:$0x1] %v10236
        %s10238 = sand.u32 %s247, 1
        %s10239 = scalar_lea.sflag [#allocation3], %s10238
        %s10240 = sand.u32 %s247, 1
        %s10241 = scalar_lea.vmem [#allocation2], %s10240
        // Predicated region
        $region61: #{digit_pallas_forward.1} parent=59 // pred_check
          %p10242 = pneg %p257
        $region62: #{digit_pallas_forward.1} parent=59 // pred_check_branch
          %10244 = sbr.rel (%p10242) target = $region64
        $region63: #{digit_pallas_forward.1} parent=59 // pred_region
          %s10246 = ssub.s32 16, 16
          %10247 = vsyncadd %s10239, %s10246
          %s10248 = smul.addr %s24, 16
          %s10249 = scalar_lea.hbm %s10, %s10248
          %s10251 = sshll.u32 %s10241, 4
          %s10252 = int_to_ptr.vmem [resolvable:$true] %s10251
          %10254 = dma.vmem_to_hbm [thread:$0]  %s10252, 16, %s10249, %s10239
        $region64: #{digit_pallas_forward.1} parent=59 // pred_fallthru
          _
      $region60: #{digit_pallas_forward.1} parent=5 // pred_fallthru
        _
      %p10255 = scmp.le.s32.totalorder 2, %s19
      // Predicated region
      $region65: #{digit_pallas_forward.1} parent=5 // pred_check
        %p10256 = pneg %p10255
      $region66: #{digit_pallas_forward.1} parent=5 // pred_check_branch
        %10258 = sbr.rel (%p10256) target = $region68
      $region67: #{digit_pallas_forward.1} parent=5 // pred_region
        %s10259 = ssub.s32 %s19, 2
        // Predicated region
        $region69: #{digit_pallas_forward.1} parent=67 // pred_check
          %p10260 = pneg %p263
        $region70: #{digit_pallas_forward.1} parent=67 // pred_check_branch
          %10262 = sbr.rel (%p10260) target = $region72
        $region71: #{digit_pallas_forward.1} parent=67 // pred_region
          %s10263 = sand.u32 %s248, 1
          %s10264 = scalar_lea.sflag [#allocation3], %s10263
          %s10265 = sand.u32 %s248, 1
          %s10266 = scalar_lea.vmem [#allocation2], %s10265
          %10267 = dma.done %s10264, 16
        $region72: #{digit_pallas_forward.1} parent=67 // pred_fallthru
          _
      $region68: #{digit_pallas_forward.1} parent=5 // pred_fallthru
        _
    $region6: #{digit_pallas_forward.1} parent=1 // loop_footer
      %s23 = sadd.s32 1, %s19
    $region7: #{digit_pallas_forward.1} parent=1 // loop_footer_branch
      %18 = sbr.rel target = $region3
    $region8: #{digit_pallas_forward.1} parent=1 // loop_exit
      _
    %10268 = vsyncpa [#allocation3], 1
    %s10269 = scalar_lea.sflag [#allocation3], 1
    %10270 = vsyncpa %s10269, 1

</llo_original>
